<compile_context>
chip_gen: v7x
topology: tpu7x:2x2x1
jax: 0.10.0
libtpu: 0.0.40
codegen_flags: <defaults>
</compile_context>

<pallas_src>
import numpy as np

import jax
import jax.numpy as jnp
from jax.experimental import pallas as pl
from jax.experimental.pallas import tpu as pltpu


# ---------------------------------------------------------------------------
# In-kernel per-stage computation (values stay in VMEM)
# ---------------------------------------------------------------------------
def _stage(h_in, sel_ref, wb_ref, b_ref):
    """3x3 stride-2 pad-1 conv + bias + ReLU on an (H, W*Cin) activation value.

    h_in   : (H, W*Cin)            bf16 activation (lane-dense, c fastest).
    sel_ref: (3, Ho, H)            bf16 0/1 row-tap selectors (row 2*ho+i-1;
                                   all-zero rows == implicit H zero padding).
    wb_ref : (3, W*Cin, Wo*Cout)   bf16 band matrices (column taps + channel
                                   mixing + implicit W zero padding).
    b_ref  : (1, Wo*Cout)          f32 bias row.
    returns: (Ho, Wo*Cout)         f32.
    """
    y = None
    for i in range(3):
        # Row-tap gather via MXU matmul (exact: each output row copies one
        # input row or is zero).  Cast back to bf16 is exact for the same
        # reason.
        rows = jnp.dot(sel_ref[i], h_in, preferred_element_type=jnp.float32)
        rows = rows.astype(jnp.bfloat16)
        part = jnp.dot(rows, wb_ref[i], preferred_element_type=jnp.float32)
        y = part if y is None else y + part
    # f32 epilogue (bias + ReLU): native VALU path on v5e as well.
    return jnp.maximum(y + b_ref[...], 0.0)


def _backbone_kernel(x_ref,
                     sel1_ref, wb1_ref, b1_ref,
                     sel2_ref, wb2_ref, b2_ref,
                     sel3_ref, wb3_ref, b3_ref,
                     o1_ref, o2_ref, o3_ref):
    # One grid step == one image; all intermediates live in VMEM.
    h0 = x_ref[0]                                       # (H, W*C0) bf16
    y1 = _stage(h0, sel1_ref, wb1_ref, b1_ref)          # (H/2, (W/2)*C1) f32
    o1_ref[0] = y1
    y2 = _stage(y1.astype(jnp.bfloat16), sel2_ref, wb2_ref, b2_ref)
    o2_ref[0] = y2
    y3 = _stage(y2.astype(jnp.bfloat16), sel3_ref, wb3_ref, b3_ref)
    o3_ref[0] = y3


# ---------------------------------------------------------------------------
# Host-side constant builders (tiny; traced into the same jit)
# ---------------------------------------------------------------------------
def _build_row_select(h_in, h_out):
    """(3, h_out, h_in) 0/1 matrices: S[i, ho, h] = 1 iff h == 2*ho + i - 1."""
    s = np.zeros((3, h_out, h_in), np.float32)
    ho = np.arange(h_out)
    for i in range(3):
        src = 2 * ho + i - 1
        valid = (src >= 0) & (src < h_in)
        s[i, ho[valid], src[valid]] = 1.0
    return jnp.asarray(s, dtype=jnp.bfloat16)


def _build_band_weights(w_oihw, w_in, w_out):
    """(3, w_in*cin, w_out*cout) band matrices for the 3 row taps.

    B_i[(w, ci), (wo, co)] = sum_j [w == 2*wo + j - 1] * wt[i, j, ci, co]
    (out-of-range w omitted -> implicit zero padding along W).
    """
    cout, cin, kh, kw = w_oihw.shape
    wt = jnp.transpose(w_oihw, (2, 3, 1, 0))            # (kh, kw, cin, cout)
    wos = np.arange(w_out)
    bands = []
    for i in range(kh):
        band = jnp.zeros((w_in, cin, w_out, cout), jnp.float32)
        for j in range(kw):
            src = 2 * wos + j - 1
            valid = (src >= 0) & (src < w_in)
            upd = jnp.broadcast_to(wt[i, j], (int(valid.sum()), cin, cout))
            band = band.at[src[valid], :, wos[valid], :].add(upd)
        bands.append(band.reshape(w_in * cin, w_out * cout))
    return jnp.stack(bands, axis=0).astype(jnp.bfloat16)


# ---------------------------------------------------------------------------
# Backbone (parameters + forward)
# ---------------------------------------------------------------------------
def init_backbone_params(key, in_ch=3, widths=(8, 16, 32)):
    """Deterministic Kaiming-uniform-style init (matches torch Conv2d default)."""
    params = []
    cin = in_ch
    for idx, cout in enumerate(widths):
        kw, kb = jax.random.split(jax.random.fold_in(key, idx))
        fan_in = cin * 3 * 3
        bound = 1.0 / (fan_in ** 0.5)
        w = jax.random.uniform(kw, (cout, cin, 3, 3), jnp.float32, -bound, bound)
        b = jax.random.uniform(kb, (cout,), jnp.float32, -bound, bound)
        params.append((w, b))
        cin = cout
    return params


@jax.jit
def backbone_forward(params, x_nchw):
    """Equivalent of Backbone.forward: returns List[Tensor] of NCHW features."""
    assert len(params) == 3, "fused kernel is specialized to 3 stages"
    N, C0, H, W = x_nchw.shape
    assert H % 8 == 0 and W % 8 == 0, "spatial dims must be divisible by 8"

    # NCHW -> lane-dense (N, H, W*C0) bf16, done once in XLA (tiny input).
    x = jnp.transpose(x_nchw, (0, 2, 3, 1)).reshape(N, H, W * C0)
    x = x.astype(jnp.bfloat16)

    # Per-stage constants (selection, band weights, bias rows) + geometry.
    sels, wbs, brows, dims = [], [], [], []
    h_in, w_in, c_in = H, W, C0
    for (w, b) in params:
        cout = w.shape[0]
        h_out, w_out = h_in // 2, w_in // 2
        sels.append(_build_row_select(h_in, h_out))
        wbs.append(_build_band_weights(w, w_in, w_out))
        brows.append(jnp.tile(b.astype(jnp.float32), w_out).reshape(1, w_out * cout))
        dims.append((h_out, w_out, cout))
        h_in, w_in, c_in = h_out, w_out, cout

    # Operand list + specs: x is batch-tiled, everything else grid-invariant.
    operands = [x]
    in_specs = [pl.BlockSpec((1, H, W * C0), lambda n: (n, 0, 0))]
    for s in range(3):
        operands += [sels[s], wbs[s], brows[s]]
        in_specs += [
            pl.BlockSpec(sels[s].shape, lambda n: (0, 0, 0)),
            pl.BlockSpec(wbs[s].shape, lambda n: (0, 0, 0)),
            pl.BlockSpec(brows[s].shape, lambda n: (0, 0)),
        ]

    out_shape = tuple(jax.ShapeDtypeStruct((N, ho, wo * co), jnp.float32)
                      for (ho, wo, co) in dims)
    out_specs = tuple(pl.BlockSpec((1, ho, wo * co), lambda n: (n, 0, 0))
                      for (ho, wo, co) in dims)

    # Useful (unpadded) cost, per the perf review.
    flops = 0
    bytes_accessed = x.size * 2
    cin = C0
    for (w, b), (ho, wo, co) in zip(params, dims):
        flops += 2 * N * ho * wo * 9 * cin * co
        bytes_accessed += N * ho * wo * co * 4 + w.size * 2 + b.size * 4
        cin = co

    outs = pl.pallas_call(
        _backbone_kernel,
        out_shape=out_shape,
        grid=(N,),
        in_specs=in_specs,
        out_specs=out_specs,
        compiler_params=pltpu.CompilerParams(
            dimension_semantics=("parallel",)),          # megacore over batch
        cost_estimate=pl.CostEstimate(flops=flops, transcendentals=0,
                                      bytes_accessed=bytes_accessed),
    )(*operands)

    # Unflatten compact (N, Ho, Wo*Cout) slabs to NCHW like torch.
    feats = []
    for o, (ho, wo, co) in zip(outs, dims):
        feats.append(jnp.transpose(o.reshape(N, ho, wo, co), (0, 3, 1, 2)))
    return feats


def backbone_reference(params, x_nchw):
    """Pure-JAX reference (lax.conv) mirroring the kernel's bf16 operand cast."""
    x = x_nchw
    feats = []
    for (w, b) in params:
        xb = x.astype(jnp.bfloat16).astype(jnp.float32)
        wb = w.astype(jnp.bfloat16).astype(jnp.float32)
        y = jax.lax.conv_general_dilated(
            xb, wb, window_strides=(2, 2), padding=((1, 1), (1, 1)),
            dimension_numbers=("NCHW", "OIHW", "NCHW"),
            precision=jax.lax.Precision.HIGHEST)
        x = jnp.maximum(y + b[None, :, None, None], 0.0)
        feats.append(x)
    return feats


# ---------------------------------------------------------------------------
if __name__ == "__main__":
    key = jax.random.PRNGKey(0)
    pkey, xkey = jax.random.split(key)

    params = init_backbone_params(pkey)

    # Emulate Backbone.__init__: probe output channels with a dummy forward
    # at (1, 3, 128, 128).
    dummy = jax.random.uniform(jax.random.PRNGKey(1), (1, 3, 128, 128), jnp.float32)
    channels = [int(f.shape[1]) for f in backbone_forward(params, dummy)]
    assert channels == [8, 16, 32], channels

    # Small real input consistent with the module (NCHW, 3 input channels).
    x = jax.random.uniform(xkey, (2, 3, 32, 32), jnp.float32)

    feats = backbone_forward(params, x)
    feats = jax.block_until_ready(feats)

    # Sanity check against the pure-JAX convolution reference.
    refs = backbone_reference(params, x)
    for f, r in zip(feats, refs):
        assert f.shape == r.shape, (f.shape, r.shape)
        assert jnp.allclose(f, r, rtol=2e-2, atol=2e-3), float(jnp.max(jnp.abs(f - r)))

    print("KERNEL_OK")
</pallas_src>

<mosaic_0001>
module attributes {stable_mosaic.version = 11 : i64} {
  func.func @_backbone_kernel(%arg0: i32, %arg1: memref<1x128x384xbf16, #tpu.memory_space<vmem>>, %arg2: memref<3x64x128xbf16, #tpu.memory_space<vmem>>, %arg3: memref<3x384x512xbf16, #tpu.memory_space<vmem>>, %arg4: memref<1x512xf32, #tpu.memory_space<vmem>>, %arg5: memref<3x32x64xbf16, #tpu.memory_space<vmem>>, %arg6: memref<3x512x512xbf16, #tpu.memory_space<vmem>>, %arg7: memref<1x512xf32, #tpu.memory_space<vmem>>, %arg8: memref<3x16x32xbf16, #tpu.memory_space<vmem>>, %arg9: memref<3x512x512xbf16, #tpu.memory_space<vmem>>, %arg10: memref<1x512xf32, #tpu.memory_space<vmem>>, %arg11: memref<1x64x512xf32, #tpu.memory_space<vmem>>, %arg12: memref<1x32x512xf32, #tpu.memory_space<vmem>>, %arg13: memref<1x16x512xf32, #tpu.memory_space<vmem>>) attributes {dimension_semantics = [#tpu.dimension_semantics<parallel>], iteration_bounds = array<i64: 1>, scalar_prefetch = 0 : i64, scratch_operands = 0 : i64, tpu.core_type = #tpu.core_type<tc>, window_params = [{transform_indices = @transform_0, window_bounds = array<i64: 1, 128, 384>}, {pipeline_mode = #tpu.pipeline_mode<synchronous>, transform_indices = @transform_1, window_bounds = array<i64: 3, 64, 128>}, {pipeline_mode = #tpu.pipeline_mode<synchronous>, transform_indices = @transform_2, window_bounds = array<i64: 3, 384, 512>}, {pipeline_mode = #tpu.pipeline_mode<synchronous>, transform_indices = @transform_3, window_bounds = array<i64: 1, 512>}, {pipeline_mode = #tpu.pipeline_mode<synchronous>, transform_indices = @transform_4, window_bounds = array<i64: 3, 32, 64>}, {pipeline_mode = #tpu.pipeline_mode<synchronous>, transform_indices = @transform_5, window_bounds = array<i64: 3, 512, 512>}, {pipeline_mode = #tpu.pipeline_mode<synchronous>, transform_indices = @transform_6, window_bounds = array<i64: 1, 512>}, {pipeline_mode = #tpu.pipeline_mode<synchronous>, transform_indices = @transform_7, window_bounds = array<i64: 3, 16, 32>}, {pipeline_mode = #tpu.pipeline_mode<synchronous>, transform_indices = @transform_8, window_bounds = array<i64: 3, 512, 512>}, {pipeline_mode = #tpu.pipeline_mode<synchronous>, transform_indices = @transform_9, window_bounds = array<i64: 1, 512>}, {transform_indices = @transform_10, window_bounds = array<i64: 1, 64, 512>}, {transform_indices = @transform_11, window_bounds = array<i64: 1, 32, 512>}, {transform_indices = @transform_12, window_bounds = array<i64: 1, 16, 512>}]} {
    %c0 = arith.constant 0 : index
    %c0_0 = arith.constant 0 : index
    %c0_1 = arith.constant 0 : index
    %0 = vector.load %arg1[%c0, %c0_0, %c0_1] : memref<1x128x384xbf16, #tpu.memory_space<vmem>>, vector<1x128x384xbf16>
    %1 = vector.shape_cast %0 : vector<1x128x384xbf16> to vector<128x384xbf16>
    %c0_2 = arith.constant 0 : index
    %c0_3 = arith.constant 0 : index
    %c0_4 = arith.constant 0 : index
    %2 = vector.load %arg2[%c0_2, %c0_3, %c0_4] : memref<3x64x128xbf16, #tpu.memory_space<vmem>>, vector<1x64x128xbf16>
    %3 = vector.shape_cast %2 : vector<1x64x128xbf16> to vector<64x128xbf16>
    %cst = arith.constant dense<0.000000e+00> : vector<64x384xf32>
    %4 = tpu.matmul %3, %1, %cst {dimension_numbers = #tpu.dot_dimension_numbers<[1], [0], [0], [1], [0, 0, 1, 1], [], []>} : vector<64x128xbf16>, vector<128x384xbf16>, vector<64x384xf32> -> vector<64x384xf32>
    %5 = arith.truncf %4 : vector<64x384xf32> to vector<64x384xbf16>
    %c0_5 = arith.constant 0 : index
    %c0_6 = arith.constant 0 : index
    %c0_7 = arith.constant 0 : index
    %6 = vector.load %arg3[%c0_5, %c0_6, %c0_7] : memref<3x384x512xbf16, #tpu.memory_space<vmem>>, vector<1x384x512xbf16>
    %7 = vector.shape_cast %6 : vector<1x384x512xbf16> to vector<384x512xbf16>
    %cst_8 = arith.constant dense<0.000000e+00> : vector<64x512xf32>
    %8 = tpu.matmul %5, %7, %cst_8 {dimension_numbers = #tpu.dot_dimension_numbers<[1], [0], [0], [1], [0, 0, 1, 1], [], []>} : vector<64x384xbf16>, vector<384x512xbf16>, vector<64x512xf32> -> vector<64x512xf32>
    %c1 = arith.constant 1 : index
    %c0_9 = arith.constant 0 : index
    %c0_10 = arith.constant 0 : index
    %9 = vector.load %arg2[%c1, %c0_9, %c0_10] : memref<3x64x128xbf16, #tpu.memory_space<vmem>>, vector<1x64x128xbf16>
    %10 = vector.shape_cast %9 : vector<1x64x128xbf16> to vector<64x128xbf16>
    %cst_11 = arith.constant dense<0.000000e+00> : vector<64x384xf32>
    %11 = tpu.matmul %10, %1, %cst_11 {dimension_numbers = #tpu.dot_dimension_numbers<[1], [0], [0], [1], [0, 0, 1, 1], [], []>} : vector<64x128xbf16>, vector<128x384xbf16>, vector<64x384xf32> -> vector<64x384xf32>
    %12 = arith.truncf %11 : vector<64x384xf32> to vector<64x384xbf16>
    %c1_12 = arith.constant 1 : index
    %c0_13 = arith.constant 0 : index
    %c0_14 = arith.constant 0 : index
    %13 = vector.load %arg3[%c1_12, %c0_13, %c0_14] : memref<3x384x512xbf16, #tpu.memory_space<vmem>>, vector<1x384x512xbf16>
    %14 = vector.shape_cast %13 : vector<1x384x512xbf16> to vector<384x512xbf16>
    %cst_15 = arith.constant dense<0.000000e+00> : vector<64x512xf32>
    %15 = tpu.matmul %12, %14, %cst_15 {dimension_numbers = #tpu.dot_dimension_numbers<[1], [0], [0], [1], [0, 0, 1, 1], [], []>} : vector<64x384xbf16>, vector<384x512xbf16>, vector<64x512xf32> -> vector<64x512xf32>
    %16 = arith.addf %8, %15 : vector<64x512xf32>
    %c2 = arith.constant 2 : index
    %c0_16 = arith.constant 0 : index
    %c0_17 = arith.constant 0 : index
    %17 = vector.load %arg2[%c2, %c0_16, %c0_17] : memref<3x64x128xbf16, #tpu.memory_space<vmem>>, vector<1x64x128xbf16>
    %18 = vector.shape_cast %17 : vector<1x64x128xbf16> to vector<64x128xbf16>
    %cst_18 = arith.constant dense<0.000000e+00> : vector<64x384xf32>
    %19 = tpu.matmul %18, %1, %cst_18 {dimension_numbers = #tpu.dot_dimension_numbers<[1], [0], [0], [1], [0, 0, 1, 1], [], []>} : vector<64x128xbf16>, vector<128x384xbf16>, vector<64x384xf32> -> vector<64x384xf32>
    %20 = arith.truncf %19 : vector<64x384xf32> to vector<64x384xbf16>
    %c2_19 = arith.constant 2 : index
    %c0_20 = arith.constant 0 : index
    %c0_21 = arith.constant 0 : index
    %21 = vector.load %arg3[%c2_19, %c0_20, %c0_21] : memref<3x384x512xbf16, #tpu.memory_space<vmem>>, vector<1x384x512xbf16>
    %22 = vector.shape_cast %21 : vector<1x384x512xbf16> to vector<384x512xbf16>
    %cst_22 = arith.constant dense<0.000000e+00> : vector<64x512xf32>
    %23 = tpu.matmul %20, %22, %cst_22 {dimension_numbers = #tpu.dot_dimension_numbers<[1], [0], [0], [1], [0, 0, 1, 1], [], []>} : vector<64x384xbf16>, vector<384x512xbf16>, vector<64x512xf32> -> vector<64x512xf32>
    %24 = arith.addf %16, %23 : vector<64x512xf32>
    %c0_23 = arith.constant 0 : index
    %c0_24 = arith.constant 0 : index
    %25 = vector.load %arg4[%c0_23, %c0_24] : memref<1x512xf32, #tpu.memory_space<vmem>>, vector<1x512xf32>
    %26 = vector.broadcast %25 : vector<1x512xf32> to vector<64x512xf32>
    %27 = arith.addf %24, %26 : vector<64x512xf32>
    %cst_25 = arith.constant 0.000000e+00 : f32
    %28 = vector.broadcast %cst_25 : f32 to vector<64x512xf32>
    %29 = arith.maximumf %27, %28 : vector<64x512xf32>
    %c0_26 = arith.constant 0 : index
    %c0_27 = arith.constant 0 : index
    %c0_28 = arith.constant 0 : index
    %30 = vector.load %arg11[%c0_26, %c0_27, %c0_28] : memref<1x64x512xf32, #tpu.memory_space<vmem>>, vector<1x64x512xf32>
    %31 = vector.shape_cast %30 : vector<1x64x512xf32> to vector<64x512xf32>
    %32 = vector.shape_cast %29 : vector<64x512xf32> to vector<1x64x512xf32>
    tpu.vector_store %arg11[%c0_26, %c0_27, %c0_28], %32 {strides = array<i32>} : memref<1x64x512xf32, #tpu.memory_space<vmem>>, vector<1x64x512xf32>,
    %33 = arith.truncf %29 : vector<64x512xf32> to vector<64x512xbf16>
    %c0_29 = arith.constant 0 : index
    %c0_30 = arith.constant 0 : index
    %c0_31 = arith.constant 0 : index
    %34 = vector.load %arg5[%c0_29, %c0_30, %c0_31] : memref<3x32x64xbf16, #tpu.memory_space<vmem>>, vector<1x32x64xbf16>
    %35 = vector.shape_cast %34 : vector<1x32x64xbf16> to vector<32x64xbf16>
    %cst_32 = arith.constant dense<0.000000e+00> : vector<32x512xf32>
    %36 = tpu.matmul %35, %33, %cst_32 {dimension_numbers = #tpu.dot_dimension_numbers<[1], [0], [0], [1], [0, 0, 1, 1], [], []>} : vector<32x64xbf16>, vector<64x512xbf16>, vector<32x512xf32> -> vector<32x512xf32>
    %37 = arith.truncf %36 : vector<32x512xf32> to vector<32x512xbf16>
    %c0_33 = arith.constant 0 : index
    %c0_34 = arith.constant 0 : index
    %c0_35 = arith.constant 0 : index
    %38 = vector.load %arg6[%c0_33, %c0_34, %c0_35] : memref<3x512x512xbf16, #tpu.memory_space<vmem>>, vector<1x512x512xbf16>
    %39 = vector.shape_cast %38 : vector<1x512x512xbf16> to vector<512x512xbf16>
    %cst_36 = arith.constant dense<0.000000e+00> : vector<32x512xf32>
    %40 = tpu.matmul %37, %39, %cst_36 {dimension_numbers = #tpu.dot_dimension_numbers<[1], [0], [0], [1], [0, 0, 1, 1], [], []>} : vector<32x512xbf16>, vector<512x512xbf16>, vector<32x512xf32> -> vector<32x512xf32>
    %c1_37 = arith.constant 1 : index
    %c0_38 = arith.constant 0 : index
    %c0_39 = arith.constant 0 : index
    %41 = vector.load %arg5[%c1_37, %c0_38, %c0_39] : memref<3x32x64xbf16, #tpu.memory_space<vmem>>, vector<1x32x64xbf16>
    %42 = vector.shape_cast %41 : vector<1x32x64xbf16> to vector<32x64xbf16>
    %cst_40 = arith.constant dense<0.000000e+00> : vector<32x512xf32>
    %43 = tpu.matmul %42, %33, %cst_40 {dimension_numbers = #tpu.dot_dimension_numbers<[1], [0], [0], [1], [0, 0, 1, 1], [], []>} : vector<32x64xbf16>, vector<64x512xbf16>, vector<32x512xf32> -> vector<32x512xf32>
    %44 = arith.truncf %43 : vector<32x512xf32> to vector<32x512xbf16>
    %c1_41 = arith.constant 1 : index
    %c0_42 = arith.constant 0 : index
    %c0_43 = arith.constant 0 : index
    %45 = vector.load %arg6[%c1_41, %c0_42, %c0_43] : memref<3x512x512xbf16, #tpu.memory_space<vmem>>, vector<1x512x512xbf16>
    %46 = vector.shape_cast %45 : vector<1x512x512xbf16> to vector<512x512xbf16>
    %cst_44 = arith.constant dense<0.000000e+00> : vector<32x512xf32>
    %47 = tpu.matmul %44, %46, %cst_44 {dimension_numbers = #tpu.dot_dimension_numbers<[1], [0], [0], [1], [0, 0, 1, 1], [], []>} : vector<32x512xbf16>, vector<512x512xbf16>, vector<32x512xf32> -> vector<32x512xf32>
    %48 = arith.addf %40, %47 : vector<32x512xf32>
    %c2_45 = arith.constant 2 : index
    %c0_46 = arith.constant 0 : index
    %c0_47 = arith.constant 0 : index
    %49 = vector.load %arg5[%c2_45, %c0_46, %c0_47] : memref<3x32x64xbf16, #tpu.memory_space<vmem>>, vector<1x32x64xbf16>
    %50 = vector.shape_cast %49 : vector<1x32x64xbf16> to vector<32x64xbf16>
    %cst_48 = arith.constant dense<0.000000e+00> : vector<32x512xf32>
    %51 = tpu.matmul %50, %33, %cst_48 {dimension_numbers = #tpu.dot_dimension_numbers<[1], [0], [0], [1], [0, 0, 1, 1], [], []>} : vector<32x64xbf16>, vector<64x512xbf16>, vector<32x512xf32> -> vector<32x512xf32>
    %52 = arith.truncf %51 : vector<32x512xf32> to vector<32x512xbf16>
    %c2_49 = arith.constant 2 : index
    %c0_50 = arith.constant 0 : index
    %c0_51 = arith.constant 0 : index
    %53 = vector.load %arg6[%c2_49, %c0_50, %c0_51] : memref<3x512x512xbf16, #tpu.memory_space<vmem>>, vector<1x512x512xbf16>
    %54 = vector.shape_cast %53 : vector<1x512x512xbf16> to vector<512x512xbf16>
    %cst_52 = arith.constant dense<0.000000e+00> : vector<32x512xf32>
    %55 = tpu.matmul %52, %54, %cst_52 {dimension_numbers = #tpu.dot_dimension_numbers<[1], [0], [0], [1], [0, 0, 1, 1], [], []>} : vector<32x512xbf16>, vector<512x512xbf16>, vector<32x512xf32> -> vector<32x512xf32>
    %56 = arith.addf %48, %55 : vector<32x512xf32>
    %c0_53 = arith.constant 0 : index
    %c0_54 = arith.constant 0 : index
    %57 = vector.load %arg7[%c0_53, %c0_54] : memref<1x512xf32, #tpu.memory_space<vmem>>, vector<1x512xf32>
    %58 = vector.broadcast %57 : vector<1x512xf32> to vector<32x512xf32>
    %59 = arith.addf %56, %58 : vector<32x512xf32>
    %cst_55 = arith.constant 0.000000e+00 : f32
    %60 = vector.broadcast %cst_55 : f32 to vector<32x512xf32>
    %61 = arith.maximumf %59, %60 : vector<32x512xf32>
    %c0_56 = arith.constant 0 : index
    %c0_57 = arith.constant 0 : index
    %c0_58 = arith.constant 0 : index
    %62 = vector.load %arg12[%c0_56, %c0_57, %c0_58] : memref<1x32x512xf32, #tpu.memory_space<vmem>>, vector<1x32x512xf32>
    %63 = vector.shape_cast %62 : vector<1x32x512xf32> to vector<32x512xf32>
    %64 = vector.shape_cast %61 : vector<32x512xf32> to vector<1x32x512xf32>
    tpu.vector_store %arg12[%c0_56, %c0_57, %c0_58], %64 {strides = array<i32>} : memref<1x32x512xf32, #tpu.memory_space<vmem>>, vector<1x32x512xf32>,
    %65 = arith.truncf %61 : vector<32x512xf32> to vector<32x512xbf16>
    %c0_59 = arith.constant 0 : index
    %c0_60 = arith.constant 0 : index
    %c0_61 = arith.constant 0 : index
    %66 = vector.load %arg8[%c0_59, %c0_60, %c0_61] : memref<3x16x32xbf16, #tpu.memory_space<vmem>>, vector<1x16x32xbf16>
    %67 = vector.shape_cast %66 : vector<1x16x32xbf16> to vector<16x32xbf16>
    %cst_62 = arith.constant dense<0.000000e+00> : vector<16x512xf32>
    %68 = tpu.matmul %67, %65, %cst_62 {dimension_numbers = #tpu.dot_dimension_numbers<[1], [0], [0], [1], [0, 0, 1, 1], [], []>} : vector<16x32xbf16>, vector<32x512xbf16>, vector<16x512xf32> -> vector<16x512xf32>
    %69 = arith.truncf %68 : vector<16x512xf32> to vector<16x512xbf16>
    %c0_63 = arith.constant 0 : index
    %c0_64 = arith.constant 0 : index
    %c0_65 = arith.constant 0 : index
    %70 = vector.load %arg9[%c0_63, %c0_64, %c0_65] : memref<3x512x512xbf16, #tpu.memory_space<vmem>>, vector<1x512x512xbf16>
    %71 = vector.shape_cast %70 : vector<1x512x512xbf16> to vector<512x512xbf16>
    %cst_66 = arith.constant dense<0.000000e+00> : vector<16x512xf32>
    %72 = tpu.matmul %69, %71, %cst_66 {dimension_numbers = #tpu.dot_dimension_numbers<[1], [0], [0], [1], [0, 0, 1, 1], [], []>} : vector<16x512xbf16>, vector<512x512xbf16>, vector<16x512xf32> -> vector<16x512xf32>
    %c1_67 = arith.constant 1 : index
    %c0_68 = arith.constant 0 : index
    %c0_69 = arith.constant 0 : index
    %73 = vector.load %arg8[%c1_67, %c0_68, %c0_69] : memref<3x16x32xbf16, #tpu.memory_space<vmem>>, vector<1x16x32xbf16>
    %74 = vector.shape_cast %73 : vector<1x16x32xbf16> to vector<16x32xbf16>
    %cst_70 = arith.constant dense<0.000000e+00> : vector<16x512xf32>
    %75 = tpu.matmul %74, %65, %cst_70 {dimension_numbers = #tpu.dot_dimension_numbers<[1], [0], [0], [1], [0, 0, 1, 1], [], []>} : vector<16x32xbf16>, vector<32x512xbf16>, vector<16x512xf32> -> vector<16x512xf32>
    %76 = arith.truncf %75 : vector<16x512xf32> to vector<16x512xbf16>
    %c1_71 = arith.constant 1 : index
    %c0_72 = arith.constant 0 : index
    %c0_73 = arith.constant 0 : index
    %77 = vector.load %arg9[%c1_71, %c0_72, %c0_73] : memref<3x512x512xbf16, #tpu.memory_space<vmem>>, vector<1x512x512xbf16>
    %78 = vector.shape_cast %77 : vector<1x512x512xbf16> to vector<512x512xbf16>
    %cst_74 = arith.constant dense<0.000000e+00> : vector<16x512xf32>
    %79 = tpu.matmul %76, %78, %cst_74 {dimension_numbers = #tpu.dot_dimension_numbers<[1], [0], [0], [1], [0, 0, 1, 1], [], []>} : vector<16x512xbf16>, vector<512x512xbf16>, vector<16x512xf32> -> vector<16x512xf32>
    %80 = arith.addf %72, %79 : vector<16x512xf32>
    %c2_75 = arith.constant 2 : index
    %c0_76 = arith.constant 0 : index
    %c0_77 = arith.constant 0 : index
    %81 = vector.load %arg8[%c2_75, %c0_76, %c0_77] : memref<3x16x32xbf16, #tpu.memory_space<vmem>>, vector<1x16x32xbf16>
    %82 = vector.shape_cast %81 : vector<1x16x32xbf16> to vector<16x32xbf16>
    %cst_78 = arith.constant dense<0.000000e+00> : vector<16x512xf32>
    %83 = tpu.matmul %82, %65, %cst_78 {dimension_numbers = #tpu.dot_dimension_numbers<[1], [0], [0], [1], [0, 0, 1, 1], [], []>} : vector<16x32xbf16>, vector<32x512xbf16>, vector<16x512xf32> -> vector<16x512xf32>
    %84 = arith.truncf %83 : vector<16x512xf32> to vector<16x512xbf16>
    %c2_79 = arith.constant 2 : index
    %c0_80 = arith.constant 0 : index
    %c0_81 = arith.constant 0 : index
    %85 = vector.load %arg9[%c2_79, %c0_80, %c0_81] : memref<3x512x512xbf16, #tpu.memory_space<vmem>>, vector<1x512x512xbf16>
    %86 = vector.shape_cast %85 : vector<1x512x512xbf16> to vector<512x512xbf16>
    %cst_82 = arith.constant dense<0.000000e+00> : vector<16x512xf32>
    %87 = tpu.matmul %84, %86, %cst_82 {dimension_numbers = #tpu.dot_dimension_numbers<[1], [0], [0], [1], [0, 0, 1, 1], [], []>} : vector<16x512xbf16>, vector<512x512xbf16>, vector<16x512xf32> -> vector<16x512xf32>
    %88 = arith.addf %80, %87 : vector<16x512xf32>
    %c0_83 = arith.constant 0 : index
    %c0_84 = arith.constant 0 : index
    %89 = vector.load %arg10[%c0_83, %c0_84] : memref<1x512xf32, #tpu.memory_space<vmem>>, vector<1x512xf32>
    %90 = vector.broadcast %89 : vector<1x512xf32> to vector<16x512xf32>
    %91 = arith.addf %88, %90 : vector<16x512xf32>
    %cst_85 = arith.constant 0.000000e+00 : f32
    %92 = vector.broadcast %cst_85 : f32 to vector<16x512xf32>
    %93 = arith.maximumf %91, %92 : vector<16x512xf32>
    %c0_86 = arith.constant 0 : index
    %c0_87 = arith.constant 0 : index
    %c0_88 = arith.constant 0 : index
    %94 = vector.load %arg13[%c0_86, %c0_87, %c0_88] : memref<1x16x512xf32, #tpu.memory_space<vmem>>, vector<1x16x512xf32>
    %95 = vector.shape_cast %94 : vector<1x16x512xf32> to vector<16x512xf32>
    %96 = vector.shape_cast %93 : vector<16x512xf32> to vector<1x16x512xf32>
    tpu.vector_store %arg13[%c0_86, %c0_87, %c0_88], %96 {strides = array<i32>} : memref<1x16x512xf32, #tpu.memory_space<vmem>>, vector<1x16x512xf32>,
    return
  }
  func.func @transform_0(%arg0: i32) -> (i32, i32, i32) {
    %c0_i32 = arith.constant 0 : i32
    %c0_i32_0 = arith.constant 0 : i32
    %c0_i32_1 = arith.constant 0 : i32
    return %arg0, %c0_i32, %c0_i32_0 : i32, i32, i32
  }
  func.func @transform_1(%arg0: i32) -> (i32, i32, i32) {
    %c0_i32 = arith.constant 0 : i32
    %c0_i32_0 = arith.constant 0 : i32
    %c0_i32_1 = arith.constant 0 : i32
    %c0_i32_2 = arith.constant 0 : i32
    return %c0_i32, %c0_i32_0, %c0_i32_1 : i32, i32, i32
  }
  func.func @transform_2(%arg0: i32) -> (i32, i32, i32) {
    %c0_i32 = arith.constant 0 : i32
    %c0_i32_0 = arith.constant 0 : i32
    %c0_i32_1 = arith.constant 0 : i32
    %c0_i32_2 = arith.constant 0 : i32
    return %c0_i32, %c0_i32_0, %c0_i32_1 : i32, i32, i32
  }
  func.func @transform_3(%arg0: i32) -> (i32, i32) {
    %c0_i32 = arith.constant 0 : i32
    %c0_i32_0 = arith.constant 0 : i32
    %c0_i32_1 = arith.constant 0 : i32
    return %c0_i32, %c0_i32_0 : i32, i32
  }
  func.func @transform_4(%arg0: i32) -> (i32, i32, i32) {
    %c0_i32 = arith.constant 0 : i32
    %c0_i32_0 = arith.constant 0 : i32
    %c0_i32_1 = arith.constant 0 : i32
    %c0_i32_2 = arith.constant 0 : i32
    return %c0_i32, %c0_i32_0, %c0_i32_1 : i32, i32, i32
  }
  func.func @transform_5(%arg0: i32) -> (i32, i32, i32) {
    %c0_i32 = arith.constant 0 : i32
    %c0_i32_0 = arith.constant 0 : i32
    %c0_i32_1 = arith.constant 0 : i32
    %c0_i32_2 = arith.constant 0 : i32
    return %c0_i32, %c0_i32_0, %c0_i32_1 : i32, i32, i32
  }
  func.func @transform_6(%arg0: i32) -> (i32, i32) {
    %c0_i32 = arith.constant 0 : i32
    %c0_i32_0 = arith.constant 0 : i32
    %c0_i32_1 = arith.constant 0 : i32
    return %c0_i32, %c0_i32_0 : i32, i32
  }
  func.func @transform_7(%arg0: i32) -> (i32, i32, i32) {
    %c0_i32 = arith.constant 0 : i32
    %c0_i32_0 = arith.constant 0 : i32
    %c0_i32_1 = arith.constant 0 : i32
    %c0_i32_2 = arith.constant 0 : i32
    return %c0_i32, %c0_i32_0, %c0_i32_1 : i32, i32, i32
  }
  func.func @transform_8(%arg0: i32) -> (i32, i32, i32) {
    %c0_i32 = arith.constant 0 : i32
    %c0_i32_0 = arith.constant 0 : i32
    %c0_i32_1 = arith.constant 0 : i32
    %c0_i32_2 = arith.constant 0 : i32
    return %c0_i32, %c0_i32_0, %c0_i32_1 : i32, i32, i32
  }
  func.func @transform_9(%arg0: i32) -> (i32, i32) {
    %c0_i32 = arith.constant 0 : i32
    %c0_i32_0 = arith.constant 0 : i32
    %c0_i32_1 = arith.constant 0 : i32
    return %c0_i32, %c0_i32_0 : i32, i32
  }
  func.func @transform_10(%arg0: i32) -> (i32, i32, i32) {
    %c0_i32 = arith.constant 0 : i32
    %c0_i32_0 = arith.constant 0 : i32
    %c0_i32_1 = arith.constant 0 : i32
    return %arg0, %c0_i32, %c0_i32_0 : i32, i32, i32
  }
  func.func @transform_11(%arg0: i32) -> (i32, i32, i32) {
    %c0_i32 = arith.constant 0 : i32
    %c0_i32_0 = arith.constant 0 : i32
    %c0_i32_1 = arith.constant 0 : i32
    return %arg0, %c0_i32, %c0_i32_0 : i32, i32, i32
  }
  func.func @transform_12(%arg0: i32) -> (i32, i32, i32) {
    %c0_i32 = arith.constant 0 : i32
    %c0_i32_0 = arith.constant 0 : i32
    %c0_i32_1 = arith.constant 0 : i32
    return %arg0, %c0_i32, %c0_i32_0 : i32, i32, i32
  }
}

</mosaic_0001>

<llo_original>
// kernel: tile.18
$region0: #{tile.18}
  #allocation0 [shape = 's32[1]{0}', space=sflag, size = 0x4, scoped, tag = 'scoped memory for tile.18']
  %s0 = inlined_call_operand.vmem [shape: f32[8], index: 0, kind: input, shape index: {}]
  %s1 = inlined_call_operand.vmem [shape: f32[64,8], index: 1, kind: output, shape index: {}]
  // Predicated region
  $region2: #{tile.18} parent=0 // pred_check
    _
  $region3: #{tile.18} parent=0 // pred_check_branch
    %3 = sbr.rel (0) target = $region5
  $region4: #{tile.18} parent=0 // pred_region
    _
  $region5: #{tile.18} parent=0 // pred_fallthru
    _
  %v4 = vld [vmem:[%s0] ss:$0 sm:$0xff]
  %5 = vst [vmem:[%s1] sm:$0xff] %v4
  %s6 = scalar_lea.vmem %s1, 8
  %7 = vst [vmem:[%s6] sm:$0xff] %v4
  %s8 = scalar_lea.vmem %s1, 16
  %9 = vst [vmem:[%s8] sm:$0xff] %v4
  %s10 = scalar_lea.vmem %s1, 24
  %11 = vst [vmem:[%s10] sm:$0xff] %v4
  %s12 = scalar_lea.vmem %s1, 32
  %13 = vst [vmem:[%s12] sm:$0xff] %v4
  %s14 = scalar_lea.vmem %s1, 40
  %15 = vst [vmem:[%s14] sm:$0xff] %v4
  %s16 = scalar_lea.vmem %s1, 48
  %17 = vst [vmem:[%s16] sm:$0xff] %v4
  %s18 = scalar_lea.vmem %s1, 56
  %19 = vst [vmem:[%s18] sm:$0xff] %v4

// kernel: tile.19
$region0: #{tile.19}
  %s0 = inlined_call_operand.vmem [shape: f32[64,8], index: 0, kind: input, shape index: {}]
  %s1 = inlined_call_operand.vmem [shape: f32[1,512], index: 1, kind: output, shape index: {}]
  $region1: #{tile.19} parent=0
    #allocation0 [shape = 'u8[16384]{0}', space=vmem, size = 0x4000, scoped, tag = 'scoped mem for output reshape']
    %s2 = smov 3
    %v3 = vld [vmem:[%s0] ss:$16 sm:%s2]
    %s4 = smov 12
    %v5 = vld [vmem:[%s0] ss:$16 sm:%s4]
    %vm6 = vcmask 1043458
    %v7 = vsel %vm6, %v5, %v3
    %vm8 = vcmask 64512
    %9 = vst.msk [vmem:[#allocation0] ss:$8 sm:$0xf] %vm8, %v7
    %s10 = scalar_lea.vmem %s0, 15
    %s11 = smov 3
    %v12 = vld [vmem:[%s10] ss:$16 sm:%s11]
    %s13 = scalar_lea.vmem %s0, 15
    %s14 = smov 12
    %v15 = vld [vmem:[%s13] ss:$16 sm:%s14]
    %vm16 = vcmask 1043458
    %v17 = vsel %vm16, %v15, %v12
    %18 = vrot.lane.b32.xlu0 %v17, 120
    %v19 = vpop.permute.xlu0 %18
    %vm20 = vcmask 1048512
    %21 = vst.msk [vmem:[#allocation0] ss:$8 sm:$0xf] %vm20, %v19
    %s22 = scalar_lea.vmem %s0, 14
    %s23 = smov 3
    %v24 = vld [vmem:[%s22] ss:$16 sm:%s23]
    %s25 = scalar_lea.vmem %s0, 14
    %s26 = smov 12
    %v27 = vld [vmem:[%s25] ss:$16 sm:%s26]
    %vm28 = vcmask 1043458
    %v29 = vsel %vm28, %v27, %v24
    %30 = vrot.lane.b32.xlu0 %v29, 112
    %v31 = vpop.permute.xlu0 %30
    %vm32 = vcmask 982912
    %33 = vst.msk [vmem:[#allocation0] ss:$8 sm:$0xf] %vm32, %v31
    %s34 = scalar_lea.vmem %s0, 13
    %s35 = smov 3
    %v36 = vld [vmem:[%s34] ss:$16 sm:%s35]
    %s37 = scalar_lea.vmem %s0, 13
    %s38 = smov 12
    %v39 = vld [vmem:[%s37] ss:$16 sm:%s38]
    %vm40 = vcmask 1043458
    %v41 = vsel %vm40, %v39, %v36
    %42 = vrot.lane.b32.xlu0 %v41, 104
    %v43 = vpop.permute.xlu0 %42
    %vm44 = vcmask 917312
    %45 = vst.msk [vmem:[#allocation0] ss:$8 sm:$0xf] %vm44, %v43
    %s46 = scalar_lea.vmem %s0, 12
    %s47 = smov 3
    %v48 = vld [vmem:[%s46] ss:$16 sm:%s47]
    %s49 = scalar_lea.vmem %s0, 12
    %s50 = smov 12
    %v51 = vld [vmem:[%s49] ss:$16 sm:%s50]
    %vm52 = vcmask 1043458
    %v53 = vsel %vm52, %v51, %v48
    %54 = vrot.lane.b32.xlu0 %v53, 96
    %v55 = vpop.permute.xlu0 %54
    %vm56 = vcmask 851712
    %57 = vst.msk [vmem:[#allocation0] ss:$8 sm:$0xf] %vm56, %v55
    %s58 = scalar_lea.vmem %s0, 11
    %s59 = smov 3
    %v60 = vld [vmem:[%s58] ss:$16 sm:%s59]
    %s61 = scalar_lea.vmem %s0, 11
    %s62 = smov 12
    %v63 = vld [vmem:[%s61] ss:$16 sm:%s62]
    %vm64 = vcmask 1043458
    %v65 = vsel %vm64, %v63, %v60
    %66 = vrot.lane.b32.xlu0 %v65, 88
    %v67 = vpop.permute.xlu0 %66
    %vm68 = vcmask 786112
    %69 = vst.msk [vmem:[#allocation0] ss:$8 sm:$0xf] %vm68, %v67
    %s70 = scalar_lea.vmem %s0, 10
    %s71 = smov 3
    %v72 = vld [vmem:[%s70] ss:$16 sm:%s71]
    %s73 = scalar_lea.vmem %s0, 10
    %s74 = smov 12
    %v75 = vld [vmem:[%s73] ss:$16 sm:%s74]
    %vm76 = vcmask 1043458
    %v77 = vsel %vm76, %v75, %v72
    %78 = vrot.lane.b32.xlu0 %v77, 80
    %v79 = vpop.permute.xlu0 %78
    %vm80 = vcmask 720512
    %81 = vst.msk [vmem:[#allocation0] ss:$8 sm:$0xf] %vm80, %v79
    %s82 = scalar_lea.vmem %s0, 9
    %s83 = smov 3
    %v84 = vld [vmem:[%s82] ss:$16 sm:%s83]
    %s85 = scalar_lea.vmem %s0, 9
    %s86 = smov 12
    %v87 = vld [vmem:[%s85] ss:$16 sm:%s86]
    %vm88 = vcmask 1043458
    %v89 = vsel %vm88, %v87, %v84
    %90 = vrot.lane.b32.xlu0 %v89, 72
    %v91 = vpop.permute.xlu0 %90
    %vm92 = vcmask 654912
    %93 = vst.msk [vmem:[#allocation0] ss:$8 sm:$0xf] %vm92, %v91
    %s94 = scalar_lea.vmem %s0, 8
    %s95 = smov 3
    %v96 = vld [vmem:[%s94] ss:$16 sm:%s95]
    %s97 = scalar_lea.vmem %s0, 8
    %s98 = smov 12
    %v99 = vld [vmem:[%s97] ss:$16 sm:%s98]
    %vm100 = vcmask 1043458
    %v101 = vsel %vm100, %v99, %v96
    %102 = vrot.lane.b32.xlu0 %v101, 64
    %v103 = vpop.permute.xlu0 %102
    %vm104 = vcmask 589312
    %105 = vst.msk [vmem:[#allocation0] ss:$8 sm:$0xf] %vm104, %v103
    %s106 = scalar_lea.vmem %s0, 7
    %s107 = smov 3
    %v108 = vld [vmem:[%s106] ss:$16 sm:%s107]
    %s109 = scalar_lea.vmem %s0, 7
    %s110 = smov 12
    %v111 = vld [vmem:[%s109] ss:$16 sm:%s110]
    %vm112 = vcmask 1043458
    %v113 = vsel %vm112, %v111, %v108
    %114 = vrot.lane.b32.xlu0 %v113, 56
    %v115 = vpop.permute.xlu0 %114
    %vm116 = vcmask 523712
    %117 = vst.msk [vmem:[#allocation0] ss:$8 sm:$0xf] %vm116, %v115
    %s118 = scalar_lea.vmem %s0, 6
    %s119 = smov 3
    %v120 = vld [vmem:[%s118] ss:$16 sm:%s119]
    %s121 = scalar_lea.vmem %s0, 6
    %s122 = smov 12
    %v123 = vld [vmem:[%s121] ss:$16 sm:%s122]
    %vm124 = vcmask 1043458
    %v125 = vsel %vm124, %v123, %v120
    %126 = vrot.lane.b32.xlu0 %v125, 48
    %v127 = vpop.permute.xlu0 %126
    %vm128 = vcmask 458112
    %129 = vst.msk [vmem:[#allocation0] ss:$8 sm:$0xf] %vm128, %v127
    %s130 = scalar_lea.vmem %s0, 5
    %s131 = smov 3
    %v132 = vld [vmem:[%s130] ss:$16 sm:%s131]
    %s133 = scalar_lea.vmem %s0, 5
    %s134 = smov 12
    %v135 = vld [vmem:[%s133] ss:$16 sm:%s134]
    %vm136 = vcmask 1043458
    %v137 = vsel %vm136, %v135, %v132
    %138 = vrot.lane.b32.xlu0 %v137, 40
    %v139 = vpop.permute.xlu0 %138
    %vm140 = vcmask 392512
    %141 = vst.msk [vmem:[#allocation0] ss:$8 sm:$0xf] %vm140, %v139
    %s142 = scalar_lea.vmem %s0, 4
    %s143 = smov 3
    %v144 = vld [vmem:[%s142] ss:$16 sm:%s143]
    %s145 = scalar_lea.vmem %s0, 4
    %s146 = smov 12
    %v147 = vld [vmem:[%s145] ss:$16 sm:%s146]
    %vm148 = vcmask 1043458
    %v149 = vsel %vm148, %v147, %v144
    %150 = vrot.lane.b32.xlu0 %v149, 32
    %v151 = vpop.permute.xlu0 %150
    %vm152 = vcmask 326912
    %153 = vst.msk [vmem:[#allocation0] ss:$8 sm:$0xf] %vm152, %v151
    %s154 = scalar_lea.vmem %s0, 3
    %s155 = smov 3
    %v156 = vld [vmem:[%s154] ss:$16 sm:%s155]
    %s157 = scalar_lea.vmem %s0, 3
    %s158 = smov 12
    %v159 = vld [vmem:[%s157] ss:$16 sm:%s158]
    %vm160 = vcmask 1043458
    %v161 = vsel %vm160, %v159, %v156
    %162 = vrot.lane.b32.xlu0 %v161, 24
    %v163 = vpop.permute.xlu0 %162
    %vm164 = vcmask 261312
    %165 = vst.msk [vmem:[#allocation0] ss:$8 sm:$0xf] %vm164, %v163
    %s166 = scalar_lea.vmem %s0, 2
    %s167 = smov 3
    %v168 = vld [vmem:[%s166] ss:$16 sm:%s167]
    %s169 = scalar_lea.vmem %s0, 2
    %s170 = smov 12
    %v171 = vld [vmem:[%s169] ss:$16 sm:%s170]
    %vm172 = vcmask 1043458
    %v173 = vsel %vm172, %v171, %v168
    %174 = vrot.lane.b32.xlu0 %v173, 16
    %v175 = vpop.permute.xlu0 %174
    %vm176 = vcmask 195712
    %177 = vst.msk [vmem:[#allocation0] ss:$8 sm:$0xf] %vm176, %v175
    %s178 = scalar_lea.vmem %s0, 1
    %s179 = smov 3
    %v180 = vld [vmem:[%s178] ss:$16 sm:%s179]
    %s181 = scalar_lea.vmem %s0, 1
    %s182 = smov 12
    %v183 = vld [vmem:[%s181] ss:$16 sm:%s182]
    %vm184 = vcmask 1043458
    %v185 = vsel %vm184, %v183, %v180
    %186 = vrot.lane.b32.xlu0 %v185, 8
    %v187 = vpop.permute.xlu0 %186
    %vm188 = vcmask 130112
    %189 = vst.msk [vmem:[#allocation0] ss:$8 sm:$0xf] %vm188, %v187
    %s191 = sshllo.u32 0, 1
    %v193 = vld [vmem:[#allocation0] sm:%s191]
    %s194 = sshllo.u32 0, 1
    %195 = vst [vmem:[%s1] sm:%s194] %v193
    %s196 = scalar_lea.vmem [#allocation0], 8
    %v197 = vld [vmem:[%s196] sm:%s191]
    %s198 = sshllo.u32 0, 1
    %s199 = scalar_lea.vmem %s1, 1
    %200 = vst [vmem:[%s199] sm:%s198] %v197
    %s201 = scalar_lea.vmem [#allocation0], 16
    %v202 = vld [vmem:[%s201] sm:%s191]
    %s203 = sshllo.u32 0, 1
    %s204 = smul.addr 1, 2
    %s205 = scalar_lea.vmem %s1, %s204
    %206 = vst [vmem:[%s205] sm:%s203] %v202
    %s207 = scalar_lea.vmem [#allocation0], 24
    %v208 = vld [vmem:[%s207] sm:%s191]
    %s209 = sshllo.u32 0, 1
    %s210 = smul.addr 1, 3
    %s211 = scalar_lea.vmem %s1, %s210
    %212 = vst [vmem:[%s211] sm:%s209] %v208

// kernel: tile.23
$region0: #{tile.23}
  #allocation0 [shape = 's32[1]{0}', space=sflag, size = 0x4, scoped, tag = 'scoped memory for tile.23']
  %s0 = inlined_call_operand.vmem [shape: f32[16], index: 0, kind: input, shape index: {}]
  %s1 = inlined_call_operand.vmem [shape: f32[32,16], index: 1, kind: output, shape index: {}]
  // Predicated region
  $region2: #{tile.23} parent=0 // pred_check
    _
  $region3: #{tile.23} parent=0 // pred_check_branch
    %3 = sbr.rel (0) target = $region5
  $region4: #{tile.23} parent=0 // pred_region
    _
  $region5: #{tile.23} parent=0 // pred_fallthru
    _
  %v4 = vld [vmem:[%s0] ss:$0 sm:$0xff]
  %5 = vst [vmem:[%s1] sm:$0xff] %v4
  %s6 = scalar_lea.vmem %s1, 8
  %7 = vst [vmem:[%s6] sm:$0xff] %v4
  %s8 = scalar_lea.vmem %s1, 16
  %9 = vst [vmem:[%s8] sm:$0xff] %v4
  %s10 = scalar_lea.vmem %s1, 24
  %11 = vst [vmem:[%s10] sm:$0xff] %v4

// kernel: tile.24
$region0: #{tile.24}
  %s0 = inlined_call_operand.vmem [shape: f32[32,16], index: 0, kind: input, shape index: {}]
  %s1 = inlined_call_operand.vmem [shape: f32[1,512], index: 1, kind: output, shape index: {}]
  $region1: #{tile.24} parent=0
    #allocation0 [shape = 'u8[16384]{0}', space=vmem, size = 0x4000, scoped, tag = 'scoped mem for output reshape']
    %v2 = vld [vmem:[%s0] ss:$8 sm:$0xf]
    %vm3 = vcmask 130048
    %4 = vst.msk [vmem:[#allocation0] ss:$8 sm:$0xf] %vm3, %v2
    %s5 = scalar_lea.vmem %s0, 7
    %v6 = vld [vmem:[%s5] ss:$8 sm:$0xf]
    %7 = vrot.lane.b32.xlu0 %v6, 112
    %v8 = vpop.permute.xlu0 %7
    %vm9 = vcmask 1048448
    %10 = vst.msk [vmem:[#allocation0] ss:$8 sm:$0xf] %vm9, %v8
    %s11 = scalar_lea.vmem %s0, 6
    %v12 = vld [vmem:[%s11] ss:$8 sm:$0xf]
    %13 = vrot.lane.b32.xlu0 %v12, 96
    %v14 = vpop.permute.xlu0 %13
    %vm15 = vcmask 917248
    %16 = vst.msk [vmem:[#allocation0] ss:$8 sm:$0xf] %vm15, %v14
    %s17 = scalar_lea.vmem %s0, 5
    %v18 = vld [vmem:[%s17] ss:$8 sm:$0xf]
    %19 = vrot.lane.b32.xlu0 %v18, 80
    %v20 = vpop.permute.xlu0 %19
    %vm21 = vcmask 786048
    %22 = vst.msk [vmem:[#allocation0] ss:$8 sm:$0xf] %vm21, %v20
    %s23 = scalar_lea.vmem %s0, 4
    %v24 = vld [vmem:[%s23] ss:$8 sm:$0xf]
    %25 = vrot.lane.b32.xlu0 %v24, 64
    %v26 = vpop.permute.xlu0 %25
    %vm27 = vcmask 654848
    %28 = vst.msk [vmem:[#allocation0] ss:$8 sm:$0xf] %vm27, %v26
    %s29 = scalar_lea.vmem %s0, 3
    %v30 = vld [vmem:[%s29] ss:$8 sm:$0xf]
    %31 = vrot.lane.b32.xlu0 %v30, 48
    %v32 = vpop.permute.xlu0 %31
    %vm33 = vcmask 523648
    %34 = vst.msk [vmem:[#allocation0] ss:$8 sm:$0xf] %vm33, %v32
    %s35 = scalar_lea.vmem %s0, 2
    %v36 = vld [vmem:[%s35] ss:$8 sm:$0xf]
    %37 = vrot.lane.b32.xlu0 %v36, 32
    %v38 = vpop.permute.xlu0 %37
    %vm39 = vcmask 392448
    %40 = vst.msk [vmem:[#allocation0] ss:$8 sm:$0xf] %vm39, %v38
    %s41 = scalar_lea.vmem %s0, 1
    %v42 = vld [vmem:[%s41] ss:$8 sm:$0xf]
    %43 = vrot.lane.b32.xlu0 %v42, 16
    %v44 = vpop.permute.xlu0 %43
    %vm45 = vcmask 261248
    %46 = vst.msk [vmem:[#allocation0] ss:$8 sm:$0xf] %vm45, %v44
    %s48 = sshllo.u32 0, 1
    %v50 = vld [vmem:[#allocation0] sm:%s48]
    %s51 = sshllo.u32 0, 1
    %52 = vst [vmem:[%s1] sm:%s51] %v50
    %s53 = scalar_lea.vmem [#allocation0], 8
    %v54 = vld [vmem:[%s53] sm:%s48]
    %s55 = sshllo.u32 0, 1
    %s56 = scalar_lea.vmem %s1, 1
    %57 = vst [vmem:[%s56] sm:%s55] %v54
    %s58 = scalar_lea.vmem [#allocation0], 16
    %v59 = vld [vmem:[%s58] sm:%s48]
    %s60 = sshllo.u32 0, 1
    %s61 = smul.addr 1, 2
    %s62 = scalar_lea.vmem %s1, %s61
    %63 = vst [vmem:[%s62] sm:%s60] %v59
    %s64 = scalar_lea.vmem [#allocation0], 24
    %v65 = vld [vmem:[%s64] sm:%s48]
    %s66 = sshllo.u32 0, 1
    %s67 = smul.addr 1, 3
    %s68 = scalar_lea.vmem %s1, %s67
    %69 = vst [vmem:[%s68] sm:%s66] %v65

// kernel: tile.28
$region0: #{tile.28}
  #allocation0 [shape = 's32[1]{0}', space=sflag, size = 0x4, scoped, tag = 'scoped memory for tile.28']
  %s0 = inlined_call_operand.vmem [shape: f32[32], index: 0, kind: input, shape index: {}]
  %s1 = inlined_call_operand.vmem [shape: f32[16,32], index: 1, kind: output, shape index: {}]
  // Predicated region
  $region2: #{tile.28} parent=0 // pred_check
    _
  $region3: #{tile.28} parent=0 // pred_check_branch
    %3 = sbr.rel (0) target = $region5
  $region4: #{tile.28} parent=0 // pred_region
    _
  $region5: #{tile.28} parent=0 // pred_fallthru
    _
  %v4 = vld [vmem:[%s0] ss:$0 sm:$0xff]
  %5 = vst [vmem:[%s1] sm:$0xff] %v4
  %s6 = scalar_lea.vmem %s1, 8
  %7 = vst [vmem:[%s6] sm:$0xff] %v4

// kernel: tile.29
$region0: #{tile.29}
  %s0 = inlined_call_operand.vmem [shape: f32[16,32], index: 0, kind: input, shape index: {}]
  %s1 = inlined_call_operand.vmem [shape: f32[1,512], index: 1, kind: output, shape index: {}]
  $region1: #{tile.29} parent=0
    #allocation0 [shape = 'u8[16384]{0}', space=vmem, size = 0x4000, scoped, tag = 'scoped mem for output reshape']
    %v2 = vld [vmem:[%s0] ss:$4 sm:$0xf]
    %vm3 = vcmask 261120
    %4 = vst.msk [vmem:[#allocation0] ss:$8 sm:$0xf] %vm3, %v2
    %s5 = scalar_lea.vmem %s0, 3
    %v6 = vld [vmem:[%s5] ss:$4 sm:$0xf]
    %7 = vrot.lane.b32.xlu0 %v6, 96
    %v8 = vpop.permute.xlu0 %7
    %vm9 = vcmask 1048320
    %10 = vst.msk [vmem:[#allocation0] ss:$8 sm:$0xf] %vm9, %v8
    %s11 = scalar_lea.vmem %s0, 2
    %v12 = vld [vmem:[%s11] ss:$4 sm:$0xf]
    %13 = vrot.lane.b32.xlu0 %v12, 64
    %v14 = vpop.permute.xlu0 %13
    %vm15 = vcmask 785920
    %16 = vst.msk [vmem:[#allocation0] ss:$8 sm:$0xf] %vm15, %v14
    %s17 = scalar_lea.vmem %s0, 1
    %v18 = vld [vmem:[%s17] ss:$4 sm:$0xf]
    %19 = vrot.lane.b32.xlu0 %v18, 32
    %v20 = vpop.permute.xlu0 %19
    %vm21 = vcmask 523520
    %22 = vst.msk [vmem:[#allocation0] ss:$8 sm:$0xf] %vm21, %v20
    %s24 = sshllo.u32 0, 1
    %v26 = vld [vmem:[#allocation0] sm:%s24]
    %s27 = sshllo.u32 0, 1
    %28 = vst [vmem:[%s1] sm:%s27] %v26
    %s29 = scalar_lea.vmem [#allocation0], 8
    %v30 = vld [vmem:[%s29] sm:%s24]
    %s31 = sshllo.u32 0, 1
    %s32 = scalar_lea.vmem %s1, 1
    %33 = vst [vmem:[%s32] sm:%s31] %v30
    %s34 = scalar_lea.vmem [#allocation0], 16
    %v35 = vld [vmem:[%s34] sm:%s24]
    %s36 = sshllo.u32 0, 1
    %s37 = smul.addr 1, 2
    %s38 = scalar_lea.vmem %s1, %s37
    %39 = vst [vmem:[%s38] sm:%s36] %v35
    %s40 = scalar_lea.vmem [#allocation0], 24
    %v41 = vld [vmem:[%s40] sm:%s24]
    %s42 = sshllo.u32 0, 1
    %s43 = smul.addr 1, 3
    %s44 = scalar_lea.vmem %s1, %s43
    %45 = vst [vmem:[%s44] sm:%s42] %v41

// kernel: backbone_forward.1
$region0: #{backbone_forward.1}
  #allocation0 [shape = 'u32[]', space=smem, size = 0x4, offset = 0x4, fixed_abs, tag = 'smem constant byte address 0x4 - core index']
  #allocation1 [shape = 'u32[144,128]{1,0:T(1,128)}', space=vmem, size = 0x12000, scoped, tag = 'internal scratch']
  %s0 = inlined_call_operand.vmem [shape: bf16[1,128,384], index: 0, kind: input, shape index: {}]
  %s1 = inlined_call_operand.vmem [shape: bf16[3,64,128], index: 1, kind: input, shape index: {}]
  %s2 = inlined_call_operand.vmem [shape: bf16[3,384,512], index: 2, kind: input, shape index: {}]
  %s3 = inlined_call_operand.vmem [shape: f32[1,512], index: 3, kind: input, shape index: {}]
  %s4 = inlined_call_operand.vmem [shape: bf16[3,32,64], index: 4, kind: input, shape index: {}]
  %s5 = inlined_call_operand.vmem [shape: bf16[3,512,512], index: 5, kind: input, shape index: {}]
  %s6 = inlined_call_operand.vmem [shape: f32[1,512], index: 6, kind: input, shape index: {}]
  %s7 = inlined_call_operand.vmem [shape: bf16[3,16,32], index: 7, kind: input, shape index: {}]
  %s8 = inlined_call_operand.vmem [shape: bf16[3,512,512], index: 8, kind: input, shape index: {}]
  %s9 = inlined_call_operand.vmem [shape: f32[1,512], index: 9, kind: input, shape index: {}]
  %s10 = inlined_call_operand.vmem [shape: f32[1,64,512], index: 10, kind: output, shape index: {0}]
  %s11 = inlined_call_operand.vmem [shape: f32[1,32,512], index: 11, kind: output, shape index: {1}]
  %s12 = inlined_call_operand.vmem [shape: f32[1,16,512], index: 12, kind: output, shape index: {2}]
  %13 = xla_tuple %s10, %s11, %s12
  %s14 = sld [smem:[#allocation0]]
  $region66: #{backbone_forward.1} parent=0
    _
  %s16 = ssub.s32 1, %s14
  %s17 = scalar_select 0, %s16, %s14
  // Predicated region
  $region2: #{backbone_forward.1} parent=0 // pred_check
    _
  $region3: #{backbone_forward.1} parent=0 // pred_check_branch
    %19 = sbr.rel (0) target = $region5
  $region4: #{backbone_forward.1} parent=0 // pred_region
    _
  $region5: #{backbone_forward.1} parent=0 // pred_fallthru
    _
  // Predicated region
  $region6: #{backbone_forward.1} parent=0 // pred_check
    _
  $region7: #{backbone_forward.1} parent=0 // pred_check_branch
    %21 = sbr.rel (0) target = $region9
  $region8: #{backbone_forward.1} parent=0 // pred_region
    _
  $region9: #{backbone_forward.1} parent=0 // pred_fallthru
    _
  // Predicated region
  $region10: #{backbone_forward.1} parent=0 // pred_check
    _
  $region11: #{backbone_forward.1} parent=0 // pred_check_branch
    %23 = sbr.rel (0) target = $region13
  $region12: #{backbone_forward.1} parent=0 // pred_region
    _
  $region13: #{backbone_forward.1} parent=0 // pred_fallthru
    _
  // Predicated region
  $region14: #{backbone_forward.1} parent=0 // pred_check
    _
  $region15: #{backbone_forward.1} parent=0 // pred_check_branch
    %25 = sbr.rel (0) target = $region17
  $region16: #{backbone_forward.1} parent=0 // pred_region
    _
  $region17: #{backbone_forward.1} parent=0 // pred_fallthru
    _
  // Predicated region
  $region18: #{backbone_forward.1} parent=0 // pred_check
    _
  $region19: #{backbone_forward.1} parent=0 // pred_check_branch
    %27 = sbr.rel (0) target = $region21
  $region20: #{backbone_forward.1} parent=0 // pred_region
    _
  $region21: #{backbone_forward.1} parent=0 // pred_fallthru
    _
  // Predicated region
  $region22: #{backbone_forward.1} parent=0 // pred_check
    _
  $region23: #{backbone_forward.1} parent=0 // pred_check_branch
    %29 = sbr.rel (0) target = $region25
  $region24: #{backbone_forward.1} parent=0 // pred_region
    _
  $region25: #{backbone_forward.1} parent=0 // pred_fallthru
    _
  // Predicated region
  $region26: #{backbone_forward.1} parent=0 // pred_check
    _
  $region27: #{backbone_forward.1} parent=0 // pred_check_branch
    %31 = sbr.rel (0) target = $region29
  $region28: #{backbone_forward.1} parent=0 // pred_region
    _
  $region29: #{backbone_forward.1} parent=0 // pred_fallthru
    _
  // Predicated region
  $region30: #{backbone_forward.1} parent=0 // pred_check
    _
  $region31: #{backbone_forward.1} parent=0 // pred_check_branch
    %33 = sbr.rel (0) target = $region33
  $region32: #{backbone_forward.1} parent=0 // pred_region
    _
  $region33: #{backbone_forward.1} parent=0 // pred_fallthru
    _
  // Predicated region
  $region34: #{backbone_forward.1} parent=0 // pred_check
    _
  $region35: #{backbone_forward.1} parent=0 // pred_check_branch
    %35 = sbr.rel (0) target = $region37
  $region36: #{backbone_forward.1} parent=0 // pred_region
    _
  $region37: #{backbone_forward.1} parent=0 // pred_fallthru
    _
  // Predicated region
  $region38: #{backbone_forward.1} parent=0 // pred_check
    _
  $region39: #{backbone_forward.1} parent=0 // pred_check_branch
    %37 = sbr.rel (0) target = $region41
  $region40: #{backbone_forward.1} parent=0 // pred_region
    _
  $region41: #{backbone_forward.1} parent=0 // pred_fallthru
    _
  %v39 = vld [vmem:[%s0] sm:$0xff]
  %v40 = vld [vmem:[%s0 + $0x8] sm:$0xf]
  %v41 = vld [vmem:[%s0 + $0xc] sm:$0xff]
  %v42 = vld [vmem:[%s0 + $0x14] sm:$0xf]
  %v43 = vld [vmem:[%s0 + $0x18] sm:$0xff]
  %v44 = vld [vmem:[%s0 + $0x20] sm:$0xf]
  %v45 = vld [vmem:[%s0 + $0x24] sm:$0xff]
  %v46 = vld [vmem:[%s0 + $0x2c] sm:$0xf]
  %v47 = vld [vmem:[%s0 + $0x30] sm:$0xff]
  %v48 = vld [vmem:[%s0 + $0x38] sm:$0xf]
  %v49 = vld [vmem:[%s0 + $0x3c] sm:$0xff]
  %v50 = vld [vmem:[%s0 + $0x44] sm:$0xf]
  %v51 = vld [vmem:[%s0 + $0x48] sm:$0xff]
  %v52 = vld [vmem:[%s0 + $0x50] sm:$0xf]
  %v53 = vld [vmem:[%s0 + $0x54] sm:$0xff]
  %v54 = vld [vmem:[%s0 + $0x5c] sm:$0xf]
  %v55 = vld [vmem:[%s0 + $0x60] sm:$0xff]
  %v56 = vld [vmem:[%s0 + $0x68] sm:$0xf]
  %v57 = vld [vmem:[%s0 + $0x6c] sm:$0xff]
  %v58 = vld [vmem:[%s0 + $0x74] sm:$0xf]
  %v59 = vld [vmem:[%s0 + $0x78] sm:$0xff]
  %v60 = vld [vmem:[%s0 + $0x80] sm:$0xf]
  %v61 = vld [vmem:[%s0 + $0x84] sm:$0xff]
  %v62 = vld [vmem:[%s0 + $0x8c] sm:$0xf]
  %v63 = vld [vmem:[%s0 + $0x90] sm:$0xff]
  %v64 = vld [vmem:[%s0 + $0x98] sm:$0xf]
  %v65 = vld [vmem:[%s0 + $0x9c] sm:$0xff]
  %v66 = vld [vmem:[%s0 + $0xa4] sm:$0xf]
  %v67 = vld [vmem:[%s0 + $0xa8] sm:$0xff]
  %v68 = vld [vmem:[%s0 + $0xb0] sm:$0xf]
  %v69 = vld [vmem:[%s0 + $0xb4] sm:$0xff]
  %v70 = vld [vmem:[%s0 + $0xbc] sm:$0xf]
  %v71 = vld [vmem:[%s1] sm:$0xf]
  %v72 = vld [vmem:[%s1 + $0x4] sm:$0xf]
  %v73 = vld [vmem:[%s1 + $0x8] sm:$0xf]
  %v74 = vld [vmem:[%s1 + $0xc] sm:$0xf]
  %v75 = vld [vmem:[%s1 + $0x10] sm:$0xf]
  %v76 = vld [vmem:[%s1 + $0x14] sm:$0xf]
  %v77 = vld [vmem:[%s1 + $0x18] sm:$0xf]
  %v78 = vld [vmem:[%s1 + $0x1c] sm:$0xf]
  %v87 = vunpack.c.l.b16 %v71
  %v88 = vunpack.c.l.b16 %v72
  %v89 = vunpack.c.l.b16 %v73
  %v90 = vunpack.c.l.b16 %v74
  %v91 = vunpack.c.l.b16 %v75
  %v92 = vunpack.c.l.b16 %v76
  %v93 = vunpack.c.l.b16 %v77
  %v94 = vunpack.c.l.b16 %v78
  %v95 = vpack.c.b16 %v88, %v87
  %v96 = vpack.c.b16 %v90, %v89
  %v97 = vpack.c.b16 %v92, %v91
  %v98 = vpack.c.b16 %v94, %v93
  %v135 = vunpack.c.l.b16 %v39
  %v136 = vunpack.c.h.b16 %v39
  %v137 = vunpack.c.l.b16 %v40
  %v138 = vunpack.c.l.b16 %v41
  %v139 = vunpack.c.h.b16 %v41
  %v140 = vunpack.c.l.b16 %v42
  %v141 = vunpack.c.l.b16 %v43
  %v142 = vunpack.c.h.b16 %v43
  %v143 = vunpack.c.l.b16 %v44
  %v144 = vunpack.c.l.b16 %v45
  %v145 = vunpack.c.h.b16 %v45
  %v146 = vunpack.c.l.b16 %v46
  %v147 = vunpack.c.l.b16 %v47
  %v148 = vunpack.c.h.b16 %v47
  %v149 = vunpack.c.l.b16 %v48
  %v150 = vunpack.c.l.b16 %v49
  %v151 = vunpack.c.h.b16 %v49
  %v152 = vunpack.c.l.b16 %v50
  %v153 = vunpack.c.l.b16 %v51
  %v154 = vunpack.c.h.b16 %v51
  %v155 = vunpack.c.l.b16 %v52
  %v156 = vunpack.c.l.b16 %v53
  %v157 = vunpack.c.h.b16 %v53
  %v158 = vunpack.c.l.b16 %v54
  %v159 = vunpack.c.l.b16 %v55
  %v160 = vunpack.c.h.b16 %v55
  %v161 = vunpack.c.l.b16 %v56
  %v162 = vunpack.c.l.b16 %v57
  %v163 = vunpack.c.h.b16 %v57
  %v164 = vunpack.c.l.b16 %v58
  %v165 = vunpack.c.l.b16 %v59
  %v166 = vunpack.c.h.b16 %v59
  %v167 = vunpack.c.l.b16 %v60
  %v168 = vunpack.c.l.b16 %v61
  %v169 = vunpack.c.h.b16 %v61
  %v170 = vunpack.c.l.b16 %v62
  %v171 = vunpack.c.l.b16 %v63
  %v172 = vunpack.c.h.b16 %v63
  %v173 = vunpack.c.l.b16 %v64
  %v174 = vunpack.c.l.b16 %v65
  %v175 = vunpack.c.h.b16 %v65
  %v176 = vunpack.c.l.b16 %v66
  %v177 = vunpack.c.l.b16 %v67
  %v178 = vunpack.c.h.b16 %v67
  %v179 = vunpack.c.l.b16 %v68
  %v180 = vunpack.c.l.b16 %v69
  %v181 = vunpack.c.h.b16 %v69
  %v182 = vunpack.c.l.b16 %v70
  %v183 = vpack.c.b16 %v138, %v135
  %v184 = vpack.c.b16 %v139, %v136
  %v185 = vpack.c.b16 %v140, %v137
  %v186 = vpack.c.b16 %v144, %v141
  %v187 = vpack.c.b16 %v145, %v142
  %v188 = vpack.c.b16 %v146, %v143
  %v189 = vpack.c.b16 %v150, %v147
  %v190 = vpack.c.b16 %v151, %v148
  %v191 = vpack.c.b16 %v152, %v149
  %v192 = vpack.c.b16 %v156, %v153
  %v193 = vpack.c.b16 %v157, %v154
  %v194 = vpack.c.b16 %v158, %v155
  %v195 = vpack.c.b16 %v162, %v159
  %v196 = vpack.c.b16 %v163, %v160
  %v197 = vpack.c.b16 %v164, %v161
  %v198 = vpack.c.b16 %v168, %v165
  %v199 = vpack.c.b16 %v169, %v166
  %v200 = vpack.c.b16 %v170, %v167
  %v201 = vpack.c.b16 %v174, %v171
  %v202 = vpack.c.b16 %v175, %v172
  %v203 = vpack.c.b16 %v176, %v173
  %v204 = vpack.c.b16 %v180, %v177
  %v205 = vpack.c.b16 %v181, %v178
  %v206 = vpack.c.b16 %v182, %v179
  %231 = vmatprep.subr.bf16.mxu0 %v184
  %232 = vmatpush1.bf16.msra.mxu0 %v183
  %233 = vmatprep.subr.bf16.mxu0 %v187
  %234 = vmatpush1.bf16.msra.mxu0 %v186
  %235 = vmatprep.subr.bf16.mxu0 %v190
  %236 = vmatpush1.bf16.msra.mxu0 %v189
  %237 = vmatprep.subr.bf16.mxu0 %v193
  %238 = vmatpush1.bf16.msra.mxu0 %v192
  %239 = vmatprep.subr.bf16.mxu0 %v196
  %240 = vmatpush1.bf16.msra.mxu0 %v195
  %241 = vmatprep.subr.bf16.mxu0 %v199
  %242 = vmatpush1.bf16.msra.mxu0 %v198
  %243 = vmatprep.subr.bf16.mxu0 %v202
  %244 = vmatpush1.bf16.msra.mxu0 %v201
  %245 = vmatprep.subr.bf16.mxu0 %v205
  %246 = vmatpush1.bf16.msra.mxu0 %v204
  %247 = vmatprep.subr.bf16.mxu0 0
  %248 = vmatpush1.bf16.msra.mxu0 0
  %249 = vmatprep.subr.bf16.mxu0 0
  %250 = vmatpush1.bf16.msra.mxu0 0
  %251 = vmatprep.subr.bf16.mxu0 0
  %252 = vmatpush1.bf16.msra.mxu0 0
  %253 = vmatprep.subr.bf16.mxu0 0
  %254 = vmatpush1.bf16.msra.mxu0 0
  %255 = vmatprep.subr.bf16.mxu0 0
  %256 = vmatpush1.bf16.msra.mxu0 0
  %257 = vmatprep.subr.bf16.mxu0 0
  %258 = vmatpush1.bf16.msra.mxu0 0
  %259 = vmatprep.subr.bf16.mxu0 0
  %260 = vmatpush1.bf16.msra.mxu0 0
  %261 = vmatprep.subr.bf16.mxu0 0
  %262 = vmatpush1.bf16.msra.mxu0 0
  %263 = vmatprep.mubr.bf16.mxu0 0
  %264 = vmatmul.mubr.bf16.gmra.mrb[0].mxu0 %v95
  %v265 = vpop.f32.mrb[0].mxu0
  %v266 = vadd.f32 0.0, %v265
  %v267 = vpop.f32.mrb[0].mxu0
  %v268 = vadd.f32 0.0, %v267
  %v269 = vpop.f32.mrb[0].mxu0
  %v270 = vadd.f32 0.0, %v269
  %v271 = vpop.f32.mrb[0].mxu0
  %v272 = vadd.f32 0.0, %v271
  %273 = vmatprep.mubr.bf16.mxu0 0
  %274 = vmatmul.mubr.bf16.gmra.mrb[0].mxu0 %v96
  %v275 = vpop.f32.mrb[0].mxu0
  %v276 = vadd.f32 0.0, %v275
  %v277 = vpop.f32.mrb[0].mxu0
  %v278 = vadd.f32 0.0, %v277
  %v279 = vpop.f32.mrb[0].mxu0
  %v280 = vadd.f32 0.0, %v279
  %v281 = vpop.f32.mrb[0].mxu0
  %v282 = vadd.f32 0.0, %v281
  %283 = vmatprep.mubr.bf16.mxu0 0
  %284 = vmatmul.mubr.bf16.gmra.mrb[0].mxu0 %v97
  %v285 = vpop.f32.mrb[0].mxu0
  %v286 = vadd.f32 0.0, %v285
  %v287 = vpop.f32.mrb[0].mxu0
  %v288 = vadd.f32 0.0, %v287
  %v289 = vpop.f32.mrb[0].mxu0
  %v290 = vadd.f32 0.0, %v289
  %v291 = vpop.f32.mrb[0].mxu0
  %v292 = vadd.f32 0.0, %v291
  %293 = vmatprep.mubr.bf16.mxu0 0
  %294 = vmatmul.mubr.bf16.gmra.mrb[0].mxu0 %v98
  %v295 = vpop.f32.mrb[0].mxu0
  %v296 = vadd.f32 0.0, %v295
  %v297 = vpop.f32.mrb[0].mxu0
  %v298 = vadd.f32 0.0, %v297
  %v299 = vpop.f32.mrb[0].mxu0
  %v300 = vadd.f32 0.0, %v299
  %v301 = vpop.f32.mrb[0].mxu0
  %v302 = vadd.f32 0.0, %v301
  %303 = vdwg.mxu0
  %304 = vmatprep.subr.bf16.mxu0 0
  %305 = vmatpush1.bf16.msra.mxu0 %v185
  %306 = vmatprep.subr.bf16.mxu0 0
  %307 = vmatpush1.bf16.msra.mxu0 %v188
  %308 = vmatprep.subr.bf16.mxu0 0
  %309 = vmatpush1.bf16.msra.mxu0 %v191
  %310 = vmatprep.subr.bf16.mxu0 0
  %311 = vmatpush1.bf16.msra.mxu0 %v194
  %312 = vmatprep.subr.bf16.mxu0 0
  %313 = vmatpush1.bf16.msra.mxu0 %v197
  %314 = vmatprep.subr.bf16.mxu0 0
  %315 = vmatpush1.bf16.msra.mxu0 %v200
  %316 = vmatprep.subr.bf16.mxu0 0
  %317 = vmatpush1.bf16.msra.mxu0 %v203
  %318 = vmatprep.subr.bf16.mxu0 0
  %319 = vmatpush1.bf16.msra.mxu0 %v206
  %320 = vmatprep.subr.bf16.mxu0 0
  %321 = vmatpush1.bf16.msra.mxu0 0
  %322 = vmatprep.subr.bf16.mxu0 0
  %323 = vmatpush1.bf16.msra.mxu0 0
  %324 = vmatprep.subr.bf16.mxu0 0
  %325 = vmatpush1.bf16.msra.mxu0 0
  %326 = vmatprep.subr.bf16.mxu0 0
  %327 = vmatpush1.bf16.msra.mxu0 0
  %328 = vmatprep.subr.bf16.mxu0 0
  %329 = vmatpush1.bf16.msra.mxu0 0
  %330 = vmatprep.subr.bf16.mxu0 0
  %331 = vmatpush1.bf16.msra.mxu0 0
  %332 = vmatprep.subr.bf16.mxu0 0
  %333 = vmatpush1.bf16.msra.mxu0 0
  %334 = vmatprep.subr.bf16.mxu0 0
  %335 = vmatpush1.bf16.msra.mxu0 0
  %336 = vmatprep.mubr.bf16.mxu0 0
  %337 = vmatmul.mubr.bf16.gmra.mrb[0].mxu0 %v95
  %v338 = vpop.f32.mrb[0].mxu0
  %v339 = vadd.f32 0.0, %v338
  %v340 = vpop.f32.mrb[0].mxu0
  %v341 = vpop.f32.mrb[0].mxu0
  %v342 = vadd.f32 0.0, %v341
  %v343 = vpop.f32.mrb[0].mxu0
  %344 = vmatprep.mubr.bf16.mxu0 0
  %345 = vmatmul.mubr.bf16.gmra.mrb[0].mxu0 %v96
  %v346 = vpop.f32.mrb[0].mxu0
  %v347 = vadd.f32 0.0, %v346
  %v348 = vpop.f32.mrb[0].mxu0
  %v349 = vpop.f32.mrb[0].mxu0
  %v350 = vadd.f32 0.0, %v349
  %v351 = vpop.f32.mrb[0].mxu0
  %352 = vmatprep.mubr.bf16.mxu0 0
  %353 = vmatmul.mubr.bf16.gmra.mrb[0].mxu0 %v97
  %v354 = vpop.f32.mrb[0].mxu0
  %v355 = vadd.f32 0.0, %v354
  %v356 = vpop.f32.mrb[0].mxu0
  %v357 = vpop.f32.mrb[0].mxu0
  %v358 = vadd.f32 0.0, %v357
  %v359 = vpop.f32.mrb[0].mxu0
  %360 = vmatprep.mubr.bf16.mxu0 0
  %361 = vmatmul.mubr.bf16.gmra.mrb[0].mxu0 %v98
  %v362 = vpop.f32.mrb[0].mxu0
  %v363 = vadd.f32 0.0, %v362
  %v364 = vpop.f32.mrb[0].mxu0
  %v365 = vpop.f32.mrb[0].mxu0
  %v366 = vadd.f32 0.0, %v365
  %v367 = vpop.f32.mrb[0].mxu0
  %368 = vdwg.mxu0
  %v369 = vpack.c.bf16 %v270, %v266
  %v370 = vpack.c.bf16 %v272, %v268
  %v371 = vpack.c.bf16 %v342, %v339
  %v372 = vpack.c.bf16 %v280, %v276
  %v373 = vpack.c.bf16 %v282, %v278
  %v374 = vpack.c.bf16 %v350, %v347
  %v375 = vpack.c.bf16 %v290, %v286
  %v376 = vpack.c.bf16 %v292, %v288
  %v377 = vpack.c.bf16 %v358, %v355
  %v378 = vpack.c.bf16 %v300, %v296
  %v379 = vpack.c.bf16 %v302, %v298
  %v380 = vpack.c.bf16 %v366, %v363
  %v381 = vld [vmem:[%s2] sm:$0xff]
  %v382 = vld [vmem:[%s2 + $0x8] sm:$0xff]
  %v383 = vld [vmem:[%s2 + $0x10] sm:$0xff]
  %v384 = vld [vmem:[%s2 + $0x18] sm:$0xff]
  %v385 = vld [vmem:[%s2 + $0x20] sm:$0xff]
  %v386 = vld [vmem:[%s2 + $0x28] sm:$0xff]
  %v387 = vld [vmem:[%s2 + $0x30] sm:$0xff]
  %v388 = vld [vmem:[%s2 + $0x38] sm:$0xff]
  %v389 = vld [vmem:[%s2 + $0x40] sm:$0xff]
  %v390 = vld [vmem:[%s2 + $0x48] sm:$0xff]
  %v391 = vld [vmem:[%s2 + $0x50] sm:$0xff]
  %v392 = vld [vmem:[%s2 + $0x58] sm:$0xff]
  %v393 = vld [vmem:[%s2 + $0x60] sm:$0xff]
  %v394 = vld [vmem:[%s2 + $0x68] sm:$0xff]
  %v395 = vld [vmem:[%s2 + $0x70] sm:$0xff]
  %v396 = vld [vmem:[%s2 + $0x78] sm:$0xff]
  %v397 = vld [vmem:[%s2 + $0x80] sm:$0xff]
  %v398 = vld [vmem:[%s2 + $0x88] sm:$0xff]
  %v399 = vld [vmem:[%s2 + $0x90] sm:$0xff]
  %v400 = vld [vmem:[%s2 + $0x98] sm:$0xff]
  %v401 = vld [vmem:[%s2 + $0xa0] sm:$0xff]
  %v402 = vld [vmem:[%s2 + $0xa8] sm:$0xff]
  %v403 = vld [vmem:[%s2 + $0xb0] sm:$0xff]
  %v404 = vld [vmem:[%s2 + $0xb8] sm:$0xff]
  %v405 = vld [vmem:[%s2 + $0xc0] sm:$0xff]
  %v406 = vld [vmem:[%s2 + $0xc8] sm:$0xff]
  %v407 = vld [vmem:[%s2 + $0xd0] sm:$0xff]
  %v408 = vld [vmem:[%s2 + $0xd8] sm:$0xff]
  %v409 = vld [vmem:[%s2 + $0xe0] sm:$0xff]
  %v410 = vld [vmem:[%s2 + $0xe8] sm:$0xff]
  %v411 = vld [vmem:[%s2 + $0xf0] sm:$0xff]
  %v412 = vld [vmem:[%s2 + $0xf8] sm:$0xff]
  %v413 = vld [vmem:[%s2 + $0x100] sm:$0xff]
  %v414 = vld [vmem:[%s2 + $0x108] sm:$0xff]
  %v415 = vld [vmem:[%s2 + $0x110] sm:$0xff]
  %v416 = vld [vmem:[%s2 + $0x118] sm:$0xff]
  %v417 = vld [vmem:[%s2 + $0x120] sm:$0xff]
  %v418 = vld [vmem:[%s2 + $0x128] sm:$0xff]
  %v419 = vld [vmem:[%s2 + $0x130] sm:$0xff]
  %v420 = vld [vmem:[%s2 + $0x138] sm:$0xff]
  %v421 = vld [vmem:[%s2 + $0x140] sm:$0xff]
  %v422 = vld [vmem:[%s2 + $0x148] sm:$0xff]
  %v423 = vld [vmem:[%s2 + $0x150] sm:$0xff]
  %v424 = vld [vmem:[%s2 + $0x158] sm:$0xff]
  %v425 = vld [vmem:[%s2 + $0x160] sm:$0xff]
  %v426 = vld [vmem:[%s2 + $0x168] sm:$0xff]
  %v427 = vld [vmem:[%s2 + $0x170] sm:$0xff]
  %v428 = vld [vmem:[%s2 + $0x178] sm:$0xff]
  %v429 = vld [vmem:[%s2 + $0x180] sm:$0xff]
  %v430 = vld [vmem:[%s2 + $0x188] sm:$0xff]
  %v431 = vld [vmem:[%s2 + $0x190] sm:$0xff]
  %v432 = vld [vmem:[%s2 + $0x198] sm:$0xff]
  %v433 = vld [vmem:[%s2 + $0x1a0] sm:$0xff]
  %v434 = vld [vmem:[%s2 + $0x1a8] sm:$0xff]
  %v435 = vld [vmem:[%s2 + $0x1b0] sm:$0xff]
  %v436 = vld [vmem:[%s2 + $0x1b8] sm:$0xff]
  %v437 = vld [vmem:[%s2 + $0x1c0] sm:$0xff]
  %v438 = vld [vmem:[%s2 + $0x1c8] sm:$0xff]
  %v439 = vld [vmem:[%s2 + $0x1d0] sm:$0xff]
  %v440 = vld [vmem:[%s2 + $0x1d8] sm:$0xff]
  %v441 = vld [vmem:[%s2 + $0x1e0] sm:$0xff]
  %v442 = vld [vmem:[%s2 + $0x1e8] sm:$0xff]
  %v443 = vld [vmem:[%s2 + $0x1f0] sm:$0xff]
  %v444 = vld [vmem:[%s2 + $0x1f8] sm:$0xff]
  %v445 = vld [vmem:[%s2 + $0x200] sm:$0xff]
  %v446 = vld [vmem:[%s2 + $0x208] sm:$0xff]
  %v447 = vld [vmem:[%s2 + $0x210] sm:$0xff]
  %v448 = vld [vmem:[%s2 + $0x218] sm:$0xff]
  %v449 = vld [vmem:[%s2 + $0x220] sm:$0xff]
  %v450 = vld [vmem:[%s2 + $0x228] sm:$0xff]
  %v451 = vld [vmem:[%s2 + $0x230] sm:$0xff]
  %v452 = vld [vmem:[%s2 + $0x238] sm:$0xff]
  %v453 = vld [vmem:[%s2 + $0x240] sm:$0xff]
  %v454 = vld [vmem:[%s2 + $0x248] sm:$0xff]
  %v455 = vld [vmem:[%s2 + $0x250] sm:$0xff]
  %v456 = vld [vmem:[%s2 + $0x258] sm:$0xff]
  %v457 = vld [vmem:[%s2 + $0x260] sm:$0xff]
  %v458 = vld [vmem:[%s2 + $0x268] sm:$0xff]
  %v459 = vld [vmem:[%s2 + $0x270] sm:$0xff]
  %v460 = vld [vmem:[%s2 + $0x278] sm:$0xff]
  %v461 = vld [vmem:[%s2 + $0x280] sm:$0xff]
  %v462 = vld [vmem:[%s2 + $0x288] sm:$0xff]
  %v463 = vld [vmem:[%s2 + $0x290] sm:$0xff]
  %v464 = vld [vmem:[%s2 + $0x298] sm:$0xff]
  %v465 = vld [vmem:[%s2 + $0x2a0] sm:$0xff]
  %v466 = vld [vmem:[%s2 + $0x2a8] sm:$0xff]
  %v467 = vld [vmem:[%s2 + $0x2b0] sm:$0xff]
  %v468 = vld [vmem:[%s2 + $0x2b8] sm:$0xff]
  %v469 = vld [vmem:[%s2 + $0x2c0] sm:$0xff]
  %v470 = vld [vmem:[%s2 + $0x2c8] sm:$0xff]
  %v471 = vld [vmem:[%s2 + $0x2d0] sm:$0xff]
  %v472 = vld [vmem:[%s2 + $0x2d8] sm:$0xff]
  %v473 = vld [vmem:[%s2 + $0x2e0] sm:$0xff]
  %v474 = vld [vmem:[%s2 + $0x2e8] sm:$0xff]
  %v475 = vld [vmem:[%s2 + $0x2f0] sm:$0xff]
  %v476 = vld [vmem:[%s2 + $0x2f8] sm:$0xff]
  %s477 = scalar_lea.vmem %s1, 32
  %v478 = vld [vmem:[%s477] sm:$0xf]
  %v479 = vld [vmem:[%s477 + $0x4] sm:$0xf]
  %v480 = vld [vmem:[%s477 + $0x8] sm:$0xf]
  %v481 = vld [vmem:[%s477 + $0xc] sm:$0xf]
  %v482 = vld [vmem:[%s477 + $0x10] sm:$0xf]
  %v483 = vld [vmem:[%s477 + $0x14] sm:$0xf]
  %v484 = vld [vmem:[%s477 + $0x18] sm:$0xf]
  %v485 = vld [vmem:[%s477 + $0x1c] sm:$0xf]
  %v494 = vunpack.c.l.b16 %v478
  %v495 = vunpack.c.l.b16 %v479
  %v496 = vunpack.c.l.b16 %v480
  %v497 = vunpack.c.l.b16 %v481
  %v498 = vunpack.c.l.b16 %v482
  %v499 = vunpack.c.l.b16 %v483
  %v500 = vunpack.c.l.b16 %v484
  %v501 = vunpack.c.l.b16 %v485
  %v502 = vpack.c.b16 %v495, %v494
  %v503 = vpack.c.b16 %v497, %v496
  %v504 = vpack.c.b16 %v499, %v498
  %v505 = vpack.c.b16 %v501, %v500
  %510 = vmatprep.subr.bf16.mxu0 %v184
  %511 = vmatpush1.bf16.msra.mxu0 %v183
  %512 = vmatprep.subr.bf16.mxu0 %v187
  %513 = vmatpush1.bf16.msra.mxu0 %v186
  %514 = vmatprep.subr.bf16.mxu0 %v190
  %515 = vmatpush1.bf16.msra.mxu0 %v189
  %516 = vmatprep.subr.bf16.mxu0 %v193
  %517 = vmatpush1.bf16.msra.mxu0 %v192
  %518 = vmatprep.subr.bf16.mxu0 %v196
  %519 = vmatpush1.bf16.msra.mxu0 %v195
  %520 = vmatprep.subr.bf16.mxu0 %v199
  %521 = vmatpush1.bf16.msra.mxu0 %v198
  %522 = vmatprep.subr.bf16.mxu0 %v202
  %523 = vmatpush1.bf16.msra.mxu0 %v201
  %524 = vmatprep.subr.bf16.mxu0 %v205
  %525 = vmatpush1.bf16.msra.mxu0 %v204
  %526 = vmatprep.subr.bf16.mxu0 0
  %527 = vmatpush1.bf16.msra.mxu0 0
  %528 = vmatprep.subr.bf16.mxu0 0
  %529 = vmatpush1.bf16.msra.mxu0 0
  %530 = vmatprep.subr.bf16.mxu0 0
  %531 = vmatpush1.bf16.msra.mxu0 0
  %532 = vmatprep.subr.bf16.mxu0 0
  %533 = vmatpush1.bf16.msra.mxu0 0
  %534 = vmatprep.subr.bf16.mxu0 0
  %535 = vmatpush1.bf16.msra.mxu0 0
  %536 = vmatprep.subr.bf16.mxu0 0
  %537 = vmatpush1.bf16.msra.mxu0 0
  %538 = vmatprep.subr.bf16.mxu0 0
  %539 = vmatpush1.bf16.msra.mxu0 0
  %540 = vmatprep.subr.bf16.mxu0 0
  %541 = vmatpush1.bf16.msra.mxu0 0
  %542 = vmatprep.mubr.bf16.mxu0 0
  %543 = vmatmul.mubr.bf16.gmra.mrb[0].mxu0 %v502
  %v544 = vpop.f32.mrb[0].mxu0
  %v545 = vadd.f32 0.0, %v544
  %v546 = vpop.f32.mrb[0].mxu0
  %v547 = vadd.f32 0.0, %v546
  %v548 = vpop.f32.mrb[0].mxu0
  %v549 = vadd.f32 0.0, %v548
  %v550 = vpop.f32.mrb[0].mxu0
  %v551 = vadd.f32 0.0, %v550
  %552 = vmatprep.mubr.bf16.mxu0 0
  %553 = vmatmul.mubr.bf16.gmra.mrb[0].mxu0 %v503
  %v554 = vpop.f32.mrb[0].mxu0
  %v555 = vadd.f32 0.0, %v554
  %v556 = vpop.f32.mrb[0].mxu0
  %v557 = vadd.f32 0.0, %v556
  %v558 = vpop.f32.mrb[0].mxu0
  %v559 = vadd.f32 0.0, %v558
  %v560 = vpop.f32.mrb[0].mxu0
  %v561 = vadd.f32 0.0, %v560
  %562 = vmatprep.mubr.bf16.mxu0 0
  %563 = vmatmul.mubr.bf16.gmra.mrb[0].mxu0 %v504
  %v564 = vpop.f32.mrb[0].mxu0
  %v565 = vadd.f32 0.0, %v564
  %v566 = vpop.f32.mrb[0].mxu0
  %v567 = vadd.f32 0.0, %v566
  %v568 = vpop.f32.mrb[0].mxu0
  %v569 = vadd.f32 0.0, %v568
  %v570 = vpop.f32.mrb[0].mxu0
  %v571 = vadd.f32 0.0, %v570
  %572 = vmatprep.mubr.bf16.mxu0 0
  %573 = vmatmul.mubr.bf16.gmra.mrb[0].mxu0 %v505
  %v574 = vpop.f32.mrb[0].mxu0
  %v575 = vadd.f32 0.0, %v574
  %v576 = vpop.f32.mrb[0].mxu0
  %v577 = vadd.f32 0.0, %v576
  %v578 = vpop.f32.mrb[0].mxu0
  %v579 = vadd.f32 0.0, %v578
  %v580 = vpop.f32.mrb[0].mxu0
  %v581 = vadd.f32 0.0, %v580
  %582 = vdwg.mxu0
  %583 = vmatprep.subr.bf16.mxu0 0
  %584 = vmatpush1.bf16.msra.mxu0 %v185
  %585 = vmatprep.subr.bf16.mxu0 0
  %586 = vmatpush1.bf16.msra.mxu0 %v188
  %587 = vmatprep.subr.bf16.mxu0 0
  %588 = vmatpush1.bf16.msra.mxu0 %v191
  %589 = vmatprep.subr.bf16.mxu0 0
  %590 = vmatpush1.bf16.msra.mxu0 %v194
  %591 = vmatprep.subr.bf16.mxu0 0
  %592 = vmatpush1.bf16.msra.mxu0 %v197
  %593 = vmatprep.subr.bf16.mxu0 0
  %594 = vmatpush1.bf16.msra.mxu0 %v200
  %595 = vmatprep.subr.bf16.mxu0 0
  %596 = vmatpush1.bf16.msra.mxu0 %v203
  %597 = vmatprep.subr.bf16.mxu0 0
  %598 = vmatpush1.bf16.msra.mxu0 %v206
  %599 = vmatprep.subr.bf16.mxu0 0
  %600 = vmatpush1.bf16.msra.mxu0 0
  %601 = vmatprep.subr.bf16.mxu0 0
  %602 = vmatpush1.bf16.msra.mxu0 0
  %603 = vmatprep.subr.bf16.mxu0 0
  %604 = vmatpush1.bf16.msra.mxu0 0
  %605 = vmatprep.subr.bf16.mxu0 0
  %606 = vmatpush1.bf16.msra.mxu0 0
  %607 = vmatprep.subr.bf16.mxu0 0
  %608 = vmatpush1.bf16.msra.mxu0 0
  %609 = vmatprep.subr.bf16.mxu0 0
  %610 = vmatpush1.bf16.msra.mxu0 0
  %611 = vmatprep.subr.bf16.mxu0 0
  %612 = vmatpush1.bf16.msra.mxu0 0
  %613 = vmatprep.subr.bf16.mxu0 0
  %614 = vmatpush1.bf16.msra.mxu0 0
  %615 = vmatprep.mubr.bf16.mxu0 0
  %616 = vmatmul.mubr.bf16.gmra.mrb[0].mxu0 %v502
  %v617 = vpop.f32.mrb[0].mxu0
  %v618 = vadd.f32 0.0, %v617
  %v619 = vpop.f32.mrb[0].mxu0
  %v620 = vpop.f32.mrb[0].mxu0
  %v621 = vadd.f32 0.0, %v620
  %v622 = vpop.f32.mrb[0].mxu0
  %623 = vmatprep.mubr.bf16.mxu0 0
  %624 = vmatmul.mubr.bf16.gmra.mrb[0].mxu0 %v503
  %v625 = vpop.f32.mrb[0].mxu0
  %v626 = vadd.f32 0.0, %v625
  %v627 = vpop.f32.mrb[0].mxu0
  %v628 = vpop.f32.mrb[0].mxu0
  %v629 = vadd.f32 0.0, %v628
  %v630 = vpop.f32.mrb[0].mxu0
  %631 = vmatprep.mubr.bf16.mxu0 0
  %632 = vmatmul.mubr.bf16.gmra.mrb[0].mxu0 %v504
  %v633 = vpop.f32.mrb[0].mxu0
  %v634 = vadd.f32 0.0, %v633
  %v635 = vpop.f32.mrb[0].mxu0
  %v636 = vpop.f32.mrb[0].mxu0
  %v637 = vadd.f32 0.0, %v636
  %v638 = vpop.f32.mrb[0].mxu0
  %639 = vmatprep.mubr.bf16.mxu0 0
  %640 = vmatmul.mubr.bf16.gmra.mrb[0].mxu0 %v505
  %v641 = vpop.f32.mrb[0].mxu0
  %v642 = vadd.f32 0.0, %v641
  %v643 = vpop.f32.mrb[0].mxu0
  %v644 = vpop.f32.mrb[0].mxu0
  %v645 = vadd.f32 0.0, %v644
  %v646 = vpop.f32.mrb[0].mxu0
  %647 = vdwg.mxu0
  %v648 = vpack.c.bf16 %v549, %v545
  %v649 = vpack.c.bf16 %v551, %v547
  %v650 = vpack.c.bf16 %v621, %v618
  %v651 = vpack.c.bf16 %v559, %v555
  %v652 = vpack.c.bf16 %v561, %v557
  %v653 = vpack.c.bf16 %v629, %v626
  %v654 = vpack.c.bf16 %v569, %v565
  %v655 = vpack.c.bf16 %v571, %v567
  %v656 = vpack.c.bf16 %v637, %v634
  %v657 = vpack.c.bf16 %v579, %v575
  %v658 = vpack.c.bf16 %v581, %v577
  %v659 = vpack.c.bf16 %v645, %v642
  %s660 = scalar_lea.vmem %s2, 768
  %v661 = vld [vmem:[%s660] sm:$0xff]
  %v662 = vld [vmem:[%s660 + $0x8] sm:$0xff]
  %v663 = vld [vmem:[%s660 + $0x10] sm:$0xff]
  %v664 = vld [vmem:[%s660 + $0x18] sm:$0xff]
  %v665 = vld [vmem:[%s660 + $0x20] sm:$0xff]
  %v666 = vld [vmem:[%s660 + $0x28] sm:$0xff]
  %v667 = vld [vmem:[%s660 + $0x30] sm:$0xff]
  %v668 = vld [vmem:[%s660 + $0x38] sm:$0xff]
  %v669 = vld [vmem:[%s660 + $0x40] sm:$0xff]
  %v670 = vld [vmem:[%s660 + $0x48] sm:$0xff]
  %v671 = vld [vmem:[%s660 + $0x50] sm:$0xff]
  %v672 = vld [vmem:[%s660 + $0x58] sm:$0xff]
  %v673 = vld [vmem:[%s660 + $0x60] sm:$0xff]
  %v674 = vld [vmem:[%s660 + $0x68] sm:$0xff]
  %v675 = vld [vmem:[%s660 + $0x70] sm:$0xff]
  %v676 = vld [vmem:[%s660 + $0x78] sm:$0xff]
  %v677 = vld [vmem:[%s660 + $0x80] sm:$0xff]
  %v678 = vld [vmem:[%s660 + $0x88] sm:$0xff]
  %v679 = vld [vmem:[%s660 + $0x90] sm:$0xff]
  %v680 = vld [vmem:[%s660 + $0x98] sm:$0xff]
  %v681 = vld [vmem:[%s660 + $0xa0] sm:$0xff]
  %v682 = vld [vmem:[%s660 + $0xa8] sm:$0xff]
  %v683 = vld [vmem:[%s660 + $0xb0] sm:$0xff]
  %v684 = vld [vmem:[%s660 + $0xb8] sm:$0xff]
  %v685 = vld [vmem:[%s660 + $0xc0] sm:$0xff]
  %v686 = vld [vmem:[%s660 + $0xc8] sm:$0xff]
  %v687 = vld [vmem:[%s660 + $0xd0] sm:$0xff]
  %v688 = vld [vmem:[%s660 + $0xd8] sm:$0xff]
  %v689 = vld [vmem:[%s660 + $0xe0] sm:$0xff]
  %v690 = vld [vmem:[%s660 + $0xe8] sm:$0xff]
  %v691 = vld [vmem:[%s660 + $0xf0] sm:$0xff]
  %v692 = vld [vmem:[%s660 + $0xf8] sm:$0xff]
  %v693 = vld [vmem:[%s660 + $0x100] sm:$0xff]
  %v694 = vld [vmem:[%s660 + $0x108] sm:$0xff]
  %v695 = vld [vmem:[%s660 + $0x110] sm:$0xff]
  %v696 = vld [vmem:[%s660 + $0x118] sm:$0xff]
  %v697 = vld [vmem:[%s660 + $0x120] sm:$0xff]
  %v698 = vld [vmem:[%s660 + $0x128] sm:$0xff]
  %v699 = vld [vmem:[%s660 + $0x130] sm:$0xff]
  %v700 = vld [vmem:[%s660 + $0x138] sm:$0xff]
  %v701 = vld [vmem:[%s660 + $0x140] sm:$0xff]
  %v702 = vld [vmem:[%s660 + $0x148] sm:$0xff]
  %v703 = vld [vmem:[%s660 + $0x150] sm:$0xff]
  %v704 = vld [vmem:[%s660 + $0x158] sm:$0xff]
  %v705 = vld [vmem:[%s660 + $0x160] sm:$0xff]
  %v706 = vld [vmem:[%s660 + $0x168] sm:$0xff]
  %v707 = vld [vmem:[%s660 + $0x170] sm:$0xff]
  %v708 = vld [vmem:[%s660 + $0x178] sm:$0xff]
  %v709 = vld [vmem:[%s660 + $0x180] sm:$0xff]
  %v710 = vld [vmem:[%s660 + $0x188] sm:$0xff]
  %v711 = vld [vmem:[%s660 + $0x190] sm:$0xff]
  %v712 = vld [vmem:[%s660 + $0x198] sm:$0xff]
  %v713 = vld [vmem:[%s660 + $0x1a0] sm:$0xff]
  %v714 = vld [vmem:[%s660 + $0x1a8] sm:$0xff]
  %v715 = vld [vmem:[%s660 + $0x1b0] sm:$0xff]
  %v716 = vld [vmem:[%s660 + $0x1b8] sm:$0xff]
  %v717 = vld [vmem:[%s660 + $0x1c0] sm:$0xff]
  %v718 = vld [vmem:[%s660 + $0x1c8] sm:$0xff]
  %v719 = vld [vmem:[%s660 + $0x1d0] sm:$0xff]
  %v720 = vld [vmem:[%s660 + $0x1d8] sm:$0xff]
  %v721 = vld [vmem:[%s660 + $0x1e0] sm:$0xff]
  %v722 = vld [vmem:[%s660 + $0x1e8] sm:$0xff]
  %v723 = vld [vmem:[%s660 + $0x1f0] sm:$0xff]
  %v724 = vld [vmem:[%s660 + $0x1f8] sm:$0xff]
  %v725 = vld [vmem:[%s660 + $0x200] sm:$0xff]
  %v726 = vld [vmem:[%s660 + $0x208] sm:$0xff]
  %v727 = vld [vmem:[%s660 + $0x210] sm:$0xff]
  %v728 = vld [vmem:[%s660 + $0x218] sm:$0xff]
  %v729 = vld [vmem:[%s660 + $0x220] sm:$0xff]
  %v730 = vld [vmem:[%s660 + $0x228] sm:$0xff]
  %v731 = vld [vmem:[%s660 + $0x230] sm:$0xff]
  %v732 = vld [vmem:[%s660 + $0x238] sm:$0xff]
  %v733 = vld [vmem:[%s660 + $0x240] sm:$0xff]
  %v734 = vld [vmem:[%s660 + $0x248] sm:$0xff]
  %v735 = vld [vmem:[%s660 + $0x250] sm:$0xff]
  %v736 = vld [vmem:[%s660 + $0x258] sm:$0xff]
  %v737 = vld [vmem:[%s660 + $0x260] sm:$0xff]
  %v738 = vld [vmem:[%s660 + $0x268] sm:$0xff]
  %v739 = vld [vmem:[%s660 + $0x270] sm:$0xff]
  %v740 = vld [vmem:[%s660 + $0x278] sm:$0xff]
  %v741 = vld [vmem:[%s660 + $0x280] sm:$0xff]
  %v742 = vld [vmem:[%s660 + $0x288] sm:$0xff]
  %v743 = vld [vmem:[%s660 + $0x290] sm:$0xff]
  %v744 = vld [vmem:[%s660 + $0x298] sm:$0xff]
  %v745 = vld [vmem:[%s660 + $0x2a0] sm:$0xff]
  %v746 = vld [vmem:[%s660 + $0x2a8] sm:$0xff]
  %v747 = vld [vmem:[%s660 + $0x2b0] sm:$0xff]
  %v748 = vld [vmem:[%s660 + $0x2b8] sm:$0xff]
  %v749 = vld [vmem:[%s660 + $0x2c0] sm:$0xff]
  %v750 = vld [vmem:[%s660 + $0x2c8] sm:$0xff]
  %v751 = vld [vmem:[%s660 + $0x2d0] sm:$0xff]
  %v752 = vld [vmem:[%s660 + $0x2d8] sm:$0xff]
  %v753 = vld [vmem:[%s660 + $0x2e0] sm:$0xff]
  %v754 = vld [vmem:[%s660 + $0x2e8] sm:$0xff]
  %v755 = vld [vmem:[%s660 + $0x2f0] sm:$0xff]
  %v756 = vld [vmem:[%s660 + $0x2f8] sm:$0xff]
  %v853 = vunpack.c.l.b16 %v661
  %v854 = vunpack.c.h.b16 %v661
  %v855 = vunpack.c.l.b16 %v662
  %v856 = vunpack.c.h.b16 %v662
  %v857 = vunpack.c.l.b16 %v663
  %v858 = vunpack.c.h.b16 %v663
  %v859 = vunpack.c.l.b16 %v664
  %v860 = vunpack.c.h.b16 %v664
  %v861 = vunpack.c.l.b16 %v665
  %v862 = vunpack.c.h.b16 %v665
  %v863 = vunpack.c.l.b16 %v666
  %v864 = vunpack.c.h.b16 %v666
  %v865 = vunpack.c.l.b16 %v667
  %v866 = vunpack.c.h.b16 %v667
  %v867 = vunpack.c.l.b16 %v668
  %v868 = vunpack.c.h.b16 %v668
  %v869 = vunpack.c.l.b16 %v669
  %v870 = vunpack.c.h.b16 %v669
  %v871 = vunpack.c.l.b16 %v670
  %v872 = vunpack.c.h.b16 %v670
  %v873 = vunpack.c.l.b16 %v671
  %v874 = vunpack.c.h.b16 %v671
  %v875 = vunpack.c.l.b16 %v672
  %v876 = vunpack.c.h.b16 %v672
  %v877 = vunpack.c.l.b16 %v673
  %v878 = vunpack.c.h.b16 %v673
  %v879 = vunpack.c.l.b16 %v674
  %v880 = vunpack.c.h.b16 %v674
  %v881 = vunpack.c.l.b16 %v675
  %v882 = vunpack.c.h.b16 %v675
  %v883 = vunpack.c.l.b16 %v676
  %v884 = vunpack.c.h.b16 %v676
  %v885 = vunpack.c.l.b16 %v677
  %v886 = vunpack.c.h.b16 %v677
  %v887 = vunpack.c.l.b16 %v678
  %v888 = vunpack.c.h.b16 %v678
  %v889 = vunpack.c.l.b16 %v679
  %v890 = vunpack.c.h.b16 %v679
  %v891 = vunpack.c.l.b16 %v680
  %v892 = vunpack.c.h.b16 %v680
  %v893 = vunpack.c.l.b16 %v681
  %v894 = vunpack.c.h.b16 %v681
  %v895 = vunpack.c.l.b16 %v682
  %v896 = vunpack.c.h.b16 %v682
  %v897 = vunpack.c.l.b16 %v683
  %v898 = vunpack.c.h.b16 %v683
  %v899 = vunpack.c.l.b16 %v684
  %v900 = vunpack.c.h.b16 %v684
  %v901 = vunpack.c.l.b16 %v685
  %v902 = vunpack.c.h.b16 %v685
  %v903 = vunpack.c.l.b16 %v686
  %v904 = vunpack.c.h.b16 %v686
  %v905 = vunpack.c.l.b16 %v687
  %v906 = vunpack.c.h.b16 %v687
  %v907 = vunpack.c.l.b16 %v688
  %v908 = vunpack.c.h.b16 %v688
  %v909 = vunpack.c.l.b16 %v689
  %v910 = vunpack.c.h.b16 %v689
  %v911 = vunpack.c.l.b16 %v690
  %v912 = vunpack.c.h.b16 %v690
  %v913 = vunpack.c.l.b16 %v691
  %v914 = vunpack.c.h.b16 %v691
  %v915 = vunpack.c.l.b16 %v692
  %v916 = vunpack.c.h.b16 %v692
  %v917 = vunpack.c.l.b16 %v693
  %v918 = vunpack.c.h.b16 %v693
  %v919 = vunpack.c.l.b16 %v694
  %v920 = vunpack.c.h.b16 %v694
  %v921 = vunpack.c.l.b16 %v695
  %v922 = vunpack.c.h.b16 %v695
  %v923 = vunpack.c.l.b16 %v696
  %v924 = vunpack.c.h.b16 %v696
  %v925 = vunpack.c.l.b16 %v697
  %v926 = vunpack.c.h.b16 %v697
  %v927 = vunpack.c.l.b16 %v698
  %v928 = vunpack.c.h.b16 %v698
  %v929 = vunpack.c.l.b16 %v699
  %v930 = vunpack.c.h.b16 %v699
  %v931 = vunpack.c.l.b16 %v700
  %v932 = vunpack.c.h.b16 %v700
  %v933 = vunpack.c.l.b16 %v701
  %v934 = vunpack.c.h.b16 %v701
  %v935 = vunpack.c.l.b16 %v702
  %v936 = vunpack.c.h.b16 %v702
  %v937 = vunpack.c.l.b16 %v703
  %v938 = vunpack.c.h.b16 %v703
  %v939 = vunpack.c.l.b16 %v704
  %v940 = vunpack.c.h.b16 %v704
  %v941 = vunpack.c.l.b16 %v705
  %v942 = vunpack.c.h.b16 %v705
  %v943 = vunpack.c.l.b16 %v706
  %v944 = vunpack.c.h.b16 %v706
  %v945 = vunpack.c.l.b16 %v707
  %v946 = vunpack.c.h.b16 %v707
  %v947 = vunpack.c.l.b16 %v708
  %v948 = vunpack.c.h.b16 %v708
  %v949 = vunpack.c.l.b16 %v709
  %v950 = vunpack.c.h.b16 %v709
  %v951 = vunpack.c.l.b16 %v710
  %v952 = vunpack.c.h.b16 %v710
  %v953 = vunpack.c.l.b16 %v711
  %v954 = vunpack.c.h.b16 %v711
  %v955 = vunpack.c.l.b16 %v712
  %v956 = vunpack.c.h.b16 %v712
  %v957 = vunpack.c.l.b16 %v713
  %v958 = vunpack.c.h.b16 %v713
  %v959 = vunpack.c.l.b16 %v714
  %v960 = vunpack.c.h.b16 %v714
  %v961 = vunpack.c.l.b16 %v715
  %v962 = vunpack.c.h.b16 %v715
  %v963 = vunpack.c.l.b16 %v716
  %v964 = vunpack.c.h.b16 %v716
  %v965 = vunpack.c.l.b16 %v717
  %v966 = vunpack.c.h.b16 %v717
  %v967 = vunpack.c.l.b16 %v718
  %v968 = vunpack.c.h.b16 %v718
  %v969 = vunpack.c.l.b16 %v719
  %v970 = vunpack.c.h.b16 %v719
  %v971 = vunpack.c.l.b16 %v720
  %v972 = vunpack.c.h.b16 %v720
  %v973 = vunpack.c.l.b16 %v721
  %v974 = vunpack.c.h.b16 %v721
  %v975 = vunpack.c.l.b16 %v722
  %v976 = vunpack.c.h.b16 %v722
  %v977 = vunpack.c.l.b16 %v723
  %v978 = vunpack.c.h.b16 %v723
  %v979 = vunpack.c.l.b16 %v724
  %v980 = vunpack.c.h.b16 %v724
  %v981 = vunpack.c.l.b16 %v725
  %v982 = vunpack.c.h.b16 %v725
  %v983 = vunpack.c.l.b16 %v726
  %v984 = vunpack.c.h.b16 %v726
  %v985 = vunpack.c.l.b16 %v727
  %v986 = vunpack.c.h.b16 %v727
  %v987 = vunpack.c.l.b16 %v728
  %v988 = vunpack.c.h.b16 %v728
  %v989 = vunpack.c.l.b16 %v729
  %v990 = vunpack.c.h.b16 %v729
  %v991 = vunpack.c.l.b16 %v730
  %v992 = vunpack.c.h.b16 %v730
  %v993 = vunpack.c.l.b16 %v731
  %v994 = vunpack.c.h.b16 %v731
  %v995 = vunpack.c.l.b16 %v732
  %v996 = vunpack.c.h.b16 %v732
  %v997 = vunpack.c.l.b16 %v733
  %v998 = vunpack.c.h.b16 %v733
  %v999 = vunpack.c.l.b16 %v734
  %v1000 = vunpack.c.h.b16 %v734
  %v1001 = vunpack.c.l.b16 %v735
  %v1002 = vunpack.c.h.b16 %v735
  %v1003 = vunpack.c.l.b16 %v736
  %v1004 = vunpack.c.h.b16 %v736
  %v1005 = vunpack.c.l.b16 %v737
  %v1006 = vunpack.c.h.b16 %v737
  %v1007 = vunpack.c.l.b16 %v738
  %v1008 = vunpack.c.h.b16 %v738
  %v1009 = vunpack.c.l.b16 %v739
  %v1010 = vunpack.c.h.b16 %v739
  %v1011 = vunpack.c.l.b16 %v740
  %v1012 = vunpack.c.h.b16 %v740
  %v1013 = vunpack.c.l.b16 %v741
  %v1014 = vunpack.c.h.b16 %v741
  %v1015 = vunpack.c.l.b16 %v742
  %v1016 = vunpack.c.h.b16 %v742
  %v1017 = vunpack.c.l.b16 %v743
  %v1018 = vunpack.c.h.b16 %v743
  %v1019 = vunpack.c.l.b16 %v744
  %v1020 = vunpack.c.h.b16 %v744
  %v1021 = vunpack.c.l.b16 %v745
  %v1022 = vunpack.c.h.b16 %v745
  %v1023 = vunpack.c.l.b16 %v746
  %v1024 = vunpack.c.h.b16 %v746
  %v1025 = vunpack.c.l.b16 %v747
  %v1026 = vunpack.c.h.b16 %v747
  %v1027 = vunpack.c.l.b16 %v748
  %v1028 = vunpack.c.h.b16 %v748
  %v1029 = vunpack.c.l.b16 %v749
  %v1030 = vunpack.c.h.b16 %v749
  %v1031 = vunpack.c.l.b16 %v750
  %v1032 = vunpack.c.h.b16 %v750
  %v1033 = vunpack.c.l.b16 %v751
  %v1034 = vunpack.c.h.b16 %v751
  %v1035 = vunpack.c.l.b16 %v752
  %v1036 = vunpack.c.h.b16 %v752
  %v1037 = vunpack.c.l.b16 %v753
  %v1038 = vunpack.c.h.b16 %v753
  %v1039 = vunpack.c.l.b16 %v754
  %v1040 = vunpack.c.h.b16 %v754
  %v1041 = vunpack.c.l.b16 %v755
  %v1042 = vunpack.c.h.b16 %v755
  %v1043 = vunpack.c.l.b16 %v756
  %v1044 = vunpack.c.h.b16 %v756
  %v1045 = vpack.c.b16 %v857, %v853
  %v1046 = vpack.c.b16 %v858, %v854
  %v1047 = vpack.c.b16 %v859, %v855
  %v1048 = vpack.c.b16 %v860, %v856
  %v1049 = vpack.c.b16 %v865, %v861
  %v1050 = vpack.c.b16 %v866, %v862
  %v1051 = vpack.c.b16 %v867, %v863
  %v1052 = vpack.c.b16 %v868, %v864
  %v1053 = vpack.c.b16 %v873, %v869
  %v1054 = vpack.c.b16 %v874, %v870
  %v1055 = vpack.c.b16 %v875, %v871
  %v1056 = vpack.c.b16 %v876, %v872
  %v1057 = vpack.c.b16 %v881, %v877
  %v1058 = vpack.c.b16 %v882, %v878
  %v1059 = vpack.c.b16 %v883, %v879
  %v1060 = vpack.c.b16 %v884, %v880
  %v1061 = vpack.c.b16 %v889, %v885
  %v1062 = vpack.c.b16 %v890, %v886
  %v1063 = vpack.c.b16 %v891, %v887
  %v1064 = vpack.c.b16 %v892, %v888
  %v1065 = vpack.c.b16 %v897, %v893
  %v1066 = vpack.c.b16 %v898, %v894
  %v1067 = vpack.c.b16 %v899, %v895
  %v1068 = vpack.c.b16 %v900, %v896
  %v1069 = vpack.c.b16 %v905, %v901
  %v1070 = vpack.c.b16 %v906, %v902
  %v1071 = vpack.c.b16 %v907, %v903
  %v1072 = vpack.c.b16 %v908, %v904
  %v1073 = vpack.c.b16 %v913, %v909
  %v1074 = vpack.c.b16 %v914, %v910
  %v1075 = vpack.c.b16 %v915, %v911
  %v1076 = vpack.c.b16 %v916, %v912
  %v1077 = vpack.c.b16 %v921, %v917
  %v1078 = vpack.c.b16 %v922, %v918
  %v1079 = vpack.c.b16 %v923, %v919
  %v1080 = vpack.c.b16 %v924, %v920
  %v1081 = vpack.c.b16 %v929, %v925
  %v1082 = vpack.c.b16 %v930, %v926
  %v1083 = vpack.c.b16 %v931, %v927
  %v1084 = vpack.c.b16 %v932, %v928
  %v1085 = vpack.c.b16 %v937, %v933
  %v1086 = vpack.c.b16 %v938, %v934
  %v1087 = vpack.c.b16 %v939, %v935
  %v1088 = vpack.c.b16 %v940, %v936
  %v1089 = vpack.c.b16 %v945, %v941
  %v1090 = vpack.c.b16 %v946, %v942
  %v1091 = vpack.c.b16 %v947, %v943
  %v1092 = vpack.c.b16 %v948, %v944
  %v1093 = vpack.c.b16 %v953, %v949
  %v1094 = vpack.c.b16 %v954, %v950
  %v1095 = vpack.c.b16 %v955, %v951
  %v1096 = vpack.c.b16 %v956, %v952
  %v1097 = vpack.c.b16 %v961, %v957
  %v1098 = vpack.c.b16 %v962, %v958
  %v1099 = vpack.c.b16 %v963, %v959
  %v1100 = vpack.c.b16 %v964, %v960
  %v1101 = vpack.c.b16 %v969, %v965
  %v1102 = vpack.c.b16 %v970, %v966
  %v1103 = vpack.c.b16 %v971, %v967
  %v1104 = vpack.c.b16 %v972, %v968
  %v1105 = vpack.c.b16 %v977, %v973
  %v1106 = vpack.c.b16 %v978, %v974
  %v1107 = vpack.c.b16 %v979, %v975
  %v1108 = vpack.c.b16 %v980, %v976
  %v1109 = vpack.c.b16 %v985, %v981
  %v1110 = vpack.c.b16 %v986, %v982
  %v1111 = vpack.c.b16 %v987, %v983
  %v1112 = vpack.c.b16 %v988, %v984
  %v1113 = vpack.c.b16 %v993, %v989
  %v1114 = vpack.c.b16 %v994, %v990
  %v1115 = vpack.c.b16 %v995, %v991
  %v1116 = vpack.c.b16 %v996, %v992
  %v1117 = vpack.c.b16 %v1001, %v997
  %v1118 = vpack.c.b16 %v1002, %v998
  %v1119 = vpack.c.b16 %v1003, %v999
  %v1120 = vpack.c.b16 %v1004, %v1000
  %v1121 = vpack.c.b16 %v1009, %v1005
  %v1122 = vpack.c.b16 %v1010, %v1006
  %v1123 = vpack.c.b16 %v1011, %v1007
  %v1124 = vpack.c.b16 %v1012, %v1008
  %v1125 = vpack.c.b16 %v1017, %v1013
  %v1126 = vpack.c.b16 %v1018, %v1014
  %v1127 = vpack.c.b16 %v1019, %v1015
  %v1128 = vpack.c.b16 %v1020, %v1016
  %v1129 = vpack.c.b16 %v1025, %v1021
  %v1130 = vpack.c.b16 %v1026, %v1022
  %v1131 = vpack.c.b16 %v1027, %v1023
  %v1132 = vpack.c.b16 %v1028, %v1024
  %v1133 = vpack.c.b16 %v1033, %v1029
  %v1134 = vpack.c.b16 %v1034, %v1030
  %v1135 = vpack.c.b16 %v1035, %v1031
  %v1136 = vpack.c.b16 %v1036, %v1032
  %v1137 = vpack.c.b16 %v1041, %v1037
  %v1138 = vpack.c.b16 %v1042, %v1038
  %v1139 = vpack.c.b16 %v1043, %v1039
  %v1140 = vpack.c.b16 %v1044, %v1040
  %1237 = vmatprep.subr.bf16.mxu0 %v1046
  %1238 = vmatpush1.bf16.msra.mxu0 %v1045
  %1239 = vmatprep.subr.bf16.mxu0 %v1050
  %1240 = vmatpush1.bf16.msra.mxu0 %v1049
  %1241 = vmatprep.subr.bf16.mxu0 %v1054
  %1242 = vmatpush1.bf16.msra.mxu0 %v1053
  %1243 = vmatprep.subr.bf16.mxu0 %v1058
  %1244 = vmatpush1.bf16.msra.mxu0 %v1057
  %1245 = vmatprep.subr.bf16.mxu0 %v1062
  %1246 = vmatpush1.bf16.msra.mxu0 %v1061
  %1247 = vmatprep.subr.bf16.mxu0 %v1066
  %1248 = vmatpush1.bf16.msra.mxu0 %v1065
  %1249 = vmatprep.subr.bf16.mxu0 %v1070
  %1250 = vmatpush1.bf16.msra.mxu0 %v1069
  %1251 = vmatprep.subr.bf16.mxu0 %v1074
  %1252 = vmatpush1.bf16.msra.mxu0 %v1073
  %1253 = vmatprep.subr.bf16.mxu0 %v1078
  %1254 = vmatpush1.bf16.msra.mxu0 %v1077
  %1255 = vmatprep.subr.bf16.mxu0 %v1082
  %1256 = vmatpush1.bf16.msra.mxu0 %v1081
  %1257 = vmatprep.subr.bf16.mxu0 %v1086
  %1258 = vmatpush1.bf16.msra.mxu0 %v1085
  %1259 = vmatprep.subr.bf16.mxu0 %v1090
  %1260 = vmatpush1.bf16.msra.mxu0 %v1089
  %1261 = vmatprep.subr.bf16.mxu0 %v1094
  %1262 = vmatpush1.bf16.msra.mxu0 %v1093
  %1263 = vmatprep.subr.bf16.mxu0 %v1098
  %1264 = vmatpush1.bf16.msra.mxu0 %v1097
  %1265 = vmatprep.subr.bf16.mxu0 %v1102
  %1266 = vmatpush1.bf16.msra.mxu0 %v1101
  %1267 = vmatprep.subr.bf16.mxu0 %v1106
  %1268 = vmatpush1.bf16.msra.mxu0 %v1105
  %1269 = vmatprep.mubr.bf16.mxu0 %v649
  %1270 = vmatmul.mubr.bf16.gmra.mrb[0].mxu0 %v648
  %v1271 = vpop.f32.mrb[0].mxu0
  %v1272 = vadd.f32 0.0, %v1271
  %v1273 = vpop.f32.mrb[0].mxu0
  %v1274 = vadd.f32 0.0, %v1273
  %v1275 = vpop.f32.mrb[0].mxu0
  %v1276 = vadd.f32 0.0, %v1275
  %v1277 = vpop.f32.mrb[0].mxu0
  %v1278 = vadd.f32 0.0, %v1277
  %1279 = vmatprep.mubr.bf16.mxu0 %v652
  %1280 = vmatmul.mubr.bf16.gmra.mrb[0].mxu0 %v651
  %v1281 = vpop.f32.mrb[0].mxu0
  %v1282 = vadd.f32 0.0, %v1281
  %v1283 = vpop.f32.mrb[0].mxu0
  %v1284 = vadd.f32 0.0, %v1283
  %v1285 = vpop.f32.mrb[0].mxu0
  %v1286 = vadd.f32 0.0, %v1285
  %v1287 = vpop.f32.mrb[0].mxu0
  %v1288 = vadd.f32 0.0, %v1287
  %1289 = vmatprep.mubr.bf16.mxu0 %v655
  %1290 = vmatmul.mubr.bf16.gmra.mrb[0].mxu0 %v654
  %v1291 = vpop.f32.mrb[0].mxu0
  %v1292 = vadd.f32 0.0, %v1291
  %v1293 = vpop.f32.mrb[0].mxu0
  %v1294 = vadd.f32 0.0, %v1293
  %v1295 = vpop.f32.mrb[0].mxu0
  %v1296 = vadd.f32 0.0, %v1295
  %v1297 = vpop.f32.mrb[0].mxu0
  %v1298 = vadd.f32 0.0, %v1297
  %1299 = vmatprep.mubr.bf16.mxu0 %v658
  %1300 = vmatmul.mubr.bf16.gmra.mrb[0].mxu0 %v657
  %v1301 = vpop.f32.mrb[0].mxu0
  %v1302 = vadd.f32 0.0, %v1301
  %v1303 = vpop.f32.mrb[0].mxu0
  %v1304 = vadd.f32 0.0, %v1303
  %v1305 = vpop.f32.mrb[0].mxu0
  %v1306 = vadd.f32 0.0, %v1305
  %v1307 = vpop.f32.mrb[0].mxu0
  %v1308 = vadd.f32 0.0, %v1307
  %1309 = vdwg.mxu0
  %1310 = vmatprep.subr.bf16.mxu0 %v1110
  %1311 = vmatpush1.bf16.msra.mxu0 %v1109
  %1312 = vmatprep.subr.bf16.mxu0 %v1114
  %1313 = vmatpush1.bf16.msra.mxu0 %v1113
  %1314 = vmatprep.subr.bf16.mxu0 %v1118
  %1315 = vmatpush1.bf16.msra.mxu0 %v1117
  %1316 = vmatprep.subr.bf16.mxu0 %v1122
  %1317 = vmatpush1.bf16.msra.mxu0 %v1121
  %1318 = vmatprep.subr.bf16.mxu0 %v1126
  %1319 = vmatpush1.bf16.msra.mxu0 %v1125
  %1320 = vmatprep.subr.bf16.mxu0 %v1130
  %1321 = vmatpush1.bf16.msra.mxu0 %v1129
  %1322 = vmatprep.subr.bf16.mxu0 %v1134
  %1323 = vmatpush1.bf16.msra.mxu0 %v1133
  %1324 = vmatprep.subr.bf16.mxu0 %v1138
  %1325 = vmatpush1.bf16.msra.mxu0 %v1137
  %1326 = vmatprep.subr.bf16.mxu0 0
  %1327 = vmatpush1.bf16.msra.mxu0 0
  %1328 = vmatprep.subr.bf16.mxu0 0
  %1329 = vmatpush1.bf16.msra.mxu0 0
  %1330 = vmatprep.subr.bf16.mxu0 0
  %1331 = vmatpush1.bf16.msra.mxu0 0
  %1332 = vmatprep.subr.bf16.mxu0 0
  %1333 = vmatpush1.bf16.msra.mxu0 0
  %1334 = vmatprep.subr.bf16.mxu0 0
  %1335 = vmatpush1.bf16.msra.mxu0 0
  %1336 = vmatprep.subr.bf16.mxu0 0
  %1337 = vmatpush1.bf16.msra.mxu0 0
  %1338 = vmatprep.subr.bf16.mxu0 0
  %1339 = vmatpush1.bf16.msra.mxu0 0
  %1340 = vmatprep.subr.bf16.mxu0 0
  %1341 = vmatpush1.bf16.msra.mxu0 0
  %1342 = vmatprep.mubr.bf16.mxu0 0
  %1343 = vmatmul.mubr.bf16.gmra.mrb[0].mxu0 %v650
  %v1344 = vpop.f32.mrb[0].mxu0
  %v1345 = vadd.f32 %v1272, %v1344
  %v1346 = vpop.f32.mrb[0].mxu0
  %v1347 = vadd.f32 %v1274, %v1346
  %v1348 = vpop.f32.mrb[0].mxu0
  %v1349 = vadd.f32 %v1276, %v1348
  %v1350 = vpop.f32.mrb[0].mxu0
  %v1351 = vadd.f32 %v1278, %v1350
  %1352 = vmatprep.mubr.bf16.mxu0 0
  %1353 = vmatmul.mubr.bf16.gmra.mrb[0].mxu0 %v653
  %v1354 = vpop.f32.mrb[0].mxu0
  %v1355 = vadd.f32 %v1282, %v1354
  %v1356 = vpop.f32.mrb[0].mxu0
  %v1357 = vadd.f32 %v1284, %v1356
  %v1358 = vpop.f32.mrb[0].mxu0
  %v1359 = vadd.f32 %v1286, %v1358
  %v1360 = vpop.f32.mrb[0].mxu0
  %v1361 = vadd.f32 %v1288, %v1360
  %1362 = vmatprep.mubr.bf16.mxu0 0
  %1363 = vmatmul.mubr.bf16.gmra.mrb[0].mxu0 %v656
  %v1364 = vpop.f32.mrb[0].mxu0
  %v1365 = vadd.f32 %v1292, %v1364
  %v1366 = vpop.f32.mrb[0].mxu0
  %v1367 = vadd.f32 %v1294, %v1366
  %v1368 = vpop.f32.mrb[0].mxu0
  %v1369 = vadd.f32 %v1296, %v1368
  %v1370 = vpop.f32.mrb[0].mxu0
  %v1371 = vadd.f32 %v1298, %v1370
  %1372 = vmatprep.mubr.bf16.mxu0 0
  %1373 = vmatmul.mubr.bf16.gmra.mrb[0].mxu0 %v659
  %v1374 = vpop.f32.mrb[0].mxu0
  %v1375 = vadd.f32 %v1302, %v1374
  %v1376 = vpop.f32.mrb[0].mxu0
  %v1377 = vadd.f32 %v1304, %v1376
  %v1378 = vpop.f32.mrb[0].mxu0
  %v1379 = vadd.f32 %v1306, %v1378
  %v1380 = vpop.f32.mrb[0].mxu0
  %v1381 = vadd.f32 %v1308, %v1380
  %1382 = vdwg.mxu0
  %1383 = vmatprep.subr.bf16.mxu0 %v1048
  %1384 = vmatpush1.bf16.msra.mxu0 %v1047
  %1385 = vmatprep.subr.bf16.mxu0 %v1052
  %1386 = vmatpush1.bf16.msra.mxu0 %v1051
  %1387 = vmatprep.subr.bf16.mxu0 %v1056
  %1388 = vmatpush1.bf16.msra.mxu0 %v1055
  %1389 = vmatprep.subr.bf16.mxu0 %v1060
  %1390 = vmatpush1.bf16.msra.mxu0 %v1059
  %1391 = vmatprep.subr.bf16.mxu0 %v1064
  %1392 = vmatpush1.bf16.msra.mxu0 %v1063
  %1393 = vmatprep.subr.bf16.mxu0 %v1068
  %1394 = vmatpush1.bf16.msra.mxu0 %v1067
  %1395 = vmatprep.subr.bf16.mxu0 %v1072
  %1396 = vmatpush1.bf16.msra.mxu0 %v1071
  %1397 = vmatprep.subr.bf16.mxu0 %v1076
  %1398 = vmatpush1.bf16.msra.mxu0 %v1075
  %1399 = vmatprep.subr.bf16.mxu0 %v1080
  %1400 = vmatpush1.bf16.msra.mxu0 %v1079
  %1401 = vmatprep.subr.bf16.mxu0 %v1084
  %1402 = vmatpush1.bf16.msra.mxu0 %v1083
  %1403 = vmatprep.subr.bf16.mxu0 %v1088
  %1404 = vmatpush1.bf16.msra.mxu0 %v1087
  %1405 = vmatprep.subr.bf16.mxu0 %v1092
  %1406 = vmatpush1.bf16.msra.mxu0 %v1091
  %1407 = vmatprep.subr.bf16.mxu0 %v1096
  %1408 = vmatpush1.bf16.msra.mxu0 %v1095
  %1409 = vmatprep.subr.bf16.mxu0 %v1100
  %1410 = vmatpush1.bf16.msra.mxu0 %v1099
  %1411 = vmatprep.subr.bf16.mxu0 %v1104
  %1412 = vmatpush1.bf16.msra.mxu0 %v1103
  %1413 = vmatprep.subr.bf16.mxu0 %v1108
  %1414 = vmatpush1.bf16.msra.mxu0 %v1107
  %1415 = vmatprep.mubr.bf16.mxu0 %v649
  %1416 = vmatmul.mubr.bf16.gmra.mrb[0].mxu0 %v648
  %v1417 = vpop.f32.mrb[0].mxu0
  %v1418 = vadd.f32 0.0, %v1417
  %v1419 = vpop.f32.mrb[0].mxu0
  %v1420 = vadd.f32 0.0, %v1419
  %v1421 = vpop.f32.mrb[0].mxu0
  %v1422 = vadd.f32 0.0, %v1421
  %v1423 = vpop.f32.mrb[0].mxu0
  %v1424 = vadd.f32 0.0, %v1423
  %1425 = vmatprep.mubr.bf16.mxu0 %v652
  %1426 = vmatmul.mubr.bf16.gmra.mrb[0].mxu0 %v651
  %v1427 = vpop.f32.mrb[0].mxu0
  %v1428 = vadd.f32 0.0, %v1427
  %v1429 = vpop.f32.mrb[0].mxu0
  %v1430 = vadd.f32 0.0, %v1429
  %v1431 = vpop.f32.mrb[0].mxu0
  %v1432 = vadd.f32 0.0, %v1431
  %v1433 = vpop.f32.mrb[0].mxu0
  %v1434 = vadd.f32 0.0, %v1433
  %1435 = vmatprep.mubr.bf16.mxu0 %v655
  %1436 = vmatmul.mubr.bf16.gmra.mrb[0].mxu0 %v654
  %v1437 = vpop.f32.mrb[0].mxu0
  %v1438 = vadd.f32 0.0, %v1437
  %v1439 = vpop.f32.mrb[0].mxu0
  %v1440 = vadd.f32 0.0, %v1439
  %v1441 = vpop.f32.mrb[0].mxu0
  %v1442 = vadd.f32 0.0, %v1441
  %v1443 = vpop.f32.mrb[0].mxu0
  %v1444 = vadd.f32 0.0, %v1443
  %1445 = vmatprep.mubr.bf16.mxu0 %v658
  %1446 = vmatmul.mubr.bf16.gmra.mrb[0].mxu0 %v657
  %v1447 = vpop.f32.mrb[0].mxu0
  %v1448 = vadd.f32 0.0, %v1447
  %v1449 = vpop.f32.mrb[0].mxu0
  %v1450 = vadd.f32 0.0, %v1449
  %v1451 = vpop.f32.mrb[0].mxu0
  %v1452 = vadd.f32 0.0, %v1451
  %v1453 = vpop.f32.mrb[0].mxu0
  %v1454 = vadd.f32 0.0, %v1453
  %1455 = vdwg.mxu0
  %1456 = vmatprep.subr.bf16.mxu0 %v1112
  %1457 = vmatpush1.bf16.msra.mxu0 %v1111
  %1458 = vmatprep.subr.bf16.mxu0 %v1116
  %1459 = vmatpush1.bf16.msra.mxu0 %v1115
  %1460 = vmatprep.subr.bf16.mxu0 %v1120
  %1461 = vmatpush1.bf16.msra.mxu0 %v1119
  %1462 = vmatprep.subr.bf16.mxu0 %v1124
  %1463 = vmatpush1.bf16.msra.mxu0 %v1123
  %1464 = vmatprep.subr.bf16.mxu0 %v1128
  %1465 = vmatpush1.bf16.msra.mxu0 %v1127
  %1466 = vmatprep.subr.bf16.mxu0 %v1132
  %1467 = vmatpush1.bf16.msra.mxu0 %v1131
  %1468 = vmatprep.subr.bf16.mxu0 %v1136
  %1469 = vmatpush1.bf16.msra.mxu0 %v1135
  %1470 = vmatprep.subr.bf16.mxu0 %v1140
  %1471 = vmatpush1.bf16.msra.mxu0 %v1139
  %1472 = vmatprep.subr.bf16.mxu0 0
  %1473 = vmatpush1.bf16.msra.mxu0 0
  %1474 = vmatprep.subr.bf16.mxu0 0
  %1475 = vmatpush1.bf16.msra.mxu0 0
  %1476 = vmatprep.subr.bf16.mxu0 0
  %1477 = vmatpush1.bf16.msra.mxu0 0
  %1478 = vmatprep.subr.bf16.mxu0 0
  %1479 = vmatpush1.bf16.msra.mxu0 0
  %1480 = vmatprep.subr.bf16.mxu0 0
  %1481 = vmatpush1.bf16.msra.mxu0 0
  %1482 = vmatprep.subr.bf16.mxu0 0
  %1483 = vmatpush1.bf16.msra.mxu0 0
  %1484 = vmatprep.subr.bf16.mxu0 0
  %1485 = vmatpush1.bf16.msra.mxu0 0
  %1486 = vmatprep.subr.bf16.mxu0 0
  %1487 = vmatpush1.bf16.msra.mxu0 0
  %1488 = vmatprep.mubr.bf16.mxu0 0
  %1489 = vmatmul.mubr.bf16.gmra.mrb[0].mxu0 %v650
  %v1490 = vpop.f32.mrb[0].mxu0
  %v1491 = vadd.f32 %v1418, %v1490
  %v1492 = vpop.f32.mrb[0].mxu0
  %v1493 = vadd.f32 %v1420, %v1492
  %v1494 = vpop.f32.mrb[0].mxu0
  %v1495 = vadd.f32 %v1422, %v1494
  %v1496 = vpop.f32.mrb[0].mxu0
  %v1497 = vadd.f32 %v1424, %v1496
  %1498 = vmatprep.mubr.bf16.mxu0 0
  %1499 = vmatmul.mubr.bf16.gmra.mrb[0].mxu0 %v653
  %v1500 = vpop.f32.mrb[0].mxu0
  %v1501 = vadd.f32 %v1428, %v1500
  %v1502 = vpop.f32.mrb[0].mxu0
  %v1503 = vadd.f32 %v1430, %v1502
  %v1504 = vpop.f32.mrb[0].mxu0
  %v1505 = vadd.f32 %v1432, %v1504
  %v1506 = vpop.f32.mrb[0].mxu0
  %v1507 = vadd.f32 %v1434, %v1506
  %1508 = vmatprep.mubr.bf16.mxu0 0
  %1509 = vmatmul.mubr.bf16.gmra.mrb[0].mxu0 %v656
  %v1510 = vpop.f32.mrb[0].mxu0
  %v1511 = vadd.f32 %v1438, %v1510
  %v1512 = vpop.f32.mrb[0].mxu0
  %v1513 = vadd.f32 %v1440, %v1512
  %v1514 = vpop.f32.mrb[0].mxu0
  %v1515 = vadd.f32 %v1442, %v1514
  %v1516 = vpop.f32.mrb[0].mxu0
  %v1517 = vadd.f32 %v1444, %v1516
  %1518 = vmatprep.mubr.bf16.mxu0 0
  %1519 = vmatmul.mubr.bf16.gmra.mrb[0].mxu0 %v659
  %v1520 = vpop.f32.mrb[0].mxu0
  %v1521 = vadd.f32 %v1448, %v1520
  %v1522 = vpop.f32.mrb[0].mxu0
  %v1523 = vadd.f32 %v1450, %v1522
  %v1524 = vpop.f32.mrb[0].mxu0
  %v1525 = vadd.f32 %v1452, %v1524
  %v1526 = vpop.f32.mrb[0].mxu0
  %v1527 = vadd.f32 %v1454, %v1526
  %1528 = vdwg.mxu0
  %v1625 = vunpack.c.l.b16 %v381
  %v1626 = vunpack.c.h.b16 %v381
  %v1627 = vunpack.c.l.b16 %v382
  %v1628 = vunpack.c.h.b16 %v382
  %v1629 = vunpack.c.l.b16 %v383
  %v1630 = vunpack.c.h.b16 %v383
  %v1631 = vunpack.c.l.b16 %v384
  %v1632 = vunpack.c.h.b16 %v384
  %v1633 = vunpack.c.l.b16 %v385
  %v1634 = vunpack.c.h.b16 %v385
  %v1635 = vunpack.c.l.b16 %v386
  %v1636 = vunpack.c.h.b16 %v386
  %v1637 = vunpack.c.l.b16 %v387
  %v1638 = vunpack.c.h.b16 %v387
  %v1639 = vunpack.c.l.b16 %v388
  %v1640 = vunpack.c.h.b16 %v388
  %v1641 = vunpack.c.l.b16 %v389
  %v1642 = vunpack.c.h.b16 %v389
  %v1643 = vunpack.c.l.b16 %v390
  %v1644 = vunpack.c.h.b16 %v390
  %v1645 = vunpack.c.l.b16 %v391
  %v1646 = vunpack.c.h.b16 %v391
  %v1647 = vunpack.c.l.b16 %v392
  %v1648 = vunpack.c.h.b16 %v392
  %v1649 = vunpack.c.l.b16 %v393
  %v1650 = vunpack.c.h.b16 %v393
  %v1651 = vunpack.c.l.b16 %v394
  %v1652 = vunpack.c.h.b16 %v394
  %v1653 = vunpack.c.l.b16 %v395
  %v1654 = vunpack.c.h.b16 %v395
  %v1655 = vunpack.c.l.b16 %v396
  %v1656 = vunpack.c.h.b16 %v396
  %v1657 = vunpack.c.l.b16 %v397
  %v1658 = vunpack.c.h.b16 %v397
  %v1659 = vunpack.c.l.b16 %v398
  %v1660 = vunpack.c.h.b16 %v398
  %v1661 = vunpack.c.l.b16 %v399
  %v1662 = vunpack.c.h.b16 %v399
  %v1663 = vunpack.c.l.b16 %v400
  %v1664 = vunpack.c.h.b16 %v400
  %v1665 = vunpack.c.l.b16 %v401
  %v1666 = vunpack.c.h.b16 %v401
  %v1667 = vunpack.c.l.b16 %v402
  %v1668 = vunpack.c.h.b16 %v402
  %v1669 = vunpack.c.l.b16 %v403
  %v1670 = vunpack.c.h.b16 %v403
  %v1671 = vunpack.c.l.b16 %v404
  %v1672 = vunpack.c.h.b16 %v404
  %v1673 = vunpack.c.l.b16 %v405
  %v1674 = vunpack.c.h.b16 %v405
  %v1675 = vunpack.c.l.b16 %v406
  %v1676 = vunpack.c.h.b16 %v406
  %v1677 = vunpack.c.l.b16 %v407
  %v1678 = vunpack.c.h.b16 %v407
  %v1679 = vunpack.c.l.b16 %v408
  %v1680 = vunpack.c.h.b16 %v408
  %v1681 = vunpack.c.l.b16 %v409
  %v1682 = vunpack.c.h.b16 %v409
  %v1683 = vunpack.c.l.b16 %v410
  %v1684 = vunpack.c.h.b16 %v410
  %v1685 = vunpack.c.l.b16 %v411
  %v1686 = vunpack.c.h.b16 %v411
  %v1687 = vunpack.c.l.b16 %v412
  %v1688 = vunpack.c.h.b16 %v412
  %v1689 = vunpack.c.l.b16 %v413
  %v1690 = vunpack.c.h.b16 %v413
  %v1691 = vunpack.c.l.b16 %v414
  %v1692 = vunpack.c.h.b16 %v414
  %v1693 = vunpack.c.l.b16 %v415
  %v1694 = vunpack.c.h.b16 %v415
  %v1695 = vunpack.c.l.b16 %v416
  %v1696 = vunpack.c.h.b16 %v416
  %v1697 = vunpack.c.l.b16 %v417
  %v1698 = vunpack.c.h.b16 %v417
  %v1699 = vunpack.c.l.b16 %v418
  %v1700 = vunpack.c.h.b16 %v418
  %v1701 = vunpack.c.l.b16 %v419
  %v1702 = vunpack.c.h.b16 %v419
  %v1703 = vunpack.c.l.b16 %v420
  %v1704 = vunpack.c.h.b16 %v420
  %v1705 = vunpack.c.l.b16 %v421
  %v1706 = vunpack.c.h.b16 %v421
  %v1707 = vunpack.c.l.b16 %v422
  %v1708 = vunpack.c.h.b16 %v422
  %v1709 = vunpack.c.l.b16 %v423
  %v1710 = vunpack.c.h.b16 %v423
  %v1711 = vunpack.c.l.b16 %v424
  %v1712 = vunpack.c.h.b16 %v424
  %v1713 = vunpack.c.l.b16 %v425
  %v1714 = vunpack.c.h.b16 %v425
  %v1715 = vunpack.c.l.b16 %v426
  %v1716 = vunpack.c.h.b16 %v426
  %v1717 = vunpack.c.l.b16 %v427
  %v1718 = vunpack.c.h.b16 %v427
  %v1719 = vunpack.c.l.b16 %v428
  %v1720 = vunpack.c.h.b16 %v428
  %v1721 = vunpack.c.l.b16 %v429
  %v1722 = vunpack.c.h.b16 %v429
  %v1723 = vunpack.c.l.b16 %v430
  %v1724 = vunpack.c.h.b16 %v430
  %v1725 = vunpack.c.l.b16 %v431
  %v1726 = vunpack.c.h.b16 %v431
  %v1727 = vunpack.c.l.b16 %v432
  %v1728 = vunpack.c.h.b16 %v432
  %v1729 = vunpack.c.l.b16 %v433
  %v1730 = vunpack.c.h.b16 %v433
  %v1731 = vunpack.c.l.b16 %v434
  %v1732 = vunpack.c.h.b16 %v434
  %v1733 = vunpack.c.l.b16 %v435
  %v1734 = vunpack.c.h.b16 %v435
  %v1735 = vunpack.c.l.b16 %v436
  %v1736 = vunpack.c.h.b16 %v436
  %v1737 = vunpack.c.l.b16 %v437
  %v1738 = vunpack.c.h.b16 %v437
  %v1739 = vunpack.c.l.b16 %v438
  %v1740 = vunpack.c.h.b16 %v438
  %v1741 = vunpack.c.l.b16 %v439
  %v1742 = vunpack.c.h.b16 %v439
  %v1743 = vunpack.c.l.b16 %v440
  %v1744 = vunpack.c.h.b16 %v440
  %v1745 = vunpack.c.l.b16 %v441
  %v1746 = vunpack.c.h.b16 %v441
  %v1747 = vunpack.c.l.b16 %v442
  %v1748 = vunpack.c.h.b16 %v442
  %v1749 = vunpack.c.l.b16 %v443
  %v1750 = vunpack.c.h.b16 %v443
  %v1751 = vunpack.c.l.b16 %v444
  %v1752 = vunpack.c.h.b16 %v444
  %v1753 = vunpack.c.l.b16 %v445
  %v1754 = vunpack.c.h.b16 %v445
  %v1755 = vunpack.c.l.b16 %v446
  %v1756 = vunpack.c.h.b16 %v446
  %v1757 = vunpack.c.l.b16 %v447
  %v1758 = vunpack.c.h.b16 %v447
  %v1759 = vunpack.c.l.b16 %v448
  %v1760 = vunpack.c.h.b16 %v448
  %v1761 = vunpack.c.l.b16 %v449
  %v1762 = vunpack.c.h.b16 %v449
  %v1763 = vunpack.c.l.b16 %v450
  %v1764 = vunpack.c.h.b16 %v450
  %v1765 = vunpack.c.l.b16 %v451
  %v1766 = vunpack.c.h.b16 %v451
  %v1767 = vunpack.c.l.b16 %v452
  %v1768 = vunpack.c.h.b16 %v452
  %v1769 = vunpack.c.l.b16 %v453
  %v1770 = vunpack.c.h.b16 %v453
  %v1771 = vunpack.c.l.b16 %v454
  %v1772 = vunpack.c.h.b16 %v454
  %v1773 = vunpack.c.l.b16 %v455
  %v1774 = vunpack.c.h.b16 %v455
  %v1775 = vunpack.c.l.b16 %v456
  %v1776 = vunpack.c.h.b16 %v456
  %v1777 = vunpack.c.l.b16 %v457
  %v1778 = vunpack.c.h.b16 %v457
  %v1779 = vunpack.c.l.b16 %v458
  %v1780 = vunpack.c.h.b16 %v458
  %v1781 = vunpack.c.l.b16 %v459
  %v1782 = vunpack.c.h.b16 %v459
  %v1783 = vunpack.c.l.b16 %v460
  %v1784 = vunpack.c.h.b16 %v460
  %v1785 = vunpack.c.l.b16 %v461
  %v1786 = vunpack.c.h.b16 %v461
  %v1787 = vunpack.c.l.b16 %v462
  %v1788 = vunpack.c.h.b16 %v462
  %v1789 = vunpack.c.l.b16 %v463
  %v1790 = vunpack.c.h.b16 %v463
  %v1791 = vunpack.c.l.b16 %v464
  %v1792 = vunpack.c.h.b16 %v464
  %v1793 = vunpack.c.l.b16 %v465
  %v1794 = vunpack.c.h.b16 %v465
  %v1795 = vunpack.c.l.b16 %v466
  %v1796 = vunpack.c.h.b16 %v466
  %v1797 = vunpack.c.l.b16 %v467
  %v1798 = vunpack.c.h.b16 %v467
  %v1799 = vunpack.c.l.b16 %v468
  %v1800 = vunpack.c.h.b16 %v468
  %v1801 = vunpack.c.l.b16 %v469
  %v1802 = vunpack.c.h.b16 %v469
  %v1803 = vunpack.c.l.b16 %v470
  %v1804 = vunpack.c.h.b16 %v470
  %v1805 = vunpack.c.l.b16 %v471
  %v1806 = vunpack.c.h.b16 %v471
  %v1807 = vunpack.c.l.b16 %v472
  %v1808 = vunpack.c.h.b16 %v472
  %v1809 = vunpack.c.l.b16 %v473
  %v1810 = vunpack.c.h.b16 %v473
  %v1811 = vunpack.c.l.b16 %v474
  %v1812 = vunpack.c.h.b16 %v474
  %v1813 = vunpack.c.l.b16 %v475
  %v1814 = vunpack.c.h.b16 %v475
  %v1815 = vunpack.c.l.b16 %v476
  %v1816 = vunpack.c.h.b16 %v476
  %v1817 = vpack.c.b16 %v1629, %v1625
  %v1818 = vpack.c.b16 %v1630, %v1626
  %v1819 = vpack.c.b16 %v1631, %v1627
  %v1820 = vpack.c.b16 %v1632, %v1628
  %v1821 = vpack.c.b16 %v1637, %v1633
  %v1822 = vpack.c.b16 %v1638, %v1634
  %v1823 = vpack.c.b16 %v1639, %v1635
  %v1824 = vpack.c.b16 %v1640, %v1636
  %v1825 = vpack.c.b16 %v1645, %v1641
  %v1826 = vpack.c.b16 %v1646, %v1642
  %v1827 = vpack.c.b16 %v1647, %v1643
  %v1828 = vpack.c.b16 %v1648, %v1644
  %v1829 = vpack.c.b16 %v1653, %v1649
  %v1830 = vpack.c.b16 %v1654, %v1650
  %v1831 = vpack.c.b16 %v1655, %v1651
  %v1832 = vpack.c.b16 %v1656, %v1652
  %v1833 = vpack.c.b16 %v1661, %v1657
  %v1834 = vpack.c.b16 %v1662, %v1658
  %v1835 = vpack.c.b16 %v1663, %v1659
  %v1836 = vpack.c.b16 %v1664, %v1660
  %v1837 = vpack.c.b16 %v1669, %v1665
  %v1838 = vpack.c.b16 %v1670, %v1666
  %v1839 = vpack.c.b16 %v1671, %v1667
  %v1840 = vpack.c.b16 %v1672, %v1668
  %v1841 = vpack.c.b16 %v1677, %v1673
  %v1842 = vpack.c.b16 %v1678, %v1674
  %v1843 = vpack.c.b16 %v1679, %v1675
  %v1844 = vpack.c.b16 %v1680, %v1676
  %v1845 = vpack.c.b16 %v1685, %v1681
  %v1846 = vpack.c.b16 %v1686, %v1682
  %v1847 = vpack.c.b16 %v1687, %v1683
  %v1848 = vpack.c.b16 %v1688, %v1684
  %v1849 = vpack.c.b16 %v1693, %v1689
  %v1850 = vpack.c.b16 %v1694, %v1690
  %v1851 = vpack.c.b16 %v1695, %v1691
  %v1852 = vpack.c.b16 %v1696, %v1692
  %v1853 = vpack.c.b16 %v1701, %v1697
  %v1854 = vpack.c.b16 %v1702, %v1698
  %v1855 = vpack.c.b16 %v1703, %v1699
  %v1856 = vpack.c.b16 %v1704, %v1700
  %v1857 = vpack.c.b16 %v1709, %v1705
  %v1858 = vpack.c.b16 %v1710, %v1706
  %v1859 = vpack.c.b16 %v1711, %v1707
  %v1860 = vpack.c.b16 %v1712, %v1708
  %v1861 = vpack.c.b16 %v1717, %v1713
  %v1862 = vpack.c.b16 %v1718, %v1714
  %v1863 = vpack.c.b16 %v1719, %v1715
  %v1864 = vpack.c.b16 %v1720, %v1716
  %v1865 = vpack.c.b16 %v1725, %v1721
  %v1866 = vpack.c.b16 %v1726, %v1722
  %v1867 = vpack.c.b16 %v1727, %v1723
  %v1868 = vpack.c.b16 %v1728, %v1724
  %v1869 = vpack.c.b16 %v1733, %v1729
  %v1870 = vpack.c.b16 %v1734, %v1730
  %v1871 = vpack.c.b16 %v1735, %v1731
  %v1872 = vpack.c.b16 %v1736, %v1732
  %v1873 = vpack.c.b16 %v1741, %v1737
  %v1874 = vpack.c.b16 %v1742, %v1738
  %v1875 = vpack.c.b16 %v1743, %v1739
  %v1876 = vpack.c.b16 %v1744, %v1740
  %v1877 = vpack.c.b16 %v1749, %v1745
  %v1878 = vpack.c.b16 %v1750, %v1746
  %v1879 = vpack.c.b16 %v1751, %v1747
  %v1880 = vpack.c.b16 %v1752, %v1748
  %v1881 = vpack.c.b16 %v1757, %v1753
  %v1882 = vpack.c.b16 %v1758, %v1754
  %v1883 = vpack.c.b16 %v1759, %v1755
  %v1884 = vpack.c.b16 %v1760, %v1756
  %v1885 = vpack.c.b16 %v1765, %v1761
  %v1886 = vpack.c.b16 %v1766, %v1762
  %v1887 = vpack.c.b16 %v1767, %v1763
  %v1888 = vpack.c.b16 %v1768, %v1764
  %v1889 = vpack.c.b16 %v1773, %v1769
  %v1890 = vpack.c.b16 %v1774, %v1770
  %v1891 = vpack.c.b16 %v1775, %v1771
  %v1892 = vpack.c.b16 %v1776, %v1772
  %v1893 = vpack.c.b16 %v1781, %v1777
  %v1894 = vpack.c.b16 %v1782, %v1778
  %v1895 = vpack.c.b16 %v1783, %v1779
  %v1896 = vpack.c.b16 %v1784, %v1780
  %v1897 = vpack.c.b16 %v1789, %v1785
  %v1898 = vpack.c.b16 %v1790, %v1786
  %v1899 = vpack.c.b16 %v1791, %v1787
  %v1900 = vpack.c.b16 %v1792, %v1788
  %v1901 = vpack.c.b16 %v1797, %v1793
  %v1902 = vpack.c.b16 %v1798, %v1794
  %v1903 = vpack.c.b16 %v1799, %v1795
  %v1904 = vpack.c.b16 %v1800, %v1796
  %v1905 = vpack.c.b16 %v1805, %v1801
  %v1906 = vpack.c.b16 %v1806, %v1802
  %v1907 = vpack.c.b16 %v1807, %v1803
  %v1908 = vpack.c.b16 %v1808, %v1804
  %v1909 = vpack.c.b16 %v1813, %v1809
  %v1910 = vpack.c.b16 %v1814, %v1810
  %v1911 = vpack.c.b16 %v1815, %v1811
  %v1912 = vpack.c.b16 %v1816, %v1812
  %2009 = vmatprep.subr.bf16.mxu0 %v1818
  %2010 = vmatpush1.bf16.msra.mxu0 %v1817
  %2011 = vmatprep.subr.bf16.mxu0 %v1822
  %2012 = vmatpush1.bf16.msra.mxu0 %v1821
  %2013 = vmatprep.subr.bf16.mxu0 %v1826
  %2014 = vmatpush1.bf16.msra.mxu0 %v1825
  %2015 = vmatprep.subr.bf16.mxu0 %v1830
  %2016 = vmatpush1.bf16.msra.mxu0 %v1829
  %2017 = vmatprep.subr.bf16.mxu0 %v1834
  %2018 = vmatpush1.bf16.msra.mxu0 %v1833
  %2019 = vmatprep.subr.bf16.mxu0 %v1838
  %2020 = vmatpush1.bf16.msra.mxu0 %v1837
  %2021 = vmatprep.subr.bf16.mxu0 %v1842
  %2022 = vmatpush1.bf16.msra.mxu0 %v1841
  %2023 = vmatprep.subr.bf16.mxu0 %v1846
  %2024 = vmatpush1.bf16.msra.mxu0 %v1845
  %2025 = vmatprep.subr.bf16.mxu0 %v1850
  %2026 = vmatpush1.bf16.msra.mxu0 %v1849
  %2027 = vmatprep.subr.bf16.mxu0 %v1854
  %2028 = vmatpush1.bf16.msra.mxu0 %v1853
  %2029 = vmatprep.subr.bf16.mxu0 %v1858
  %2030 = vmatpush1.bf16.msra.mxu0 %v1857
  %2031 = vmatprep.subr.bf16.mxu0 %v1862
  %2032 = vmatpush1.bf16.msra.mxu0 %v1861
  %2033 = vmatprep.subr.bf16.mxu0 %v1866
  %2034 = vmatpush1.bf16.msra.mxu0 %v1865
  %2035 = vmatprep.subr.bf16.mxu0 %v1870
  %2036 = vmatpush1.bf16.msra.mxu0 %v1869
  %2037 = vmatprep.subr.bf16.mxu0 %v1874
  %2038 = vmatpush1.bf16.msra.mxu0 %v1873
  %2039 = vmatprep.subr.bf16.mxu0 %v1878
  %2040 = vmatpush1.bf16.msra.mxu0 %v1877
  %2041 = vmatprep.mubr.bf16.mxu0 %v370
  %2042 = vmatmul.mubr.bf16.gmra.mrb[0].mxu0 %v369
  %v2043 = vpop.f32.mrb[0].mxu0
  %v2044 = vadd.f32 %v1345, %v2043
  %v2045 = vpop.f32.mrb[0].mxu0
  %v2046 = vadd.f32 %v1347, %v2045
  %v2047 = vpop.f32.mrb[0].mxu0
  %v2048 = vadd.f32 %v1349, %v2047
  %v2049 = vpop.f32.mrb[0].mxu0
  %v2050 = vadd.f32 %v1351, %v2049
  %2051 = vmatprep.mubr.bf16.mxu0 %v373
  %2052 = vmatmul.mubr.bf16.gmra.mrb[0].mxu0 %v372
  %v2053 = vpop.f32.mrb[0].mxu0
  %v2054 = vadd.f32 %v1355, %v2053
  %v2055 = vpop.f32.mrb[0].mxu0
  %v2056 = vadd.f32 %v1357, %v2055
  %v2057 = vpop.f32.mrb[0].mxu0
  %v2058 = vadd.f32 %v1359, %v2057
  %v2059 = vpop.f32.mrb[0].mxu0
  %v2060 = vadd.f32 %v1361, %v2059
  %2061 = vmatprep.mubr.bf16.mxu0 %v376
  %2062 = vmatmul.mubr.bf16.gmra.mrb[0].mxu0 %v375
  %v2063 = vpop.f32.mrb[0].mxu0
  %v2064 = vadd.f32 %v1365, %v2063
  %v2065 = vpop.f32.mrb[0].mxu0
  %v2066 = vadd.f32 %v1367, %v2065
  %v2067 = vpop.f32.mrb[0].mxu0
  %v2068 = vadd.f32 %v1369, %v2067
  %v2069 = vpop.f32.mrb[0].mxu0
  %v2070 = vadd.f32 %v1371, %v2069
  %2071 = vmatprep.mubr.bf16.mxu0 %v379
  %2072 = vmatmul.mubr.bf16.gmra.mrb[0].mxu0 %v378
  %v2073 = vpop.f32.mrb[0].mxu0
  %v2074 = vadd.f32 %v1375, %v2073
  %v2075 = vpop.f32.mrb[0].mxu0
  %v2076 = vadd.f32 %v1377, %v2075
  %v2077 = vpop.f32.mrb[0].mxu0
  %v2078 = vadd.f32 %v1379, %v2077
  %v2079 = vpop.f32.mrb[0].mxu0
  %v2080 = vadd.f32 %v1381, %v2079
  %2081 = vdwg.mxu0
  %2082 = vmatprep.subr.bf16.mxu0 %v1882
  %2083 = vmatpush1.bf16.msra.mxu0 %v1881
  %2084 = vmatprep.subr.bf16.mxu0 %v1886
  %2085 = vmatpush1.bf16.msra.mxu0 %v1885
  %2086 = vmatprep.subr.bf16.mxu0 %v1890
  %2087 = vmatpush1.bf16.msra.mxu0 %v1889
  %2088 = vmatprep.subr.bf16.mxu0 %v1894
  %2089 = vmatpush1.bf16.msra.mxu0 %v1893
  %2090 = vmatprep.subr.bf16.mxu0 %v1898
  %2091 = vmatpush1.bf16.msra.mxu0 %v1897
  %2092 = vmatprep.subr.bf16.mxu0 %v1902
  %2093 = vmatpush1.bf16.msra.mxu0 %v1901
  %2094 = vmatprep.subr.bf16.mxu0 %v1906
  %2095 = vmatpush1.bf16.msra.mxu0 %v1905
  %2096 = vmatprep.subr.bf16.mxu0 %v1910
  %2097 = vmatpush1.bf16.msra.mxu0 %v1909
  %2098 = vmatprep.subr.bf16.mxu0 0
  %2099 = vmatpush1.bf16.msra.mxu0 0
  %2100 = vmatprep.subr.bf16.mxu0 0
  %2101 = vmatpush1.bf16.msra.mxu0 0
  %2102 = vmatprep.subr.bf16.mxu0 0
  %2103 = vmatpush1.bf16.msra.mxu0 0
  %2104 = vmatprep.subr.bf16.mxu0 0
  %2105 = vmatpush1.bf16.msra.mxu0 0
  %2106 = vmatprep.subr.bf16.mxu0 0
  %2107 = vmatpush1.bf16.msra.mxu0 0
  %2108 = vmatprep.subr.bf16.mxu0 0
  %2109 = vmatpush1.bf16.msra.mxu0 0
  %2110 = vmatprep.subr.bf16.mxu0 0
  %2111 = vmatpush1.bf16.msra.mxu0 0
  %2112 = vmatprep.subr.bf16.mxu0 0
  %2113 = vmatpush1.bf16.msra.mxu0 0
  %2114 = vmatprep.mubr.bf16.mxu0 0
  %2115 = vmatmul.mubr.bf16.gmra.mrb[0].mxu0 %v371
  %v2116 = vpop.f32.mrb[0].mxu0
  %v2117 = vadd.f32 %v2044, %v2116
  %v2118 = vpop.f32.mrb[0].mxu0
  %v2119 = vadd.f32 %v2046, %v2118
  %v2120 = vpop.f32.mrb[0].mxu0
  %v2121 = vadd.f32 %v2048, %v2120
  %v2122 = vpop.f32.mrb[0].mxu0
  %v2123 = vadd.f32 %v2050, %v2122
  %2124 = vmatprep.mubr.bf16.mxu0 0
  %2125 = vmatmul.mubr.bf16.gmra.mrb[0].mxu0 %v374
  %v2126 = vpop.f32.mrb[0].mxu0
  %v2127 = vadd.f32 %v2054, %v2126
  %v2128 = vpop.f32.mrb[0].mxu0
  %v2129 = vadd.f32 %v2056, %v2128
  %v2130 = vpop.f32.mrb[0].mxu0
  %v2131 = vadd.f32 %v2058, %v2130
  %v2132 = vpop.f32.mrb[0].mxu0
  %v2133 = vadd.f32 %v2060, %v2132
  %2134 = vmatprep.mubr.bf16.mxu0 0
  %2135 = vmatmul.mubr.bf16.gmra.mrb[0].mxu0 %v377
  %v2136 = vpop.f32.mrb[0].mxu0
  %v2137 = vadd.f32 %v2064, %v2136
  %v2138 = vpop.f32.mrb[0].mxu0
  %v2139 = vadd.f32 %v2066, %v2138
  %v2140 = vpop.f32.mrb[0].mxu0
  %v2141 = vadd.f32 %v2068, %v2140
  %v2142 = vpop.f32.mrb[0].mxu0
  %v2143 = vadd.f32 %v2070, %v2142
  %2144 = vmatprep.mubr.bf16.mxu0 0
  %2145 = vmatmul.mubr.bf16.gmra.mrb[0].mxu0 %v380
  %v2146 = vpop.f32.mrb[0].mxu0
  %v2147 = vadd.f32 %v2074, %v2146
  %v2148 = vpop.f32.mrb[0].mxu0
  %v2149 = vadd.f32 %v2076, %v2148
  %v2150 = vpop.f32.mrb[0].mxu0
  %v2151 = vadd.f32 %v2078, %v2150
  %v2152 = vpop.f32.mrb[0].mxu0
  %v2153 = vadd.f32 %v2080, %v2152
  %2154 = vdwg.mxu0
  %2155 = vmatprep.subr.bf16.mxu0 %v1820
  %2156 = vmatpush1.bf16.msra.mxu0 %v1819
  %2157 = vmatprep.subr.bf16.mxu0 %v1824
  %2158 = vmatpush1.bf16.msra.mxu0 %v1823
  %2159 = vmatprep.subr.bf16.mxu0 %v1828
  %2160 = vmatpush1.bf16.msra.mxu0 %v1827
  %2161 = vmatprep.subr.bf16.mxu0 %v1832
  %2162 = vmatpush1.bf16.msra.mxu0 %v1831
  %2163 = vmatprep.subr.bf16.mxu0 %v1836
  %2164 = vmatpush1.bf16.msra.mxu0 %v1835
  %2165 = vmatprep.subr.bf16.mxu0 %v1840
  %2166 = vmatpush1.bf16.msra.mxu0 %v1839
  %2167 = vmatprep.subr.bf16.mxu0 %v1844
  %2168 = vmatpush1.bf16.msra.mxu0 %v1843
  %2169 = vmatprep.subr.bf16.mxu0 %v1848
  %2170 = vmatpush1.bf16.msra.mxu0 %v1847
  %2171 = vmatprep.subr.bf16.mxu0 %v1852
  %2172 = vmatpush1.bf16.msra.mxu0 %v1851
  %2173 = vmatprep.subr.bf16.mxu0 %v1856
  %2174 = vmatpush1.bf16.msra.mxu0 %v1855
  %2175 = vmatprep.subr.bf16.mxu0 %v1860
  %2176 = vmatpush1.bf16.msra.mxu0 %v1859
  %2177 = vmatprep.subr.bf16.mxu0 %v1864
  %2178 = vmatpush1.bf16.msra.mxu0 %v1863
  %2179 = vmatprep.subr.bf16.mxu0 %v1868
  %2180 = vmatpush1.bf16.msra.mxu0 %v1867
  %2181 = vmatprep.subr.bf16.mxu0 %v1872
  %2182 = vmatpush1.bf16.msra.mxu0 %v1871
  %2183 = vmatprep.subr.bf16.mxu0 %v1876
  %2184 = vmatpush1.bf16.msra.mxu0 %v1875
  %2185 = vmatprep.subr.bf16.mxu0 %v1880
  %2186 = vmatpush1.bf16.msra.mxu0 %v1879
  %2187 = vmatprep.mubr.bf16.mxu0 %v370
  %2188 = vmatmul.mubr.bf16.gmra.mrb[0].mxu0 %v369
  %v2189 = vpop.f32.mrb[0].mxu0
  %v2190 = vadd.f32 %v1491, %v2189
  %v2191 = vpop.f32.mrb[0].mxu0
  %v2192 = vadd.f32 %v1493, %v2191
  %v2193 = vpop.f32.mrb[0].mxu0
  %v2194 = vadd.f32 %v1495, %v2193
  %v2195 = vpop.f32.mrb[0].mxu0
  %v2196 = vadd.f32 %v1497, %v2195
  %2197 = vmatprep.mubr.bf16.mxu0 %v373
  %2198 = vmatmul.mubr.bf16.gmra.mrb[0].mxu0 %v372
  %v2199 = vpop.f32.mrb[0].mxu0
  %v2200 = vadd.f32 %v1501, %v2199
  %v2201 = vpop.f32.mrb[0].mxu0
  %v2202 = vadd.f32 %v1503, %v2201
  %v2203 = vpop.f32.mrb[0].mxu0
  %v2204 = vadd.f32 %v1505, %v2203
  %v2205 = vpop.f32.mrb[0].mxu0
  %v2206 = vadd.f32 %v1507, %v2205
  %2207 = vmatprep.mubr.bf16.mxu0 %v376
  %2208 = vmatmul.mubr.bf16.gmra.mrb[0].mxu0 %v375
  %v2209 = vpop.f32.mrb[0].mxu0
  %v2210 = vadd.f32 %v1511, %v2209
  %v2211 = vpop.f32.mrb[0].mxu0
  %v2212 = vadd.f32 %v1513, %v2211
  %v2213 = vpop.f32.mrb[0].mxu0
  %v2214 = vadd.f32 %v1515, %v2213
  %v2215 = vpop.f32.mrb[0].mxu0
  %v2216 = vadd.f32 %v1517, %v2215
  %2217 = vmatprep.mubr.bf16.mxu0 %v379
  %2218 = vmatmul.mubr.bf16.gmra.mrb[0].mxu0 %v378
  %v2219 = vpop.f32.mrb[0].mxu0
  %v2220 = vadd.f32 %v1521, %v2219
  %v2221 = vpop.f32.mrb[0].mxu0
  %v2222 = vadd.f32 %v1523, %v2221
  %v2223 = vpop.f32.mrb[0].mxu0
  %v2224 = vadd.f32 %v1525, %v2223
  %v2225 = vpop.f32.mrb[0].mxu0
  %v2226 = vadd.f32 %v1527, %v2225
  %2227 = vdwg.mxu0
  %2228 = vmatprep.subr.bf16.mxu0 %v1884
  %2229 = vmatpush1.bf16.msra.mxu0 %v1883
  %2230 = vmatprep.subr.bf16.mxu0 %v1888
  %2231 = vmatpush1.bf16.msra.mxu0 %v1887
  %2232 = vmatprep.subr.bf16.mxu0 %v1892
  %2233 = vmatpush1.bf16.msra.mxu0 %v1891
  %2234 = vmatprep.subr.bf16.mxu0 %v1896
  %2235 = vmatpush1.bf16.msra.mxu0 %v1895
  %2236 = vmatprep.subr.bf16.mxu0 %v1900
  %2237 = vmatpush1.bf16.msra.mxu0 %v1899
  %2238 = vmatprep.subr.bf16.mxu0 %v1904
  %2239 = vmatpush1.bf16.msra.mxu0 %v1903
  %2240 = vmatprep.subr.bf16.mxu0 %v1908
  %2241 = vmatpush1.bf16.msra.mxu0 %v1907
  %2242 = vmatprep.subr.bf16.mxu0 %v1912
  %2243 = vmatpush1.bf16.msra.mxu0 %v1911
  %2244 = vmatprep.subr.bf16.mxu0 0
  %2245 = vmatpush1.bf16.msra.mxu0 0
  %2246 = vmatprep.subr.bf16.mxu0 0
  %2247 = vmatpush1.bf16.msra.mxu0 0
  %2248 = vmatprep.subr.bf16.mxu0 0
  %2249 = vmatpush1.bf16.msra.mxu0 0
  %2250 = vmatprep.subr.bf16.mxu0 0
  %2251 = vmatpush1.bf16.msra.mxu0 0
  %2252 = vmatprep.subr.bf16.mxu0 0
  %2253 = vmatpush1.bf16.msra.mxu0 0
  %2254 = vmatprep.subr.bf16.mxu0 0
  %2255 = vmatpush1.bf16.msra.mxu0 0
  %2256 = vmatprep.subr.bf16.mxu0 0
  %2257 = vmatpush1.bf16.msra.mxu0 0
  %2258 = vmatprep.subr.bf16.mxu0 0
  %2259 = vmatpush1.bf16.msra.mxu0 0
  %2260 = vmatprep.mubr.bf16.mxu0 0
  %2261 = vmatmul.mubr.bf16.gmra.mrb[0].mxu0 %v371
  %v2262 = vpop.f32.mrb[0].mxu0
  %v2263 = vadd.f32 %v2190, %v2262
  %v2264 = vpop.f32.mrb[0].mxu0
  %v2265 = vadd.f32 %v2192, %v2264
  %v2266 = vpop.f32.mrb[0].mxu0
  %v2267 = vadd.f32 %v2194, %v2266
  %v2268 = vpop.f32.mrb[0].mxu0
  %v2269 = vadd.f32 %v2196, %v2268
  %2270 = vmatprep.mubr.bf16.mxu0 0
  %2271 = vmatmul.mubr.bf16.gmra.mrb[0].mxu0 %v374
  %v2272 = vpop.f32.mrb[0].mxu0
  %v2273 = vadd.f32 %v2200, %v2272
  %v2274 = vpop.f32.mrb[0].mxu0
  %v2275 = vadd.f32 %v2202, %v2274
  %v2276 = vpop.f32.mrb[0].mxu0
  %v2277 = vadd.f32 %v2204, %v2276
  %v2278 = vpop.f32.mrb[0].mxu0
  %v2279 = vadd.f32 %v2206, %v2278
  %2280 = vmatprep.mubr.bf16.mxu0 0
  %2281 = vmatmul.mubr.bf16.gmra.mrb[0].mxu0 %v377
  %v2282 = vpop.f32.mrb[0].mxu0
  %v2283 = vadd.f32 %v2210, %v2282
  %v2284 = vpop.f32.mrb[0].mxu0
  %v2285 = vadd.f32 %v2212, %v2284
  %v2286 = vpop.f32.mrb[0].mxu0
  %v2287 = vadd.f32 %v2214, %v2286
  %v2288 = vpop.f32.mrb[0].mxu0
  %v2289 = vadd.f32 %v2216, %v2288
  %2290 = vmatprep.mubr.bf16.mxu0 0
  %2291 = vmatmul.mubr.bf16.gmra.mrb[0].mxu0 %v380
  %v2292 = vpop.f32.mrb[0].mxu0
  %v2293 = vadd.f32 %v2220, %v2292
  %v2294 = vpop.f32.mrb[0].mxu0
  %v2295 = vadd.f32 %v2222, %v2294
  %v2296 = vpop.f32.mrb[0].mxu0
  %v2297 = vadd.f32 %v2224, %v2296
  %v2298 = vpop.f32.mrb[0].mxu0
  %v2299 = vadd.f32 %v2226, %v2298
  %2300 = vdwg.mxu0
  %s2301 = scalar_lea.vmem %s1, 64
  %v2302 = vld [vmem:[%s2301] sm:$0xf]
  %v2303 = vld [vmem:[%s2301 + $0x4] sm:$0xf]
  %v2304 = vld [vmem:[%s2301 + $0x8] sm:$0xf]
  %v2305 = vld [vmem:[%s2301 + $0xc] sm:$0xf]
  %v2306 = vld [vmem:[%s2301 + $0x10] sm:$0xf]
  %v2307 = vld [vmem:[%s2301 + $0x14] sm:$0xf]
  %v2308 = vld [vmem:[%s2301 + $0x18] sm:$0xf]
  %v2309 = vld [vmem:[%s2301 + $0x1c] sm:$0xf]
  %v2318 = vunpack.c.l.b16 %v2302
  %v2319 = vunpack.c.l.b16 %v2303
  %v2320 = vunpack.c.l.b16 %v2304
  %v2321 = vunpack.c.l.b16 %v2305
  %v2322 = vunpack.c.l.b16 %v2306
  %v2323 = vunpack.c.l.b16 %v2307
  %v2324 = vunpack.c.l.b16 %v2308
  %v2325 = vunpack.c.l.b16 %v2309
  %v2326 = vpack.c.b16 %v2319, %v2318
  %v2327 = vpack.c.b16 %v2321, %v2320
  %v2328 = vpack.c.b16 %v2323, %v2322
  %v2329 = vpack.c.b16 %v2325, %v2324
  %2334 = vmatprep.subr.bf16.mxu0 %v184
  %2335 = vmatpush1.bf16.msra.mxu0 %v183
  %2336 = vmatprep.subr.bf16.mxu0 %v187
  %2337 = vmatpush1.bf16.msra.mxu0 %v186
  %2338 = vmatprep.subr.bf16.mxu0 %v190
  %2339 = vmatpush1.bf16.msra.mxu0 %v189
  %2340 = vmatprep.subr.bf16.mxu0 %v193
  %2341 = vmatpush1.bf16.msra.mxu0 %v192
  %2342 = vmatprep.subr.bf16.mxu0 %v196
  %2343 = vmatpush1.bf16.msra.mxu0 %v195
  %2344 = vmatprep.subr.bf16.mxu0 %v199
  %2345 = vmatpush1.bf16.msra.mxu0 %v198
  %2346 = vmatprep.subr.bf16.mxu0 %v202
  %2347 = vmatpush1.bf16.msra.mxu0 %v201
  %2348 = vmatprep.subr.bf16.mxu0 %v205
  %2349 = vmatpush1.bf16.msra.mxu0 %v204
  %2350 = vmatprep.subr.bf16.mxu0 0
  %2351 = vmatpush1.bf16.msra.mxu0 0
  %2352 = vmatprep.subr.bf16.mxu0 0
  %2353 = vmatpush1.bf16.msra.mxu0 0
  %2354 = vmatprep.subr.bf16.mxu0 0
  %2355 = vmatpush1.bf16.msra.mxu0 0
  %2356 = vmatprep.subr.bf16.mxu0 0
  %2357 = vmatpush1.bf16.msra.mxu0 0
  %2358 = vmatprep.subr.bf16.mxu0 0
  %2359 = vmatpush1.bf16.msra.mxu0 0
  %2360 = vmatprep.subr.bf16.mxu0 0
  %2361 = vmatpush1.bf16.msra.mxu0 0
  %2362 = vmatprep.subr.bf16.mxu0 0
  %2363 = vmatpush1.bf16.msra.mxu0 0
  %2364 = vmatprep.subr.bf16.mxu0 0
  %2365 = vmatpush1.bf16.msra.mxu0 0
  %2366 = vmatprep.mubr.bf16.mxu0 0
  %2367 = vmatmul.mubr.bf16.gmra.mrb[0].mxu0 %v2326
  %v2368 = vpop.f32.mrb[0].mxu0
  %v2369 = vadd.f32 0.0, %v2368
  %v2370 = vpop.f32.mrb[0].mxu0
  %v2371 = vadd.f32 0.0, %v2370
  %v2372 = vpop.f32.mrb[0].mxu0
  %v2373 = vadd.f32 0.0, %v2372
  %v2374 = vpop.f32.mrb[0].mxu0
  %v2375 = vadd.f32 0.0, %v2374
  %2376 = vmatprep.mubr.bf16.mxu0 0
  %2377 = vmatmul.mubr.bf16.gmra.mrb[0].mxu0 %v2327
  %v2378 = vpop.f32.mrb[0].mxu0
  %v2379 = vadd.f32 0.0, %v2378
  %v2380 = vpop.f32.mrb[0].mxu0
  %v2381 = vadd.f32 0.0, %v2380
  %v2382 = vpop.f32.mrb[0].mxu0
  %v2383 = vadd.f32 0.0, %v2382
  %v2384 = vpop.f32.mrb[0].mxu0
  %v2385 = vadd.f32 0.0, %v2384
  %2386 = vmatprep.mubr.bf16.mxu0 0
  %2387 = vmatmul.mubr.bf16.gmra.mrb[0].mxu0 %v2328
  %v2388 = vpop.f32.mrb[0].mxu0
  %v2389 = vadd.f32 0.0, %v2388
  %v2390 = vpop.f32.mrb[0].mxu0
  %v2391 = vadd.f32 0.0, %v2390
  %v2392 = vpop.f32.mrb[0].mxu0
  %v2393 = vadd.f32 0.0, %v2392
  %v2394 = vpop.f32.mrb[0].mxu0
  %v2395 = vadd.f32 0.0, %v2394
  %2396 = vmatprep.mubr.bf16.mxu0 0
  %2397 = vmatmul.mubr.bf16.gmra.mrb[0].mxu0 %v2329
  %v2398 = vpop.f32.mrb[0].mxu0
  %v2399 = vadd.f32 0.0, %v2398
  %v2400 = vpop.f32.mrb[0].mxu0
  %v2401 = vadd.f32 0.0, %v2400
  %v2402 = vpop.f32.mrb[0].mxu0
  %v2403 = vadd.f32 0.0, %v2402
  %v2404 = vpop.f32.mrb[0].mxu0
  %v2405 = vadd.f32 0.0, %v2404
  %2406 = vdwg.mxu0
  %2407 = vmatprep.subr.bf16.mxu0 0
  %2408 = vmatpush1.bf16.msra.mxu0 %v185
  %2409 = vmatprep.subr.bf16.mxu0 0
  %2410 = vmatpush1.bf16.msra.mxu0 %v188
  %2411 = vmatprep.subr.bf16.mxu0 0
  %2412 = vmatpush1.bf16.msra.mxu0 %v191
  %2413 = vmatprep.subr.bf16.mxu0 0
  %2414 = vmatpush1.bf16.msra.mxu0 %v194
  %2415 = vmatprep.subr.bf16.mxu0 0
  %2416 = vmatpush1.bf16.msra.mxu0 %v197
  %2417 = vmatprep.subr.bf16.mxu0 0
  %2418 = vmatpush1.bf16.msra.mxu0 %v200
  %2419 = vmatprep.subr.bf16.mxu0 0
  %2420 = vmatpush1.bf16.msra.mxu0 %v203
  %2421 = vmatprep.subr.bf16.mxu0 0
  %2422 = vmatpush1.bf16.msra.mxu0 %v206
  %2423 = vmatprep.subr.bf16.mxu0 0
  %2424 = vmatpush1.bf16.msra.mxu0 0
  %2425 = vmatprep.subr.bf16.mxu0 0
  %2426 = vmatpush1.bf16.msra.mxu0 0
  %2427 = vmatprep.subr.bf16.mxu0 0
  %2428 = vmatpush1.bf16.msra.mxu0 0
  %2429 = vmatprep.subr.bf16.mxu0 0
  %2430 = vmatpush1.bf16.msra.mxu0 0
  %2431 = vmatprep.subr.bf16.mxu0 0
  %2432 = vmatpush1.bf16.msra.mxu0 0
  %2433 = vmatprep.subr.bf16.mxu0 0
  %2434 = vmatpush1.bf16.msra.mxu0 0
  %2435 = vmatprep.subr.bf16.mxu0 0
  %2436 = vmatpush1.bf16.msra.mxu0 0
  %2437 = vmatprep.subr.bf16.mxu0 0
  %2438 = vmatpush1.bf16.msra.mxu0 0
  %2439 = vmatprep.mubr.bf16.mxu0 0
  %2440 = vmatmul.mubr.bf16.gmra.mrb[0].mxu0 %v2326
  %v2441 = vpop.f32.mrb[0].mxu0
  %v2442 = vadd.f32 0.0, %v2441
  %v2443 = vpop.f32.mrb[0].mxu0
  %v2444 = vpop.f32.mrb[0].mxu0
  %v2445 = vadd.f32 0.0, %v2444
  %v2446 = vpop.f32.mrb[0].mxu0
  %2447 = vmatprep.mubr.bf16.mxu0 0
  %2448 = vmatmul.mubr.bf16.gmra.mrb[0].mxu0 %v2327
  %v2449 = vpop.f32.mrb[0].mxu0
  %v2450 = vadd.f32 0.0, %v2449
  %v2451 = vpop.f32.mrb[0].mxu0
  %v2452 = vpop.f32.mrb[0].mxu0
  %v2453 = vadd.f32 0.0, %v2452
  %v2454 = vpop.f32.mrb[0].mxu0
  %2455 = vmatprep.mubr.bf16.mxu0 0
  %2456 = vmatmul.mubr.bf16.gmra.mrb[0].mxu0 %v2328
  %v2457 = vpop.f32.mrb[0].mxu0
  %v2458 = vadd.f32 0.0, %v2457
  %v2459 = vpop.f32.mrb[0].mxu0
  %v2460 = vpop.f32.mrb[0].mxu0
  %v2461 = vadd.f32 0.0, %v2460
  %v2462 = vpop.f32.mrb[0].mxu0
  %2463 = vmatprep.mubr.bf16.mxu0 0
  %2464 = vmatmul.mubr.bf16.gmra.mrb[0].mxu0 %v2329
  %v2465 = vpop.f32.mrb[0].mxu0
  %v2466 = vadd.f32 0.0, %v2465
  %v2467 = vpop.f32.mrb[0].mxu0
  %v2468 = vpop.f32.mrb[0].mxu0
  %v2469 = vadd.f32 0.0, %v2468
  %v2470 = vpop.f32.mrb[0].mxu0
  %2471 = vdwg.mxu0
  %v2472 = vpack.c.bf16 %v2373, %v2369
  %v2473 = vpack.c.bf16 %v2375, %v2371
  %v2474 = vpack.c.bf16 %v2445, %v2442
  %v2475 = vpack.c.bf16 %v2383, %v2379
  %v2476 = vpack.c.bf16 %v2385, %v2381
  %v2477 = vpack.c.bf16 %v2453, %v2450
  %v2478 = vpack.c.bf16 %v2393, %v2389
  %v2479 = vpack.c.bf16 %v2395, %v2391
  %v2480 = vpack.c.bf16 %v2461, %v2458
  %v2481 = vpack.c.bf16 %v2403, %v2399
  %v2482 = vpack.c.bf16 %v2405, %v2401
  %v2483 = vpack.c.bf16 %v2469, %v2466
  %s2484 = scalar_lea.vmem %s2, 1536
  %v2485 = vld [vmem:[%s2484] sm:$0xff]
  %v2486 = vld [vmem:[%s2484 + $0x8] sm:$0xff]
  %v2487 = vld [vmem:[%s2484 + $0x10] sm:$0xff]
  %v2488 = vld [vmem:[%s2484 + $0x18] sm:$0xff]
  %v2489 = vld [vmem:[%s2484 + $0x20] sm:$0xff]
  %v2490 = vld [vmem:[%s2484 + $0x28] sm:$0xff]
  %v2491 = vld [vmem:[%s2484 + $0x30] sm:$0xff]
  %v2492 = vld [vmem:[%s2484 + $0x38] sm:$0xff]
  %v2493 = vld [vmem:[%s2484 + $0x40] sm:$0xff]
  %v2494 = vld [vmem:[%s2484 + $0x48] sm:$0xff]
  %v2495 = vld [vmem:[%s2484 + $0x50] sm:$0xff]
  %v2496 = vld [vmem:[%s2484 + $0x58] sm:$0xff]
  %v2497 = vld [vmem:[%s2484 + $0x60] sm:$0xff]
  %v2498 = vld [vmem:[%s2484 + $0x68] sm:$0xff]
  %v2499 = vld [vmem:[%s2484 + $0x70] sm:$0xff]
  %v2500 = vld [vmem:[%s2484 + $0x78] sm:$0xff]
  %v2501 = vld [vmem:[%s2484 + $0x80] sm:$0xff]
  %v2502 = vld [vmem:[%s2484 + $0x88] sm:$0xff]
  %v2503 = vld [vmem:[%s2484 + $0x90] sm:$0xff]
  %v2504 = vld [vmem:[%s2484 + $0x98] sm:$0xff]
  %v2505 = vld [vmem:[%s2484 + $0xa0] sm:$0xff]
  %v2506 = vld [vmem:[%s2484 + $0xa8] sm:$0xff]
  %v2507 = vld [vmem:[%s2484 + $0xb0] sm:$0xff]
  %v2508 = vld [vmem:[%s2484 + $0xb8] sm:$0xff]
  %v2509 = vld [vmem:[%s2484 + $0xc0] sm:$0xff]
  %v2510 = vld [vmem:[%s2484 + $0xc8] sm:$0xff]
  %v2511 = vld [vmem:[%s2484 + $0xd0] sm:$0xff]
  %v2512 = vld [vmem:[%s2484 + $0xd8] sm:$0xff]
  %v2513 = vld [vmem:[%s2484 + $0xe0] sm:$0xff]
  %v2514 = vld [vmem:[%s2484 + $0xe8] sm:$0xff]
  %v2515 = vld [vmem:[%s2484 + $0xf0] sm:$0xff]
  %v2516 = vld [vmem:[%s2484 + $0xf8] sm:$0xff]
  %v2517 = vld [vmem:[%s2484 + $0x100] sm:$0xff]
  %v2518 = vld [vmem:[%s2484 + $0x108] sm:$0xff]
  %v2519 = vld [vmem:[%s2484 + $0x110] sm:$0xff]
  %v2520 = vld [vmem:[%s2484 + $0x118] sm:$0xff]
  %v2521 = vld [vmem:[%s2484 + $0x120] sm:$0xff]
  %v2522 = vld [vmem:[%s2484 + $0x128] sm:$0xff]
  %v2523 = vld [vmem:[%s2484 + $0x130] sm:$0xff]
  %v2524 = vld [vmem:[%s2484 + $0x138] sm:$0xff]
  %v2525 = vld [vmem:[%s2484 + $0x140] sm:$0xff]
  %v2526 = vld [vmem:[%s2484 + $0x148] sm:$0xff]
  %v2527 = vld [vmem:[%s2484 + $0x150] sm:$0xff]
  %v2528 = vld [vmem:[%s2484 + $0x158] sm:$0xff]
  %v2529 = vld [vmem:[%s2484 + $0x160] sm:$0xff]
  %v2530 = vld [vmem:[%s2484 + $0x168] sm:$0xff]
  %v2531 = vld [vmem:[%s2484 + $0x170] sm:$0xff]
  %v2532 = vld [vmem:[%s2484 + $0x178] sm:$0xff]
  %v2533 = vld [vmem:[%s2484 + $0x180] sm:$0xff]
  %v2534 = vld [vmem:[%s2484 + $0x188] sm:$0xff]
  %v2535 = vld [vmem:[%s2484 + $0x190] sm:$0xff]
  %v2536 = vld [vmem:[%s2484 + $0x198] sm:$0xff]
  %v2537 = vld [vmem:[%s2484 + $0x1a0] sm:$0xff]
  %v2538 = vld [vmem:[%s2484 + $0x1a8] sm:$0xff]
  %v2539 = vld [vmem:[%s2484 + $0x1b0] sm:$0xff]
  %v2540 = vld [vmem:[%s2484 + $0x1b8] sm:$0xff]
  %v2541 = vld [vmem:[%s2484 + $0x1c0] sm:$0xff]
  %v2542 = vld [vmem:[%s2484 + $0x1c8] sm:$0xff]
  %v2543 = vld [vmem:[%s2484 + $0x1d0] sm:$0xff]
  %v2544 = vld [vmem:[%s2484 + $0x1d8] sm:$0xff]
  %v2545 = vld [vmem:[%s2484 + $0x1e0] sm:$0xff]
  %v2546 = vld [vmem:[%s2484 + $0x1e8] sm:$0xff]
  %v2547 = vld [vmem:[%s2484 + $0x1f0] sm:$0xff]
  %v2548 = vld [vmem:[%s2484 + $0x1f8] sm:$0xff]
  %v2549 = vld [vmem:[%s2484 + $0x200] sm:$0xff]
  %v2550 = vld [vmem:[%s2484 + $0x208] sm:$0xff]
  %v2551 = vld [vmem:[%s2484 + $0x210] sm:$0xff]
  %v2552 = vld [vmem:[%s2484 + $0x218] sm:$0xff]
  %v2553 = vld [vmem:[%s2484 + $0x220] sm:$0xff]
  %v2554 = vld [vmem:[%s2484 + $0x228] sm:$0xff]
  %v2555 = vld [vmem:[%s2484 + $0x230] sm:$0xff]
  %v2556 = vld [vmem:[%s2484 + $0x238] sm:$0xff]
  %v2557 = vld [vmem:[%s2484 + $0x240] sm:$0xff]
  %v2558 = vld [vmem:[%s2484 + $0x248] sm:$0xff]
  %v2559 = vld [vmem:[%s2484 + $0x250] sm:$0xff]
  %v2560 = vld [vmem:[%s2484 + $0x258] sm:$0xff]
  %v2561 = vld [vmem:[%s2484 + $0x260] sm:$0xff]
  %v2562 = vld [vmem:[%s2484 + $0x268] sm:$0xff]
  %v2563 = vld [vmem:[%s2484 + $0x270] sm:$0xff]
  %v2564 = vld [vmem:[%s2484 + $0x278] sm:$0xff]
  %v2565 = vld [vmem:[%s2484 + $0x280] sm:$0xff]
  %v2566 = vld [vmem:[%s2484 + $0x288] sm:$0xff]
  %v2567 = vld [vmem:[%s2484 + $0x290] sm:$0xff]
  %v2568 = vld [vmem:[%s2484 + $0x298] sm:$0xff]
  %v2569 = vld [vmem:[%s2484 + $0x2a0] sm:$0xff]
  %v2570 = vld [vmem:[%s2484 + $0x2a8] sm:$0xff]
  %v2571 = vld [vmem:[%s2484 + $0x2b0] sm:$0xff]
  %v2572 = vld [vmem:[%s2484 + $0x2b8] sm:$0xff]
  %v2573 = vld [vmem:[%s2484 + $0x2c0] sm:$0xff]
  %v2574 = vld [vmem:[%s2484 + $0x2c8] sm:$0xff]
  %v2575 = vld [vmem:[%s2484 + $0x2d0] sm:$0xff]
  %v2576 = vld [vmem:[%s2484 + $0x2d8] sm:$0xff]
  %v2577 = vld [vmem:[%s2484 + $0x2e0] sm:$0xff]
  %v2578 = vld [vmem:[%s2484 + $0x2e8] sm:$0xff]
  %v2579 = vld [vmem:[%s2484 + $0x2f0] sm:$0xff]
  %v2580 = vld [vmem:[%s2484 + $0x2f8] sm:$0xff]
  %v2677 = vunpack.c.l.b16 %v2485
  %v2678 = vunpack.c.h.b16 %v2485
  %v2679 = vunpack.c.l.b16 %v2486
  %v2680 = vunpack.c.h.b16 %v2486
  %v2681 = vunpack.c.l.b16 %v2487
  %v2682 = vunpack.c.h.b16 %v2487
  %v2683 = vunpack.c.l.b16 %v2488
  %v2684 = vunpack.c.h.b16 %v2488
  %v2685 = vunpack.c.l.b16 %v2489
  %v2686 = vunpack.c.h.b16 %v2489
  %v2687 = vunpack.c.l.b16 %v2490
  %v2688 = vunpack.c.h.b16 %v2490
  %v2689 = vunpack.c.l.b16 %v2491
  %v2690 = vunpack.c.h.b16 %v2491
  %v2691 = vunpack.c.l.b16 %v2492
  %v2692 = vunpack.c.h.b16 %v2492
  %v2693 = vunpack.c.l.b16 %v2493
  %v2694 = vunpack.c.h.b16 %v2493
  %v2695 = vunpack.c.l.b16 %v2494
  %v2696 = vunpack.c.h.b16 %v2494
  %v2697 = vunpack.c.l.b16 %v2495
  %v2698 = vunpack.c.h.b16 %v2495
  %v2699 = vunpack.c.l.b16 %v2496
  %v2700 = vunpack.c.h.b16 %v2496
  %v2701 = vunpack.c.l.b16 %v2497
  %v2702 = vunpack.c.h.b16 %v2497
  %v2703 = vunpack.c.l.b16 %v2498
  %v2704 = vunpack.c.h.b16 %v2498
  %v2705 = vunpack.c.l.b16 %v2499
  %v2706 = vunpack.c.h.b16 %v2499
  %v2707 = vunpack.c.l.b16 %v2500
  %v2708 = vunpack.c.h.b16 %v2500
  %v2709 = vunpack.c.l.b16 %v2501
  %v2710 = vunpack.c.h.b16 %v2501
  %v2711 = vunpack.c.l.b16 %v2502
  %v2712 = vunpack.c.h.b16 %v2502
  %v2713 = vunpack.c.l.b16 %v2503
  %v2714 = vunpack.c.h.b16 %v2503
  %v2715 = vunpack.c.l.b16 %v2504
  %v2716 = vunpack.c.h.b16 %v2504
  %v2717 = vunpack.c.l.b16 %v2505
  %v2718 = vunpack.c.h.b16 %v2505
  %v2719 = vunpack.c.l.b16 %v2506
  %v2720 = vunpack.c.h.b16 %v2506
  %v2721 = vunpack.c.l.b16 %v2507
  %v2722 = vunpack.c.h.b16 %v2507
  %v2723 = vunpack.c.l.b16 %v2508
  %v2724 = vunpack.c.h.b16 %v2508
  %v2725 = vunpack.c.l.b16 %v2509
  %v2726 = vunpack.c.h.b16 %v2509
  %v2727 = vunpack.c.l.b16 %v2510
  %v2728 = vunpack.c.h.b16 %v2510
  %v2729 = vunpack.c.l.b16 %v2511
  %v2730 = vunpack.c.h.b16 %v2511
  %v2731 = vunpack.c.l.b16 %v2512
  %v2732 = vunpack.c.h.b16 %v2512
  %v2733 = vunpack.c.l.b16 %v2513
  %v2734 = vunpack.c.h.b16 %v2513
  %v2735 = vunpack.c.l.b16 %v2514
  %v2736 = vunpack.c.h.b16 %v2514
  %v2737 = vunpack.c.l.b16 %v2515
  %v2738 = vunpack.c.h.b16 %v2515
  %v2739 = vunpack.c.l.b16 %v2516
  %v2740 = vunpack.c.h.b16 %v2516
  %v2741 = vunpack.c.l.b16 %v2517
  %v2742 = vunpack.c.h.b16 %v2517
  %v2743 = vunpack.c.l.b16 %v2518
  %v2744 = vunpack.c.h.b16 %v2518
  %v2745 = vunpack.c.l.b16 %v2519
  %v2746 = vunpack.c.h.b16 %v2519
  %v2747 = vunpack.c.l.b16 %v2520
  %v2748 = vunpack.c.h.b16 %v2520
  %v2749 = vunpack.c.l.b16 %v2521
  %v2750 = vunpack.c.h.b16 %v2521
  %v2751 = vunpack.c.l.b16 %v2522
  %v2752 = vunpack.c.h.b16 %v2522
  %v2753 = vunpack.c.l.b16 %v2523
  %v2754 = vunpack.c.h.b16 %v2523
  %v2755 = vunpack.c.l.b16 %v2524
  %v2756 = vunpack.c.h.b16 %v2524
  %v2757 = vunpack.c.l.b16 %v2525
  %v2758 = vunpack.c.h.b16 %v2525
  %v2759 = vunpack.c.l.b16 %v2526
  %v2760 = vunpack.c.h.b16 %v2526
  %v2761 = vunpack.c.l.b16 %v2527
  %v2762 = vunpack.c.h.b16 %v2527
  %v2763 = vunpack.c.l.b16 %v2528
  %v2764 = vunpack.c.h.b16 %v2528
  %v2765 = vunpack.c.l.b16 %v2529
  %v2766 = vunpack.c.h.b16 %v2529
  %v2767 = vunpack.c.l.b16 %v2530
  %v2768 = vunpack.c.h.b16 %v2530
  %v2769 = vunpack.c.l.b16 %v2531
  %v2770 = vunpack.c.h.b16 %v2531
  %v2771 = vunpack.c.l.b16 %v2532
  %v2772 = vunpack.c.h.b16 %v2532
  %v2773 = vunpack.c.l.b16 %v2533
  %v2774 = vunpack.c.h.b16 %v2533
  %v2775 = vunpack.c.l.b16 %v2534
  %v2776 = vunpack.c.h.b16 %v2534
  %v2777 = vunpack.c.l.b16 %v2535
  %v2778 = vunpack.c.h.b16 %v2535
  %v2779 = vunpack.c.l.b16 %v2536
  %v2780 = vunpack.c.h.b16 %v2536
  %v2781 = vunpack.c.l.b16 %v2537
  %v2782 = vunpack.c.h.b16 %v2537
  %v2783 = vunpack.c.l.b16 %v2538
  %v2784 = vunpack.c.h.b16 %v2538
  %v2785 = vunpack.c.l.b16 %v2539
  %v2786 = vunpack.c.h.b16 %v2539
  %v2787 = vunpack.c.l.b16 %v2540
  %v2788 = vunpack.c.h.b16 %v2540
  %v2789 = vunpack.c.l.b16 %v2541
  %v2790 = vunpack.c.h.b16 %v2541
  %v2791 = vunpack.c.l.b16 %v2542
  %v2792 = vunpack.c.h.b16 %v2542
  %v2793 = vunpack.c.l.b16 %v2543
  %v2794 = vunpack.c.h.b16 %v2543
  %v2795 = vunpack.c.l.b16 %v2544
  %v2796 = vunpack.c.h.b16 %v2544
  %v2797 = vunpack.c.l.b16 %v2545
  %v2798 = vunpack.c.h.b16 %v2545
  %v2799 = vunpack.c.l.b16 %v2546
  %v2800 = vunpack.c.h.b16 %v2546
  %v2801 = vunpack.c.l.b16 %v2547
  %v2802 = vunpack.c.h.b16 %v2547
  %v2803 = vunpack.c.l.b16 %v2548
  %v2804 = vunpack.c.h.b16 %v2548
  %v2805 = vunpack.c.l.b16 %v2549
  %v2806 = vunpack.c.h.b16 %v2549
  %v2807 = vunpack.c.l.b16 %v2550
  %v2808 = vunpack.c.h.b16 %v2550
  %v2809 = vunpack.c.l.b16 %v2551
  %v2810 = vunpack.c.h.b16 %v2551
  %v2811 = vunpack.c.l.b16 %v2552
  %v2812 = vunpack.c.h.b16 %v2552
  %v2813 = vunpack.c.l.b16 %v2553
  %v2814 = vunpack.c.h.b16 %v2553
  %v2815 = vunpack.c.l.b16 %v2554
  %v2816 = vunpack.c.h.b16 %v2554
  %v2817 = vunpack.c.l.b16 %v2555
  %v2818 = vunpack.c.h.b16 %v2555
  %v2819 = vunpack.c.l.b16 %v2556
  %v2820 = vunpack.c.h.b16 %v2556
  %v2821 = vunpack.c.l.b16 %v2557
  %v2822 = vunpack.c.h.b16 %v2557
  %v2823 = vunpack.c.l.b16 %v2558
  %v2824 = vunpack.c.h.b16 %v2558
  %v2825 = vunpack.c.l.b16 %v2559
  %v2826 = vunpack.c.h.b16 %v2559
  %v2827 = vunpack.c.l.b16 %v2560
  %v2828 = vunpack.c.h.b16 %v2560
  %v2829 = vunpack.c.l.b16 %v2561
  %v2830 = vunpack.c.h.b16 %v2561
  %v2831 = vunpack.c.l.b16 %v2562
  %v2832 = vunpack.c.h.b16 %v2562
  %v2833 = vunpack.c.l.b16 %v2563
  %v2834 = vunpack.c.h.b16 %v2563
  %v2835 = vunpack.c.l.b16 %v2564
  %v2836 = vunpack.c.h.b16 %v2564
  %v2837 = vunpack.c.l.b16 %v2565
  %v2838 = vunpack.c.h.b16 %v2565
  %v2839 = vunpack.c.l.b16 %v2566
  %v2840 = vunpack.c.h.b16 %v2566
  %v2841 = vunpack.c.l.b16 %v2567
  %v2842 = vunpack.c.h.b16 %v2567
  %v2843 = vunpack.c.l.b16 %v2568
  %v2844 = vunpack.c.h.b16 %v2568
  %v2845 = vunpack.c.l.b16 %v2569
  %v2846 = vunpack.c.h.b16 %v2569
  %v2847 = vunpack.c.l.b16 %v2570
  %v2848 = vunpack.c.h.b16 %v2570
  %v2849 = vunpack.c.l.b16 %v2571
  %v2850 = vunpack.c.h.b16 %v2571
  %v2851 = vunpack.c.l.b16 %v2572
  %v2852 = vunpack.c.h.b16 %v2572
  %v2853 = vunpack.c.l.b16 %v2573
  %v2854 = vunpack.c.h.b16 %v2573
  %v2855 = vunpack.c.l.b16 %v2574
  %v2856 = vunpack.c.h.b16 %v2574
  %v2857 = vunpack.c.l.b16 %v2575
  %v2858 = vunpack.c.h.b16 %v2575
  %v2859 = vunpack.c.l.b16 %v2576
  %v2860 = vunpack.c.h.b16 %v2576
  %v2861 = vunpack.c.l.b16 %v2577
  %v2862 = vunpack.c.h.b16 %v2577
  %v2863 = vunpack.c.l.b16 %v2578
  %v2864 = vunpack.c.h.b16 %v2578
  %v2865 = vunpack.c.l.b16 %v2579
  %v2866 = vunpack.c.h.b16 %v2579
  %v2867 = vunpack.c.l.b16 %v2580
  %v2868 = vunpack.c.h.b16 %v2580
  %v2869 = vpack.c.b16 %v2681, %v2677
  %v2870 = vpack.c.b16 %v2682, %v2678
  %v2871 = vpack.c.b16 %v2683, %v2679
  %v2872 = vpack.c.b16 %v2684, %v2680
  %v2873 = vpack.c.b16 %v2689, %v2685
  %v2874 = vpack.c.b16 %v2690, %v2686
  %v2875 = vpack.c.b16 %v2691, %v2687
  %v2876 = vpack.c.b16 %v2692, %v2688
  %v2877 = vpack.c.b16 %v2697, %v2693
  %v2878 = vpack.c.b16 %v2698, %v2694
  %v2879 = vpack.c.b16 %v2699, %v2695
  %v2880 = vpack.c.b16 %v2700, %v2696
  %v2881 = vpack.c.b16 %v2705, %v2701
  %v2882 = vpack.c.b16 %v2706, %v2702
  %v2883 = vpack.c.b16 %v2707, %v2703
  %v2884 = vpack.c.b16 %v2708, %v2704
  %v2885 = vpack.c.b16 %v2713, %v2709
  %v2886 = vpack.c.b16 %v2714, %v2710
  %v2887 = vpack.c.b16 %v2715, %v2711
  %v2888 = vpack.c.b16 %v2716, %v2712
  %v2889 = vpack.c.b16 %v2721, %v2717
  %v2890 = vpack.c.b16 %v2722, %v2718
  %v2891 = vpack.c.b16 %v2723, %v2719
  %v2892 = vpack.c.b16 %v2724, %v2720
  %v2893 = vpack.c.b16 %v2729, %v2725
  %v2894 = vpack.c.b16 %v2730, %v2726
  %v2895 = vpack.c.b16 %v2731, %v2727
  %v2896 = vpack.c.b16 %v2732, %v2728
  %v2897 = vpack.c.b16 %v2737, %v2733
  %v2898 = vpack.c.b16 %v2738, %v2734
  %v2899 = vpack.c.b16 %v2739, %v2735
  %v2900 = vpack.c.b16 %v2740, %v2736
  %v2901 = vpack.c.b16 %v2745, %v2741
  %v2902 = vpack.c.b16 %v2746, %v2742
  %v2903 = vpack.c.b16 %v2747, %v2743
  %v2904 = vpack.c.b16 %v2748, %v2744
  %v2905 = vpack.c.b16 %v2753, %v2749
  %v2906 = vpack.c.b16 %v2754, %v2750
  %v2907 = vpack.c.b16 %v2755, %v2751
  %v2908 = vpack.c.b16 %v2756, %v2752
  %v2909 = vpack.c.b16 %v2761, %v2757
  %v2910 = vpack.c.b16 %v2762, %v2758
  %v2911 = vpack.c.b16 %v2763, %v2759
  %v2912 = vpack.c.b16 %v2764, %v2760
  %v2913 = vpack.c.b16 %v2769, %v2765
  %v2914 = vpack.c.b16 %v2770, %v2766
  %v2915 = vpack.c.b16 %v2771, %v2767
  %v2916 = vpack.c.b16 %v2772, %v2768
  %v2917 = vpack.c.b16 %v2777, %v2773
  %v2918 = vpack.c.b16 %v2778, %v2774
  %v2919 = vpack.c.b16 %v2779, %v2775
  %v2920 = vpack.c.b16 %v2780, %v2776
  %v2921 = vpack.c.b16 %v2785, %v2781
  %v2922 = vpack.c.b16 %v2786, %v2782
  %v2923 = vpack.c.b16 %v2787, %v2783
  %v2924 = vpack.c.b16 %v2788, %v2784
  %v2925 = vpack.c.b16 %v2793, %v2789
  %v2926 = vpack.c.b16 %v2794, %v2790
  %v2927 = vpack.c.b16 %v2795, %v2791
  %v2928 = vpack.c.b16 %v2796, %v2792
  %v2929 = vpack.c.b16 %v2801, %v2797
  %v2930 = vpack.c.b16 %v2802, %v2798
  %v2931 = vpack.c.b16 %v2803, %v2799
  %v2932 = vpack.c.b16 %v2804, %v2800
  %v2933 = vpack.c.b16 %v2809, %v2805
  %v2934 = vpack.c.b16 %v2810, %v2806
  %v2935 = vpack.c.b16 %v2811, %v2807
  %v2936 = vpack.c.b16 %v2812, %v2808
  %v2937 = vpack.c.b16 %v2817, %v2813
  %v2938 = vpack.c.b16 %v2818, %v2814
  %v2939 = vpack.c.b16 %v2819, %v2815
  %v2940 = vpack.c.b16 %v2820, %v2816
  %v2941 = vpack.c.b16 %v2825, %v2821
  %v2942 = vpack.c.b16 %v2826, %v2822
  %v2943 = vpack.c.b16 %v2827, %v2823
  %v2944 = vpack.c.b16 %v2828, %v2824
  %v2945 = vpack.c.b16 %v2833, %v2829
  %v2946 = vpack.c.b16 %v2834, %v2830
  %v2947 = vpack.c.b16 %v2835, %v2831
  %v2948 = vpack.c.b16 %v2836, %v2832
  %v2949 = vpack.c.b16 %v2841, %v2837
  %v2950 = vpack.c.b16 %v2842, %v2838
  %v2951 = vpack.c.b16 %v2843, %v2839
  %v2952 = vpack.c.b16 %v2844, %v2840
  %v2953 = vpack.c.b16 %v2849, %v2845
  %v2954 = vpack.c.b16 %v2850, %v2846
  %v2955 = vpack.c.b16 %v2851, %v2847
  %v2956 = vpack.c.b16 %v2852, %v2848
  %v2957 = vpack.c.b16 %v2857, %v2853
  %v2958 = vpack.c.b16 %v2858, %v2854
  %v2959 = vpack.c.b16 %v2859, %v2855
  %v2960 = vpack.c.b16 %v2860, %v2856
  %v2961 = vpack.c.b16 %v2865, %v2861
  %v2962 = vpack.c.b16 %v2866, %v2862
  %v2963 = vpack.c.b16 %v2867, %v2863
  %v2964 = vpack.c.b16 %v2868, %v2864
  %3061 = vmatprep.subr.bf16.mxu0 %v2870
  %3062 = vmatpush1.bf16.msra.mxu0 %v2869
  %3063 = vmatprep.subr.bf16.mxu0 %v2874
  %3064 = vmatpush1.bf16.msra.mxu0 %v2873
  %3065 = vmatprep.subr.bf16.mxu0 %v2878
  %3066 = vmatpush1.bf16.msra.mxu0 %v2877
  %3067 = vmatprep.subr.bf16.mxu0 %v2882
  %3068 = vmatpush1.bf16.msra.mxu0 %v2881
  %3069 = vmatprep.subr.bf16.mxu0 %v2886
  %3070 = vmatpush1.bf16.msra.mxu0 %v2885
  %3071 = vmatprep.subr.bf16.mxu0 %v2890
  %3072 = vmatpush1.bf16.msra.mxu0 %v2889
  %3073 = vmatprep.subr.bf16.mxu0 %v2894
  %3074 = vmatpush1.bf16.msra.mxu0 %v2893
  %3075 = vmatprep.subr.bf16.mxu0 %v2898
  %3076 = vmatpush1.bf16.msra.mxu0 %v2897
  %3077 = vmatprep.subr.bf16.mxu0 %v2902
  %3078 = vmatpush1.bf16.msra.mxu0 %v2901
  %3079 = vmatprep.subr.bf16.mxu0 %v2906
  %3080 = vmatpush1.bf16.msra.mxu0 %v2905
  %3081 = vmatprep.subr.bf16.mxu0 %v2910
  %3082 = vmatpush1.bf16.msra.mxu0 %v2909
  %3083 = vmatprep.subr.bf16.mxu0 %v2914
  %3084 = vmatpush1.bf16.msra.mxu0 %v2913
  %3085 = vmatprep.subr.bf16.mxu0 %v2918
  %3086 = vmatpush1.bf16.msra.mxu0 %v2917
  %3087 = vmatprep.subr.bf16.mxu0 %v2922
  %3088 = vmatpush1.bf16.msra.mxu0 %v2921
  %3089 = vmatprep.subr.bf16.mxu0 %v2926
  %3090 = vmatpush1.bf16.msra.mxu0 %v2925
  %3091 = vmatprep.subr.bf16.mxu0 %v2930
  %3092 = vmatpush1.bf16.msra.mxu0 %v2929
  %3093 = vmatprep.mubr.bf16.mxu0 %v2473
  %3094 = vmatmul.mubr.bf16.gmra.mrb[0].mxu0 %v2472
  %v3095 = vpop.f32.mrb[0].mxu0
  %v3096 = vadd.f32 0.0, %v3095
  %v3097 = vpop.f32.mrb[0].mxu0
  %v3098 = vadd.f32 0.0, %v3097
  %v3099 = vpop.f32.mrb[0].mxu0
  %v3100 = vadd.f32 0.0, %v3099
  %v3101 = vpop.f32.mrb[0].mxu0
  %v3102 = vadd.f32 0.0, %v3101
  %3103 = vmatprep.mubr.bf16.mxu0 %v2476
  %3104 = vmatmul.mubr.bf16.gmra.mrb[0].mxu0 %v2475
  %v3105 = vpop.f32.mrb[0].mxu0
  %v3106 = vadd.f32 0.0, %v3105
  %v3107 = vpop.f32.mrb[0].mxu0
  %v3108 = vadd.f32 0.0, %v3107
  %v3109 = vpop.f32.mrb[0].mxu0
  %v3110 = vadd.f32 0.0, %v3109
  %v3111 = vpop.f32.mrb[0].mxu0
  %v3112 = vadd.f32 0.0, %v3111
  %3113 = vmatprep.mubr.bf16.mxu0 %v2479
  %3114 = vmatmul.mubr.bf16.gmra.mrb[0].mxu0 %v2478
  %v3115 = vpop.f32.mrb[0].mxu0
  %v3116 = vadd.f32 0.0, %v3115
  %v3117 = vpop.f32.mrb[0].mxu0
  %v3118 = vadd.f32 0.0, %v3117
  %v3119 = vpop.f32.mrb[0].mxu0
  %v3120 = vadd.f32 0.0, %v3119
  %v3121 = vpop.f32.mrb[0].mxu0
  %v3122 = vadd.f32 0.0, %v3121
  %3123 = vmatprep.mubr.bf16.mxu0 %v2482
  %3124 = vmatmul.mubr.bf16.gmra.mrb[0].mxu0 %v2481
  %v3125 = vpop.f32.mrb[0].mxu0
  %v3126 = vadd.f32 0.0, %v3125
  %v3127 = vpop.f32.mrb[0].mxu0
  %v3128 = vadd.f32 0.0, %v3127
  %v3129 = vpop.f32.mrb[0].mxu0
  %v3130 = vadd.f32 0.0, %v3129
  %v3131 = vpop.f32.mrb[0].mxu0
  %v3132 = vadd.f32 0.0, %v3131
  %3133 = vdwg.mxu0
  %3134 = vmatprep.subr.bf16.mxu0 %v2934
  %3135 = vmatpush1.bf16.msra.mxu0 %v2933
  %3136 = vmatprep.subr.bf16.mxu0 %v2938
  %3137 = vmatpush1.bf16.msra.mxu0 %v2937
  %3138 = vmatprep.subr.bf16.mxu0 %v2942
  %3139 = vmatpush1.bf16.msra.mxu0 %v2941
  %3140 = vmatprep.subr.bf16.mxu0 %v2946
  %3141 = vmatpush1.bf16.msra.mxu0 %v2945
  %3142 = vmatprep.subr.bf16.mxu0 %v2950
  %3143 = vmatpush1.bf16.msra.mxu0 %v2949
  %3144 = vmatprep.subr.bf16.mxu0 %v2954
  %3145 = vmatpush1.bf16.msra.mxu0 %v2953
  %3146 = vmatprep.subr.bf16.mxu0 %v2958
  %3147 = vmatpush1.bf16.msra.mxu0 %v2957
  %3148 = vmatprep.subr.bf16.mxu0 %v2962
  %3149 = vmatpush1.bf16.msra.mxu0 %v2961
  %3150 = vmatprep.subr.bf16.mxu0 0
  %3151 = vmatpush1.bf16.msra.mxu0 0
  %3152 = vmatprep.subr.bf16.mxu0 0
  %3153 = vmatpush1.bf16.msra.mxu0 0
  %3154 = vmatprep.subr.bf16.mxu0 0
  %3155 = vmatpush1.bf16.msra.mxu0 0
  %3156 = vmatprep.subr.bf16.mxu0 0
  %3157 = vmatpush1.bf16.msra.mxu0 0
  %3158 = vmatprep.subr.bf16.mxu0 0
  %3159 = vmatpush1.bf16.msra.mxu0 0
  %3160 = vmatprep.subr.bf16.mxu0 0
  %3161 = vmatpush1.bf16.msra.mxu0 0
  %3162 = vmatprep.subr.bf16.mxu0 0
  %3163 = vmatpush1.bf16.msra.mxu0 0
  %3164 = vmatprep.subr.bf16.mxu0 0
  %3165 = vmatpush1.bf16.msra.mxu0 0
  %3166 = vmatprep.mubr.bf16.mxu0 0
  %3167 = vmatmul.mubr.bf16.gmra.mrb[0].mxu0 %v2474
  %v3168 = vpop.f32.mrb[0].mxu0
  %v3169 = vadd.f32 %v3096, %v3168
  %v3170 = vpop.f32.mrb[0].mxu0
  %v3171 = vadd.f32 %v3098, %v3170
  %v3172 = vpop.f32.mrb[0].mxu0
  %v3173 = vadd.f32 %v3100, %v3172
  %v3174 = vpop.f32.mrb[0].mxu0
  %v3175 = vadd.f32 %v3102, %v3174
  %3176 = vmatprep.mubr.bf16.mxu0 0
  %3177 = vmatmul.mubr.bf16.gmra.mrb[0].mxu0 %v2477
  %v3178 = vpop.f32.mrb[0].mxu0
  %v3179 = vadd.f32 %v3106, %v3178
  %v3180 = vpop.f32.mrb[0].mxu0
  %v3181 = vadd.f32 %v3108, %v3180
  %v3182 = vpop.f32.mrb[0].mxu0
  %v3183 = vadd.f32 %v3110, %v3182
  %v3184 = vpop.f32.mrb[0].mxu0
  %v3185 = vadd.f32 %v3112, %v3184
  %3186 = vmatprep.mubr.bf16.mxu0 0
  %3187 = vmatmul.mubr.bf16.gmra.mrb[0].mxu0 %v2480
  %v3188 = vpop.f32.mrb[0].mxu0
  %v3189 = vadd.f32 %v3116, %v3188
  %v3190 = vpop.f32.mrb[0].mxu0
  %v3191 = vadd.f32 %v3118, %v3190
  %v3192 = vpop.f32.mrb[0].mxu0
  %v3193 = vadd.f32 %v3120, %v3192
  %v3194 = vpop.f32.mrb[0].mxu0
  %v3195 = vadd.f32 %v3122, %v3194
  %3196 = vmatprep.mubr.bf16.mxu0 0
  %3197 = vmatmul.mubr.bf16.gmra.mrb[0].mxu0 %v2483
  %v3198 = vpop.f32.mrb[0].mxu0
  %v3199 = vadd.f32 %v3126, %v3198
  %v3200 = vpop.f32.mrb[0].mxu0
  %v3201 = vadd.f32 %v3128, %v3200
  %v3202 = vpop.f32.mrb[0].mxu0
  %v3203 = vadd.f32 %v3130, %v3202
  %v3204 = vpop.f32.mrb[0].mxu0
  %v3205 = vadd.f32 %v3132, %v3204
  %3206 = vdwg.mxu0
  %3207 = vmatprep.subr.bf16.mxu0 %v2872
  %3208 = vmatpush1.bf16.msra.mxu0 %v2871
  %3209 = vmatprep.subr.bf16.mxu0 %v2876
  %3210 = vmatpush1.bf16.msra.mxu0 %v2875
  %3211 = vmatprep.subr.bf16.mxu0 %v2880
  %3212 = vmatpush1.bf16.msra.mxu0 %v2879
  %3213 = vmatprep.subr.bf16.mxu0 %v2884
  %3214 = vmatpush1.bf16.msra.mxu0 %v2883
  %3215 = vmatprep.subr.bf16.mxu0 %v2888
  %3216 = vmatpush1.bf16.msra.mxu0 %v2887
  %3217 = vmatprep.subr.bf16.mxu0 %v2892
  %3218 = vmatpush1.bf16.msra.mxu0 %v2891
  %3219 = vmatprep.subr.bf16.mxu0 %v2896
  %3220 = vmatpush1.bf16.msra.mxu0 %v2895
  %3221 = vmatprep.subr.bf16.mxu0 %v2900
  %3222 = vmatpush1.bf16.msra.mxu0 %v2899
  %3223 = vmatprep.subr.bf16.mxu0 %v2904
  %3224 = vmatpush1.bf16.msra.mxu0 %v2903
  %3225 = vmatprep.subr.bf16.mxu0 %v2908
  %3226 = vmatpush1.bf16.msra.mxu0 %v2907
  %3227 = vmatprep.subr.bf16.mxu0 %v2912
  %3228 = vmatpush1.bf16.msra.mxu0 %v2911
  %3229 = vmatprep.subr.bf16.mxu0 %v2916
  %3230 = vmatpush1.bf16.msra.mxu0 %v2915
  %3231 = vmatprep.subr.bf16.mxu0 %v2920
  %3232 = vmatpush1.bf16.msra.mxu0 %v2919
  %3233 = vmatprep.subr.bf16.mxu0 %v2924
  %3234 = vmatpush1.bf16.msra.mxu0 %v2923
  %3235 = vmatprep.subr.bf16.mxu0 %v2928
  %3236 = vmatpush1.bf16.msra.mxu0 %v2927
  %3237 = vmatprep.subr.bf16.mxu0 %v2932
  %3238 = vmatpush1.bf16.msra.mxu0 %v2931
  %3239 = vmatprep.mubr.bf16.mxu0 %v2473
  %3240 = vmatmul.mubr.bf16.gmra.mrb[0].mxu0 %v2472
  %v3241 = vpop.f32.mrb[0].mxu0
  %v3242 = vadd.f32 0.0, %v3241
  %v3243 = vpop.f32.mrb[0].mxu0
  %v3244 = vadd.f32 0.0, %v3243
  %v3245 = vpop.f32.mrb[0].mxu0
  %v3246 = vadd.f32 0.0, %v3245
  %v3247 = vpop.f32.mrb[0].mxu0
  %v3248 = vadd.f32 0.0, %v3247
  %3249 = vmatprep.mubr.bf16.mxu0 %v2476
  %3250 = vmatmul.mubr.bf16.gmra.mrb[0].mxu0 %v2475
  %v3251 = vpop.f32.mrb[0].mxu0
  %v3252 = vadd.f32 0.0, %v3251
  %v3253 = vpop.f32.mrb[0].mxu0
  %v3254 = vadd.f32 0.0, %v3253
  %v3255 = vpop.f32.mrb[0].mxu0
  %v3256 = vadd.f32 0.0, %v3255
  %v3257 = vpop.f32.mrb[0].mxu0
  %v3258 = vadd.f32 0.0, %v3257
  %3259 = vmatprep.mubr.bf16.mxu0 %v2479
  %3260 = vmatmul.mubr.bf16.gmra.mrb[0].mxu0 %v2478
  %v3261 = vpop.f32.mrb[0].mxu0
  %v3262 = vadd.f32 0.0, %v3261
  %v3263 = vpop.f32.mrb[0].mxu0
  %v3264 = vadd.f32 0.0, %v3263
  %v3265 = vpop.f32.mrb[0].mxu0
  %v3266 = vadd.f32 0.0, %v3265
  %v3267 = vpop.f32.mrb[0].mxu0
  %v3268 = vadd.f32 0.0, %v3267
  %3269 = vmatprep.mubr.bf16.mxu0 %v2482
  %3270 = vmatmul.mubr.bf16.gmra.mrb[0].mxu0 %v2481
  %v3271 = vpop.f32.mrb[0].mxu0
  %v3272 = vadd.f32 0.0, %v3271
  %v3273 = vpop.f32.mrb[0].mxu0
  %v3274 = vadd.f32 0.0, %v3273
  %v3275 = vpop.f32.mrb[0].mxu0
  %v3276 = vadd.f32 0.0, %v3275
  %v3277 = vpop.f32.mrb[0].mxu0
  %v3278 = vadd.f32 0.0, %v3277
  %3279 = vdwg.mxu0
  %3280 = vmatprep.subr.bf16.mxu0 %v2936
  %3281 = vmatpush1.bf16.msra.mxu0 %v2935
  %3282 = vmatprep.subr.bf16.mxu0 %v2940
  %3283 = vmatpush1.bf16.msra.mxu0 %v2939
  %3284 = vmatprep.subr.bf16.mxu0 %v2944
  %3285 = vmatpush1.bf16.msra.mxu0 %v2943
  %3286 = vmatprep.subr.bf16.mxu0 %v2948
  %3287 = vmatpush1.bf16.msra.mxu0 %v2947
  %3288 = vmatprep.subr.bf16.mxu0 %v2952
  %3289 = vmatpush1.bf16.msra.mxu0 %v2951
  %3290 = vmatprep.subr.bf16.mxu0 %v2956
  %3291 = vmatpush1.bf16.msra.mxu0 %v2955
  %3292 = vmatprep.subr.bf16.mxu0 %v2960
  %3293 = vmatpush1.bf16.msra.mxu0 %v2959
  %3294 = vmatprep.subr.bf16.mxu0 %v2964
  %3295 = vmatpush1.bf16.msra.mxu0 %v2963
  %3296 = vmatprep.subr.bf16.mxu0 0
  %3297 = vmatpush1.bf16.msra.mxu0 0
  %3298 = vmatprep.subr.bf16.mxu0 0
  %3299 = vmatpush1.bf16.msra.mxu0 0
  %3300 = vmatprep.subr.bf16.mxu0 0
  %3301 = vmatpush1.bf16.msra.mxu0 0
  %3302 = vmatprep.subr.bf16.mxu0 0
  %3303 = vmatpush1.bf16.msra.mxu0 0
  %3304 = vmatprep.subr.bf16.mxu0 0
  %3305 = vmatpush1.bf16.msra.mxu0 0
  %3306 = vmatprep.subr.bf16.mxu0 0
  %3307 = vmatpush1.bf16.msra.mxu0 0
  %3308 = vmatprep.subr.bf16.mxu0 0
  %3309 = vmatpush1.bf16.msra.mxu0 0
  %3310 = vmatprep.subr.bf16.mxu0 0
  %3311 = vmatpush1.bf16.msra.mxu0 0
  %3312 = vmatprep.mubr.bf16.mxu0 0
  %3313 = vmatmul.mubr.bf16.gmra.mrb[0].mxu0 %v2474
  %v3314 = vpop.f32.mrb[0].mxu0
  %v3315 = vadd.f32 %v3242, %v3314
  %v3316 = vpop.f32.mrb[0].mxu0
  %v3317 = vadd.f32 %v3244, %v3316
  %v3318 = vpop.f32.mrb[0].mxu0
  %v3319 = vadd.f32 %v3246, %v3318
  %v3320 = vpop.f32.mrb[0].mxu0
  %v3321 = vadd.f32 %v3248, %v3320
  %3322 = vmatprep.mubr.bf16.mxu0 0
  %3323 = vmatmul.mubr.bf16.gmra.mrb[0].mxu0 %v2477
  %v3324 = vpop.f32.mrb[0].mxu0
  %v3325 = vadd.f32 %v3252, %v3324
  %v3326 = vpop.f32.mrb[0].mxu0
  %v3327 = vadd.f32 %v3254, %v3326
  %v3328 = vpop.f32.mrb[0].mxu0
  %v3329 = vadd.f32 %v3256, %v3328
  %v3330 = vpop.f32.mrb[0].mxu0
  %v3331 = vadd.f32 %v3258, %v3330
  %3332 = vmatprep.mubr.bf16.mxu0 0
  %3333 = vmatmul.mubr.bf16.gmra.mrb[0].mxu0 %v2480
  %v3334 = vpop.f32.mrb[0].mxu0
  %v3335 = vadd.f32 %v3262, %v3334
  %v3336 = vpop.f32.mrb[0].mxu0
  %v3337 = vadd.f32 %v3264, %v3336
  %v3338 = vpop.f32.mrb[0].mxu0
  %v3339 = vadd.f32 %v3266, %v3338
  %v3340 = vpop.f32.mrb[0].mxu0
  %v3341 = vadd.f32 %v3268, %v3340
  %3342 = vmatprep.mubr.bf16.mxu0 0
  %3343 = vmatmul.mubr.bf16.gmra.mrb[0].mxu0 %v2483
  %v3344 = vpop.f32.mrb[0].mxu0
  %v3345 = vadd.f32 %v3272, %v3344
  %v3346 = vpop.f32.mrb[0].mxu0
  %v3347 = vadd.f32 %v3274, %v3346
  %v3348 = vpop.f32.mrb[0].mxu0
  %v3349 = vadd.f32 %v3276, %v3348
  %v3350 = vpop.f32.mrb[0].mxu0
  %v3351 = vadd.f32 %v3278, %v3350
  %3352 = vdwg.mxu0
  %v3353 = vadd.f32 %v2117, %v3169
  %v3354 = vadd.f32 %v2119, %v3171
  %v3355 = vadd.f32 %v2263, %v3315
  %v3356 = vadd.f32 %v2265, %v3317
  %v3357 = vadd.f32 %v2121, %v3173
  %v3358 = vadd.f32 %v2123, %v3175
  %v3359 = vadd.f32 %v2267, %v3319
  %v3360 = vadd.f32 %v2269, %v3321
  %v3361 = vadd.f32 %v2127, %v3179
  %v3362 = vadd.f32 %v2129, %v3181
  %v3363 = vadd.f32 %v2273, %v3325
  %v3364 = vadd.f32 %v2275, %v3327
  %v3365 = vadd.f32 %v2131, %v3183
  %v3366 = vadd.f32 %v2133, %v3185
  %v3367 = vadd.f32 %v2277, %v3329
  %v3368 = vadd.f32 %v2279, %v3331
  %v3369 = vadd.f32 %v2137, %v3189
  %v3370 = vadd.f32 %v2139, %v3191
  %v3371 = vadd.f32 %v2283, %v3335
  %v3372 = vadd.f32 %v2285, %v3337
  %v3373 = vadd.f32 %v2141, %v3193
  %v3374 = vadd.f32 %v2143, %v3195
  %v3375 = vadd.f32 %v2287, %v3339
  %v3376 = vadd.f32 %v2289, %v3341
  %v3377 = vadd.f32 %v2147, %v3199
  %v3378 = vadd.f32 %v2149, %v3201
  %v3379 = vadd.f32 %v2293, %v3345
  %v3380 = vadd.f32 %v2295, %v3347
  %v3381 = vadd.f32 %v2151, %v3203
  %v3382 = vadd.f32 %v2153, %v3205
  %v3383 = vadd.f32 %v2297, %v3349
  %v3384 = vadd.f32 %v2299, %v3351
  %v3385 = vld [vmem:[%s3] sm:$0xf]
  %v3387 = vlaneseq
  %v3388 = vshrl.u32 %v3387, 7
  %v3389 = vsub.s32 0, %v3388
  %v3390 = vrot.slane %v3385, %v3389
  %v3391 = vlaneseq
  %v3392 = vshrl.u32 %v3391, 7
  %v3393 = vsub.s32 1, %v3392
  %v3394 = vrot.slane %v3385, %v3393
  %v3395 = vlaneseq
  %v3396 = vshrl.u32 %v3395, 7
  %v3397 = vsub.s32 2, %v3396
  %v3398 = vrot.slane %v3385, %v3397
  %v3399 = vlaneseq
  %v3400 = vshrl.u32 %v3399, 7
  %v3401 = vsub.s32 3, %v3400
  %v3402 = vrot.slane %v3385, %v3401
  %v3407 = vadd.f32 %v3353, %v3390
  %v3408 = vadd.f32 %v3354, %v3394
  %v3409 = vadd.f32 %v3355, %v3398
  %v3410 = vadd.f32 %v3356, %v3402
  %v3411 = vadd.f32 %v3357, %v3390
  %v3412 = vadd.f32 %v3358, %v3394
  %v3413 = vadd.f32 %v3359, %v3398
  %v3414 = vadd.f32 %v3360, %v3402
  %v3415 = vadd.f32 %v3361, %v3390
  %v3416 = vadd.f32 %v3362, %v3394
  %v3417 = vadd.f32 %v3363, %v3398
  %v3418 = vadd.f32 %v3364, %v3402
  %v3419 = vadd.f32 %v3365, %v3390
  %v3420 = vadd.f32 %v3366, %v3394
  %v3421 = vadd.f32 %v3367, %v3398
  %v3422 = vadd.f32 %v3368, %v3402
  %v3423 = vadd.f32 %v3369, %v3390
  %v3424 = vadd.f32 %v3370, %v3394
  %v3425 = vadd.f32 %v3371, %v3398
  %v3426 = vadd.f32 %v3372, %v3402
  %v3427 = vadd.f32 %v3373, %v3390
  %v3428 = vadd.f32 %v3374, %v3394
  %v3429 = vadd.f32 %v3375, %v3398
  %v3430 = vadd.f32 %v3376, %v3402
  %v3431 = vadd.f32 %v3377, %v3390
  %v3432 = vadd.f32 %v3378, %v3394
  %v3433 = vadd.f32 %v3379, %v3398
  %v3434 = vadd.f32 %v3380, %v3402
  %v3435 = vadd.f32 %v3381, %v3390
  %v3436 = vadd.f32 %v3382, %v3394
  %v3437 = vadd.f32 %v3383, %v3398
  %v3438 = vadd.f32 %v3384, %v3402
  %v3439 = vmax.f32 %v3407, 0.0
  %v3440 = vmax.f32 %v3408, 0.0
  %v3441 = vmax.f32 %v3409, 0.0
  %v3442 = vmax.f32 %v3410, 0.0
  %v3443 = vmax.f32 %v3411, 0.0
  %v3444 = vmax.f32 %v3412, 0.0
  %v3445 = vmax.f32 %v3413, 0.0
  %v3446 = vmax.f32 %v3414, 0.0
  %v3447 = vmax.f32 %v3415, 0.0
  %v3448 = vmax.f32 %v3416, 0.0
  %v3449 = vmax.f32 %v3417, 0.0
  %v3450 = vmax.f32 %v3418, 0.0
  %v3451 = vmax.f32 %v3419, 0.0
  %v3452 = vmax.f32 %v3420, 0.0
  %v3453 = vmax.f32 %v3421, 0.0
  %v3454 = vmax.f32 %v3422, 0.0
  %v3455 = vmax.f32 %v3423, 0.0
  %v3456 = vmax.f32 %v3424, 0.0
  %v3457 = vmax.f32 %v3425, 0.0
  %v3458 = vmax.f32 %v3426, 0.0
  %v3459 = vmax.f32 %v3427, 0.0
  %v3460 = vmax.f32 %v3428, 0.0
  %v3461 = vmax.f32 %v3429, 0.0
  %v3462 = vmax.f32 %v3430, 0.0
  %v3463 = vmax.f32 %v3431, 0.0
  %v3464 = vmax.f32 %v3432, 0.0
  %v3465 = vmax.f32 %v3433, 0.0
  %v3466 = vmax.f32 %v3434, 0.0
  %v3467 = vmax.f32 %v3435, 0.0
  %v3468 = vmax.f32 %v3436, 0.0
  %v3469 = vmax.f32 %v3437, 0.0
  %v3470 = vmax.f32 %v3438, 0.0
  %3471 = vst [vmem:[%s10] sm:$0xff] %v3439
  %3472 = vst [vmem:[%s10 + $0x8] sm:$0xff] %v3440
  %3473 = vst [vmem:[%s10 + $0x10] sm:$0xff] %v3441
  %3474 = vst [vmem:[%s10 + $0x18] sm:$0xff] %v3442
  %3475 = vst [vmem:[%s10 + $0x20] sm:$0xff] %v3443
  %3476 = vst [vmem:[%s10 + $0x28] sm:$0xff] %v3444
  %3477 = vst [vmem:[%s10 + $0x30] sm:$0xff] %v3445
  %3478 = vst [vmem:[%s10 + $0x38] sm:$0xff] %v3446
  %3479 = vst [vmem:[%s10 + $0x40] sm:$0xff] %v3447
  %3480 = vst [vmem:[%s10 + $0x48] sm:$0xff] %v3448
  %3481 = vst [vmem:[%s10 + $0x50] sm:$0xff] %v3449
  %3482 = vst [vmem:[%s10 + $0x58] sm:$0xff] %v3450
  %3483 = vst [vmem:[%s10 + $0x60] sm:$0xff] %v3451
  %3484 = vst [vmem:[%s10 + $0x68] sm:$0xff] %v3452
  %3485 = vst [vmem:[%s10 + $0x70] sm:$0xff] %v3453
  %3486 = vst [vmem:[%s10 + $0x78] sm:$0xff] %v3454
  %3487 = vst [vmem:[%s10 + $0x80] sm:$0xff] %v3455
  %3488 = vst [vmem:[%s10 + $0x88] sm:$0xff] %v3456
  %3489 = vst [vmem:[%s10 + $0x90] sm:$0xff] %v3457
  %3490 = vst [vmem:[%s10 + $0x98] sm:$0xff] %v3458
  %3491 = vst [vmem:[%s10 + $0xa0] sm:$0xff] %v3459
  %3492 = vst [vmem:[%s10 + $0xa8] sm:$0xff] %v3460
  %3493 = vst [vmem:[%s10 + $0xb0] sm:$0xff] %v3461
  %3494 = vst [vmem:[%s10 + $0xb8] sm:$0xff] %v3462
  %3495 = vst [vmem:[%s10 + $0xc0] sm:$0xff] %v3463
  %3496 = vst [vmem:[%s10 + $0xc8] sm:$0xff] %v3464
  %3497 = vst [vmem:[%s10 + $0xd0] sm:$0xff] %v3465
  %3498 = vst [vmem:[%s10 + $0xd8] sm:$0xff] %v3466
  %3499 = vst [vmem:[%s10 + $0xe0] sm:$0xff] %v3467
  %3500 = vst [vmem:[%s10 + $0xe8] sm:$0xff] %v3468
  %3501 = vst [vmem:[%s10 + $0xf0] sm:$0xff] %v3469
  %3502 = vst [vmem:[%s10 + $0xf8] sm:$0xff] %v3470
  %v3503 = vpack.c.bf16 %v3443, %v3439
  %v3504 = vpack.c.bf16 %v3444, %v3440
  %v3505 = vpack.c.bf16 %v3445, %v3441
  %v3506 = vpack.c.bf16 %v3446, %v3442
  %v3507 = vpack.c.bf16 %v3451, %v3447
  %v3508 = vpack.c.bf16 %v3452, %v3448
  %v3509 = vpack.c.bf16 %v3453, %v3449
  %v3510 = vpack.c.bf16 %v3454, %v3450
  %v3511 = vpack.c.bf16 %v3459, %v3455
  %v3512 = vpack.c.bf16 %v3460, %v3456
  %v3513 = vpack.c.bf16 %v3461, %v3457
  %v3514 = vpack.c.bf16 %v3462, %v3458
  %v3515 = vpack.c.bf16 %v3467, %v3463
  %v3516 = vpack.c.bf16 %v3468, %v3464
  %v3517 = vpack.c.bf16 %v3469, %v3465
  %v3518 = vpack.c.bf16 %v3470, %v3466
  %v3519 = vld [vmem:[%s4] sm:$0xf]
  %v3520 = vld [vmem:[%s4 + $0x4] sm:$0xf]
  %v3521 = vld [vmem:[%s4 + $0x8] sm:$0xf]
  %v3522 = vld [vmem:[%s4 + $0xc] sm:$0xf]
  %v3527 = vunpack.c.l.b16 %v3519
  %v3528 = vunpack.c.l.b16 %v3520
  %v3529 = vunpack.c.l.b16 %v3521
  %v3530 = vunpack.c.l.b16 %v3522
  %v3531 = vpack.c.b16 %v3528, %v3527
  %v3532 = vpack.c.b16 %v3530, %v3529
  %vm3533 = vcmask 523264
  %v3535 = vsel %vm3533, %v3531, 0
  %v3538 = vsel %vm3533, %v3532, 0
  %3540 = vmatprep.subr.bf16.mxu0 %v3504
  %3541 = vmatpush1.bf16.msra.mxu0 %v3503
  %3542 = vmatprep.subr.bf16.mxu0 %v3508
  %3543 = vmatpush1.bf16.msra.mxu0 %v3507
  %3544 = vmatprep.subr.bf16.mxu0 %v3512
  %3545 = vmatpush1.bf16.msra.mxu0 %v3511
  %3546 = vmatprep.subr.bf16.mxu0 %v3516
  %3547 = vmatpush1.bf16.msra.mxu0 %v3515
  %3548 = vmatprep.subr.bf16.mxu0 0
  %3549 = vmatpush1.bf16.msra.mxu0 0
  %3550 = vmatprep.subr.bf16.mxu0 0
  %3551 = vmatpush1.bf16.msra.mxu0 0
  %3552 = vmatprep.subr.bf16.mxu0 0
  %3553 = vmatpush1.bf16.msra.mxu0 0
  %3554 = vmatprep.subr.bf16.mxu0 0
  %3555 = vmatpush1.bf16.msra.mxu0 0
  %3556 = vmatprep.subr.bf16.mxu0 0
  %3557 = vmatpush1.bf16.msra.mxu0 0
  %3558 = vmatprep.subr.bf16.mxu0 0
  %3559 = vmatpush1.bf16.msra.mxu0 0
  %3560 = vmatprep.subr.bf16.mxu0 0
  %3561 = vmatpush1.bf16.msra.mxu0 0
  %3562 = vmatprep.subr.bf16.mxu0 0
  %3563 = vmatpush1.bf16.msra.mxu0 0
  %3564 = vmatprep.subr.bf16.mxu0 0
  %3565 = vmatpush1.bf16.msra.mxu0 0
  %3566 = vmatprep.subr.bf16.mxu0 0
  %3567 = vmatpush1.bf16.msra.mxu0 0
  %3568 = vmatprep.subr.bf16.mxu0 0
  %3569 = vmatpush1.bf16.msra.mxu0 0
  %3570 = vmatprep.subr.bf16.mxu0 0
  %3571 = vmatpush1.bf16.msra.mxu0 0
  %3572 = vmatprep.mubr.bf16.mxu0 0
  %3573 = vmatmul.mubr.bf16.gmra.mrb[0].mxu0 %v3535
  %v3574 = vpop.f32.mrb[0].mxu0
  %v3575 = vadd.f32 0.0, %v3574
  %v3576 = vpop.f32.mrb[0].mxu0
  %v3577 = vadd.f32 0.0, %v3576
  %v3578 = vpop.f32.mrb[0].mxu0
  %v3579 = vadd.f32 0.0, %v3578
  %v3580 = vpop.f32.mrb[0].mxu0
  %v3581 = vadd.f32 0.0, %v3580
  %3582 = vmatprep.mubr.bf16.mxu0 0
  %3583 = vmatmul.mubr.bf16.gmra.mrb[0].mxu0 %v3538
  %v3584 = vpop.f32.mrb[0].mxu0
  %v3585 = vadd.f32 0.0, %v3584
  %v3586 = vpop.f32.mrb[0].mxu0
  %v3587 = vadd.f32 0.0, %v3586
  %v3588 = vpop.f32.mrb[0].mxu0
  %v3589 = vadd.f32 0.0, %v3588
  %v3590 = vpop.f32.mrb[0].mxu0
  %v3591 = vadd.f32 0.0, %v3590
  %3592 = vdwg.mxu0
  %3593 = vmatprep.subr.bf16.mxu0 %v3506
  %3594 = vmatpush1.bf16.msra.mxu0 %v3505
  %3595 = vmatprep.subr.bf16.mxu0 %v3510
  %3596 = vmatpush1.bf16.msra.mxu0 %v3509
  %3597 = vmatprep.subr.bf16.mxu0 %v3514
  %3598 = vmatpush1.bf16.msra.mxu0 %v3513
  %3599 = vmatprep.subr.bf16.mxu0 %v3518
  %3600 = vmatpush1.bf16.msra.mxu0 %v3517
  %3601 = vmatprep.subr.bf16.mxu0 0
  %3602 = vmatpush1.bf16.msra.mxu0 0
  %3603 = vmatprep.subr.bf16.mxu0 0
  %3604 = vmatpush1.bf16.msra.mxu0 0
  %3605 = vmatprep.subr.bf16.mxu0 0
  %3606 = vmatpush1.bf16.msra.mxu0 0
  %3607 = vmatprep.subr.bf16.mxu0 0
  %3608 = vmatpush1.bf16.msra.mxu0 0
  %3609 = vmatprep.subr.bf16.mxu0 0
  %3610 = vmatpush1.bf16.msra.mxu0 0
  %3611 = vmatprep.subr.bf16.mxu0 0
  %3612 = vmatpush1.bf16.msra.mxu0 0
  %3613 = vmatprep.subr.bf16.mxu0 0
  %3614 = vmatpush1.bf16.msra.mxu0 0
  %3615 = vmatprep.subr.bf16.mxu0 0
  %3616 = vmatpush1.bf16.msra.mxu0 0
  %3617 = vmatprep.subr.bf16.mxu0 0
  %3618 = vmatpush1.bf16.msra.mxu0 0
  %3619 = vmatprep.subr.bf16.mxu0 0
  %3620 = vmatpush1.bf16.msra.mxu0 0
  %3621 = vmatprep.subr.bf16.mxu0 0
  %3622 = vmatpush1.bf16.msra.mxu0 0
  %3623 = vmatprep.subr.bf16.mxu0 0
  %3624 = vmatpush1.bf16.msra.mxu0 0
  %3625 = vmatprep.mubr.bf16.mxu0 0
  %3626 = vmatmul.mubr.bf16.gmra.mrb[0].mxu0 %v3535
  %v3627 = vpop.f32.mrb[0].mxu0
  %v3628 = vadd.f32 0.0, %v3627
  %v3629 = vpop.f32.mrb[0].mxu0
  %v3630 = vadd.f32 0.0, %v3629
  %v3631 = vpop.f32.mrb[0].mxu0
  %v3632 = vadd.f32 0.0, %v3631
  %v3633 = vpop.f32.mrb[0].mxu0
  %v3634 = vadd.f32 0.0, %v3633
  %3635 = vmatprep.mubr.bf16.mxu0 0
  %3636 = vmatmul.mubr.bf16.gmra.mrb[0].mxu0 %v3538
  %v3637 = vpop.f32.mrb[0].mxu0
  %v3638 = vadd.f32 0.0, %v3637
  %v3639 = vpop.f32.mrb[0].mxu0
  %v3640 = vadd.f32 0.0, %v3639
  %v3641 = vpop.f32.mrb[0].mxu0
  %v3642 = vadd.f32 0.0, %v3641
  %v3643 = vpop.f32.mrb[0].mxu0
  %v3644 = vadd.f32 0.0, %v3643
  %3645 = vdwg.mxu0
  %v3646 = vpack.c.bf16 %v3579, %v3575
  %v3647 = vpack.c.bf16 %v3581, %v3577
  %v3648 = vpack.c.bf16 %v3632, %v3628
  %v3649 = vpack.c.bf16 %v3634, %v3630
  %v3650 = vpack.c.bf16 %v3589, %v3585
  %v3651 = vpack.c.bf16 %v3591, %v3587
  %v3652 = vpack.c.bf16 %v3642, %v3638
  %v3653 = vpack.c.bf16 %v3644, %v3640
  %v3654 = vld [vmem:[%s5] sm:$0xff]
  %v3655 = vld [vmem:[%s5 + $0x8] sm:$0xff]
  %v3656 = vld [vmem:[%s5 + $0x10] sm:$0xff]
  %v3657 = vld [vmem:[%s5 + $0x18] sm:$0xff]
  %v3658 = vld [vmem:[%s5 + $0x20] sm:$0xff]
  %v3659 = vld [vmem:[%s5 + $0x28] sm:$0xff]
  %v3660 = vld [vmem:[%s5 + $0x30] sm:$0xff]
  %v3661 = vld [vmem:[%s5 + $0x38] sm:$0xff]
  %v3662 = vld [vmem:[%s5 + $0x40] sm:$0xff]
  %v3663 = vld [vmem:[%s5 + $0x48] sm:$0xff]
  %v3664 = vld [vmem:[%s5 + $0x50] sm:$0xff]
  %v3665 = vld [vmem:[%s5 + $0x58] sm:$0xff]
  %v3666 = vld [vmem:[%s5 + $0x60] sm:$0xff]
  %v3667 = vld [vmem:[%s5 + $0x68] sm:$0xff]
  %v3668 = vld [vmem:[%s5 + $0x70] sm:$0xff]
  %v3669 = vld [vmem:[%s5 + $0x78] sm:$0xff]
  %v3670 = vld [vmem:[%s5 + $0x80] sm:$0xff]
  %v3671 = vld [vmem:[%s5 + $0x88] sm:$0xff]
  %v3672 = vld [vmem:[%s5 + $0x90] sm:$0xff]
  %v3673 = vld [vmem:[%s5 + $0x98] sm:$0xff]
  %v3674 = vld [vmem:[%s5 + $0xa0] sm:$0xff]
  %v3675 = vld [vmem:[%s5 + $0xa8] sm:$0xff]
  %v3676 = vld [vmem:[%s5 + $0xb0] sm:$0xff]
  %v3677 = vld [vmem:[%s5 + $0xb8] sm:$0xff]
  %v3678 = vld [vmem:[%s5 + $0xc0] sm:$0xff]
  %v3679 = vld [vmem:[%s5 + $0xc8] sm:$0xff]
  %v3680 = vld [vmem:[%s5 + $0xd0] sm:$0xff]
  %v3681 = vld [vmem:[%s5 + $0xd8] sm:$0xff]
  %v3682 = vld [vmem:[%s5 + $0xe0] sm:$0xff]
  %v3683 = vld [vmem:[%s5 + $0xe8] sm:$0xff]
  %v3684 = vld [vmem:[%s5 + $0xf0] sm:$0xff]
  %v3685 = vld [vmem:[%s5 + $0xf8] sm:$0xff]
  %v3686 = vld [vmem:[%s5 + $0x100] sm:$0xff]
  %v3687 = vld [vmem:[%s5 + $0x108] sm:$0xff]
  %v3688 = vld [vmem:[%s5 + $0x110] sm:$0xff]
  %v3689 = vld [vmem:[%s5 + $0x118] sm:$0xff]
  %v3690 = vld [vmem:[%s5 + $0x120] sm:$0xff]
  %v3691 = vld [vmem:[%s5 + $0x128] sm:$0xff]
  %v3692 = vld [vmem:[%s5 + $0x130] sm:$0xff]
  %v3693 = vld [vmem:[%s5 + $0x138] sm:$0xff]
  %v3694 = vld [vmem:[%s5 + $0x140] sm:$0xff]
  %v3695 = vld [vmem:[%s5 + $0x148] sm:$0xff]
  %v3696 = vld [vmem:[%s5 + $0x150] sm:$0xff]
  %v3697 = vld [vmem:[%s5 + $0x158] sm:$0xff]
  %v3698 = vld [vmem:[%s5 + $0x160] sm:$0xff]
  %v3699 = vld [vmem:[%s5 + $0x168] sm:$0xff]
  %v3700 = vld [vmem:[%s5 + $0x170] sm:$0xff]
  %v3701 = vld [vmem:[%s5 + $0x178] sm:$0xff]
  %v3702 = vld [vmem:[%s5 + $0x180] sm:$0xff]
  %v3703 = vld [vmem:[%s5 + $0x188] sm:$0xff]
  %v3704 = vld [vmem:[%s5 + $0x190] sm:$0xff]
  %v3705 = vld [vmem:[%s5 + $0x198] sm:$0xff]
  %v3706 = vld [vmem:[%s5 + $0x1a0] sm:$0xff]
  %v3707 = vld [vmem:[%s5 + $0x1a8] sm:$0xff]
  %v3708 = vld [vmem:[%s5 + $0x1b0] sm:$0xff]
  %v3709 = vld [vmem:[%s5 + $0x1b8] sm:$0xff]
  %v3710 = vld [vmem:[%s5 + $0x1c0] sm:$0xff]
  %v3711 = vld [vmem:[%s5 + $0x1c8] sm:$0xff]
  %v3712 = vld [vmem:[%s5 + $0x1d0] sm:$0xff]
  %v3713 = vld [vmem:[%s5 + $0x1d8] sm:$0xff]
  %v3714 = vld [vmem:[%s5 + $0x1e0] sm:$0xff]
  %v3715 = vld [vmem:[%s5 + $0x1e8] sm:$0xff]
  %v3716 = vld [vmem:[%s5 + $0x1f0] sm:$0xff]
  %v3717 = vld [vmem:[%s5 + $0x1f8] sm:$0xff]
  %v3718 = vld [vmem:[%s5 + $0x200] sm:$0xff]
  %v3719 = vld [vmem:[%s5 + $0x208] sm:$0xff]
  %v3720 = vld [vmem:[%s5 + $0x210] sm:$0xff]
  %v3721 = vld [vmem:[%s5 + $0x218] sm:$0xff]
  %v3722 = vld [vmem:[%s5 + $0x220] sm:$0xff]
  %v3723 = vld [vmem:[%s5 + $0x228] sm:$0xff]
  %v3724 = vld [vmem:[%s5 + $0x230] sm:$0xff]
  %v3725 = vld [vmem:[%s5 + $0x238] sm:$0xff]
  %v3726 = vld [vmem:[%s5 + $0x240] sm:$0xff]
  %v3727 = vld [vmem:[%s5 + $0x248] sm:$0xff]
  %v3728 = vld [vmem:[%s5 + $0x250] sm:$0xff]
  %v3729 = vld [vmem:[%s5 + $0x258] sm:$0xff]
  %v3730 = vld [vmem:[%s5 + $0x260] sm:$0xff]
  %v3731 = vld [vmem:[%s5 + $0x268] sm:$0xff]
  %v3732 = vld [vmem:[%s5 + $0x270] sm:$0xff]
  %v3733 = vld [vmem:[%s5 + $0x278] sm:$0xff]
  %v3734 = vld [vmem:[%s5 + $0x280] sm:$0xff]
  %v3735 = vld [vmem:[%s5 + $0x288] sm:$0xff]
  %v3736 = vld [vmem:[%s5 + $0x290] sm:$0xff]
  %v3737 = vld [vmem:[%s5 + $0x298] sm:$0xff]
  %v3738 = vld [vmem:[%s5 + $0x2a0] sm:$0xff]
  %v3739 = vld [vmem:[%s5 + $0x2a8] sm:$0xff]
  %v3740 = vld [vmem:[%s5 + $0x2b0] sm:$0xff]
  %v3741 = vld [vmem:[%s5 + $0x2b8] sm:$0xff]
  %v3742 = vld [vmem:[%s5 + $0x2c0] sm:$0xff]
  %v3743 = vld [vmem:[%s5 + $0x2c8] sm:$0xff]
  %v3744 = vld [vmem:[%s5 + $0x2d0] sm:$0xff]
  %v3745 = vld [vmem:[%s5 + $0x2d8] sm:$0xff]
  %v3746 = vld [vmem:[%s5 + $0x2e0] sm:$0xff]
  %v3747 = vld [vmem:[%s5 + $0x2e8] sm:$0xff]
  %v3748 = vld [vmem:[%s5 + $0x2f0] sm:$0xff]
  %v3749 = vld [vmem:[%s5 + $0x2f8] sm:$0xff]
  %v3750 = vld [vmem:[%s5 + $0x300] sm:$0xff]
  %v3751 = vld [vmem:[%s5 + $0x308] sm:$0xff]
  %v3752 = vld [vmem:[%s5 + $0x310] sm:$0xff]
  %v3753 = vld [vmem:[%s5 + $0x318] sm:$0xff]
  %v3754 = vld [vmem:[%s5 + $0x320] sm:$0xff]
  %v3755 = vld [vmem:[%s5 + $0x328] sm:$0xff]
  %v3756 = vld [vmem:[%s5 + $0x330] sm:$0xff]
  %v3757 = vld [vmem:[%s5 + $0x338] sm:$0xff]
  %v3758 = vld [vmem:[%s5 + $0x340] sm:$0xff]
  %v3759 = vld [vmem:[%s5 + $0x348] sm:$0xff]
  %v3760 = vld [vmem:[%s5 + $0x350] sm:$0xff]
  %v3761 = vld [vmem:[%s5 + $0x358] sm:$0xff]
  %v3762 = vld [vmem:[%s5 + $0x360] sm:$0xff]
  %v3763 = vld [vmem:[%s5 + $0x368] sm:$0xff]
  %v3764 = vld [vmem:[%s5 + $0x370] sm:$0xff]
  %v3765 = vld [vmem:[%s5 + $0x378] sm:$0xff]
  %v3766 = vld [vmem:[%s5 + $0x380] sm:$0xff]
  %v3767 = vld [vmem:[%s5 + $0x388] sm:$0xff]
  %v3768 = vld [vmem:[%s5 + $0x390] sm:$0xff]
  %v3769 = vld [vmem:[%s5 + $0x398] sm:$0xff]
  %v3770 = vld [vmem:[%s5 + $0x3a0] sm:$0xff]
  %v3771 = vld [vmem:[%s5 + $0x3a8] sm:$0xff]
  %v3772 = vld [vmem:[%s5 + $0x3b0] sm:$0xff]
  %v3773 = vld [vmem:[%s5 + $0x3b8] sm:$0xff]
  %v3774 = vld [vmem:[%s5 + $0x3c0] sm:$0xff]
  %v3775 = vld [vmem:[%s5 + $0x3c8] sm:$0xff]
  %v3776 = vld [vmem:[%s5 + $0x3d0] sm:$0xff]
  %v3777 = vld [vmem:[%s5 + $0x3d8] sm:$0xff]
  %v3778 = vld [vmem:[%s5 + $0x3e0] sm:$0xff]
  %v3779 = vld [vmem:[%s5 + $0x3e8] sm:$0xff]
  %v3780 = vld [vmem:[%s5 + $0x3f0] sm:$0xff]
  %v3781 = vld [vmem:[%s5 + $0x3f8] sm:$0xff]
  %s3782 = scalar_lea.vmem %s4, 16
  %v3783 = vld [vmem:[%s3782] sm:$0xf]
  %v3784 = vld [vmem:[%s3782 + $0x4] sm:$0xf]
  %v3785 = vld [vmem:[%s3782 + $0x8] sm:$0xf]
  %v3786 = vld [vmem:[%s3782 + $0xc] sm:$0xf]
  %v3791 = vunpack.c.l.b16 %v3783
  %v3792 = vunpack.c.l.b16 %v3784
  %v3793 = vunpack.c.l.b16 %v3785
  %v3794 = vunpack.c.l.b16 %v3786
  %v3795 = vpack.c.b16 %v3792, %v3791
  %v3796 = vpack.c.b16 %v3794, %v3793
  %v3798 = vsel %vm3533, %v3795, 0
  %v3801 = vsel %vm3533, %v3796, 0
  %3803 = vmatprep.subr.bf16.mxu0 %v3504
  %3804 = vmatpush1.bf16.msra.mxu0 %v3503
  %3805 = vmatprep.subr.bf16.mxu0 %v3508
  %3806 = vmatpush1.bf16.msra.mxu0 %v3507
  %3807 = vmatprep.subr.bf16.mxu0 %v3512
  %3808 = vmatpush1.bf16.msra.mxu0 %v3511
  %3809 = vmatprep.subr.bf16.mxu0 %v3516
  %3810 = vmatpush1.bf16.msra.mxu0 %v3515
  %3811 = vmatprep.subr.bf16.mxu0 0
  %3812 = vmatpush1.bf16.msra.mxu0 0
  %3813 = vmatprep.subr.bf16.mxu0 0
  %3814 = vmatpush1.bf16.msra.mxu0 0
  %3815 = vmatprep.subr.bf16.mxu0 0
  %3816 = vmatpush1.bf16.msra.mxu0 0
  %3817 = vmatprep.subr.bf16.mxu0 0
  %3818 = vmatpush1.bf16.msra.mxu0 0
  %3819 = vmatprep.subr.bf16.mxu0 0
  %3820 = vmatpush1.bf16.msra.mxu0 0
  %3821 = vmatprep.subr.bf16.mxu0 0
  %3822 = vmatpush1.bf16.msra.mxu0 0
  %3823 = vmatprep.subr.bf16.mxu0 0
  %3824 = vmatpush1.bf16.msra.mxu0 0
  %3825 = vmatprep.subr.bf16.mxu0 0
  %3826 = vmatpush1.bf16.msra.mxu0 0
  %3827 = vmatprep.subr.bf16.mxu0 0
  %3828 = vmatpush1.bf16.msra.mxu0 0
  %3829 = vmatprep.subr.bf16.mxu0 0
  %3830 = vmatpush1.bf16.msra.mxu0 0
  %3831 = vmatprep.subr.bf16.mxu0 0
  %3832 = vmatpush1.bf16.msra.mxu0 0
  %3833 = vmatprep.subr.bf16.mxu0 0
  %3834 = vmatpush1.bf16.msra.mxu0 0
  %3835 = vmatprep.mubr.bf16.mxu0 0
  %3836 = vmatmul.mubr.bf16.gmra.mrb[0].mxu0 %v3798
  %v3837 = vpop.f32.mrb[0].mxu0
  %v3838 = vadd.f32 0.0, %v3837
  %v3839 = vpop.f32.mrb[0].mxu0
  %v3840 = vadd.f32 0.0, %v3839
  %v3841 = vpop.f32.mrb[0].mxu0
  %v3842 = vadd.f32 0.0, %v3841
  %v3843 = vpop.f32.mrb[0].mxu0
  %v3844 = vadd.f32 0.0, %v3843
  %3845 = vmatprep.mubr.bf16.mxu0 0
  %3846 = vmatmul.mubr.bf16.gmra.mrb[0].mxu0 %v3801
  %v3847 = vpop.f32.mrb[0].mxu0
  %v3848 = vadd.f32 0.0, %v3847
  %v3849 = vpop.f32.mrb[0].mxu0
  %v3850 = vadd.f32 0.0, %v3849
  %v3851 = vpop.f32.mrb[0].mxu0
  %v3852 = vadd.f32 0.0, %v3851
  %v3853 = vpop.f32.mrb[0].mxu0
  %v3854 = vadd.f32 0.0, %v3853
  %3855 = vdwg.mxu0
  %3856 = vmatprep.subr.bf16.mxu0 %v3506
  %3857 = vmatpush1.bf16.msra.mxu0 %v3505
  %3858 = vmatprep.subr.bf16.mxu0 %v3510
  %3859 = vmatpush1.bf16.msra.mxu0 %v3509
  %3860 = vmatprep.subr.bf16.mxu0 %v3514
  %3861 = vmatpush1.bf16.msra.mxu0 %v3513
  %3862 = vmatprep.subr.bf16.mxu0 %v3518
  %3863 = vmatpush1.bf16.msra.mxu0 %v3517
  %3864 = vmatprep.subr.bf16.mxu0 0
  %3865 = vmatpush1.bf16.msra.mxu0 0
  %3866 = vmatprep.subr.bf16.mxu0 0
  %3867 = vmatpush1.bf16.msra.mxu0 0
  %3868 = vmatprep.subr.bf16.mxu0 0
  %3869 = vmatpush1.bf16.msra.mxu0 0
  %3870 = vmatprep.subr.bf16.mxu0 0
  %3871 = vmatpush1.bf16.msra.mxu0 0
  %3872 = vmatprep.subr.bf16.mxu0 0
  %3873 = vmatpush1.bf16.msra.mxu0 0
  %3874 = vmatprep.subr.bf16.mxu0 0
  %3875 = vmatpush1.bf16.msra.mxu0 0
  %3876 = vmatprep.subr.bf16.mxu0 0
  %3877 = vmatpush1.bf16.msra.mxu0 0
  %3878 = vmatprep.subr.bf16.mxu0 0
  %3879 = vmatpush1.bf16.msra.mxu0 0
  %3880 = vmatprep.subr.bf16.mxu0 0
  %3881 = vmatpush1.bf16.msra.mxu0 0
  %3882 = vmatprep.subr.bf16.mxu0 0
  %3883 = vmatpush1.bf16.msra.mxu0 0
  %3884 = vmatprep.subr.bf16.mxu0 0
  %3885 = vmatpush1.bf16.msra.mxu0 0
  %3886 = vmatprep.subr.bf16.mxu0 0
  %3887 = vmatpush1.bf16.msra.mxu0 0
  %3888 = vmatprep.mubr.bf16.mxu0 0
  %3889 = vmatmul.mubr.bf16.gmra.mrb[0].mxu0 %v3798
  %v3890 = vpop.f32.mrb[0].mxu0
  %v3891 = vadd.f32 0.0, %v3890
  %v3892 = vpop.f32.mrb[0].mxu0
  %v3893 = vadd.f32 0.0, %v3892
  %v3894 = vpop.f32.mrb[0].mxu0
  %v3895 = vadd.f32 0.0, %v3894
  %v3896 = vpop.f32.mrb[0].mxu0
  %v3897 = vadd.f32 0.0, %v3896
  %3898 = vmatprep.mubr.bf16.mxu0 0
  %3899 = vmatmul.mubr.bf16.gmra.mrb[0].mxu0 %v3801
  %v3900 = vpop.f32.mrb[0].mxu0
  %v3901 = vadd.f32 0.0, %v3900
  %v3902 = vpop.f32.mrb[0].mxu0
  %v3903 = vadd.f32 0.0, %v3902
  %v3904 = vpop.f32.mrb[0].mxu0
  %v3905 = vadd.f32 0.0, %v3904
  %v3906 = vpop.f32.mrb[0].mxu0
  %v3907 = vadd.f32 0.0, %v3906
  %3908 = vdwg.mxu0
  %v3909 = vpack.c.bf16 %v3842, %v3838
  %v3910 = vpack.c.bf16 %v3844, %v3840
  %v3911 = vpack.c.bf16 %v3895, %v3891
  %v3912 = vpack.c.bf16 %v3897, %v3893
  %v3913 = vpack.c.bf16 %v3852, %v3848
  %v3914 = vpack.c.bf16 %v3854, %v3850
  %v3915 = vpack.c.bf16 %v3905, %v3901
  %v3916 = vpack.c.bf16 %v3907, %v3903
  %s3917 = scalar_lea.vmem %s5, 1024
  %v3918 = vld [vmem:[%s3917] sm:$0xff]
  %v3919 = vld [vmem:[%s3917 + $0x8] sm:$0xff]
  %v3920 = vld [vmem:[%s3917 + $0x10] sm:$0xff]
  %v3921 = vld [vmem:[%s3917 + $0x18] sm:$0xff]
  %v3922 = vld [vmem:[%s3917 + $0x20] sm:$0xff]
  %v3923 = vld [vmem:[%s3917 + $0x28] sm:$0xff]
  %v3924 = vld [vmem:[%s3917 + $0x30] sm:$0xff]
  %v3925 = vld [vmem:[%s3917 + $0x38] sm:$0xff]
  %v3926 = vld [vmem:[%s3917 + $0x40] sm:$0xff]
  %v3927 = vld [vmem:[%s3917 + $0x48] sm:$0xff]
  %v3928 = vld [vmem:[%s3917 + $0x50] sm:$0xff]
  %v3929 = vld [vmem:[%s3917 + $0x58] sm:$0xff]
  %v3930 = vld [vmem:[%s3917 + $0x60] sm:$0xff]
  %v3931 = vld [vmem:[%s3917 + $0x68] sm:$0xff]
  %v3932 = vld [vmem:[%s3917 + $0x70] sm:$0xff]
  %v3933 = vld [vmem:[%s3917 + $0x78] sm:$0xff]
  %v3934 = vld [vmem:[%s3917 + $0x80] sm:$0xff]
  %v3935 = vld [vmem:[%s3917 + $0x88] sm:$0xff]
  %v3936 = vld [vmem:[%s3917 + $0x90] sm:$0xff]
  %v3937 = vld [vmem:[%s3917 + $0x98] sm:$0xff]
  %v3938 = vld [vmem:[%s3917 + $0xa0] sm:$0xff]
  %v3939 = vld [vmem:[%s3917 + $0xa8] sm:$0xff]
  %v3940 = vld [vmem:[%s3917 + $0xb0] sm:$0xff]
  %v3941 = vld [vmem:[%s3917 + $0xb8] sm:$0xff]
  %v3942 = vld [vmem:[%s3917 + $0xc0] sm:$0xff]
  %v3943 = vld [vmem:[%s3917 + $0xc8] sm:$0xff]
  %v3944 = vld [vmem:[%s3917 + $0xd0] sm:$0xff]
  %v3945 = vld [vmem:[%s3917 + $0xd8] sm:$0xff]
  %v3946 = vld [vmem:[%s3917 + $0xe0] sm:$0xff]
  %v3947 = vld [vmem:[%s3917 + $0xe8] sm:$0xff]
  %v3948 = vld [vmem:[%s3917 + $0xf0] sm:$0xff]
  %v3949 = vld [vmem:[%s3917 + $0xf8] sm:$0xff]
  %v3950 = vld [vmem:[%s3917 + $0x100] sm:$0xff]
  %v3951 = vld [vmem:[%s3917 + $0x108] sm:$0xff]
  %v3952 = vld [vmem:[%s3917 + $0x110] sm:$0xff]
  %v3953 = vld [vmem:[%s3917 + $0x118] sm:$0xff]
  %v3954 = vld [vmem:[%s3917 + $0x120] sm:$0xff]
  %v3955 = vld [vmem:[%s3917 + $0x128] sm:$0xff]
  %v3956 = vld [vmem:[%s3917 + $0x130] sm:$0xff]
  %v3957 = vld [vmem:[%s3917 + $0x138] sm:$0xff]
  %v3958 = vld [vmem:[%s3917 + $0x140] sm:$0xff]
  %v3959 = vld [vmem:[%s3917 + $0x148] sm:$0xff]
  %v3960 = vld [vmem:[%s3917 + $0x150] sm:$0xff]
  %v3961 = vld [vmem:[%s3917 + $0x158] sm:$0xff]
  %v3962 = vld [vmem:[%s3917 + $0x160] sm:$0xff]
  %v3963 = vld [vmem:[%s3917 + $0x168] sm:$0xff]
  %v3964 = vld [vmem:[%s3917 + $0x170] sm:$0xff]
  %v3965 = vld [vmem:[%s3917 + $0x178] sm:$0xff]
  %v3966 = vld [vmem:[%s3917 + $0x180] sm:$0xff]
  %v3967 = vld [vmem:[%s3917 + $0x188] sm:$0xff]
  %v3968 = vld [vmem:[%s3917 + $0x190] sm:$0xff]
  %v3969 = vld [vmem:[%s3917 + $0x198] sm:$0xff]
  %v3970 = vld [vmem:[%s3917 + $0x1a0] sm:$0xff]
  %v3971 = vld [vmem:[%s3917 + $0x1a8] sm:$0xff]
  %v3972 = vld [vmem:[%s3917 + $0x1b0] sm:$0xff]
  %v3973 = vld [vmem:[%s3917 + $0x1b8] sm:$0xff]
  %v3974 = vld [vmem:[%s3917 + $0x1c0] sm:$0xff]
  %v3975 = vld [vmem:[%s3917 + $0x1c8] sm:$0xff]
  %v3976 = vld [vmem:[%s3917 + $0x1d0] sm:$0xff]
  %v3977 = vld [vmem:[%s3917 + $0x1d8] sm:$0xff]
  %v3978 = vld [vmem:[%s3917 + $0x1e0] sm:$0xff]
  %v3979 = vld [vmem:[%s3917 + $0x1e8] sm:$0xff]
  %v3980 = vld [vmem:[%s3917 + $0x1f0] sm:$0xff]
  %v3981 = vld [vmem:[%s3917 + $0x1f8] sm:$0xff]
  %v3982 = vld [vmem:[%s3917 + $0x200] sm:$0xff]
  %v3983 = vld [vmem:[%s3917 + $0x208] sm:$0xff]
  %v3984 = vld [vmem:[%s3917 + $0x210] sm:$0xff]
  %v3985 = vld [vmem:[%s3917 + $0x218] sm:$0xff]
  %v3986 = vld [vmem:[%s3917 + $0x220] sm:$0xff]
  %v3987 = vld [vmem:[%s3917 + $0x228] sm:$0xff]
  %v3988 = vld [vmem:[%s3917 + $0x230] sm:$0xff]
  %v3989 = vld [vmem:[%s3917 + $0x238] sm:$0xff]
  %v3990 = vld [vmem:[%s3917 + $0x240] sm:$0xff]
  %v3991 = vld [vmem:[%s3917 + $0x248] sm:$0xff]
  %v3992 = vld [vmem:[%s3917 + $0x250] sm:$0xff]
  %v3993 = vld [vmem:[%s3917 + $0x258] sm:$0xff]
  %v3994 = vld [vmem:[%s3917 + $0x260] sm:$0xff]
  %v3995 = vld [vmem:[%s3917 + $0x268] sm:$0xff]
  %v3996 = vld [vmem:[%s3917 + $0x270] sm:$0xff]
  %v3997 = vld [vmem:[%s3917 + $0x278] sm:$0xff]
  %v3998 = vld [vmem:[%s3917 + $0x280] sm:$0xff]
  %v3999 = vld [vmem:[%s3917 + $0x288] sm:$0xff]
  %v4000 = vld [vmem:[%s3917 + $0x290] sm:$0xff]
  %v4001 = vld [vmem:[%s3917 + $0x298] sm:$0xff]
  %v4002 = vld [vmem:[%s3917 + $0x2a0] sm:$0xff]
  %v4003 = vld [vmem:[%s3917 + $0x2a8] sm:$0xff]
  %v4004 = vld [vmem:[%s3917 + $0x2b0] sm:$0xff]
  %v4005 = vld [vmem:[%s3917 + $0x2b8] sm:$0xff]
  %v4006 = vld [vmem:[%s3917 + $0x2c0] sm:$0xff]
  %v4007 = vld [vmem:[%s3917 + $0x2c8] sm:$0xff]
  %v4008 = vld [vmem:[%s3917 + $0x2d0] sm:$0xff]
  %v4009 = vld [vmem:[%s3917 + $0x2d8] sm:$0xff]
  %v4010 = vld [vmem:[%s3917 + $0x2e0] sm:$0xff]
  %v4011 = vld [vmem:[%s3917 + $0x2e8] sm:$0xff]
  %v4012 = vld [vmem:[%s3917 + $0x2f0] sm:$0xff]
  %v4013 = vld [vmem:[%s3917 + $0x2f8] sm:$0xff]
  %v4014 = vld [vmem:[%s3917 + $0x300] sm:$0xff]
  %v4015 = vld [vmem:[%s3917 + $0x308] sm:$0xff]
  %v4016 = vld [vmem:[%s3917 + $0x310] sm:$0xff]
  %v4017 = vld [vmem:[%s3917 + $0x318] sm:$0xff]
  %v4018 = vld [vmem:[%s3917 + $0x320] sm:$0xff]
  %v4019 = vld [vmem:[%s3917 + $0x328] sm:$0xff]
  %v4020 = vld [vmem:[%s3917 + $0x330] sm:$0xff]
  %v4021 = vld [vmem:[%s3917 + $0x338] sm:$0xff]
  %v4022 = vld [vmem:[%s3917 + $0x340] sm:$0xff]
  %v4023 = vld [vmem:[%s3917 + $0x348] sm:$0xff]
  %v4024 = vld [vmem:[%s3917 + $0x350] sm:$0xff]
  %v4025 = vld [vmem:[%s3917 + $0x358] sm:$0xff]
  %v4026 = vld [vmem:[%s3917 + $0x360] sm:$0xff]
  %v4027 = vld [vmem:[%s3917 + $0x368] sm:$0xff]
  %v4028 = vld [vmem:[%s3917 + $0x370] sm:$0xff]
  %v4029 = vld [vmem:[%s3917 + $0x378] sm:$0xff]
  %v4030 = vld [vmem:[%s3917 + $0x380] sm:$0xff]
  %v4031 = vld [vmem:[%s3917 + $0x388] sm:$0xff]
  %v4032 = vld [vmem:[%s3917 + $0x390] sm:$0xff]
  %v4033 = vld [vmem:[%s3917 + $0x398] sm:$0xff]
  %v4034 = vld [vmem:[%s3917 + $0x3a0] sm:$0xff]
  %v4035 = vld [vmem:[%s3917 + $0x3a8] sm:$0xff]
  %v4036 = vld [vmem:[%s3917 + $0x3b0] sm:$0xff]
  %v4037 = vld [vmem:[%s3917 + $0x3b8] sm:$0xff]
  %v4038 = vld [vmem:[%s3917 + $0x3c0] sm:$0xff]
  %v4039 = vld [vmem:[%s3917 + $0x3c8] sm:$0xff]
  %v4040 = vld [vmem:[%s3917 + $0x3d0] sm:$0xff]
  %v4041 = vld [vmem:[%s3917 + $0x3d8] sm:$0xff]
  %v4042 = vld [vmem:[%s3917 + $0x3e0] sm:$0xff]
  %v4043 = vld [vmem:[%s3917 + $0x3e8] sm:$0xff]
  %v4044 = vld [vmem:[%s3917 + $0x3f0] sm:$0xff]
  %v4045 = vld [vmem:[%s3917 + $0x3f8] sm:$0xff]
  %v4174 = vunpack.c.l.b16 %v3918
  %v4175 = vunpack.c.h.b16 %v3918
  %v4176 = vunpack.c.l.b16 %v3919
  %v4177 = vunpack.c.h.b16 %v3919
  %v4178 = vunpack.c.l.b16 %v3920
  %v4179 = vunpack.c.h.b16 %v3920
  %v4180 = vunpack.c.l.b16 %v3921
  %v4181 = vunpack.c.h.b16 %v3921
  %v4182 = vunpack.c.l.b16 %v3922
  %v4183 = vunpack.c.h.b16 %v3922
  %v4184 = vunpack.c.l.b16 %v3923
  %v4185 = vunpack.c.h.b16 %v3923
  %v4186 = vunpack.c.l.b16 %v3924
  %v4187 = vunpack.c.h.b16 %v3924
  %v4188 = vunpack.c.l.b16 %v3925
  %v4189 = vunpack.c.h.b16 %v3925
  %v4190 = vunpack.c.l.b16 %v3926
  %v4191 = vunpack.c.h.b16 %v3926
  %v4192 = vunpack.c.l.b16 %v3927
  %v4193 = vunpack.c.h.b16 %v3927
  %v4194 = vunpack.c.l.b16 %v3928
  %v4195 = vunpack.c.h.b16 %v3928
  %v4196 = vunpack.c.l.b16 %v3929
  %v4197 = vunpack.c.h.b16 %v3929
  %v4198 = vunpack.c.l.b16 %v3930
  %v4199 = vunpack.c.h.b16 %v3930
  %v4200 = vunpack.c.l.b16 %v3931
  %v4201 = vunpack.c.h.b16 %v3931
  %v4202 = vunpack.c.l.b16 %v3932
  %v4203 = vunpack.c.h.b16 %v3932
  %v4204 = vunpack.c.l.b16 %v3933
  %v4205 = vunpack.c.h.b16 %v3933
  %v4206 = vunpack.c.l.b16 %v3934
  %v4207 = vunpack.c.h.b16 %v3934
  %v4208 = vunpack.c.l.b16 %v3935
  %v4209 = vunpack.c.h.b16 %v3935
  %v4210 = vunpack.c.l.b16 %v3936
  %v4211 = vunpack.c.h.b16 %v3936
  %v4212 = vunpack.c.l.b16 %v3937
  %v4213 = vunpack.c.h.b16 %v3937
  %v4214 = vunpack.c.l.b16 %v3938
  %v4215 = vunpack.c.h.b16 %v3938
  %v4216 = vunpack.c.l.b16 %v3939
  %v4217 = vunpack.c.h.b16 %v3939
  %v4218 = vunpack.c.l.b16 %v3940
  %v4219 = vunpack.c.h.b16 %v3940
  %v4220 = vunpack.c.l.b16 %v3941
  %v4221 = vunpack.c.h.b16 %v3941
  %v4222 = vunpack.c.l.b16 %v3942
  %v4223 = vunpack.c.h.b16 %v3942
  %v4224 = vunpack.c.l.b16 %v3943
  %v4225 = vunpack.c.h.b16 %v3943
  %v4226 = vunpack.c.l.b16 %v3944
  %v4227 = vunpack.c.h.b16 %v3944
  %v4228 = vunpack.c.l.b16 %v3945
  %v4229 = vunpack.c.h.b16 %v3945
  %v4230 = vunpack.c.l.b16 %v3946
  %v4231 = vunpack.c.h.b16 %v3946
  %v4232 = vunpack.c.l.b16 %v3947
  %v4233 = vunpack.c.h.b16 %v3947
  %v4234 = vunpack.c.l.b16 %v3948
  %v4235 = vunpack.c.h.b16 %v3948
  %v4236 = vunpack.c.l.b16 %v3949
  %v4237 = vunpack.c.h.b16 %v3949
  %v4238 = vunpack.c.l.b16 %v3950
  %v4239 = vunpack.c.h.b16 %v3950
  %v4240 = vunpack.c.l.b16 %v3951
  %v4241 = vunpack.c.h.b16 %v3951
  %v4242 = vunpack.c.l.b16 %v3952
  %v4243 = vunpack.c.h.b16 %v3952
  %v4244 = vunpack.c.l.b16 %v3953
  %v4245 = vunpack.c.h.b16 %v3953
  %v4246 = vunpack.c.l.b16 %v3954
  %v4247 = vunpack.c.h.b16 %v3954
  %v4248 = vunpack.c.l.b16 %v3955
  %v4249 = vunpack.c.h.b16 %v3955
  %v4250 = vunpack.c.l.b16 %v3956
  %v4251 = vunpack.c.h.b16 %v3956
  %v4252 = vunpack.c.l.b16 %v3957
  %v4253 = vunpack.c.h.b16 %v3957
  %v4254 = vunpack.c.l.b16 %v3958
  %v4255 = vunpack.c.h.b16 %v3958
  %v4256 = vunpack.c.l.b16 %v3959
  %v4257 = vunpack.c.h.b16 %v3959
  %v4258 = vunpack.c.l.b16 %v3960
  %v4259 = vunpack.c.h.b16 %v3960
  %v4260 = vunpack.c.l.b16 %v3961
  %v4261 = vunpack.c.h.b16 %v3961
  %v4262 = vunpack.c.l.b16 %v3962
  %v4263 = vunpack.c.h.b16 %v3962
  %v4264 = vunpack.c.l.b16 %v3963
  %v4265 = vunpack.c.h.b16 %v3963
  %v4266 = vunpack.c.l.b16 %v3964
  %v4267 = vunpack.c.h.b16 %v3964
  %v4268 = vunpack.c.l.b16 %v3965
  %v4269 = vunpack.c.h.b16 %v3965
  %v4270 = vunpack.c.l.b16 %v3966
  %v4271 = vunpack.c.h.b16 %v3966
  %v4272 = vunpack.c.l.b16 %v3967
  %v4273 = vunpack.c.h.b16 %v3967
  %v4274 = vunpack.c.l.b16 %v3968
  %v4275 = vunpack.c.h.b16 %v3968
  %v4276 = vunpack.c.l.b16 %v3969
  %v4277 = vunpack.c.h.b16 %v3969
  %v4278 = vunpack.c.l.b16 %v3970
  %v4279 = vunpack.c.h.b16 %v3970
  %v4280 = vunpack.c.l.b16 %v3971
  %v4281 = vunpack.c.h.b16 %v3971
  %v4282 = vunpack.c.l.b16 %v3972
  %v4283 = vunpack.c.h.b16 %v3972
  %v4284 = vunpack.c.l.b16 %v3973
  %v4285 = vunpack.c.h.b16 %v3973
  %v4286 = vunpack.c.l.b16 %v3974
  %v4287 = vunpack.c.h.b16 %v3974
  %v4288 = vunpack.c.l.b16 %v3975
  %v4289 = vunpack.c.h.b16 %v3975
  %v4290 = vunpack.c.l.b16 %v3976
  %v4291 = vunpack.c.h.b16 %v3976
  %v4292 = vunpack.c.l.b16 %v3977
  %v4293 = vunpack.c.h.b16 %v3977
  %v4294 = vunpack.c.l.b16 %v3978
  %v4295 = vunpack.c.h.b16 %v3978
  %v4296 = vunpack.c.l.b16 %v3979
  %v4297 = vunpack.c.h.b16 %v3979
  %v4298 = vunpack.c.l.b16 %v3980
  %v4299 = vunpack.c.h.b16 %v3980
  %v4300 = vunpack.c.l.b16 %v3981
  %v4301 = vunpack.c.h.b16 %v3981
  %v4302 = vunpack.c.l.b16 %v3982
  %v4303 = vunpack.c.h.b16 %v3982
  %v4304 = vunpack.c.l.b16 %v3983
  %v4305 = vunpack.c.h.b16 %v3983
  %v4306 = vunpack.c.l.b16 %v3984
  %v4307 = vunpack.c.h.b16 %v3984
  %v4308 = vunpack.c.l.b16 %v3985
  %v4309 = vunpack.c.h.b16 %v3985
  %v4310 = vunpack.c.l.b16 %v3986
  %v4311 = vunpack.c.h.b16 %v3986
  %v4312 = vunpack.c.l.b16 %v3987
  %v4313 = vunpack.c.h.b16 %v3987
  %v4314 = vunpack.c.l.b16 %v3988
  %v4315 = vunpack.c.h.b16 %v3988
  %v4316 = vunpack.c.l.b16 %v3989
  %v4317 = vunpack.c.h.b16 %v3989
  %v4318 = vunpack.c.l.b16 %v3990
  %v4319 = vunpack.c.h.b16 %v3990
  %v4320 = vunpack.c.l.b16 %v3991
  %v4321 = vunpack.c.h.b16 %v3991
  %v4322 = vunpack.c.l.b16 %v3992
  %v4323 = vunpack.c.h.b16 %v3992
  %v4324 = vunpack.c.l.b16 %v3993
  %v4325 = vunpack.c.h.b16 %v3993
  %v4326 = vunpack.c.l.b16 %v3994
  %v4327 = vunpack.c.h.b16 %v3994
  %v4328 = vunpack.c.l.b16 %v3995
  %v4329 = vunpack.c.h.b16 %v3995
  %v4330 = vunpack.c.l.b16 %v3996
  %v4331 = vunpack.c.h.b16 %v3996
  %v4332 = vunpack.c.l.b16 %v3997
  %v4333 = vunpack.c.h.b16 %v3997
  %v4334 = vunpack.c.l.b16 %v3998
  %v4335 = vunpack.c.h.b16 %v3998
  %v4336 = vunpack.c.l.b16 %v3999
  %v4337 = vunpack.c.h.b16 %v3999
  %v4338 = vunpack.c.l.b16 %v4000
  %v4339 = vunpack.c.h.b16 %v4000
  %v4340 = vunpack.c.l.b16 %v4001
  %v4341 = vunpack.c.h.b16 %v4001
  %v4342 = vunpack.c.l.b16 %v4002
  %v4343 = vunpack.c.h.b16 %v4002
  %v4344 = vunpack.c.l.b16 %v4003
  %v4345 = vunpack.c.h.b16 %v4003
  %v4346 = vunpack.c.l.b16 %v4004
  %v4347 = vunpack.c.h.b16 %v4004
  %v4348 = vunpack.c.l.b16 %v4005
  %v4349 = vunpack.c.h.b16 %v4005
  %v4350 = vunpack.c.l.b16 %v4006
  %v4351 = vunpack.c.h.b16 %v4006
  %v4352 = vunpack.c.l.b16 %v4007
  %v4353 = vunpack.c.h.b16 %v4007
  %v4354 = vunpack.c.l.b16 %v4008
  %v4355 = vunpack.c.h.b16 %v4008
  %v4356 = vunpack.c.l.b16 %v4009
  %v4357 = vunpack.c.h.b16 %v4009
  %v4358 = vunpack.c.l.b16 %v4010
  %v4359 = vunpack.c.h.b16 %v4010
  %v4360 = vunpack.c.l.b16 %v4011
  %v4361 = vunpack.c.h.b16 %v4011
  %v4362 = vunpack.c.l.b16 %v4012
  %v4363 = vunpack.c.h.b16 %v4012
  %v4364 = vunpack.c.l.b16 %v4013
  %v4365 = vunpack.c.h.b16 %v4013
  %v4366 = vunpack.c.l.b16 %v4014
  %v4367 = vunpack.c.h.b16 %v4014
  %v4368 = vunpack.c.l.b16 %v4015
  %v4369 = vunpack.c.h.b16 %v4015
  %v4370 = vunpack.c.l.b16 %v4016
  %v4371 = vunpack.c.h.b16 %v4016
  %v4372 = vunpack.c.l.b16 %v4017
  %v4373 = vunpack.c.h.b16 %v4017
  %v4374 = vunpack.c.l.b16 %v4018
  %v4375 = vunpack.c.h.b16 %v4018
  %v4376 = vunpack.c.l.b16 %v4019
  %v4377 = vunpack.c.h.b16 %v4019
  %v4378 = vunpack.c.l.b16 %v4020
  %v4379 = vunpack.c.h.b16 %v4020
  %v4380 = vunpack.c.l.b16 %v4021
  %v4381 = vunpack.c.h.b16 %v4021
  %v4382 = vunpack.c.l.b16 %v4022
  %v4383 = vunpack.c.h.b16 %v4022
  %v4384 = vunpack.c.l.b16 %v4023
  %v4385 = vunpack.c.h.b16 %v4023
  %v4386 = vunpack.c.l.b16 %v4024
  %v4387 = vunpack.c.h.b16 %v4024
  %v4388 = vunpack.c.l.b16 %v4025
  %v4389 = vunpack.c.h.b16 %v4025
  %v4390 = vunpack.c.l.b16 %v4026
  %v4391 = vunpack.c.h.b16 %v4026
  %v4392 = vunpack.c.l.b16 %v4027
  %v4393 = vunpack.c.h.b16 %v4027
  %v4394 = vunpack.c.l.b16 %v4028
  %v4395 = vunpack.c.h.b16 %v4028
  %v4396 = vunpack.c.l.b16 %v4029
  %v4397 = vunpack.c.h.b16 %v4029
  %v4398 = vunpack.c.l.b16 %v4030
  %v4399 = vunpack.c.h.b16 %v4030
  %v4400 = vunpack.c.l.b16 %v4031
  %v4401 = vunpack.c.h.b16 %v4031
  %v4402 = vunpack.c.l.b16 %v4032
  %v4403 = vunpack.c.h.b16 %v4032
  %v4404 = vunpack.c.l.b16 %v4033
  %v4405 = vunpack.c.h.b16 %v4033
  %v4406 = vunpack.c.l.b16 %v4034
  %v4407 = vunpack.c.h.b16 %v4034
  %v4408 = vunpack.c.l.b16 %v4035
  %v4409 = vunpack.c.h.b16 %v4035
  %v4410 = vunpack.c.l.b16 %v4036
  %v4411 = vunpack.c.h.b16 %v4036
  %v4412 = vunpack.c.l.b16 %v4037
  %v4413 = vunpack.c.h.b16 %v4037
  %v4414 = vunpack.c.l.b16 %v4038
  %v4415 = vunpack.c.h.b16 %v4038
  %v4416 = vunpack.c.l.b16 %v4039
  %v4417 = vunpack.c.h.b16 %v4039
  %v4418 = vunpack.c.l.b16 %v4040
  %v4419 = vunpack.c.h.b16 %v4040
  %v4420 = vunpack.c.l.b16 %v4041
  %v4421 = vunpack.c.h.b16 %v4041
  %v4422 = vunpack.c.l.b16 %v4042
  %v4423 = vunpack.c.h.b16 %v4042
  %v4424 = vunpack.c.l.b16 %v4043
  %v4425 = vunpack.c.h.b16 %v4043
  %v4426 = vunpack.c.l.b16 %v4044
  %v4427 = vunpack.c.h.b16 %v4044
  %v4428 = vunpack.c.l.b16 %v4045
  %v4429 = vunpack.c.h.b16 %v4045
  %v4430 = vpack.c.b16 %v4178, %v4174
  %v4431 = vpack.c.b16 %v4179, %v4175
  %v4432 = vpack.c.b16 %v4180, %v4176
  %v4433 = vpack.c.b16 %v4181, %v4177
  %v4434 = vpack.c.b16 %v4186, %v4182
  %v4435 = vpack.c.b16 %v4187, %v4183
  %v4436 = vpack.c.b16 %v4188, %v4184
  %v4437 = vpack.c.b16 %v4189, %v4185
  %v4438 = vpack.c.b16 %v4194, %v4190
  %v4439 = vpack.c.b16 %v4195, %v4191
  %v4440 = vpack.c.b16 %v4196, %v4192
  %v4441 = vpack.c.b16 %v4197, %v4193
  %v4442 = vpack.c.b16 %v4202, %v4198
  %v4443 = vpack.c.b16 %v4203, %v4199
  %v4444 = vpack.c.b16 %v4204, %v4200
  %v4445 = vpack.c.b16 %v4205, %v4201
  %v4446 = vpack.c.b16 %v4210, %v4206
  %v4447 = vpack.c.b16 %v4211, %v4207
  %v4448 = vpack.c.b16 %v4212, %v4208
  %v4449 = vpack.c.b16 %v4213, %v4209
  %v4450 = vpack.c.b16 %v4218, %v4214
  %v4451 = vpack.c.b16 %v4219, %v4215
  %v4452 = vpack.c.b16 %v4220, %v4216
  %v4453 = vpack.c.b16 %v4221, %v4217
  %v4454 = vpack.c.b16 %v4226, %v4222
  %v4455 = vpack.c.b16 %v4227, %v4223
  %v4456 = vpack.c.b16 %v4228, %v4224
  %v4457 = vpack.c.b16 %v4229, %v4225
  %v4458 = vpack.c.b16 %v4234, %v4230
  %v4459 = vpack.c.b16 %v4235, %v4231
  %v4460 = vpack.c.b16 %v4236, %v4232
  %v4461 = vpack.c.b16 %v4237, %v4233
  %v4462 = vpack.c.b16 %v4242, %v4238
  %v4463 = vpack.c.b16 %v4243, %v4239
  %v4464 = vpack.c.b16 %v4244, %v4240
  %v4465 = vpack.c.b16 %v4245, %v4241
  %v4466 = vpack.c.b16 %v4250, %v4246
  %v4467 = vpack.c.b16 %v4251, %v4247
  %v4468 = vpack.c.b16 %v4252, %v4248
  %v4469 = vpack.c.b16 %v4253, %v4249
  %v4470 = vpack.c.b16 %v4258, %v4254
  %v4471 = vpack.c.b16 %v4259, %v4255
  %v4472 = vpack.c.b16 %v4260, %v4256
  %v4473 = vpack.c.b16 %v4261, %v4257
  %v4474 = vpack.c.b16 %v4266, %v4262
  %v4475 = vpack.c.b16 %v4267, %v4263
  %v4476 = vpack.c.b16 %v4268, %v4264
  %v4477 = vpack.c.b16 %v4269, %v4265
  %v4478 = vpack.c.b16 %v4274, %v4270
  %v4479 = vpack.c.b16 %v4275, %v4271
  %v4480 = vpack.c.b16 %v4276, %v4272
  %v4481 = vpack.c.b16 %v4277, %v4273
  %v4482 = vpack.c.b16 %v4282, %v4278
  %v4483 = vpack.c.b16 %v4283, %v4279
  %v4484 = vpack.c.b16 %v4284, %v4280
  %v4485 = vpack.c.b16 %v4285, %v4281
  %v4486 = vpack.c.b16 %v4290, %v4286
  %v4487 = vpack.c.b16 %v4291, %v4287
  %v4488 = vpack.c.b16 %v4292, %v4288
  %v4489 = vpack.c.b16 %v4293, %v4289
  %v4490 = vpack.c.b16 %v4298, %v4294
  %v4491 = vpack.c.b16 %v4299, %v4295
  %v4492 = vpack.c.b16 %v4300, %v4296
  %v4493 = vpack.c.b16 %v4301, %v4297
  %v4494 = vpack.c.b16 %v4306, %v4302
  %v4495 = vpack.c.b16 %v4307, %v4303
  %v4496 = vpack.c.b16 %v4308, %v4304
  %v4497 = vpack.c.b16 %v4309, %v4305
  %v4498 = vpack.c.b16 %v4314, %v4310
  %v4499 = vpack.c.b16 %v4315, %v4311
  %v4500 = vpack.c.b16 %v4316, %v4312
  %v4501 = vpack.c.b16 %v4317, %v4313
  %v4502 = vpack.c.b16 %v4322, %v4318
  %v4503 = vpack.c.b16 %v4323, %v4319
  %v4504 = vpack.c.b16 %v4324, %v4320
  %v4505 = vpack.c.b16 %v4325, %v4321
  %v4506 = vpack.c.b16 %v4330, %v4326
  %v4507 = vpack.c.b16 %v4331, %v4327
  %v4508 = vpack.c.b16 %v4332, %v4328
  %v4509 = vpack.c.b16 %v4333, %v4329
  %v4510 = vpack.c.b16 %v4338, %v4334
  %v4511 = vpack.c.b16 %v4339, %v4335
  %v4512 = vpack.c.b16 %v4340, %v4336
  %v4513 = vpack.c.b16 %v4341, %v4337
  %v4514 = vpack.c.b16 %v4346, %v4342
  %v4515 = vpack.c.b16 %v4347, %v4343
  %v4516 = vpack.c.b16 %v4348, %v4344
  %v4517 = vpack.c.b16 %v4349, %v4345
  %v4518 = vpack.c.b16 %v4354, %v4350
  %v4519 = vpack.c.b16 %v4355, %v4351
  %v4520 = vpack.c.b16 %v4356, %v4352
  %v4521 = vpack.c.b16 %v4357, %v4353
  %v4522 = vpack.c.b16 %v4362, %v4358
  %v4523 = vpack.c.b16 %v4363, %v4359
  %v4524 = vpack.c.b16 %v4364, %v4360
  %v4525 = vpack.c.b16 %v4365, %v4361
  %v4526 = vpack.c.b16 %v4370, %v4366
  %v4527 = vpack.c.b16 %v4371, %v4367
  %v4528 = vpack.c.b16 %v4372, %v4368
  %v4529 = vpack.c.b16 %v4373, %v4369
  %v4530 = vpack.c.b16 %v4378, %v4374
  %v4531 = vpack.c.b16 %v4379, %v4375
  %v4532 = vpack.c.b16 %v4380, %v4376
  %v4533 = vpack.c.b16 %v4381, %v4377
  %v4534 = vpack.c.b16 %v4386, %v4382
  %v4535 = vpack.c.b16 %v4387, %v4383
  %v4536 = vpack.c.b16 %v4388, %v4384
  %v4537 = vpack.c.b16 %v4389, %v4385
  %v4538 = vpack.c.b16 %v4394, %v4390
  %v4539 = vpack.c.b16 %v4395, %v4391
  %v4540 = vpack.c.b16 %v4396, %v4392
  %v4541 = vpack.c.b16 %v4397, %v4393
  %v4542 = vpack.c.b16 %v4402, %v4398
  %v4543 = vpack.c.b16 %v4403, %v4399
  %v4544 = vpack.c.b16 %v4404, %v4400
  %v4545 = vpack.c.b16 %v4405, %v4401
  %v4546 = vpack.c.b16 %v4410, %v4406
  %v4547 = vpack.c.b16 %v4411, %v4407
  %v4548 = vpack.c.b16 %v4412, %v4408
  %v4549 = vpack.c.b16 %v4413, %v4409
  %v4550 = vpack.c.b16 %v4418, %v4414
  %v4551 = vpack.c.b16 %v4419, %v4415
  %v4552 = vpack.c.b16 %v4420, %v4416
  %v4553 = vpack.c.b16 %v4421, %v4417
  %v4554 = vpack.c.b16 %v4426, %v4422
  %v4555 = vpack.c.b16 %v4427, %v4423
  %v4556 = vpack.c.b16 %v4428, %v4424
  %v4557 = vpack.c.b16 %v4429, %v4425
  %4686 = vmatprep.subr.bf16.mxu0 %v4431
  %4687 = vmatpush1.bf16.msra.mxu0 %v4430
  %4688 = vmatprep.subr.bf16.mxu0 %v4435
  %4689 = vmatpush1.bf16.msra.mxu0 %v4434
  %4690 = vmatprep.subr.bf16.mxu0 %v4439
  %4691 = vmatpush1.bf16.msra.mxu0 %v4438
  %4692 = vmatprep.subr.bf16.mxu0 %v4443
  %4693 = vmatpush1.bf16.msra.mxu0 %v4442
  %4694 = vmatprep.subr.bf16.mxu0 %v4447
  %4695 = vmatpush1.bf16.msra.mxu0 %v4446
  %4696 = vmatprep.subr.bf16.mxu0 %v4451
  %4697 = vmatpush1.bf16.msra.mxu0 %v4450
  %4698 = vmatprep.subr.bf16.mxu0 %v4455
  %4699 = vmatpush1.bf16.msra.mxu0 %v4454
  %4700 = vmatprep.subr.bf16.mxu0 %v4459
  %4701 = vmatpush1.bf16.msra.mxu0 %v4458
  %4702 = vmatprep.subr.bf16.mxu0 %v4463
  %4703 = vmatpush1.bf16.msra.mxu0 %v4462
  %4704 = vmatprep.subr.bf16.mxu0 %v4467
  %4705 = vmatpush1.bf16.msra.mxu0 %v4466
  %4706 = vmatprep.subr.bf16.mxu0 %v4471
  %4707 = vmatpush1.bf16.msra.mxu0 %v4470
  %4708 = vmatprep.subr.bf16.mxu0 %v4475
  %4709 = vmatpush1.bf16.msra.mxu0 %v4474
  %4710 = vmatprep.subr.bf16.mxu0 %v4479
  %4711 = vmatpush1.bf16.msra.mxu0 %v4478
  %4712 = vmatprep.subr.bf16.mxu0 %v4483
  %4713 = vmatpush1.bf16.msra.mxu0 %v4482
  %4714 = vmatprep.subr.bf16.mxu0 %v4487
  %4715 = vmatpush1.bf16.msra.mxu0 %v4486
  %4716 = vmatprep.subr.bf16.mxu0 %v4491
  %4717 = vmatpush1.bf16.msra.mxu0 %v4490
  %4718 = vmatprep.mubr.bf16.mxu0 %v3910
  %4719 = vmatmul.mubr.bf16.gmra.mrb[0].mxu0 %v3909
  %v4720 = vpop.f32.mrb[0].mxu0
  %v4721 = vadd.f32 0.0, %v4720
  %v4722 = vpop.f32.mrb[0].mxu0
  %v4723 = vadd.f32 0.0, %v4722
  %v4724 = vpop.f32.mrb[0].mxu0
  %v4725 = vadd.f32 0.0, %v4724
  %v4726 = vpop.f32.mrb[0].mxu0
  %v4727 = vadd.f32 0.0, %v4726
  %4728 = vmatprep.mubr.bf16.mxu0 %v3914
  %4729 = vmatmul.mubr.bf16.gmra.mrb[0].mxu0 %v3913
  %v4730 = vpop.f32.mrb[0].mxu0
  %v4731 = vadd.f32 0.0, %v4730
  %v4732 = vpop.f32.mrb[0].mxu0
  %v4733 = vadd.f32 0.0, %v4732
  %v4734 = vpop.f32.mrb[0].mxu0
  %v4735 = vadd.f32 0.0, %v4734
  %v4736 = vpop.f32.mrb[0].mxu0
  %v4737 = vadd.f32 0.0, %v4736
  %4738 = vdwg.mxu0
  %4739 = vmatprep.subr.bf16.mxu0 %v4495
  %4740 = vmatpush1.bf16.msra.mxu0 %v4494
  %4741 = vmatprep.subr.bf16.mxu0 %v4499
  %4742 = vmatpush1.bf16.msra.mxu0 %v4498
  %4743 = vmatprep.subr.bf16.mxu0 %v4503
  %4744 = vmatpush1.bf16.msra.mxu0 %v4502
  %4745 = vmatprep.subr.bf16.mxu0 %v4507
  %4746 = vmatpush1.bf16.msra.mxu0 %v4506
  %4747 = vmatprep.subr.bf16.mxu0 %v4511
  %4748 = vmatpush1.bf16.msra.mxu0 %v4510
  %4749 = vmatprep.subr.bf16.mxu0 %v4515
  %4750 = vmatpush1.bf16.msra.mxu0 %v4514
  %4751 = vmatprep.subr.bf16.mxu0 %v4519
  %4752 = vmatpush1.bf16.msra.mxu0 %v4518
  %4753 = vmatprep.subr.bf16.mxu0 %v4523
  %4754 = vmatpush1.bf16.msra.mxu0 %v4522
  %4755 = vmatprep.subr.bf16.mxu0 %v4527
  %4756 = vmatpush1.bf16.msra.mxu0 %v4526
  %4757 = vmatprep.subr.bf16.mxu0 %v4531
  %4758 = vmatpush1.bf16.msra.mxu0 %v4530
  %4759 = vmatprep.subr.bf16.mxu0 %v4535
  %4760 = vmatpush1.bf16.msra.mxu0 %v4534
  %4761 = vmatprep.subr.bf16.mxu0 %v4539
  %4762 = vmatpush1.bf16.msra.mxu0 %v4538
  %4763 = vmatprep.subr.bf16.mxu0 %v4543
  %4764 = vmatpush1.bf16.msra.mxu0 %v4542
  %4765 = vmatprep.subr.bf16.mxu0 %v4547
  %4766 = vmatpush1.bf16.msra.mxu0 %v4546
  %4767 = vmatprep.subr.bf16.mxu0 %v4551
  %4768 = vmatpush1.bf16.msra.mxu0 %v4550
  %4769 = vmatprep.subr.bf16.mxu0 %v4555
  %4770 = vmatpush1.bf16.msra.mxu0 %v4554
  %4771 = vmatprep.mubr.bf16.mxu0 %v3912
  %4772 = vmatmul.mubr.bf16.gmra.mrb[0].mxu0 %v3911
  %v4773 = vpop.f32.mrb[0].mxu0
  %v4774 = vadd.f32 %v4721, %v4773
  %v4775 = vpop.f32.mrb[0].mxu0
  %v4776 = vadd.f32 %v4723, %v4775
  %v4777 = vpop.f32.mrb[0].mxu0
  %v4778 = vadd.f32 %v4725, %v4777
  %v4779 = vpop.f32.mrb[0].mxu0
  %v4780 = vadd.f32 %v4727, %v4779
  %4781 = vmatprep.mubr.bf16.mxu0 %v3916
  %4782 = vmatmul.mubr.bf16.gmra.mrb[0].mxu0 %v3915
  %v4783 = vpop.f32.mrb[0].mxu0
  %v4784 = vadd.f32 %v4731, %v4783
  %v4785 = vpop.f32.mrb[0].mxu0
  %v4786 = vadd.f32 %v4733, %v4785
  %v4787 = vpop.f32.mrb[0].mxu0
  %v4788 = vadd.f32 %v4735, %v4787
  %v4789 = vpop.f32.mrb[0].mxu0
  %v4790 = vadd.f32 %v4737, %v4789
  %4791 = vdwg.mxu0
  %4792 = vmatprep.subr.bf16.mxu0 %v4433
  %4793 = vmatpush1.bf16.msra.mxu0 %v4432
  %4794 = vmatprep.subr.bf16.mxu0 %v4437
  %4795 = vmatpush1.bf16.msra.mxu0 %v4436
  %4796 = vmatprep.subr.bf16.mxu0 %v4441
  %4797 = vmatpush1.bf16.msra.mxu0 %v4440
  %4798 = vmatprep.subr.bf16.mxu0 %v4445
  %4799 = vmatpush1.bf16.msra.mxu0 %v4444
  %4800 = vmatprep.subr.bf16.mxu0 %v4449
  %4801 = vmatpush1.bf16.msra.mxu0 %v4448
  %4802 = vmatprep.subr.bf16.mxu0 %v4453
  %4803 = vmatpush1.bf16.msra.mxu0 %v4452
  %4804 = vmatprep.subr.bf16.mxu0 %v4457
  %4805 = vmatpush1.bf16.msra.mxu0 %v4456
  %4806 = vmatprep.subr.bf16.mxu0 %v4461
  %4807 = vmatpush1.bf16.msra.mxu0 %v4460
  %4808 = vmatprep.subr.bf16.mxu0 %v4465
  %4809 = vmatpush1.bf16.msra.mxu0 %v4464
  %4810 = vmatprep.subr.bf16.mxu0 %v4469
  %4811 = vmatpush1.bf16.msra.mxu0 %v4468
  %4812 = vmatprep.subr.bf16.mxu0 %v4473
  %4813 = vmatpush1.bf16.msra.mxu0 %v4472
  %4814 = vmatprep.subr.bf16.mxu0 %v4477
  %4815 = vmatpush1.bf16.msra.mxu0 %v4476
  %4816 = vmatprep.subr.bf16.mxu0 %v4481
  %4817 = vmatpush1.bf16.msra.mxu0 %v4480
  %4818 = vmatprep.subr.bf16.mxu0 %v4485
  %4819 = vmatpush1.bf16.msra.mxu0 %v4484
  %4820 = vmatprep.subr.bf16.mxu0 %v4489
  %4821 = vmatpush1.bf16.msra.mxu0 %v4488
  %4822 = vmatprep.subr.bf16.mxu0 %v4493
  %4823 = vmatpush1.bf16.msra.mxu0 %v4492
  %4824 = vmatprep.mubr.bf16.mxu0 %v3910
  %4825 = vmatmul.mubr.bf16.gmra.mrb[0].mxu0 %v3909
  %v4826 = vpop.f32.mrb[0].mxu0
  %v4827 = vadd.f32 0.0, %v4826
  %v4828 = vpop.f32.mrb[0].mxu0
  %v4829 = vadd.f32 0.0, %v4828
  %v4830 = vpop.f32.mrb[0].mxu0
  %v4831 = vadd.f32 0.0, %v4830
  %v4832 = vpop.f32.mrb[0].mxu0
  %v4833 = vadd.f32 0.0, %v4832
  %4834 = vmatprep.mubr.bf16.mxu0 %v3914
  %4835 = vmatmul.mubr.bf16.gmra.mrb[0].mxu0 %v3913
  %v4836 = vpop.f32.mrb[0].mxu0
  %v4837 = vadd.f32 0.0, %v4836
  %v4838 = vpop.f32.mrb[0].mxu0
  %v4839 = vadd.f32 0.0, %v4838
  %v4840 = vpop.f32.mrb[0].mxu0
  %v4841 = vadd.f32 0.0, %v4840
  %v4842 = vpop.f32.mrb[0].mxu0
  %v4843 = vadd.f32 0.0, %v4842
  %4844 = vdwg.mxu0
  %4845 = vmatprep.subr.bf16.mxu0 %v4497
  %4846 = vmatpush1.bf16.msra.mxu0 %v4496
  %4847 = vmatprep.subr.bf16.mxu0 %v4501
  %4848 = vmatpush1.bf16.msra.mxu0 %v4500
  %4849 = vmatprep.subr.bf16.mxu0 %v4505
  %4850 = vmatpush1.bf16.msra.mxu0 %v4504
  %4851 = vmatprep.subr.bf16.mxu0 %v4509
  %4852 = vmatpush1.bf16.msra.mxu0 %v4508
  %4853 = vmatprep.subr.bf16.mxu0 %v4513
  %4854 = vmatpush1.bf16.msra.mxu0 %v4512
  %4855 = vmatprep.subr.bf16.mxu0 %v4517
  %4856 = vmatpush1.bf16.msra.mxu0 %v4516
  %4857 = vmatprep.subr.bf16.mxu0 %v4521
  %4858 = vmatpush1.bf16.msra.mxu0 %v4520
  %4859 = vmatprep.subr.bf16.mxu0 %v4525
  %4860 = vmatpush1.bf16.msra.mxu0 %v4524
  %4861 = vmatprep.subr.bf16.mxu0 %v4529
  %4862 = vmatpush1.bf16.msra.mxu0 %v4528
  %4863 = vmatprep.subr.bf16.mxu0 %v4533
  %4864 = vmatpush1.bf16.msra.mxu0 %v4532
  %4865 = vmatprep.subr.bf16.mxu0 %v4537
  %4866 = vmatpush1.bf16.msra.mxu0 %v4536
  %4867 = vmatprep.subr.bf16.mxu0 %v4541
  %4868 = vmatpush1.bf16.msra.mxu0 %v4540
  %4869 = vmatprep.subr.bf16.mxu0 %v4545
  %4870 = vmatpush1.bf16.msra.mxu0 %v4544
  %4871 = vmatprep.subr.bf16.mxu0 %v4549
  %4872 = vmatpush1.bf16.msra.mxu0 %v4548
  %4873 = vmatprep.subr.bf16.mxu0 %v4553
  %4874 = vmatpush1.bf16.msra.mxu0 %v4552
  %4875 = vmatprep.subr.bf16.mxu0 %v4557
  %4876 = vmatpush1.bf16.msra.mxu0 %v4556
  %4877 = vmatprep.mubr.bf16.mxu0 %v3912
  %4878 = vmatmul.mubr.bf16.gmra.mrb[0].mxu0 %v3911
  %v4879 = vpop.f32.mrb[0].mxu0
  %v4880 = vadd.f32 %v4827, %v4879
  %v4881 = vpop.f32.mrb[0].mxu0
  %v4882 = vadd.f32 %v4829, %v4881
  %v4883 = vpop.f32.mrb[0].mxu0
  %v4884 = vadd.f32 %v4831, %v4883
  %v4885 = vpop.f32.mrb[0].mxu0
  %v4886 = vadd.f32 %v4833, %v4885
  %4887 = vmatprep.mubr.bf16.mxu0 %v3916
  %4888 = vmatmul.mubr.bf16.gmra.mrb[0].mxu0 %v3915
  %v4889 = vpop.f32.mrb[0].mxu0
  %v4890 = vadd.f32 %v4837, %v4889
  %v4891 = vpop.f32.mrb[0].mxu0
  %v4892 = vadd.f32 %v4839, %v4891
  %v4893 = vpop.f32.mrb[0].mxu0
  %v4894 = vadd.f32 %v4841, %v4893
  %v4895 = vpop.f32.mrb[0].mxu0
  %v4896 = vadd.f32 %v4843, %v4895
  %4897 = vdwg.mxu0
  %v5026 = vunpack.c.l.b16 %v3654
  %v5027 = vunpack.c.h.b16 %v3654
  %v5028 = vunpack.c.l.b16 %v3655
  %v5029 = vunpack.c.h.b16 %v3655
  %v5030 = vunpack.c.l.b16 %v3656
  %v5031 = vunpack.c.h.b16 %v3656
  %v5032 = vunpack.c.l.b16 %v3657
  %v5033 = vunpack.c.h.b16 %v3657
  %v5034 = vunpack.c.l.b16 %v3658
  %v5035 = vunpack.c.h.b16 %v3658
  %v5036 = vunpack.c.l.b16 %v3659
  %v5037 = vunpack.c.h.b16 %v3659
  %v5038 = vunpack.c.l.b16 %v3660
  %v5039 = vunpack.c.h.b16 %v3660
  %v5040 = vunpack.c.l.b16 %v3661
  %v5041 = vunpack.c.h.b16 %v3661
  %v5042 = vunpack.c.l.b16 %v3662
  %v5043 = vunpack.c.h.b16 %v3662
  %v5044 = vunpack.c.l.b16 %v3663
  %v5045 = vunpack.c.h.b16 %v3663
  %v5046 = vunpack.c.l.b16 %v3664
  %v5047 = vunpack.c.h.b16 %v3664
  %v5048 = vunpack.c.l.b16 %v3665
  %v5049 = vunpack.c.h.b16 %v3665
  %v5050 = vunpack.c.l.b16 %v3666
  %v5051 = vunpack.c.h.b16 %v3666
  %v5052 = vunpack.c.l.b16 %v3667
  %v5053 = vunpack.c.h.b16 %v3667
  %v5054 = vunpack.c.l.b16 %v3668
  %v5055 = vunpack.c.h.b16 %v3668
  %v5056 = vunpack.c.l.b16 %v3669
  %v5057 = vunpack.c.h.b16 %v3669
  %v5058 = vunpack.c.l.b16 %v3670
  %v5059 = vunpack.c.h.b16 %v3670
  %v5060 = vunpack.c.l.b16 %v3671
  %v5061 = vunpack.c.h.b16 %v3671
  %v5062 = vunpack.c.l.b16 %v3672
  %v5063 = vunpack.c.h.b16 %v3672
  %v5064 = vunpack.c.l.b16 %v3673
  %v5065 = vunpack.c.h.b16 %v3673
  %v5066 = vunpack.c.l.b16 %v3674
  %v5067 = vunpack.c.h.b16 %v3674
  %v5068 = vunpack.c.l.b16 %v3675
  %v5069 = vunpack.c.h.b16 %v3675
  %v5070 = vunpack.c.l.b16 %v3676
  %v5071 = vunpack.c.h.b16 %v3676
  %v5072 = vunpack.c.l.b16 %v3677
  %v5073 = vunpack.c.h.b16 %v3677
  %v5074 = vunpack.c.l.b16 %v3678
  %v5075 = vunpack.c.h.b16 %v3678
  %v5076 = vunpack.c.l.b16 %v3679
  %v5077 = vunpack.c.h.b16 %v3679
  %v5078 = vunpack.c.l.b16 %v3680
  %v5079 = vunpack.c.h.b16 %v3680
  %v5080 = vunpack.c.l.b16 %v3681
  %v5081 = vunpack.c.h.b16 %v3681
  %v5082 = vunpack.c.l.b16 %v3682
  %v5083 = vunpack.c.h.b16 %v3682
  %v5084 = vunpack.c.l.b16 %v3683
  %v5085 = vunpack.c.h.b16 %v3683
  %v5086 = vunpack.c.l.b16 %v3684
  %v5087 = vunpack.c.h.b16 %v3684
  %v5088 = vunpack.c.l.b16 %v3685
  %v5089 = vunpack.c.h.b16 %v3685
  %v5090 = vunpack.c.l.b16 %v3686
  %v5091 = vunpack.c.h.b16 %v3686
  %v5092 = vunpack.c.l.b16 %v3687
  %v5093 = vunpack.c.h.b16 %v3687
  %v5094 = vunpack.c.l.b16 %v3688
  %v5095 = vunpack.c.h.b16 %v3688
  %v5096 = vunpack.c.l.b16 %v3689
  %v5097 = vunpack.c.h.b16 %v3689
  %v5098 = vunpack.c.l.b16 %v3690
  %v5099 = vunpack.c.h.b16 %v3690
  %v5100 = vunpack.c.l.b16 %v3691
  %v5101 = vunpack.c.h.b16 %v3691
  %v5102 = vunpack.c.l.b16 %v3692
  %v5103 = vunpack.c.h.b16 %v3692
  %v5104 = vunpack.c.l.b16 %v3693
  %v5105 = vunpack.c.h.b16 %v3693
  %v5106 = vunpack.c.l.b16 %v3694
  %v5107 = vunpack.c.h.b16 %v3694
  %v5108 = vunpack.c.l.b16 %v3695
  %v5109 = vunpack.c.h.b16 %v3695
  %v5110 = vunpack.c.l.b16 %v3696
  %v5111 = vunpack.c.h.b16 %v3696
  %v5112 = vunpack.c.l.b16 %v3697
  %v5113 = vunpack.c.h.b16 %v3697
  %v5114 = vunpack.c.l.b16 %v3698
  %v5115 = vunpack.c.h.b16 %v3698
  %v5116 = vunpack.c.l.b16 %v3699
  %v5117 = vunpack.c.h.b16 %v3699
  %v5118 = vunpack.c.l.b16 %v3700
  %v5119 = vunpack.c.h.b16 %v3700
  %v5120 = vunpack.c.l.b16 %v3701
  %v5121 = vunpack.c.h.b16 %v3701
  %v5122 = vunpack.c.l.b16 %v3702
  %v5123 = vunpack.c.h.b16 %v3702
  %v5124 = vunpack.c.l.b16 %v3703
  %v5125 = vunpack.c.h.b16 %v3703
  %v5126 = vunpack.c.l.b16 %v3704
  %v5127 = vunpack.c.h.b16 %v3704
  %v5128 = vunpack.c.l.b16 %v3705
  %v5129 = vunpack.c.h.b16 %v3705
  %v5130 = vunpack.c.l.b16 %v3706
  %v5131 = vunpack.c.h.b16 %v3706
  %v5132 = vunpack.c.l.b16 %v3707
  %v5133 = vunpack.c.h.b16 %v3707
  %v5134 = vunpack.c.l.b16 %v3708
  %v5135 = vunpack.c.h.b16 %v3708
  %v5136 = vunpack.c.l.b16 %v3709
  %v5137 = vunpack.c.h.b16 %v3709
  %v5138 = vunpack.c.l.b16 %v3710
  %v5139 = vunpack.c.h.b16 %v3710
  %v5140 = vunpack.c.l.b16 %v3711
  %v5141 = vunpack.c.h.b16 %v3711
  %v5142 = vunpack.c.l.b16 %v3712
  %v5143 = vunpack.c.h.b16 %v3712
  %v5144 = vunpack.c.l.b16 %v3713
  %v5145 = vunpack.c.h.b16 %v3713
  %v5146 = vunpack.c.l.b16 %v3714
  %v5147 = vunpack.c.h.b16 %v3714
  %v5148 = vunpack.c.l.b16 %v3715
  %v5149 = vunpack.c.h.b16 %v3715
  %v5150 = vunpack.c.l.b16 %v3716
  %v5151 = vunpack.c.h.b16 %v3716
  %v5152 = vunpack.c.l.b16 %v3717
  %v5153 = vunpack.c.h.b16 %v3717
  %v5154 = vunpack.c.l.b16 %v3718
  %v5155 = vunpack.c.h.b16 %v3718
  %v5156 = vunpack.c.l.b16 %v3719
  %v5157 = vunpack.c.h.b16 %v3719
  %v5158 = vunpack.c.l.b16 %v3720
  %v5159 = vunpack.c.h.b16 %v3720
  %v5160 = vunpack.c.l.b16 %v3721
  %v5161 = vunpack.c.h.b16 %v3721
  %v5162 = vunpack.c.l.b16 %v3722
  %v5163 = vunpack.c.h.b16 %v3722
  %v5164 = vunpack.c.l.b16 %v3723
  %v5165 = vunpack.c.h.b16 %v3723
  %v5166 = vunpack.c.l.b16 %v3724
  %v5167 = vunpack.c.h.b16 %v3724
  %v5168 = vunpack.c.l.b16 %v3725
  %v5169 = vunpack.c.h.b16 %v3725
  %v5170 = vunpack.c.l.b16 %v3726
  %v5171 = vunpack.c.h.b16 %v3726
  %v5172 = vunpack.c.l.b16 %v3727
  %v5173 = vunpack.c.h.b16 %v3727
  %v5174 = vunpack.c.l.b16 %v3728
  %v5175 = vunpack.c.h.b16 %v3728
  %v5176 = vunpack.c.l.b16 %v3729
  %v5177 = vunpack.c.h.b16 %v3729
  %v5178 = vunpack.c.l.b16 %v3730
  %v5179 = vunpack.c.h.b16 %v3730
  %v5180 = vunpack.c.l.b16 %v3731
  %v5181 = vunpack.c.h.b16 %v3731
  %v5182 = vunpack.c.l.b16 %v3732
  %v5183 = vunpack.c.h.b16 %v3732
  %v5184 = vunpack.c.l.b16 %v3733
  %v5185 = vunpack.c.h.b16 %v3733
  %v5186 = vunpack.c.l.b16 %v3734
  %v5187 = vunpack.c.h.b16 %v3734
  %v5188 = vunpack.c.l.b16 %v3735
  %v5189 = vunpack.c.h.b16 %v3735
  %v5190 = vunpack.c.l.b16 %v3736
  %v5191 = vunpack.c.h.b16 %v3736
  %v5192 = vunpack.c.l.b16 %v3737
  %v5193 = vunpack.c.h.b16 %v3737
  %v5194 = vunpack.c.l.b16 %v3738
  %v5195 = vunpack.c.h.b16 %v3738
  %v5196 = vunpack.c.l.b16 %v3739
  %v5197 = vunpack.c.h.b16 %v3739
  %v5198 = vunpack.c.l.b16 %v3740
  %v5199 = vunpack.c.h.b16 %v3740
  %v5200 = vunpack.c.l.b16 %v3741
  %v5201 = vunpack.c.h.b16 %v3741
  %v5202 = vunpack.c.l.b16 %v3742
  %v5203 = vunpack.c.h.b16 %v3742
  %v5204 = vunpack.c.l.b16 %v3743
  %v5205 = vunpack.c.h.b16 %v3743
  %v5206 = vunpack.c.l.b16 %v3744
  %v5207 = vunpack.c.h.b16 %v3744
  %v5208 = vunpack.c.l.b16 %v3745
  %v5209 = vunpack.c.h.b16 %v3745
  %v5210 = vunpack.c.l.b16 %v3746
  %v5211 = vunpack.c.h.b16 %v3746
  %v5212 = vunpack.c.l.b16 %v3747
  %v5213 = vunpack.c.h.b16 %v3747
  %v5214 = vunpack.c.l.b16 %v3748
  %v5215 = vunpack.c.h.b16 %v3748
  %v5216 = vunpack.c.l.b16 %v3749
  %v5217 = vunpack.c.h.b16 %v3749
  %v5218 = vunpack.c.l.b16 %v3750
  %v5219 = vunpack.c.h.b16 %v3750
  %v5220 = vunpack.c.l.b16 %v3751
  %v5221 = vunpack.c.h.b16 %v3751
  %v5222 = vunpack.c.l.b16 %v3752
  %v5223 = vunpack.c.h.b16 %v3752
  %v5224 = vunpack.c.l.b16 %v3753
  %v5225 = vunpack.c.h.b16 %v3753
  %v5226 = vunpack.c.l.b16 %v3754
  %v5227 = vunpack.c.h.b16 %v3754
  %v5228 = vunpack.c.l.b16 %v3755
  %v5229 = vunpack.c.h.b16 %v3755
  %v5230 = vunpack.c.l.b16 %v3756
  %v5231 = vunpack.c.h.b16 %v3756
  %v5232 = vunpack.c.l.b16 %v3757
  %v5233 = vunpack.c.h.b16 %v3757
  %v5234 = vunpack.c.l.b16 %v3758
  %v5235 = vunpack.c.h.b16 %v3758
  %v5236 = vunpack.c.l.b16 %v3759
  %v5237 = vunpack.c.h.b16 %v3759
  %v5238 = vunpack.c.l.b16 %v3760
  %v5239 = vunpack.c.h.b16 %v3760
  %v5240 = vunpack.c.l.b16 %v3761
  %v5241 = vunpack.c.h.b16 %v3761
  %v5242 = vunpack.c.l.b16 %v3762
  %v5243 = vunpack.c.h.b16 %v3762
  %v5244 = vunpack.c.l.b16 %v3763
  %v5245 = vunpack.c.h.b16 %v3763
  %v5246 = vunpack.c.l.b16 %v3764
  %v5247 = vunpack.c.h.b16 %v3764
  %v5248 = vunpack.c.l.b16 %v3765
  %v5249 = vunpack.c.h.b16 %v3765
  %v5250 = vunpack.c.l.b16 %v3766
  %v5251 = vunpack.c.h.b16 %v3766
  %v5252 = vunpack.c.l.b16 %v3767
  %v5253 = vunpack.c.h.b16 %v3767
  %v5254 = vunpack.c.l.b16 %v3768
  %v5255 = vunpack.c.h.b16 %v3768
  %v5256 = vunpack.c.l.b16 %v3769
  %v5257 = vunpack.c.h.b16 %v3769
  %v5258 = vunpack.c.l.b16 %v3770
  %v5259 = vunpack.c.h.b16 %v3770
  %v5260 = vunpack.c.l.b16 %v3771
  %v5261 = vunpack.c.h.b16 %v3771
  %v5262 = vunpack.c.l.b16 %v3772
  %v5263 = vunpack.c.h.b16 %v3772
  %v5264 = vunpack.c.l.b16 %v3773
  %v5265 = vunpack.c.h.b16 %v3773
  %v5266 = vunpack.c.l.b16 %v3774
  %v5267 = vunpack.c.h.b16 %v3774
  %v5268 = vunpack.c.l.b16 %v3775
  %v5269 = vunpack.c.h.b16 %v3775
  %v5270 = vunpack.c.l.b16 %v3776
  %v5271 = vunpack.c.h.b16 %v3776
  %v5272 = vunpack.c.l.b16 %v3777
  %v5273 = vunpack.c.h.b16 %v3777
  %v5274 = vunpack.c.l.b16 %v3778
  %v5275 = vunpack.c.h.b16 %v3778
  %v5276 = vunpack.c.l.b16 %v3779
  %v5277 = vunpack.c.h.b16 %v3779
  %v5278 = vunpack.c.l.b16 %v3780
  %v5279 = vunpack.c.h.b16 %v3780
  %v5280 = vunpack.c.l.b16 %v3781
  %v5281 = vunpack.c.h.b16 %v3781
  %v5282 = vpack.c.b16 %v5030, %v5026
  %v5283 = vpack.c.b16 %v5031, %v5027
  %v5284 = vpack.c.b16 %v5032, %v5028
  %v5285 = vpack.c.b16 %v5033, %v5029
  %v5286 = vpack.c.b16 %v5038, %v5034
  %v5287 = vpack.c.b16 %v5039, %v5035
  %v5288 = vpack.c.b16 %v5040, %v5036
  %v5289 = vpack.c.b16 %v5041, %v5037
  %v5290 = vpack.c.b16 %v5046, %v5042
  %v5291 = vpack.c.b16 %v5047, %v5043
  %v5292 = vpack.c.b16 %v5048, %v5044
  %v5293 = vpack.c.b16 %v5049, %v5045
  %v5294 = vpack.c.b16 %v5054, %v5050
  %v5295 = vpack.c.b16 %v5055, %v5051
  %v5296 = vpack.c.b16 %v5056, %v5052
  %v5297 = vpack.c.b16 %v5057, %v5053
  %v5298 = vpack.c.b16 %v5062, %v5058
  %v5299 = vpack.c.b16 %v5063, %v5059
  %v5300 = vpack.c.b16 %v5064, %v5060
  %v5301 = vpack.c.b16 %v5065, %v5061
  %v5302 = vpack.c.b16 %v5070, %v5066
  %v5303 = vpack.c.b16 %v5071, %v5067
  %v5304 = vpack.c.b16 %v5072, %v5068
  %v5305 = vpack.c.b16 %v5073, %v5069
  %v5306 = vpack.c.b16 %v5078, %v5074
  %v5307 = vpack.c.b16 %v5079, %v5075
  %v5308 = vpack.c.b16 %v5080, %v5076
  %v5309 = vpack.c.b16 %v5081, %v5077
  %v5310 = vpack.c.b16 %v5086, %v5082
  %v5311 = vpack.c.b16 %v5087, %v5083
  %v5312 = vpack.c.b16 %v5088, %v5084
  %v5313 = vpack.c.b16 %v5089, %v5085
  %v5314 = vpack.c.b16 %v5094, %v5090
  %v5315 = vpack.c.b16 %v5095, %v5091
  %v5316 = vpack.c.b16 %v5096, %v5092
  %v5317 = vpack.c.b16 %v5097, %v5093
  %v5318 = vpack.c.b16 %v5102, %v5098
  %v5319 = vpack.c.b16 %v5103, %v5099
  %v5320 = vpack.c.b16 %v5104, %v5100
  %v5321 = vpack.c.b16 %v5105, %v5101
  %v5322 = vpack.c.b16 %v5110, %v5106
  %v5323 = vpack.c.b16 %v5111, %v5107
  %v5324 = vpack.c.b16 %v5112, %v5108
  %v5325 = vpack.c.b16 %v5113, %v5109
  %v5326 = vpack.c.b16 %v5118, %v5114
  %v5327 = vpack.c.b16 %v5119, %v5115
  %v5328 = vpack.c.b16 %v5120, %v5116
  %v5329 = vpack.c.b16 %v5121, %v5117
  %v5330 = vpack.c.b16 %v5126, %v5122
  %v5331 = vpack.c.b16 %v5127, %v5123
  %v5332 = vpack.c.b16 %v5128, %v5124
  %v5333 = vpack.c.b16 %v5129, %v5125
  %v5334 = vpack.c.b16 %v5134, %v5130
  %v5335 = vpack.c.b16 %v5135, %v5131
  %v5336 = vpack.c.b16 %v5136, %v5132
  %v5337 = vpack.c.b16 %v5137, %v5133
  %v5338 = vpack.c.b16 %v5142, %v5138
  %v5339 = vpack.c.b16 %v5143, %v5139
  %v5340 = vpack.c.b16 %v5144, %v5140
  %v5341 = vpack.c.b16 %v5145, %v5141
  %v5342 = vpack.c.b16 %v5150, %v5146
  %v5343 = vpack.c.b16 %v5151, %v5147
  %v5344 = vpack.c.b16 %v5152, %v5148
  %v5345 = vpack.c.b16 %v5153, %v5149
  %v5346 = vpack.c.b16 %v5158, %v5154
  %v5347 = vpack.c.b16 %v5159, %v5155
  %v5348 = vpack.c.b16 %v5160, %v5156
  %v5349 = vpack.c.b16 %v5161, %v5157
  %v5350 = vpack.c.b16 %v5166, %v5162
  %v5351 = vpack.c.b16 %v5167, %v5163
  %v5352 = vpack.c.b16 %v5168, %v5164
  %v5353 = vpack.c.b16 %v5169, %v5165
  %v5354 = vpack.c.b16 %v5174, %v5170
  %v5355 = vpack.c.b16 %v5175, %v5171
  %v5356 = vpack.c.b16 %v5176, %v5172
  %v5357 = vpack.c.b16 %v5177, %v5173
  %v5358 = vpack.c.b16 %v5182, %v5178
  %v5359 = vpack.c.b16 %v5183, %v5179
  %v5360 = vpack.c.b16 %v5184, %v5180
  %v5361 = vpack.c.b16 %v5185, %v5181
  %v5362 = vpack.c.b16 %v5190, %v5186
  %v5363 = vpack.c.b16 %v5191, %v5187
  %v5364 = vpack.c.b16 %v5192, %v5188
  %v5365 = vpack.c.b16 %v5193, %v5189
  %v5366 = vpack.c.b16 %v5198, %v5194
  %v5367 = vpack.c.b16 %v5199, %v5195
  %v5368 = vpack.c.b16 %v5200, %v5196
  %v5369 = vpack.c.b16 %v5201, %v5197
  %v5370 = vpack.c.b16 %v5206, %v5202
  %v5371 = vpack.c.b16 %v5207, %v5203
  %v5372 = vpack.c.b16 %v5208, %v5204
  %v5373 = vpack.c.b16 %v5209, %v5205
  %v5374 = vpack.c.b16 %v5214, %v5210
  %v5375 = vpack.c.b16 %v5215, %v5211
  %v5376 = vpack.c.b16 %v5216, %v5212
  %v5377 = vpack.c.b16 %v5217, %v5213
  %v5378 = vpack.c.b16 %v5222, %v5218
  %v5379 = vpack.c.b16 %v5223, %v5219
  %v5380 = vpack.c.b16 %v5224, %v5220
  %v5381 = vpack.c.b16 %v5225, %v5221
  %v5382 = vpack.c.b16 %v5230, %v5226
  %v5383 = vpack.c.b16 %v5231, %v5227
  %v5384 = vpack.c.b16 %v5232, %v5228
  %v5385 = vpack.c.b16 %v5233, %v5229
  %v5386 = vpack.c.b16 %v5238, %v5234
  %v5387 = vpack.c.b16 %v5239, %v5235
  %v5388 = vpack.c.b16 %v5240, %v5236
  %v5389 = vpack.c.b16 %v5241, %v5237
  %v5390 = vpack.c.b16 %v5246, %v5242
  %v5391 = vpack.c.b16 %v5247, %v5243
  %v5392 = vpack.c.b16 %v5248, %v5244
  %v5393 = vpack.c.b16 %v5249, %v5245
  %v5394 = vpack.c.b16 %v5254, %v5250
  %v5395 = vpack.c.b16 %v5255, %v5251
  %v5396 = vpack.c.b16 %v5256, %v5252
  %v5397 = vpack.c.b16 %v5257, %v5253
  %v5398 = vpack.c.b16 %v5262, %v5258
  %v5399 = vpack.c.b16 %v5263, %v5259
  %v5400 = vpack.c.b16 %v5264, %v5260
  %v5401 = vpack.c.b16 %v5265, %v5261
  %v5402 = vpack.c.b16 %v5270, %v5266
  %v5403 = vpack.c.b16 %v5271, %v5267
  %v5404 = vpack.c.b16 %v5272, %v5268
  %v5405 = vpack.c.b16 %v5273, %v5269
  %v5406 = vpack.c.b16 %v5278, %v5274
  %v5407 = vpack.c.b16 %v5279, %v5275
  %v5408 = vpack.c.b16 %v5280, %v5276
  %v5409 = vpack.c.b16 %v5281, %v5277
  %5538 = vmatprep.subr.bf16.mxu0 %v5283
  %5539 = vmatpush1.bf16.msra.mxu0 %v5282
  %5540 = vmatprep.subr.bf16.mxu0 %v5287
  %5541 = vmatpush1.bf16.msra.mxu0 %v5286
  %5542 = vmatprep.subr.bf16.mxu0 %v5291
  %5543 = vmatpush1.bf16.msra.mxu0 %v5290
  %5544 = vmatprep.subr.bf16.mxu0 %v5295
  %5545 = vmatpush1.bf16.msra.mxu0 %v5294
  %5546 = vmatprep.subr.bf16.mxu0 %v5299
  %5547 = vmatpush1.bf16.msra.mxu0 %v5298
  %5548 = vmatprep.subr.bf16.mxu0 %v5303
  %5549 = vmatpush1.bf16.msra.mxu0 %v5302
  %5550 = vmatprep.subr.bf16.mxu0 %v5307
  %5551 = vmatpush1.bf16.msra.mxu0 %v5306
  %5552 = vmatprep.subr.bf16.mxu0 %v5311
  %5553 = vmatpush1.bf16.msra.mxu0 %v5310
  %5554 = vmatprep.subr.bf16.mxu0 %v5315
  %5555 = vmatpush1.bf16.msra.mxu0 %v5314
  %5556 = vmatprep.subr.bf16.mxu0 %v5319
  %5557 = vmatpush1.bf16.msra.mxu0 %v5318
  %5558 = vmatprep.subr.bf16.mxu0 %v5323
  %5559 = vmatpush1.bf16.msra.mxu0 %v5322
  %5560 = vmatprep.subr.bf16.mxu0 %v5327
  %5561 = vmatpush1.bf16.msra.mxu0 %v5326
  %5562 = vmatprep.subr.bf16.mxu0 %v5331
  %5563 = vmatpush1.bf16.msra.mxu0 %v5330
  %5564 = vmatprep.subr.bf16.mxu0 %v5335
  %5565 = vmatpush1.bf16.msra.mxu0 %v5334
  %5566 = vmatprep.subr.bf16.mxu0 %v5339
  %5567 = vmatpush1.bf16.msra.mxu0 %v5338
  %5568 = vmatprep.subr.bf16.mxu0 %v5343
  %5569 = vmatpush1.bf16.msra.mxu0 %v5342
  %5570 = vmatprep.mubr.bf16.mxu0 %v3647
  %5571 = vmatmul.mubr.bf16.gmra.mrb[0].mxu0 %v3646
  %v5572 = vpop.f32.mrb[0].mxu0
  %v5573 = vadd.f32 %v4774, %v5572
  %v5574 = vpop.f32.mrb[0].mxu0
  %v5575 = vadd.f32 %v4776, %v5574
  %v5576 = vpop.f32.mrb[0].mxu0
  %v5577 = vadd.f32 %v4778, %v5576
  %v5578 = vpop.f32.mrb[0].mxu0
  %v5579 = vadd.f32 %v4780, %v5578
  %5580 = vmatprep.mubr.bf16.mxu0 %v3651
  %5581 = vmatmul.mubr.bf16.gmra.mrb[0].mxu0 %v3650
  %v5582 = vpop.f32.mrb[0].mxu0
  %v5583 = vadd.f32 %v4784, %v5582
  %v5584 = vpop.f32.mrb[0].mxu0
  %v5585 = vadd.f32 %v4786, %v5584
  %v5586 = vpop.f32.mrb[0].mxu0
  %v5587 = vadd.f32 %v4788, %v5586
  %v5588 = vpop.f32.mrb[0].mxu0
  %v5589 = vadd.f32 %v4790, %v5588
  %5590 = vdwg.mxu0
  %5591 = vmatprep.subr.bf16.mxu0 %v5347
  %5592 = vmatpush1.bf16.msra.mxu0 %v5346
  %5593 = vmatprep.subr.bf16.mxu0 %v5351
  %5594 = vmatpush1.bf16.msra.mxu0 %v5350
  %5595 = vmatprep.subr.bf16.mxu0 %v5355
  %5596 = vmatpush1.bf16.msra.mxu0 %v5354
  %5597 = vmatprep.subr.bf16.mxu0 %v5359
  %5598 = vmatpush1.bf16.msra.mxu0 %v5358
  %5599 = vmatprep.subr.bf16.mxu0 %v5363
  %5600 = vmatpush1.bf16.msra.mxu0 %v5362
  %5601 = vmatprep.subr.bf16.mxu0 %v5367
  %5602 = vmatpush1.bf16.msra.mxu0 %v5366
  %5603 = vmatprep.subr.bf16.mxu0 %v5371
  %5604 = vmatpush1.bf16.msra.mxu0 %v5370
  %5605 = vmatprep.subr.bf16.mxu0 %v5375
  %5606 = vmatpush1.bf16.msra.mxu0 %v5374
  %5607 = vmatprep.subr.bf16.mxu0 %v5379
  %5608 = vmatpush1.bf16.msra.mxu0 %v5378
  %5609 = vmatprep.subr.bf16.mxu0 %v5383
  %5610 = vmatpush1.bf16.msra.mxu0 %v5382
  %5611 = vmatprep.subr.bf16.mxu0 %v5387
  %5612 = vmatpush1.bf16.msra.mxu0 %v5386
  %5613 = vmatprep.subr.bf16.mxu0 %v5391
  %5614 = vmatpush1.bf16.msra.mxu0 %v5390
  %5615 = vmatprep.subr.bf16.mxu0 %v5395
  %5616 = vmatpush1.bf16.msra.mxu0 %v5394
  %5617 = vmatprep.subr.bf16.mxu0 %v5399
  %5618 = vmatpush1.bf16.msra.mxu0 %v5398
  %5619 = vmatprep.subr.bf16.mxu0 %v5403
  %5620 = vmatpush1.bf16.msra.mxu0 %v5402
  %5621 = vmatprep.subr.bf16.mxu0 %v5407
  %5622 = vmatpush1.bf16.msra.mxu0 %v5406
  %5623 = vmatprep.mubr.bf16.mxu0 %v3649
  %5624 = vmatmul.mubr.bf16.gmra.mrb[0].mxu0 %v3648
  %v5625 = vpop.f32.mrb[0].mxu0
  %v5626 = vadd.f32 %v5573, %v5625
  %v5627 = vpop.f32.mrb[0].mxu0
  %v5628 = vadd.f32 %v5575, %v5627
  %v5629 = vpop.f32.mrb[0].mxu0
  %v5630 = vadd.f32 %v5577, %v5629
  %v5631 = vpop.f32.mrb[0].mxu0
  %v5632 = vadd.f32 %v5579, %v5631
  %5633 = vmatprep.mubr.bf16.mxu0 %v3653
  %5634 = vmatmul.mubr.bf16.gmra.mrb[0].mxu0 %v3652
  %v5635 = vpop.f32.mrb[0].mxu0
  %v5636 = vadd.f32 %v5583, %v5635
  %v5637 = vpop.f32.mrb[0].mxu0
  %v5638 = vadd.f32 %v5585, %v5637
  %v5639 = vpop.f32.mrb[0].mxu0
  %v5640 = vadd.f32 %v5587, %v5639
  %v5641 = vpop.f32.mrb[0].mxu0
  %v5642 = vadd.f32 %v5589, %v5641
  %5643 = vdwg.mxu0
  %5644 = vmatprep.subr.bf16.mxu0 %v5285
  %5645 = vmatpush1.bf16.msra.mxu0 %v5284
  %5646 = vmatprep.subr.bf16.mxu0 %v5289
  %5647 = vmatpush1.bf16.msra.mxu0 %v5288
  %5648 = vmatprep.subr.bf16.mxu0 %v5293
  %5649 = vmatpush1.bf16.msra.mxu0 %v5292
  %5650 = vmatprep.subr.bf16.mxu0 %v5297
  %5651 = vmatpush1.bf16.msra.mxu0 %v5296
  %5652 = vmatprep.subr.bf16.mxu0 %v5301
  %5653 = vmatpush1.bf16.msra.mxu0 %v5300
  %5654 = vmatprep.subr.bf16.mxu0 %v5305
  %5655 = vmatpush1.bf16.msra.mxu0 %v5304
  %5656 = vmatprep.subr.bf16.mxu0 %v5309
  %5657 = vmatpush1.bf16.msra.mxu0 %v5308
  %5658 = vmatprep.subr.bf16.mxu0 %v5313
  %5659 = vmatpush1.bf16.msra.mxu0 %v5312
  %5660 = vmatprep.subr.bf16.mxu0 %v5317
  %5661 = vmatpush1.bf16.msra.mxu0 %v5316
  %5662 = vmatprep.subr.bf16.mxu0 %v5321
  %5663 = vmatpush1.bf16.msra.mxu0 %v5320
  %5664 = vmatprep.subr.bf16.mxu0 %v5325
  %5665 = vmatpush1.bf16.msra.mxu0 %v5324
  %5666 = vmatprep.subr.bf16.mxu0 %v5329
  %5667 = vmatpush1.bf16.msra.mxu0 %v5328
  %5668 = vmatprep.subr.bf16.mxu0 %v5333
  %5669 = vmatpush1.bf16.msra.mxu0 %v5332
  %5670 = vmatprep.subr.bf16.mxu0 %v5337
  %5671 = vmatpush1.bf16.msra.mxu0 %v5336
  %5672 = vmatprep.subr.bf16.mxu0 %v5341
  %5673 = vmatpush1.bf16.msra.mxu0 %v5340
  %5674 = vmatprep.subr.bf16.mxu0 %v5345
  %5675 = vmatpush1.bf16.msra.mxu0 %v5344
  %5676 = vmatprep.mubr.bf16.mxu0 %v3647
  %5677 = vmatmul.mubr.bf16.gmra.mrb[0].mxu0 %v3646
  %v5678 = vpop.f32.mrb[0].mxu0
  %v5679 = vadd.f32 %v4880, %v5678
  %v5680 = vpop.f32.mrb[0].mxu0
  %v5681 = vadd.f32 %v4882, %v5680
  %v5682 = vpop.f32.mrb[0].mxu0
  %v5683 = vadd.f32 %v4884, %v5682
  %v5684 = vpop.f32.mrb[0].mxu0
  %v5685 = vadd.f32 %v4886, %v5684
  %5686 = vmatprep.mubr.bf16.mxu0 %v3651
  %5687 = vmatmul.mubr.bf16.gmra.mrb[0].mxu0 %v3650
  %v5688 = vpop.f32.mrb[0].mxu0
  %v5689 = vadd.f32 %v4890, %v5688
  %v5690 = vpop.f32.mrb[0].mxu0
  %v5691 = vadd.f32 %v4892, %v5690
  %v5692 = vpop.f32.mrb[0].mxu0
  %v5693 = vadd.f32 %v4894, %v5692
  %v5694 = vpop.f32.mrb[0].mxu0
  %v5695 = vadd.f32 %v4896, %v5694
  %5696 = vdwg.mxu0
  %5697 = vmatprep.subr.bf16.mxu0 %v5349
  %5698 = vmatpush1.bf16.msra.mxu0 %v5348
  %5699 = vmatprep.subr.bf16.mxu0 %v5353
  %5700 = vmatpush1.bf16.msra.mxu0 %v5352
  %5701 = vmatprep.subr.bf16.mxu0 %v5357
  %5702 = vmatpush1.bf16.msra.mxu0 %v5356
  %5703 = vmatprep.subr.bf16.mxu0 %v5361
  %5704 = vmatpush1.bf16.msra.mxu0 %v5360
  %5705 = vmatprep.subr.bf16.mxu0 %v5365
  %5706 = vmatpush1.bf16.msra.mxu0 %v5364
  %5707 = vmatprep.subr.bf16.mxu0 %v5369
  %5708 = vmatpush1.bf16.msra.mxu0 %v5368
  %5709 = vmatprep.subr.bf16.mxu0 %v5373
  %5710 = vmatpush1.bf16.msra.mxu0 %v5372
  %5711 = vmatprep.subr.bf16.mxu0 %v5377
  %5712 = vmatpush1.bf16.msra.mxu0 %v5376
  %5713 = vmatprep.subr.bf16.mxu0 %v5381
  %5714 = vmatpush1.bf16.msra.mxu0 %v5380
  %5715 = vmatprep.subr.bf16.mxu0 %v5385
  %5716 = vmatpush1.bf16.msra.mxu0 %v5384
  %5717 = vmatprep.subr.bf16.mxu0 %v5389
  %5718 = vmatpush1.bf16.msra.mxu0 %v5388
  %5719 = vmatprep.subr.bf16.mxu0 %v5393
  %5720 = vmatpush1.bf16.msra.mxu0 %v5392
  %5721 = vmatprep.subr.bf16.mxu0 %v5397
  %5722 = vmatpush1.bf16.msra.mxu0 %v5396
  %5723 = vmatprep.subr.bf16.mxu0 %v5401
  %5724 = vmatpush1.bf16.msra.mxu0 %v5400
  %5725 = vmatprep.subr.bf16.mxu0 %v5405
  %5726 = vmatpush1.bf16.msra.mxu0 %v5404
  %5727 = vmatprep.subr.bf16.mxu0 %v5409
  %5728 = vmatpush1.bf16.msra.mxu0 %v5408
  %5729 = vmatprep.mubr.bf16.mxu0 %v3649
  %5730 = vmatmul.mubr.bf16.gmra.mrb[0].mxu0 %v3648
  %v5731 = vpop.f32.mrb[0].mxu0
  %v5732 = vadd.f32 %v5679, %v5731
  %v5733 = vpop.f32.mrb[0].mxu0
  %v5734 = vadd.f32 %v5681, %v5733
  %v5735 = vpop.f32.mrb[0].mxu0
  %v5736 = vadd.f32 %v5683, %v5735
  %v5737 = vpop.f32.mrb[0].mxu0
  %v5738 = vadd.f32 %v5685, %v5737
  %5739 = vmatprep.mubr.bf16.mxu0 %v3653
  %5740 = vmatmul.mubr.bf16.gmra.mrb[0].mxu0 %v3652
  %v5741 = vpop.f32.mrb[0].mxu0
  %v5742 = vadd.f32 %v5689, %v5741
  %v5743 = vpop.f32.mrb[0].mxu0
  %v5744 = vadd.f32 %v5691, %v5743
  %v5745 = vpop.f32.mrb[0].mxu0
  %v5746 = vadd.f32 %v5693, %v5745
  %v5747 = vpop.f32.mrb[0].mxu0
  %v5748 = vadd.f32 %v5695, %v5747
  %5749 = vdwg.mxu0
  %s5750 = scalar_lea.vmem %s4, 32
  %v5751 = vld [vmem:[%s5750] sm:$0xf]
  %v5752 = vld [vmem:[%s5750 + $0x4] sm:$0xf]
  %v5753 = vld [vmem:[%s5750 + $0x8] sm:$0xf]
  %v5754 = vld [vmem:[%s5750 + $0xc] sm:$0xf]
  %v5759 = vunpack.c.l.b16 %v5751
  %v5760 = vunpack.c.l.b16 %v5752
  %v5761 = vunpack.c.l.b16 %v5753
  %v5762 = vunpack.c.l.b16 %v5754
  %v5763 = vpack.c.b16 %v5760, %v5759
  %v5764 = vpack.c.b16 %v5762, %v5761
  %v5766 = vsel %vm3533, %v5763, 0
  %v5769 = vsel %vm3533, %v5764, 0
  %5771 = vmatprep.subr.bf16.mxu0 %v3504
  %5772 = vmatpush1.bf16.msra.mxu0 %v3503
  %5773 = vmatprep.subr.bf16.mxu0 %v3508
  %5774 = vmatpush1.bf16.msra.mxu0 %v3507
  %5775 = vmatprep.subr.bf16.mxu0 %v3512
  %5776 = vmatpush1.bf16.msra.mxu0 %v3511
  %5777 = vmatprep.subr.bf16.mxu0 %v3516
  %5778 = vmatpush1.bf16.msra.mxu0 %v3515
  %5779 = vmatprep.subr.bf16.mxu0 0
  %5780 = vmatpush1.bf16.msra.mxu0 0
  %5781 = vmatprep.subr.bf16.mxu0 0
  %5782 = vmatpush1.bf16.msra.mxu0 0
  %5783 = vmatprep.subr.bf16.mxu0 0
  %5784 = vmatpush1.bf16.msra.mxu0 0
  %5785 = vmatprep.subr.bf16.mxu0 0
  %5786 = vmatpush1.bf16.msra.mxu0 0
  %5787 = vmatprep.subr.bf16.mxu0 0
  %5788 = vmatpush1.bf16.msra.mxu0 0
  %5789 = vmatprep.subr.bf16.mxu0 0
  %5790 = vmatpush1.bf16.msra.mxu0 0
  %5791 = vmatprep.subr.bf16.mxu0 0
  %5792 = vmatpush1.bf16.msra.mxu0 0
  %5793 = vmatprep.subr.bf16.mxu0 0
  %5794 = vmatpush1.bf16.msra.mxu0 0
  %5795 = vmatprep.subr.bf16.mxu0 0
  %5796 = vmatpush1.bf16.msra.mxu0 0
  %5797 = vmatprep.subr.bf16.mxu0 0
  %5798 = vmatpush1.bf16.msra.mxu0 0
  %5799 = vmatprep.subr.bf16.mxu0 0
  %5800 = vmatpush1.bf16.msra.mxu0 0
  %5801 = vmatprep.subr.bf16.mxu0 0
  %5802 = vmatpush1.bf16.msra.mxu0 0
  %5803 = vmatprep.mubr.bf16.mxu0 0
  %5804 = vmatmul.mubr.bf16.gmra.mrb[0].mxu0 %v5766
  %v5805 = vpop.f32.mrb[0].mxu0
  %v5806 = vadd.f32 0.0, %v5805
  %v5807 = vpop.f32.mrb[0].mxu0
  %v5808 = vadd.f32 0.0, %v5807
  %v5809 = vpop.f32.mrb[0].mxu0
  %v5810 = vadd.f32 0.0, %v5809
  %v5811 = vpop.f32.mrb[0].mxu0
  %v5812 = vadd.f32 0.0, %v5811
  %5813 = vmatprep.mubr.bf16.mxu0 0
  %5814 = vmatmul.mubr.bf16.gmra.mrb[0].mxu0 %v5769
  %v5815 = vpop.f32.mrb[0].mxu0
  %v5816 = vadd.f32 0.0, %v5815
  %v5817 = vpop.f32.mrb[0].mxu0
  %v5818 = vadd.f32 0.0, %v5817
  %v5819 = vpop.f32.mrb[0].mxu0
  %v5820 = vadd.f32 0.0, %v5819
  %v5821 = vpop.f32.mrb[0].mxu0
  %v5822 = vadd.f32 0.0, %v5821
  %5823 = vdwg.mxu0
  %5824 = vmatprep.subr.bf16.mxu0 %v3506
  %5825 = vmatpush1.bf16.msra.mxu0 %v3505
  %5826 = vmatprep.subr.bf16.mxu0 %v3510
  %5827 = vmatpush1.bf16.msra.mxu0 %v3509
  %5828 = vmatprep.subr.bf16.mxu0 %v3514
  %5829 = vmatpush1.bf16.msra.mxu0 %v3513
  %5830 = vmatprep.subr.bf16.mxu0 %v3518
  %5831 = vmatpush1.bf16.msra.mxu0 %v3517
  %5832 = vmatprep.subr.bf16.mxu0 0
  %5833 = vmatpush1.bf16.msra.mxu0 0
  %5834 = vmatprep.subr.bf16.mxu0 0
  %5835 = vmatpush1.bf16.msra.mxu0 0
  %5836 = vmatprep.subr.bf16.mxu0 0
  %5837 = vmatpush1.bf16.msra.mxu0 0
  %5838 = vmatprep.subr.bf16.mxu0 0
  %5839 = vmatpush1.bf16.msra.mxu0 0
  %5840 = vmatprep.subr.bf16.mxu0 0
  %5841 = vmatpush1.bf16.msra.mxu0 0
  %5842 = vmatprep.subr.bf16.mxu0 0
  %5843 = vmatpush1.bf16.msra.mxu0 0
  %5844 = vmatprep.subr.bf16.mxu0 0
  %5845 = vmatpush1.bf16.msra.mxu0 0
  %5846 = vmatprep.subr.bf16.mxu0 0
  %5847 = vmatpush1.bf16.msra.mxu0 0
  %5848 = vmatprep.subr.bf16.mxu0 0
  %5849 = vmatpush1.bf16.msra.mxu0 0
  %5850 = vmatprep.subr.bf16.mxu0 0
  %5851 = vmatpush1.bf16.msra.mxu0 0
  %5852 = vmatprep.subr.bf16.mxu0 0
  %5853 = vmatpush1.bf16.msra.mxu0 0
  %5854 = vmatprep.subr.bf16.mxu0 0
  %5855 = vmatpush1.bf16.msra.mxu0 0
  %5856 = vmatprep.mubr.bf16.mxu0 0
  %5857 = vmatmul.mubr.bf16.gmra.mrb[0].mxu0 %v5766
  %v5858 = vpop.f32.mrb[0].mxu0
  %v5859 = vadd.f32 0.0, %v5858
  %v5860 = vpop.f32.mrb[0].mxu0
  %v5861 = vadd.f32 0.0, %v5860
  %v5862 = vpop.f32.mrb[0].mxu0
  %v5863 = vadd.f32 0.0, %v5862
  %v5864 = vpop.f32.mrb[0].mxu0
  %v5865 = vadd.f32 0.0, %v5864
  %5866 = vmatprep.mubr.bf16.mxu0 0
  %5867 = vmatmul.mubr.bf16.gmra.mrb[0].mxu0 %v5769
  %v5868 = vpop.f32.mrb[0].mxu0
  %v5869 = vadd.f32 0.0, %v5868
  %v5870 = vpop.f32.mrb[0].mxu0
  %v5871 = vadd.f32 0.0, %v5870
  %v5872 = vpop.f32.mrb[0].mxu0
  %v5873 = vadd.f32 0.0, %v5872
  %v5874 = vpop.f32.mrb[0].mxu0
  %v5875 = vadd.f32 0.0, %v5874
  %5876 = vdwg.mxu0
  %v5877 = vpack.c.bf16 %v5810, %v5806
  %v5878 = vpack.c.bf16 %v5812, %v5808
  %v5879 = vpack.c.bf16 %v5863, %v5859
  %v5880 = vpack.c.bf16 %v5865, %v5861
  %v5881 = vpack.c.bf16 %v5820, %v5816
  %v5882 = vpack.c.bf16 %v5822, %v5818
  %v5883 = vpack.c.bf16 %v5873, %v5869
  %v5884 = vpack.c.bf16 %v5875, %v5871
  %s5885 = scalar_lea.vmem %s5, 2048
  %v5886 = vld [vmem:[%s5885] sm:$0xff]
  %v5887 = vld [vmem:[%s5885 + $0x8] sm:$0xff]
  %v5888 = vld [vmem:[%s5885 + $0x10] sm:$0xff]
  %v5889 = vld [vmem:[%s5885 + $0x18] sm:$0xff]
  %v5890 = vld [vmem:[%s5885 + $0x20] sm:$0xff]
  %v5891 = vld [vmem:[%s5885 + $0x28] sm:$0xff]
  %v5892 = vld [vmem:[%s5885 + $0x30] sm:$0xff]
  %v5893 = vld [vmem:[%s5885 + $0x38] sm:$0xff]
  %v5894 = vld [vmem:[%s5885 + $0x40] sm:$0xff]
  %v5895 = vld [vmem:[%s5885 + $0x48] sm:$0xff]
  %v5896 = vld [vmem:[%s5885 + $0x50] sm:$0xff]
  %v5897 = vld [vmem:[%s5885 + $0x58] sm:$0xff]
  %v5898 = vld [vmem:[%s5885 + $0x60] sm:$0xff]
  %v5899 = vld [vmem:[%s5885 + $0x68] sm:$0xff]
  %v5900 = vld [vmem:[%s5885 + $0x70] sm:$0xff]
  %v5901 = vld [vmem:[%s5885 + $0x78] sm:$0xff]
  %v5902 = vld [vmem:[%s5885 + $0x80] sm:$0xff]
  %v5903 = vld [vmem:[%s5885 + $0x88] sm:$0xff]
  %v5904 = vld [vmem:[%s5885 + $0x90] sm:$0xff]
  %v5905 = vld [vmem:[%s5885 + $0x98] sm:$0xff]
  %v5906 = vld [vmem:[%s5885 + $0xa0] sm:$0xff]
  %v5907 = vld [vmem:[%s5885 + $0xa8] sm:$0xff]
  %v5908 = vld [vmem:[%s5885 + $0xb0] sm:$0xff]
  %v5909 = vld [vmem:[%s5885 + $0xb8] sm:$0xff]
  %v5910 = vld [vmem:[%s5885 + $0xc0] sm:$0xff]
  %v5911 = vld [vmem:[%s5885 + $0xc8] sm:$0xff]
  %v5912 = vld [vmem:[%s5885 + $0xd0] sm:$0xff]
  %v5913 = vld [vmem:[%s5885 + $0xd8] sm:$0xff]
  %v5914 = vld [vmem:[%s5885 + $0xe0] sm:$0xff]
  %v5915 = vld [vmem:[%s5885 + $0xe8] sm:$0xff]
  %v5916 = vld [vmem:[%s5885 + $0xf0] sm:$0xff]
  %v5917 = vld [vmem:[%s5885 + $0xf8] sm:$0xff]
  %v5918 = vld [vmem:[%s5885 + $0x100] sm:$0xff]
  %v5919 = vld [vmem:[%s5885 + $0x108] sm:$0xff]
  %v5920 = vld [vmem:[%s5885 + $0x110] sm:$0xff]
  %v5921 = vld [vmem:[%s5885 + $0x118] sm:$0xff]
  %v5922 = vld [vmem:[%s5885 + $0x120] sm:$0xff]
  %v5923 = vld [vmem:[%s5885 + $0x128] sm:$0xff]
  %v5924 = vld [vmem:[%s5885 + $0x130] sm:$0xff]
  %v5925 = vld [vmem:[%s5885 + $0x138] sm:$0xff]
  %v5926 = vld [vmem:[%s5885 + $0x140] sm:$0xff]
  %v5927 = vld [vmem:[%s5885 + $0x148] sm:$0xff]
  %v5928 = vld [vmem:[%s5885 + $0x150] sm:$0xff]
  %v5929 = vld [vmem:[%s5885 + $0x158] sm:$0xff]
  %v5930 = vld [vmem:[%s5885 + $0x160] sm:$0xff]
  %v5931 = vld [vmem:[%s5885 + $0x168] sm:$0xff]
  %v5932 = vld [vmem:[%s5885 + $0x170] sm:$0xff]
  %v5933 = vld [vmem:[%s5885 + $0x178] sm:$0xff]
  %v5934 = vld [vmem:[%s5885 + $0x180] sm:$0xff]
  %v5935 = vld [vmem:[%s5885 + $0x188] sm:$0xff]
  %v5936 = vld [vmem:[%s5885 + $0x190] sm:$0xff]
  %v5937 = vld [vmem:[%s5885 + $0x198] sm:$0xff]
  %v5938 = vld [vmem:[%s5885 + $0x1a0] sm:$0xff]
  %v5939 = vld [vmem:[%s5885 + $0x1a8] sm:$0xff]
  %v5940 = vld [vmem:[%s5885 + $0x1b0] sm:$0xff]
  %v5941 = vld [vmem:[%s5885 + $0x1b8] sm:$0xff]
  %v5942 = vld [vmem:[%s5885 + $0x1c0] sm:$0xff]
  %v5943 = vld [vmem:[%s5885 + $0x1c8] sm:$0xff]
  %v5944 = vld [vmem:[%s5885 + $0x1d0] sm:$0xff]
  %v5945 = vld [vmem:[%s5885 + $0x1d8] sm:$0xff]
  %v5946 = vld [vmem:[%s5885 + $0x1e0] sm:$0xff]
  %v5947 = vld [vmem:[%s5885 + $0x1e8] sm:$0xff]
  %v5948 = vld [vmem:[%s5885 + $0x1f0] sm:$0xff]
  %v5949 = vld [vmem:[%s5885 + $0x1f8] sm:$0xff]
  %v5950 = vld [vmem:[%s5885 + $0x200] sm:$0xff]
  %v5951 = vld [vmem:[%s5885 + $0x208] sm:$0xff]
  %v5952 = vld [vmem:[%s5885 + $0x210] sm:$0xff]
  %v5953 = vld [vmem:[%s5885 + $0x218] sm:$0xff]
  %v5954 = vld [vmem:[%s5885 + $0x220] sm:$0xff]
  %v5955 = vld [vmem:[%s5885 + $0x228] sm:$0xff]
  %v5956 = vld [vmem:[%s5885 + $0x230] sm:$0xff]
  %v5957 = vld [vmem:[%s5885 + $0x238] sm:$0xff]
  %v5958 = vld [vmem:[%s5885 + $0x240] sm:$0xff]
  %v5959 = vld [vmem:[%s5885 + $0x248] sm:$0xff]
  %v5960 = vld [vmem:[%s5885 + $0x250] sm:$0xff]
  %v5961 = vld [vmem:[%s5885 + $0x258] sm:$0xff]
  %v5962 = vld [vmem:[%s5885 + $0x260] sm:$0xff]
  %v5963 = vld [vmem:[%s5885 + $0x268] sm:$0xff]
  %v5964 = vld [vmem:[%s5885 + $0x270] sm:$0xff]
  %v5965 = vld [vmem:[%s5885 + $0x278] sm:$0xff]
  %v5966 = vld [vmem:[%s5885 + $0x280] sm:$0xff]
  %v5967 = vld [vmem:[%s5885 + $0x288] sm:$0xff]
  %v5968 = vld [vmem:[%s5885 + $0x290] sm:$0xff]
  %v5969 = vld [vmem:[%s5885 + $0x298] sm:$0xff]
  %v5970 = vld [vmem:[%s5885 + $0x2a0] sm:$0xff]
  %v5971 = vld [vmem:[%s5885 + $0x2a8] sm:$0xff]
  %v5972 = vld [vmem:[%s5885 + $0x2b0] sm:$0xff]
  %v5973 = vld [vmem:[%s5885 + $0x2b8] sm:$0xff]
  %v5974 = vld [vmem:[%s5885 + $0x2c0] sm:$0xff]
  %v5975 = vld [vmem:[%s5885 + $0x2c8] sm:$0xff]
  %v5976 = vld [vmem:[%s5885 + $0x2d0] sm:$0xff]
  %v5977 = vld [vmem:[%s5885 + $0x2d8] sm:$0xff]
  %v5978 = vld [vmem:[%s5885 + $0x2e0] sm:$0xff]
  %v5979 = vld [vmem:[%s5885 + $0x2e8] sm:$0xff]
  %v5980 = vld [vmem:[%s5885 + $0x2f0] sm:$0xff]
  %v5981 = vld [vmem:[%s5885 + $0x2f8] sm:$0xff]
  %v5982 = vld [vmem:[%s5885 + $0x300] sm:$0xff]
  %v5983 = vld [vmem:[%s5885 + $0x308] sm:$0xff]
  %v5984 = vld [vmem:[%s5885 + $0x310] sm:$0xff]
  %v5985 = vld [vmem:[%s5885 + $0x318] sm:$0xff]
  %v5986 = vld [vmem:[%s5885 + $0x320] sm:$0xff]
  %v5987 = vld [vmem:[%s5885 + $0x328] sm:$0xff]
  %v5988 = vld [vmem:[%s5885 + $0x330] sm:$0xff]
  %v5989 = vld [vmem:[%s5885 + $0x338] sm:$0xff]
  %v5990 = vld [vmem:[%s5885 + $0x340] sm:$0xff]
  %v5991 = vld [vmem:[%s5885 + $0x348] sm:$0xff]
  %v5992 = vld [vmem:[%s5885 + $0x350] sm:$0xff]
  %v5993 = vld [vmem:[%s5885 + $0x358] sm:$0xff]
  %v5994 = vld [vmem:[%s5885 + $0x360] sm:$0xff]
  %v5995 = vld [vmem:[%s5885 + $0x368] sm:$0xff]
  %v5996 = vld [vmem:[%s5885 + $0x370] sm:$0xff]
  %v5997 = vld [vmem:[%s5885 + $0x378] sm:$0xff]
  %v5998 = vld [vmem:[%s5885 + $0x380] sm:$0xff]
  %v5999 = vld [vmem:[%s5885 + $0x388] sm:$0xff]
  %v6000 = vld [vmem:[%s5885 + $0x390] sm:$0xff]
  %v6001 = vld [vmem:[%s5885 + $0x398] sm:$0xff]
  %v6002 = vld [vmem:[%s5885 + $0x3a0] sm:$0xff]
  %v6003 = vld [vmem:[%s5885 + $0x3a8] sm:$0xff]
  %v6004 = vld [vmem:[%s5885 + $0x3b0] sm:$0xff]
  %v6005 = vld [vmem:[%s5885 + $0x3b8] sm:$0xff]
  %v6006 = vld [vmem:[%s5885 + $0x3c0] sm:$0xff]
  %v6007 = vld [vmem:[%s5885 + $0x3c8] sm:$0xff]
  %v6008 = vld [vmem:[%s5885 + $0x3d0] sm:$0xff]
  %v6009 = vld [vmem:[%s5885 + $0x3d8] sm:$0xff]
  %v6010 = vld [vmem:[%s5885 + $0x3e0] sm:$0xff]
  %v6011 = vld [vmem:[%s5885 + $0x3e8] sm:$0xff]
  %v6012 = vld [vmem:[%s5885 + $0x3f0] sm:$0xff]
  %v6013 = vld [vmem:[%s5885 + $0x3f8] sm:$0xff]
  %v6142 = vunpack.c.l.b16 %v5886
  %v6143 = vunpack.c.h.b16 %v5886
  %v6144 = vunpack.c.l.b16 %v5887
  %v6145 = vunpack.c.h.b16 %v5887
  %v6146 = vunpack.c.l.b16 %v5888
  %v6147 = vunpack.c.h.b16 %v5888
  %v6148 = vunpack.c.l.b16 %v5889
  %v6149 = vunpack.c.h.b16 %v5889
  %v6150 = vunpack.c.l.b16 %v5890
  %v6151 = vunpack.c.h.b16 %v5890
  %v6152 = vunpack.c.l.b16 %v5891
  %v6153 = vunpack.c.h.b16 %v5891
  %v6154 = vunpack.c.l.b16 %v5892
  %v6155 = vunpack.c.h.b16 %v5892
  %v6156 = vunpack.c.l.b16 %v5893
  %v6157 = vunpack.c.h.b16 %v5893
  %v6158 = vunpack.c.l.b16 %v5894
  %v6159 = vunpack.c.h.b16 %v5894
  %v6160 = vunpack.c.l.b16 %v5895
  %v6161 = vunpack.c.h.b16 %v5895
  %v6162 = vunpack.c.l.b16 %v5896
  %v6163 = vunpack.c.h.b16 %v5896
  %v6164 = vunpack.c.l.b16 %v5897
  %v6165 = vunpack.c.h.b16 %v5897
  %v6166 = vunpack.c.l.b16 %v5898
  %v6167 = vunpack.c.h.b16 %v5898
  %v6168 = vunpack.c.l.b16 %v5899
  %v6169 = vunpack.c.h.b16 %v5899
  %v6170 = vunpack.c.l.b16 %v5900
  %v6171 = vunpack.c.h.b16 %v5900
  %v6172 = vunpack.c.l.b16 %v5901
  %v6173 = vunpack.c.h.b16 %v5901
  %v6174 = vunpack.c.l.b16 %v5902
  %v6175 = vunpack.c.h.b16 %v5902
  %v6176 = vunpack.c.l.b16 %v5903
  %v6177 = vunpack.c.h.b16 %v5903
  %v6178 = vunpack.c.l.b16 %v5904
  %v6179 = vunpack.c.h.b16 %v5904
  %v6180 = vunpack.c.l.b16 %v5905
  %v6181 = vunpack.c.h.b16 %v5905
  %v6182 = vunpack.c.l.b16 %v5906
  %v6183 = vunpack.c.h.b16 %v5906
  %v6184 = vunpack.c.l.b16 %v5907
  %v6185 = vunpack.c.h.b16 %v5907
  %v6186 = vunpack.c.l.b16 %v5908
  %v6187 = vunpack.c.h.b16 %v5908
  %v6188 = vunpack.c.l.b16 %v5909
  %v6189 = vunpack.c.h.b16 %v5909
  %v6190 = vunpack.c.l.b16 %v5910
  %v6191 = vunpack.c.h.b16 %v5910
  %v6192 = vunpack.c.l.b16 %v5911
  %v6193 = vunpack.c.h.b16 %v5911
  %v6194 = vunpack.c.l.b16 %v5912
  %v6195 = vunpack.c.h.b16 %v5912
  %v6196 = vunpack.c.l.b16 %v5913
  %v6197 = vunpack.c.h.b16 %v5913
  %v6198 = vunpack.c.l.b16 %v5914
  %v6199 = vunpack.c.h.b16 %v5914
  %v6200 = vunpack.c.l.b16 %v5915
  %v6201 = vunpack.c.h.b16 %v5915
  %v6202 = vunpack.c.l.b16 %v5916
  %v6203 = vunpack.c.h.b16 %v5916
  %v6204 = vunpack.c.l.b16 %v5917
  %v6205 = vunpack.c.h.b16 %v5917
  %v6206 = vunpack.c.l.b16 %v5918
  %v6207 = vunpack.c.h.b16 %v5918
  %v6208 = vunpack.c.l.b16 %v5919
  %v6209 = vunpack.c.h.b16 %v5919
  %v6210 = vunpack.c.l.b16 %v5920
  %v6211 = vunpack.c.h.b16 %v5920
  %v6212 = vunpack.c.l.b16 %v5921
  %v6213 = vunpack.c.h.b16 %v5921
  %v6214 = vunpack.c.l.b16 %v5922
  %v6215 = vunpack.c.h.b16 %v5922
  %v6216 = vunpack.c.l.b16 %v5923
  %v6217 = vunpack.c.h.b16 %v5923
  %v6218 = vunpack.c.l.b16 %v5924
  %v6219 = vunpack.c.h.b16 %v5924
  %v6220 = vunpack.c.l.b16 %v5925
  %v6221 = vunpack.c.h.b16 %v5925
  %v6222 = vunpack.c.l.b16 %v5926
  %v6223 = vunpack.c.h.b16 %v5926
  %v6224 = vunpack.c.l.b16 %v5927
  %v6225 = vunpack.c.h.b16 %v5927
  %v6226 = vunpack.c.l.b16 %v5928
  %v6227 = vunpack.c.h.b16 %v5928
  %v6228 = vunpack.c.l.b16 %v5929
  %v6229 = vunpack.c.h.b16 %v5929
  %v6230 = vunpack.c.l.b16 %v5930
  %v6231 = vunpack.c.h.b16 %v5930
  %v6232 = vunpack.c.l.b16 %v5931
  %v6233 = vunpack.c.h.b16 %v5931
  %v6234 = vunpack.c.l.b16 %v5932
  %v6235 = vunpack.c.h.b16 %v5932
  %v6236 = vunpack.c.l.b16 %v5933
  %v6237 = vunpack.c.h.b16 %v5933
  %v6238 = vunpack.c.l.b16 %v5934
  %v6239 = vunpack.c.h.b16 %v5934
  %v6240 = vunpack.c.l.b16 %v5935
  %v6241 = vunpack.c.h.b16 %v5935
  %v6242 = vunpack.c.l.b16 %v5936
  %v6243 = vunpack.c.h.b16 %v5936
  %v6244 = vunpack.c.l.b16 %v5937
  %v6245 = vunpack.c.h.b16 %v5937
  %v6246 = vunpack.c.l.b16 %v5938
  %v6247 = vunpack.c.h.b16 %v5938
  %v6248 = vunpack.c.l.b16 %v5939
  %v6249 = vunpack.c.h.b16 %v5939
  %v6250 = vunpack.c.l.b16 %v5940
  %v6251 = vunpack.c.h.b16 %v5940
  %v6252 = vunpack.c.l.b16 %v5941
  %v6253 = vunpack.c.h.b16 %v5941
  %v6254 = vunpack.c.l.b16 %v5942
  %v6255 = vunpack.c.h.b16 %v5942
  %v6256 = vunpack.c.l.b16 %v5943
  %v6257 = vunpack.c.h.b16 %v5943
  %v6258 = vunpack.c.l.b16 %v5944
  %v6259 = vunpack.c.h.b16 %v5944
  %v6260 = vunpack.c.l.b16 %v5945
  %v6261 = vunpack.c.h.b16 %v5945
  %v6262 = vunpack.c.l.b16 %v5946
  %v6263 = vunpack.c.h.b16 %v5946
  %v6264 = vunpack.c.l.b16 %v5947
  %v6265 = vunpack.c.h.b16 %v5947
  %v6266 = vunpack.c.l.b16 %v5948
  %v6267 = vunpack.c.h.b16 %v5948
  %v6268 = vunpack.c.l.b16 %v5949
  %v6269 = vunpack.c.h.b16 %v5949
  %v6270 = vunpack.c.l.b16 %v5950
  %v6271 = vunpack.c.h.b16 %v5950
  %v6272 = vunpack.c.l.b16 %v5951
  %v6273 = vunpack.c.h.b16 %v5951
  %v6274 = vunpack.c.l.b16 %v5952
  %v6275 = vunpack.c.h.b16 %v5952
  %v6276 = vunpack.c.l.b16 %v5953
  %v6277 = vunpack.c.h.b16 %v5953
  %v6278 = vunpack.c.l.b16 %v5954
  %v6279 = vunpack.c.h.b16 %v5954
  %v6280 = vunpack.c.l.b16 %v5955
  %v6281 = vunpack.c.h.b16 %v5955
  %v6282 = vunpack.c.l.b16 %v5956
  %v6283 = vunpack.c.h.b16 %v5956
  %v6284 = vunpack.c.l.b16 %v5957
  %v6285 = vunpack.c.h.b16 %v5957
  %v6286 = vunpack.c.l.b16 %v5958
  %v6287 = vunpack.c.h.b16 %v5958
  %v6288 = vunpack.c.l.b16 %v5959
  %v6289 = vunpack.c.h.b16 %v5959
  %v6290 = vunpack.c.l.b16 %v5960
  %v6291 = vunpack.c.h.b16 %v5960
  %v6292 = vunpack.c.l.b16 %v5961
  %v6293 = vunpack.c.h.b16 %v5961
  %v6294 = vunpack.c.l.b16 %v5962
  %v6295 = vunpack.c.h.b16 %v5962
  %v6296 = vunpack.c.l.b16 %v5963
  %v6297 = vunpack.c.h.b16 %v5963
  %v6298 = vunpack.c.l.b16 %v5964
  %v6299 = vunpack.c.h.b16 %v5964
  %v6300 = vunpack.c.l.b16 %v5965
  %v6301 = vunpack.c.h.b16 %v5965
  %v6302 = vunpack.c.l.b16 %v5966
  %v6303 = vunpack.c.h.b16 %v5966
  %v6304 = vunpack.c.l.b16 %v5967
  %v6305 = vunpack.c.h.b16 %v5967
  %v6306 = vunpack.c.l.b16 %v5968
  %v6307 = vunpack.c.h.b16 %v5968
  %v6308 = vunpack.c.l.b16 %v5969
  %v6309 = vunpack.c.h.b16 %v5969
  %v6310 = vunpack.c.l.b16 %v5970
  %v6311 = vunpack.c.h.b16 %v5970
  %v6312 = vunpack.c.l.b16 %v5971
  %v6313 = vunpack.c.h.b16 %v5971
  %v6314 = vunpack.c.l.b16 %v5972
  %v6315 = vunpack.c.h.b16 %v5972
  %v6316 = vunpack.c.l.b16 %v5973
  %v6317 = vunpack.c.h.b16 %v5973
  %v6318 = vunpack.c.l.b16 %v5974
  %v6319 = vunpack.c.h.b16 %v5974
  %v6320 = vunpack.c.l.b16 %v5975
  %v6321 = vunpack.c.h.b16 %v5975
  %v6322 = vunpack.c.l.b16 %v5976
  %v6323 = vunpack.c.h.b16 %v5976
  %v6324 = vunpack.c.l.b16 %v5977
  %v6325 = vunpack.c.h.b16 %v5977
  %v6326 = vunpack.c.l.b16 %v5978
  %v6327 = vunpack.c.h.b16 %v5978
  %v6328 = vunpack.c.l.b16 %v5979
  %v6329 = vunpack.c.h.b16 %v5979
  %v6330 = vunpack.c.l.b16 %v5980
  %v6331 = vunpack.c.h.b16 %v5980
  %v6332 = vunpack.c.l.b16 %v5981
  %v6333 = vunpack.c.h.b16 %v5981
  %v6334 = vunpack.c.l.b16 %v5982
  %v6335 = vunpack.c.h.b16 %v5982
  %v6336 = vunpack.c.l.b16 %v5983
  %v6337 = vunpack.c.h.b16 %v5983
  %v6338 = vunpack.c.l.b16 %v5984
  %v6339 = vunpack.c.h.b16 %v5984
  %v6340 = vunpack.c.l.b16 %v5985
  %v6341 = vunpack.c.h.b16 %v5985
  %v6342 = vunpack.c.l.b16 %v5986
  %v6343 = vunpack.c.h.b16 %v5986
  %v6344 = vunpack.c.l.b16 %v5987
  %v6345 = vunpack.c.h.b16 %v5987
  %v6346 = vunpack.c.l.b16 %v5988
  %v6347 = vunpack.c.h.b16 %v5988
  %v6348 = vunpack.c.l.b16 %v5989
  %v6349 = vunpack.c.h.b16 %v5989
  %v6350 = vunpack.c.l.b16 %v5990
  %v6351 = vunpack.c.h.b16 %v5990
  %v6352 = vunpack.c.l.b16 %v5991
  %v6353 = vunpack.c.h.b16 %v5991
  %v6354 = vunpack.c.l.b16 %v5992
  %v6355 = vunpack.c.h.b16 %v5992
  %v6356 = vunpack.c.l.b16 %v5993
  %v6357 = vunpack.c.h.b16 %v5993
  %v6358 = vunpack.c.l.b16 %v5994
  %v6359 = vunpack.c.h.b16 %v5994
  %v6360 = vunpack.c.l.b16 %v5995
  %v6361 = vunpack.c.h.b16 %v5995
  %v6362 = vunpack.c.l.b16 %v5996
  %v6363 = vunpack.c.h.b16 %v5996
  %v6364 = vunpack.c.l.b16 %v5997
  %v6365 = vunpack.c.h.b16 %v5997
  %v6366 = vunpack.c.l.b16 %v5998
  %v6367 = vunpack.c.h.b16 %v5998
  %v6368 = vunpack.c.l.b16 %v5999
  %v6369 = vunpack.c.h.b16 %v5999
  %v6370 = vunpack.c.l.b16 %v6000
  %v6371 = vunpack.c.h.b16 %v6000
  %v6372 = vunpack.c.l.b16 %v6001
  %v6373 = vunpack.c.h.b16 %v6001
  %v6374 = vunpack.c.l.b16 %v6002
  %v6375 = vunpack.c.h.b16 %v6002
  %v6376 = vunpack.c.l.b16 %v6003
  %v6377 = vunpack.c.h.b16 %v6003
  %v6378 = vunpack.c.l.b16 %v6004
  %v6379 = vunpack.c.h.b16 %v6004
  %v6380 = vunpack.c.l.b16 %v6005
  %v6381 = vunpack.c.h.b16 %v6005
  %v6382 = vunpack.c.l.b16 %v6006
  %v6383 = vunpack.c.h.b16 %v6006
  %v6384 = vunpack.c.l.b16 %v6007
  %v6385 = vunpack.c.h.b16 %v6007
  %v6386 = vunpack.c.l.b16 %v6008
  %v6387 = vunpack.c.h.b16 %v6008
  %v6388 = vunpack.c.l.b16 %v6009
  %v6389 = vunpack.c.h.b16 %v6009
  %v6390 = vunpack.c.l.b16 %v6010
  %v6391 = vunpack.c.h.b16 %v6010
  %v6392 = vunpack.c.l.b16 %v6011
  %v6393 = vunpack.c.h.b16 %v6011
  %v6394 = vunpack.c.l.b16 %v6012
  %v6395 = vunpack.c.h.b16 %v6012
  %v6396 = vunpack.c.l.b16 %v6013
  %v6397 = vunpack.c.h.b16 %v6013
  %v6398 = vpack.c.b16 %v6146, %v6142
  %v6399 = vpack.c.b16 %v6147, %v6143
  %v6400 = vpack.c.b16 %v6148, %v6144
  %v6401 = vpack.c.b16 %v6149, %v6145
  %v6402 = vpack.c.b16 %v6154, %v6150
  %v6403 = vpack.c.b16 %v6155, %v6151
  %v6404 = vpack.c.b16 %v6156, %v6152
  %v6405 = vpack.c.b16 %v6157, %v6153
  %v6406 = vpack.c.b16 %v6162, %v6158
  %v6407 = vpack.c.b16 %v6163, %v6159
  %v6408 = vpack.c.b16 %v6164, %v6160
  %v6409 = vpack.c.b16 %v6165, %v6161
  %v6410 = vpack.c.b16 %v6170, %v6166
  %v6411 = vpack.c.b16 %v6171, %v6167
  %v6412 = vpack.c.b16 %v6172, %v6168
  %v6413 = vpack.c.b16 %v6173, %v6169
  %v6414 = vpack.c.b16 %v6178, %v6174
  %v6415 = vpack.c.b16 %v6179, %v6175
  %v6416 = vpack.c.b16 %v6180, %v6176
  %v6417 = vpack.c.b16 %v6181, %v6177
  %v6418 = vpack.c.b16 %v6186, %v6182
  %v6419 = vpack.c.b16 %v6187, %v6183
  %v6420 = vpack.c.b16 %v6188, %v6184
  %v6421 = vpack.c.b16 %v6189, %v6185
  %v6422 = vpack.c.b16 %v6194, %v6190
  %v6423 = vpack.c.b16 %v6195, %v6191
  %v6424 = vpack.c.b16 %v6196, %v6192
  %v6425 = vpack.c.b16 %v6197, %v6193
  %v6426 = vpack.c.b16 %v6202, %v6198
  %v6427 = vpack.c.b16 %v6203, %v6199
  %v6428 = vpack.c.b16 %v6204, %v6200
  %v6429 = vpack.c.b16 %v6205, %v6201
  %v6430 = vpack.c.b16 %v6210, %v6206
  %v6431 = vpack.c.b16 %v6211, %v6207
  %v6432 = vpack.c.b16 %v6212, %v6208
  %v6433 = vpack.c.b16 %v6213, %v6209
  %v6434 = vpack.c.b16 %v6218, %v6214
  %v6435 = vpack.c.b16 %v6219, %v6215
  %v6436 = vpack.c.b16 %v6220, %v6216
  %v6437 = vpack.c.b16 %v6221, %v6217
  %v6438 = vpack.c.b16 %v6226, %v6222
  %v6439 = vpack.c.b16 %v6227, %v6223
  %v6440 = vpack.c.b16 %v6228, %v6224
  %v6441 = vpack.c.b16 %v6229, %v6225
  %v6442 = vpack.c.b16 %v6234, %v6230
  %v6443 = vpack.c.b16 %v6235, %v6231
  %v6444 = vpack.c.b16 %v6236, %v6232
  %v6445 = vpack.c.b16 %v6237, %v6233
  %v6446 = vpack.c.b16 %v6242, %v6238
  %v6447 = vpack.c.b16 %v6243, %v6239
  %v6448 = vpack.c.b16 %v6244, %v6240
  %v6449 = vpack.c.b16 %v6245, %v6241
  %v6450 = vpack.c.b16 %v6250, %v6246
  %v6451 = vpack.c.b16 %v6251, %v6247
  %v6452 = vpack.c.b16 %v6252, %v6248
  %v6453 = vpack.c.b16 %v6253, %v6249
  %v6454 = vpack.c.b16 %v6258, %v6254
  %v6455 = vpack.c.b16 %v6259, %v6255
  %v6456 = vpack.c.b16 %v6260, %v6256
  %v6457 = vpack.c.b16 %v6261, %v6257
  %v6458 = vpack.c.b16 %v6266, %v6262
  %v6459 = vpack.c.b16 %v6267, %v6263
  %v6460 = vpack.c.b16 %v6268, %v6264
  %v6461 = vpack.c.b16 %v6269, %v6265
  %v6462 = vpack.c.b16 %v6274, %v6270
  %v6463 = vpack.c.b16 %v6275, %v6271
  %v6464 = vpack.c.b16 %v6276, %v6272
  %v6465 = vpack.c.b16 %v6277, %v6273
  %v6466 = vpack.c.b16 %v6282, %v6278
  %v6467 = vpack.c.b16 %v6283, %v6279
  %v6468 = vpack.c.b16 %v6284, %v6280
  %v6469 = vpack.c.b16 %v6285, %v6281
  %v6470 = vpack.c.b16 %v6290, %v6286
  %v6471 = vpack.c.b16 %v6291, %v6287
  %v6472 = vpack.c.b16 %v6292, %v6288
  %v6473 = vpack.c.b16 %v6293, %v6289
  %v6474 = vpack.c.b16 %v6298, %v6294
  %v6475 = vpack.c.b16 %v6299, %v6295
  %v6476 = vpack.c.b16 %v6300, %v6296
  %v6477 = vpack.c.b16 %v6301, %v6297
  %v6478 = vpack.c.b16 %v6306, %v6302
  %v6479 = vpack.c.b16 %v6307, %v6303
  %v6480 = vpack.c.b16 %v6308, %v6304
  %v6481 = vpack.c.b16 %v6309, %v6305
  %v6482 = vpack.c.b16 %v6314, %v6310
  %v6483 = vpack.c.b16 %v6315, %v6311
  %v6484 = vpack.c.b16 %v6316, %v6312
  %v6485 = vpack.c.b16 %v6317, %v6313
  %v6486 = vpack.c.b16 %v6322, %v6318
  %v6487 = vpack.c.b16 %v6323, %v6319
  %v6488 = vpack.c.b16 %v6324, %v6320
  %v6489 = vpack.c.b16 %v6325, %v6321
  %v6490 = vpack.c.b16 %v6330, %v6326
  %v6491 = vpack.c.b16 %v6331, %v6327
  %v6492 = vpack.c.b16 %v6332, %v6328
  %v6493 = vpack.c.b16 %v6333, %v6329
  %v6494 = vpack.c.b16 %v6338, %v6334
  %v6495 = vpack.c.b16 %v6339, %v6335
  %v6496 = vpack.c.b16 %v6340, %v6336
  %v6497 = vpack.c.b16 %v6341, %v6337
  %v6498 = vpack.c.b16 %v6346, %v6342
  %v6499 = vpack.c.b16 %v6347, %v6343
  %v6500 = vpack.c.b16 %v6348, %v6344
  %v6501 = vpack.c.b16 %v6349, %v6345
  %v6502 = vpack.c.b16 %v6354, %v6350
  %v6503 = vpack.c.b16 %v6355, %v6351
  %v6504 = vpack.c.b16 %v6356, %v6352
  %v6505 = vpack.c.b16 %v6357, %v6353
  %v6506 = vpack.c.b16 %v6362, %v6358
  %v6507 = vpack.c.b16 %v6363, %v6359
  %v6508 = vpack.c.b16 %v6364, %v6360
  %v6509 = vpack.c.b16 %v6365, %v6361
  %v6510 = vpack.c.b16 %v6370, %v6366
  %v6511 = vpack.c.b16 %v6371, %v6367
  %v6512 = vpack.c.b16 %v6372, %v6368
  %v6513 = vpack.c.b16 %v6373, %v6369
  %v6514 = vpack.c.b16 %v6378, %v6374
  %v6515 = vpack.c.b16 %v6379, %v6375
  %v6516 = vpack.c.b16 %v6380, %v6376
  %v6517 = vpack.c.b16 %v6381, %v6377
  %v6518 = vpack.c.b16 %v6386, %v6382
  %v6519 = vpack.c.b16 %v6387, %v6383
  %v6520 = vpack.c.b16 %v6388, %v6384
  %v6521 = vpack.c.b16 %v6389, %v6385
  %v6522 = vpack.c.b16 %v6394, %v6390
  %v6523 = vpack.c.b16 %v6395, %v6391
  %v6524 = vpack.c.b16 %v6396, %v6392
  %v6525 = vpack.c.b16 %v6397, %v6393
  %6654 = vmatprep.subr.bf16.mxu0 %v6399
  %6655 = vmatpush1.bf16.msra.mxu0 %v6398
  %6656 = vmatprep.subr.bf16.mxu0 %v6403
  %6657 = vmatpush1.bf16.msra.mxu0 %v6402
  %6658 = vmatprep.subr.bf16.mxu0 %v6407
  %6659 = vmatpush1.bf16.msra.mxu0 %v6406
  %6660 = vmatprep.subr.bf16.mxu0 %v6411
  %6661 = vmatpush1.bf16.msra.mxu0 %v6410
  %6662 = vmatprep.subr.bf16.mxu0 %v6415
  %6663 = vmatpush1.bf16.msra.mxu0 %v6414
  %6664 = vmatprep.subr.bf16.mxu0 %v6419
  %6665 = vmatpush1.bf16.msra.mxu0 %v6418
  %6666 = vmatprep.subr.bf16.mxu0 %v6423
  %6667 = vmatpush1.bf16.msra.mxu0 %v6422
  %6668 = vmatprep.subr.bf16.mxu0 %v6427
  %6669 = vmatpush1.bf16.msra.mxu0 %v6426
  %6670 = vmatprep.subr.bf16.mxu0 %v6431
  %6671 = vmatpush1.bf16.msra.mxu0 %v6430
  %6672 = vmatprep.subr.bf16.mxu0 %v6435
  %6673 = vmatpush1.bf16.msra.mxu0 %v6434
  %6674 = vmatprep.subr.bf16.mxu0 %v6439
  %6675 = vmatpush1.bf16.msra.mxu0 %v6438
  %6676 = vmatprep.subr.bf16.mxu0 %v6443
  %6677 = vmatpush1.bf16.msra.mxu0 %v6442
  %6678 = vmatprep.subr.bf16.mxu0 %v6447
  %6679 = vmatpush1.bf16.msra.mxu0 %v6446
  %6680 = vmatprep.subr.bf16.mxu0 %v6451
  %6681 = vmatpush1.bf16.msra.mxu0 %v6450
  %6682 = vmatprep.subr.bf16.mxu0 %v6455
  %6683 = vmatpush1.bf16.msra.mxu0 %v6454
  %6684 = vmatprep.subr.bf16.mxu0 %v6459
  %6685 = vmatpush1.bf16.msra.mxu0 %v6458
  %6686 = vmatprep.mubr.bf16.mxu0 %v5878
  %6687 = vmatmul.mubr.bf16.gmra.mrb[0].mxu0 %v5877
  %v6688 = vpop.f32.mrb[0].mxu0
  %v6689 = vadd.f32 0.0, %v6688
  %v6690 = vpop.f32.mrb[0].mxu0
  %v6691 = vadd.f32 0.0, %v6690
  %v6692 = vpop.f32.mrb[0].mxu0
  %v6693 = vadd.f32 0.0, %v6692
  %v6694 = vpop.f32.mrb[0].mxu0
  %v6695 = vadd.f32 0.0, %v6694
  %6696 = vmatprep.mubr.bf16.mxu0 %v5882
  %6697 = vmatmul.mubr.bf16.gmra.mrb[0].mxu0 %v5881
  %v6698 = vpop.f32.mrb[0].mxu0
  %v6699 = vadd.f32 0.0, %v6698
  %v6700 = vpop.f32.mrb[0].mxu0
  %v6701 = vadd.f32 0.0, %v6700
  %v6702 = vpop.f32.mrb[0].mxu0
  %v6703 = vadd.f32 0.0, %v6702
  %v6704 = vpop.f32.mrb[0].mxu0
  %v6705 = vadd.f32 0.0, %v6704
  %6706 = vdwg.mxu0
  %6707 = vmatprep.subr.bf16.mxu0 %v6463
  %6708 = vmatpush1.bf16.msra.mxu0 %v6462
  %6709 = vmatprep.subr.bf16.mxu0 %v6467
  %6710 = vmatpush1.bf16.msra.mxu0 %v6466
  %6711 = vmatprep.subr.bf16.mxu0 %v6471
  %6712 = vmatpush1.bf16.msra.mxu0 %v6470
  %6713 = vmatprep.subr.bf16.mxu0 %v6475
  %6714 = vmatpush1.bf16.msra.mxu0 %v6474
  %6715 = vmatprep.subr.bf16.mxu0 %v6479
  %6716 = vmatpush1.bf16.msra.mxu0 %v6478
  %6717 = vmatprep.subr.bf16.mxu0 %v6483
  %6718 = vmatpush1.bf16.msra.mxu0 %v6482
  %6719 = vmatprep.subr.bf16.mxu0 %v6487
  %6720 = vmatpush1.bf16.msra.mxu0 %v6486
  %6721 = vmatprep.subr.bf16.mxu0 %v6491
  %6722 = vmatpush1.bf16.msra.mxu0 %v6490
  %6723 = vmatprep.subr.bf16.mxu0 %v6495
  %6724 = vmatpush1.bf16.msra.mxu0 %v6494
  %6725 = vmatprep.subr.bf16.mxu0 %v6499
  %6726 = vmatpush1.bf16.msra.mxu0 %v6498
  %6727 = vmatprep.subr.bf16.mxu0 %v6503
  %6728 = vmatpush1.bf16.msra.mxu0 %v6502
  %6729 = vmatprep.subr.bf16.mxu0 %v6507
  %6730 = vmatpush1.bf16.msra.mxu0 %v6506
  %6731 = vmatprep.subr.bf16.mxu0 %v6511
  %6732 = vmatpush1.bf16.msra.mxu0 %v6510
  %6733 = vmatprep.subr.bf16.mxu0 %v6515
  %6734 = vmatpush1.bf16.msra.mxu0 %v6514
  %6735 = vmatprep.subr.bf16.mxu0 %v6519
  %6736 = vmatpush1.bf16.msra.mxu0 %v6518
  %6737 = vmatprep.subr.bf16.mxu0 %v6523
  %6738 = vmatpush1.bf16.msra.mxu0 %v6522
  %6739 = vmatprep.mubr.bf16.mxu0 %v5880
  %6740 = vmatmul.mubr.bf16.gmra.mrb[0].mxu0 %v5879
  %v6741 = vpop.f32.mrb[0].mxu0
  %v6742 = vadd.f32 %v6689, %v6741
  %v6743 = vpop.f32.mrb[0].mxu0
  %v6744 = vadd.f32 %v6691, %v6743
  %v6745 = vpop.f32.mrb[0].mxu0
  %v6746 = vadd.f32 %v6693, %v6745
  %v6747 = vpop.f32.mrb[0].mxu0
  %v6748 = vadd.f32 %v6695, %v6747
  %6749 = vmatprep.mubr.bf16.mxu0 %v5884
  %6750 = vmatmul.mubr.bf16.gmra.mrb[0].mxu0 %v5883
  %v6751 = vpop.f32.mrb[0].mxu0
  %v6752 = vadd.f32 %v6699, %v6751
  %v6753 = vpop.f32.mrb[0].mxu0
  %v6754 = vadd.f32 %v6701, %v6753
  %v6755 = vpop.f32.mrb[0].mxu0
  %v6756 = vadd.f32 %v6703, %v6755
  %v6757 = vpop.f32.mrb[0].mxu0
  %v6758 = vadd.f32 %v6705, %v6757
  %6759 = vdwg.mxu0
  %6760 = vmatprep.subr.bf16.mxu0 %v6401
  %6761 = vmatpush1.bf16.msra.mxu0 %v6400
  %6762 = vmatprep.subr.bf16.mxu0 %v6405
  %6763 = vmatpush1.bf16.msra.mxu0 %v6404
  %6764 = vmatprep.subr.bf16.mxu0 %v6409
  %6765 = vmatpush1.bf16.msra.mxu0 %v6408
  %6766 = vmatprep.subr.bf16.mxu0 %v6413
  %6767 = vmatpush1.bf16.msra.mxu0 %v6412
  %6768 = vmatprep.subr.bf16.mxu0 %v6417
  %6769 = vmatpush1.bf16.msra.mxu0 %v6416
  %6770 = vmatprep.subr.bf16.mxu0 %v6421
  %6771 = vmatpush1.bf16.msra.mxu0 %v6420
  %6772 = vmatprep.subr.bf16.mxu0 %v6425
  %6773 = vmatpush1.bf16.msra.mxu0 %v6424
  %6774 = vmatprep.subr.bf16.mxu0 %v6429
  %6775 = vmatpush1.bf16.msra.mxu0 %v6428
  %6776 = vmatprep.subr.bf16.mxu0 %v6433
  %6777 = vmatpush1.bf16.msra.mxu0 %v6432
  %6778 = vmatprep.subr.bf16.mxu0 %v6437
  %6779 = vmatpush1.bf16.msra.mxu0 %v6436
  %6780 = vmatprep.subr.bf16.mxu0 %v6441
  %6781 = vmatpush1.bf16.msra.mxu0 %v6440
  %6782 = vmatprep.subr.bf16.mxu0 %v6445
  %6783 = vmatpush1.bf16.msra.mxu0 %v6444
  %6784 = vmatprep.subr.bf16.mxu0 %v6449
  %6785 = vmatpush1.bf16.msra.mxu0 %v6448
  %6786 = vmatprep.subr.bf16.mxu0 %v6453
  %6787 = vmatpush1.bf16.msra.mxu0 %v6452
  %6788 = vmatprep.subr.bf16.mxu0 %v6457
  %6789 = vmatpush1.bf16.msra.mxu0 %v6456
  %6790 = vmatprep.subr.bf16.mxu0 %v6461
  %6791 = vmatpush1.bf16.msra.mxu0 %v6460
  %6792 = vmatprep.mubr.bf16.mxu0 %v5878
  %6793 = vmatmul.mubr.bf16.gmra.mrb[0].mxu0 %v5877
  %v6794 = vpop.f32.mrb[0].mxu0
  %v6795 = vadd.f32 0.0, %v6794
  %v6796 = vpop.f32.mrb[0].mxu0
  %v6797 = vadd.f32 0.0, %v6796
  %v6798 = vpop.f32.mrb[0].mxu0
  %v6799 = vadd.f32 0.0, %v6798
  %v6800 = vpop.f32.mrb[0].mxu0
  %v6801 = vadd.f32 0.0, %v6800
  %6802 = vmatprep.mubr.bf16.mxu0 %v5882
  %6803 = vmatmul.mubr.bf16.gmra.mrb[0].mxu0 %v5881
  %v6804 = vpop.f32.mrb[0].mxu0
  %v6805 = vadd.f32 0.0, %v6804
  %v6806 = vpop.f32.mrb[0].mxu0
  %v6807 = vadd.f32 0.0, %v6806
  %v6808 = vpop.f32.mrb[0].mxu0
  %v6809 = vadd.f32 0.0, %v6808
  %v6810 = vpop.f32.mrb[0].mxu0
  %v6811 = vadd.f32 0.0, %v6810
  %6812 = vdwg.mxu0
  %6813 = vmatprep.subr.bf16.mxu0 %v6465
  %6814 = vmatpush1.bf16.msra.mxu0 %v6464
  %6815 = vmatprep.subr.bf16.mxu0 %v6469
  %6816 = vmatpush1.bf16.msra.mxu0 %v6468
  %6817 = vmatprep.subr.bf16.mxu0 %v6473
  %6818 = vmatpush1.bf16.msra.mxu0 %v6472
  %6819 = vmatprep.subr.bf16.mxu0 %v6477
  %6820 = vmatpush1.bf16.msra.mxu0 %v6476
  %6821 = vmatprep.subr.bf16.mxu0 %v6481
  %6822 = vmatpush1.bf16.msra.mxu0 %v6480
  %6823 = vmatprep.subr.bf16.mxu0 %v6485
  %6824 = vmatpush1.bf16.msra.mxu0 %v6484
  %6825 = vmatprep.subr.bf16.mxu0 %v6489
  %6826 = vmatpush1.bf16.msra.mxu0 %v6488
  %6827 = vmatprep.subr.bf16.mxu0 %v6493
  %6828 = vmatpush1.bf16.msra.mxu0 %v6492
  %6829 = vmatprep.subr.bf16.mxu0 %v6497
  %6830 = vmatpush1.bf16.msra.mxu0 %v6496
  %6831 = vmatprep.subr.bf16.mxu0 %v6501
  %6832 = vmatpush1.bf16.msra.mxu0 %v6500
  %6833 = vmatprep.subr.bf16.mxu0 %v6505
  %6834 = vmatpush1.bf16.msra.mxu0 %v6504
  %6835 = vmatprep.subr.bf16.mxu0 %v6509
  %6836 = vmatpush1.bf16.msra.mxu0 %v6508
  %6837 = vmatprep.subr.bf16.mxu0 %v6513
  %6838 = vmatpush1.bf16.msra.mxu0 %v6512
  %6839 = vmatprep.subr.bf16.mxu0 %v6517
  %6840 = vmatpush1.bf16.msra.mxu0 %v6516
  %6841 = vmatprep.subr.bf16.mxu0 %v6521
  %6842 = vmatpush1.bf16.msra.mxu0 %v6520
  %6843 = vmatprep.subr.bf16.mxu0 %v6525
  %6844 = vmatpush1.bf16.msra.mxu0 %v6524
  %6845 = vmatprep.mubr.bf16.mxu0 %v5880
  %6846 = vmatmul.mubr.bf16.gmra.mrb[0].mxu0 %v5879
  %v6847 = vpop.f32.mrb[0].mxu0
  %v6848 = vadd.f32 %v6795, %v6847
  %v6849 = vpop.f32.mrb[0].mxu0
  %v6850 = vadd.f32 %v6797, %v6849
  %v6851 = vpop.f32.mrb[0].mxu0
  %v6852 = vadd.f32 %v6799, %v6851
  %v6853 = vpop.f32.mrb[0].mxu0
  %v6854 = vadd.f32 %v6801, %v6853
  %6855 = vmatprep.mubr.bf16.mxu0 %v5884
  %6856 = vmatmul.mubr.bf16.gmra.mrb[0].mxu0 %v5883
  %v6857 = vpop.f32.mrb[0].mxu0
  %v6858 = vadd.f32 %v6805, %v6857
  %v6859 = vpop.f32.mrb[0].mxu0
  %v6860 = vadd.f32 %v6807, %v6859
  %v6861 = vpop.f32.mrb[0].mxu0
  %v6862 = vadd.f32 %v6809, %v6861
  %v6863 = vpop.f32.mrb[0].mxu0
  %v6864 = vadd.f32 %v6811, %v6863
  %6865 = vdwg.mxu0
  %v6866 = vadd.f32 %v5626, %v6742
  %v6867 = vadd.f32 %v5628, %v6744
  %v6868 = vadd.f32 %v5732, %v6848
  %v6869 = vadd.f32 %v5734, %v6850
  %v6870 = vadd.f32 %v5630, %v6746
  %v6871 = vadd.f32 %v5632, %v6748
  %v6872 = vadd.f32 %v5736, %v6852
  %v6873 = vadd.f32 %v5738, %v6854
  %v6874 = vadd.f32 %v5636, %v6752
  %v6875 = vadd.f32 %v5638, %v6754
  %v6876 = vadd.f32 %v5742, %v6858
  %v6877 = vadd.f32 %v5744, %v6860
  %v6878 = vadd.f32 %v5640, %v6756
  %v6879 = vadd.f32 %v5642, %v6758
  %v6880 = vadd.f32 %v5746, %v6862
  %v6881 = vadd.f32 %v5748, %v6864
  %v6882 = vld [vmem:[%s6] sm:$0xf]
  %v6884 = vlaneseq
  %v6885 = vshrl.u32 %v6884, 7
  %v6886 = vsub.s32 0, %v6885
  %v6887 = vrot.slane %v6882, %v6886
  %v6888 = vlaneseq
  %v6889 = vshrl.u32 %v6888, 7
  %v6890 = vsub.s32 1, %v6889
  %v6891 = vrot.slane %v6882, %v6890
  %v6892 = vlaneseq
  %v6893 = vshrl.u32 %v6892, 7
  %v6894 = vsub.s32 2, %v6893
  %v6895 = vrot.slane %v6882, %v6894
  %v6896 = vlaneseq
  %v6897 = vshrl.u32 %v6896, 7
  %v6898 = vsub.s32 3, %v6897
  %v6899 = vrot.slane %v6882, %v6898
  %v6904 = vadd.f32 %v6866, %v6887
  %v6905 = vadd.f32 %v6867, %v6891
  %v6906 = vadd.f32 %v6868, %v6895
  %v6907 = vadd.f32 %v6869, %v6899
  %v6908 = vadd.f32 %v6870, %v6887
  %v6909 = vadd.f32 %v6871, %v6891
  %v6910 = vadd.f32 %v6872, %v6895
  %v6911 = vadd.f32 %v6873, %v6899
  %v6912 = vadd.f32 %v6874, %v6887
  %v6913 = vadd.f32 %v6875, %v6891
  %v6914 = vadd.f32 %v6876, %v6895
  %v6915 = vadd.f32 %v6877, %v6899
  %v6916 = vadd.f32 %v6878, %v6887
  %v6917 = vadd.f32 %v6879, %v6891
  %v6918 = vadd.f32 %v6880, %v6895
  %v6919 = vadd.f32 %v6881, %v6899
  %v6920 = vmax.f32 %v6904, 0.0
  %v6921 = vmax.f32 %v6905, 0.0
  %v6922 = vmax.f32 %v6906, 0.0
  %v6923 = vmax.f32 %v6907, 0.0
  %v6924 = vmax.f32 %v6908, 0.0
  %v6925 = vmax.f32 %v6909, 0.0
  %v6926 = vmax.f32 %v6910, 0.0
  %v6927 = vmax.f32 %v6911, 0.0
  %v6928 = vmax.f32 %v6912, 0.0
  %v6929 = vmax.f32 %v6913, 0.0
  %v6930 = vmax.f32 %v6914, 0.0
  %v6931 = vmax.f32 %v6915, 0.0
  %v6932 = vmax.f32 %v6916, 0.0
  %v6933 = vmax.f32 %v6917, 0.0
  %v6934 = vmax.f32 %v6918, 0.0
  %v6935 = vmax.f32 %v6919, 0.0
  %6936 = vst [vmem:[%s11] sm:$0xff] %v6920
  %6937 = vst [vmem:[%s11 + $0x8] sm:$0xff] %v6921
  %6938 = vst [vmem:[%s11 + $0x10] sm:$0xff] %v6922
  %6939 = vst [vmem:[%s11 + $0x18] sm:$0xff] %v6923
  %6940 = vst [vmem:[%s11 + $0x20] sm:$0xff] %v6924
  %6941 = vst [vmem:[%s11 + $0x28] sm:$0xff] %v6925
  %6942 = vst [vmem:[%s11 + $0x30] sm:$0xff] %v6926
  %6943 = vst [vmem:[%s11 + $0x38] sm:$0xff] %v6927
  %6944 = vst [vmem:[%s11 + $0x40] sm:$0xff] %v6928
  %6945 = vst [vmem:[%s11 + $0x48] sm:$0xff] %v6929
  %6946 = vst [vmem:[%s11 + $0x50] sm:$0xff] %v6930
  %6947 = vst [vmem:[%s11 + $0x58] sm:$0xff] %v6931
  %6948 = vst [vmem:[%s11 + $0x60] sm:$0xff] %v6932
  %6949 = vst [vmem:[%s11 + $0x68] sm:$0xff] %v6933
  %6950 = vst [vmem:[%s11 + $0x70] sm:$0xff] %v6934
  %6951 = vst [vmem:[%s11 + $0x78] sm:$0xff] %v6935
  %v6952 = vpack.c.bf16 %v6924, %v6920
  %v6953 = vpack.c.bf16 %v6925, %v6921
  %v6954 = vpack.c.bf16 %v6926, %v6922
  %v6955 = vpack.c.bf16 %v6927, %v6923
  %v6956 = vpack.c.bf16 %v6932, %v6928
  %v6957 = vpack.c.bf16 %v6933, %v6929
  %v6958 = vpack.c.bf16 %v6934, %v6930
  %v6959 = vpack.c.bf16 %v6935, %v6931
  %v6960 = vld [vmem:[%s7] sm:$0xf]
  %v6961 = vld [vmem:[%s7 + $0x4] sm:$0xf]
  %v6964 = vunpack.c.l.b16 %v6960
  %v6965 = vunpack.c.l.b16 %v6961
  %v6966 = vpack.c.b16 %v6965, %v6964
  %vm6967 = vcmask 261120
  %v6969 = vsel %vm6967, %v6966, 0
  %6971 = vmatprep.subr.bf16.mxu0 %v6953
  %6972 = vmatpush1.bf16.msra.mxu0 %v6952
  %6973 = vmatprep.subr.bf16.mxu0 %v6957
  %6974 = vmatpush1.bf16.msra.mxu0 %v6956
  %6975 = vmatprep.subr.bf16.mxu0 0
  %6976 = vmatpush1.bf16.msra.mxu0 0
  %6977 = vmatprep.subr.bf16.mxu0 0
  %6978 = vmatpush1.bf16.msra.mxu0 0
  %6979 = vmatprep.subr.bf16.mxu0 0
  %6980 = vmatpush1.bf16.msra.mxu0 0
  %6981 = vmatprep.subr.bf16.mxu0 0
  %6982 = vmatpush1.bf16.msra.mxu0 0
  %6983 = vmatprep.subr.bf16.mxu0 0
  %6984 = vmatpush1.bf16.msra.mxu0 0
  %6985 = vmatprep.subr.bf16.mxu0 0
  %6986 = vmatpush1.bf16.msra.mxu0 0
  %6987 = vmatprep.subr.bf16.mxu0 0
  %6988 = vmatpush1.bf16.msra.mxu0 0
  %6989 = vmatprep.subr.bf16.mxu0 0
  %6990 = vmatpush1.bf16.msra.mxu0 0
  %6991 = vmatprep.subr.bf16.mxu0 0
  %6992 = vmatpush1.bf16.msra.mxu0 0
  %6993 = vmatprep.subr.bf16.mxu0 0
  %6994 = vmatpush1.bf16.msra.mxu0 0
  %6995 = vmatprep.subr.bf16.mxu0 0
  %6996 = vmatpush1.bf16.msra.mxu0 0
  %6997 = vmatprep.subr.bf16.mxu0 0
  %6998 = vmatpush1.bf16.msra.mxu0 0
  %6999 = vmatprep.subr.bf16.mxu0 0
  %7000 = vmatpush1.bf16.msra.mxu0 0
  %7001 = vmatprep.subr.bf16.mxu0 0
  %7002 = vmatpush1.bf16.msra.mxu0 0
  %7003 = vmatprep.mubr.bf16.mxu0 0
  %7004 = vmatmul.mubr.bf16.gmra.mrb[0].mxu0 %v6969
  %v7005 = vpop.f32.mrb[0].mxu0
  %v7006 = vadd.f32 0.0, %v7005
  %v7007 = vpop.f32.mrb[0].mxu0
  %v7008 = vadd.f32 0.0, %v7007
  %v7009 = vpop.f32.mrb[0].mxu0
  %v7010 = vadd.f32 0.0, %v7009
  %v7011 = vpop.f32.mrb[0].mxu0
  %v7012 = vadd.f32 0.0, %v7011
  %7013 = vdwg.mxu0
  %7014 = vmatprep.subr.bf16.mxu0 %v6955
  %7015 = vmatpush1.bf16.msra.mxu0 %v6954
  %7016 = vmatprep.subr.bf16.mxu0 %v6959
  %7017 = vmatpush1.bf16.msra.mxu0 %v6958
  %7018 = vmatprep.subr.bf16.mxu0 0
  %7019 = vmatpush1.bf16.msra.mxu0 0
  %7020 = vmatprep.subr.bf16.mxu0 0
  %7021 = vmatpush1.bf16.msra.mxu0 0
  %7022 = vmatprep.subr.bf16.mxu0 0
  %7023 = vmatpush1.bf16.msra.mxu0 0
  %7024 = vmatprep.subr.bf16.mxu0 0
  %7025 = vmatpush1.bf16.msra.mxu0 0
  %7026 = vmatprep.subr.bf16.mxu0 0
  %7027 = vmatpush1.bf16.msra.mxu0 0
  %7028 = vmatprep.subr.bf16.mxu0 0
  %7029 = vmatpush1.bf16.msra.mxu0 0
  %7030 = vmatprep.subr.bf16.mxu0 0
  %7031 = vmatpush1.bf16.msra.mxu0 0
  %7032 = vmatprep.subr.bf16.mxu0 0
  %7033 = vmatpush1.bf16.msra.mxu0 0
  %7034 = vmatprep.subr.bf16.mxu0 0
  %7035 = vmatpush1.bf16.msra.mxu0 0
  %7036 = vmatprep.subr.bf16.mxu0 0
  %7037 = vmatpush1.bf16.msra.mxu0 0
  %7038 = vmatprep.subr.bf16.mxu0 0
  %7039 = vmatpush1.bf16.msra.mxu0 0
  %7040 = vmatprep.subr.bf16.mxu0 0
  %7041 = vmatpush1.bf16.msra.mxu0 0
  %7042 = vmatprep.subr.bf16.mxu0 0
  %7043 = vmatpush1.bf16.msra.mxu0 0
  %7044 = vmatprep.subr.bf16.mxu0 0
  %7045 = vmatpush1.bf16.msra.mxu0 0
  %7046 = vmatprep.mubr.bf16.mxu0 0
  %7047 = vmatmul.mubr.bf16.gmra.mrb[0].mxu0 %v6969
  %v7048 = vpop.f32.mrb[0].mxu0
  %v7049 = vadd.f32 0.0, %v7048
  %v7050 = vpop.f32.mrb[0].mxu0
  %v7051 = vadd.f32 0.0, %v7050
  %v7052 = vpop.f32.mrb[0].mxu0
  %v7053 = vadd.f32 0.0, %v7052
  %v7054 = vpop.f32.mrb[0].mxu0
  %v7055 = vadd.f32 0.0, %v7054
  %7056 = vdwg.mxu0
  %v7057 = vpack.c.bf16 %v7010, %v7006
  %v7058 = vpack.c.bf16 %v7012, %v7008
  %v7059 = vpack.c.bf16 %v7053, %v7049
  %v7060 = vpack.c.bf16 %v7055, %v7051
  %v7061 = vld [vmem:[%s8] sm:$0xff]
  %v7062 = vld [vmem:[%s8 + $0x8] sm:$0xff]
  %v7063 = vld [vmem:[%s8 + $0x10] sm:$0xff]
  %v7064 = vld [vmem:[%s8 + $0x18] sm:$0xff]
  %v7065 = vld [vmem:[%s8 + $0x20] sm:$0xff]
  %v7066 = vld [vmem:[%s8 + $0x28] sm:$0xff]
  %v7067 = vld [vmem:[%s8 + $0x30] sm:$0xff]
  %v7068 = vld [vmem:[%s8 + $0x38] sm:$0xff]
  %v7069 = vld [vmem:[%s8 + $0x40] sm:$0xff]
  %v7070 = vld [vmem:[%s8 + $0x48] sm:$0xff]
  %v7071 = vld [vmem:[%s8 + $0x50] sm:$0xff]
  %v7072 = vld [vmem:[%s8 + $0x58] sm:$0xff]
  %v7073 = vld [vmem:[%s8 + $0x60] sm:$0xff]
  %v7074 = vld [vmem:[%s8 + $0x68] sm:$0xff]
  %v7075 = vld [vmem:[%s8 + $0x70] sm:$0xff]
  %v7076 = vld [vmem:[%s8 + $0x78] sm:$0xff]
  %v7077 = vld [vmem:[%s8 + $0x80] sm:$0xff]
  %v7078 = vld [vmem:[%s8 + $0x88] sm:$0xff]
  %v7079 = vld [vmem:[%s8 + $0x90] sm:$0xff]
  %v7080 = vld [vmem:[%s8 + $0x98] sm:$0xff]
  %v7081 = vld [vmem:[%s8 + $0xa0] sm:$0xff]
  %v7082 = vld [vmem:[%s8 + $0xa8] sm:$0xff]
  %v7083 = vld [vmem:[%s8 + $0xb0] sm:$0xff]
  %v7084 = vld [vmem:[%s8 + $0xb8] sm:$0xff]
  %v7085 = vld [vmem:[%s8 + $0xc0] sm:$0xff]
  %v7086 = vld [vmem:[%s8 + $0xc8] sm:$0xff]
  %v7087 = vld [vmem:[%s8 + $0xd0] sm:$0xff]
  %v7088 = vld [vmem:[%s8 + $0xd8] sm:$0xff]
  %v7089 = vld [vmem:[%s8 + $0xe0] sm:$0xff]
  %v7090 = vld [vmem:[%s8 + $0xe8] sm:$0xff]
  %v7091 = vld [vmem:[%s8 + $0xf0] sm:$0xff]
  %v7092 = vld [vmem:[%s8 + $0xf8] sm:$0xff]
  %v7093 = vld [vmem:[%s8 + $0x100] sm:$0xff]
  %v7094 = vld [vmem:[%s8 + $0x108] sm:$0xff]
  %v7095 = vld [vmem:[%s8 + $0x110] sm:$0xff]
  %v7096 = vld [vmem:[%s8 + $0x118] sm:$0xff]
  %v7097 = vld [vmem:[%s8 + $0x120] sm:$0xff]
  %v7098 = vld [vmem:[%s8 + $0x128] sm:$0xff]
  %v7099 = vld [vmem:[%s8 + $0x130] sm:$0xff]
  %v7100 = vld [vmem:[%s8 + $0x138] sm:$0xff]
  %v7101 = vld [vmem:[%s8 + $0x140] sm:$0xff]
  %v7102 = vld [vmem:[%s8 + $0x148] sm:$0xff]
  %v7103 = vld [vmem:[%s8 + $0x150] sm:$0xff]
  %v7104 = vld [vmem:[%s8 + $0x158] sm:$0xff]
  %v7105 = vld [vmem:[%s8 + $0x160] sm:$0xff]
  %v7106 = vld [vmem:[%s8 + $0x168] sm:$0xff]
  %v7107 = vld [vmem:[%s8 + $0x170] sm:$0xff]
  %v7108 = vld [vmem:[%s8 + $0x178] sm:$0xff]
  %v7109 = vld [vmem:[%s8 + $0x180] sm:$0xff]
  %v7110 = vld [vmem:[%s8 + $0x188] sm:$0xff]
  %v7111 = vld [vmem:[%s8 + $0x190] sm:$0xff]
  %v7112 = vld [vmem:[%s8 + $0x198] sm:$0xff]
  %v7113 = vld [vmem:[%s8 + $0x1a0] sm:$0xff]
  %v7114 = vld [vmem:[%s8 + $0x1a8] sm:$0xff]
  %v7115 = vld [vmem:[%s8 + $0x1b0] sm:$0xff]
  %v7116 = vld [vmem:[%s8 + $0x1b8] sm:$0xff]
  %v7117 = vld [vmem:[%s8 + $0x1c0] sm:$0xff]
  %v7118 = vld [vmem:[%s8 + $0x1c8] sm:$0xff]
  %v7119 = vld [vmem:[%s8 + $0x1d0] sm:$0xff]
  %v7120 = vld [vmem:[%s8 + $0x1d8] sm:$0xff]
  %v7121 = vld [vmem:[%s8 + $0x1e0] sm:$0xff]
  %v7122 = vld [vmem:[%s8 + $0x1e8] sm:$0xff]
  %v7123 = vld [vmem:[%s8 + $0x1f0] sm:$0xff]
  %v7124 = vld [vmem:[%s8 + $0x1f8] sm:$0xff]
  %v7125 = vld [vmem:[%s8 + $0x200] sm:$0xff]
  %v7126 = vld [vmem:[%s8 + $0x208] sm:$0xff]
  %v7127 = vld [vmem:[%s8 + $0x210] sm:$0xff]
  %v7128 = vld [vmem:[%s8 + $0x218] sm:$0xff]
  %v7129 = vld [vmem:[%s8 + $0x220] sm:$0xff]
  %v7130 = vld [vmem:[%s8 + $0x228] sm:$0xff]
  %v7131 = vld [vmem:[%s8 + $0x230] sm:$0xff]
  %v7132 = vld [vmem:[%s8 + $0x238] sm:$0xff]
  %v7133 = vld [vmem:[%s8 + $0x240] sm:$0xff]
  %v7134 = vld [vmem:[%s8 + $0x248] sm:$0xff]
  %v7135 = vld [vmem:[%s8 + $0x250] sm:$0xff]
  %v7136 = vld [vmem:[%s8 + $0x258] sm:$0xff]
  %v7137 = vld [vmem:[%s8 + $0x260] sm:$0xff]
  %v7138 = vld [vmem:[%s8 + $0x268] sm:$0xff]
  %v7139 = vld [vmem:[%s8 + $0x270] sm:$0xff]
  %v7140 = vld [vmem:[%s8 + $0x278] sm:$0xff]
  %v7141 = vld [vmem:[%s8 + $0x280] sm:$0xff]
  %v7142 = vld [vmem:[%s8 + $0x288] sm:$0xff]
  %v7143 = vld [vmem:[%s8 + $0x290] sm:$0xff]
  %v7144 = vld [vmem:[%s8 + $0x298] sm:$0xff]
  %v7145 = vld [vmem:[%s8 + $0x2a0] sm:$0xff]
  %v7146 = vld [vmem:[%s8 + $0x2a8] sm:$0xff]
  %v7147 = vld [vmem:[%s8 + $0x2b0] sm:$0xff]
  %v7148 = vld [vmem:[%s8 + $0x2b8] sm:$0xff]
  %v7149 = vld [vmem:[%s8 + $0x2c0] sm:$0xff]
  %v7150 = vld [vmem:[%s8 + $0x2c8] sm:$0xff]
  %v7151 = vld [vmem:[%s8 + $0x2d0] sm:$0xff]
  %v7152 = vld [vmem:[%s8 + $0x2d8] sm:$0xff]
  %v7153 = vld [vmem:[%s8 + $0x2e0] sm:$0xff]
  %v7154 = vld [vmem:[%s8 + $0x2e8] sm:$0xff]
  %v7155 = vld [vmem:[%s8 + $0x2f0] sm:$0xff]
  %v7156 = vld [vmem:[%s8 + $0x2f8] sm:$0xff]
  %v7157 = vld [vmem:[%s8 + $0x300] sm:$0xff]
  %v7158 = vld [vmem:[%s8 + $0x308] sm:$0xff]
  %v7159 = vld [vmem:[%s8 + $0x310] sm:$0xff]
  %v7160 = vld [vmem:[%s8 + $0x318] sm:$0xff]
  %v7161 = vld [vmem:[%s8 + $0x320] sm:$0xff]
  %v7162 = vld [vmem:[%s8 + $0x328] sm:$0xff]
  %v7163 = vld [vmem:[%s8 + $0x330] sm:$0xff]
  %v7164 = vld [vmem:[%s8 + $0x338] sm:$0xff]
  %v7165 = vld [vmem:[%s8 + $0x340] sm:$0xff]
  %v7166 = vld [vmem:[%s8 + $0x348] sm:$0xff]
  %v7167 = vld [vmem:[%s8 + $0x350] sm:$0xff]
  %v7168 = vld [vmem:[%s8 + $0x358] sm:$0xff]
  %v7169 = vld [vmem:[%s8 + $0x360] sm:$0xff]
  %v7170 = vld [vmem:[%s8 + $0x368] sm:$0xff]
  %v7171 = vld [vmem:[%s8 + $0x370] sm:$0xff]
  %v7172 = vld [vmem:[%s8 + $0x378] sm:$0xff]
  %v7173 = vld [vmem:[%s8 + $0x380] sm:$0xff]
  %v7174 = vld [vmem:[%s8 + $0x388] sm:$0xff]
  %v7175 = vld [vmem:[%s8 + $0x390] sm:$0xff]
  %v7176 = vld [vmem:[%s8 + $0x398] sm:$0xff]
  %v7177 = vld [vmem:[%s8 + $0x3a0] sm:$0xff]
  %v7178 = vld [vmem:[%s8 + $0x3a8] sm:$0xff]
  %v7179 = vld [vmem:[%s8 + $0x3b0] sm:$0xff]
  %v7180 = vld [vmem:[%s8 + $0x3b8] sm:$0xff]
  %v7181 = vld [vmem:[%s8 + $0x3c0] sm:$0xff]
  %v7182 = vld [vmem:[%s8 + $0x3c8] sm:$0xff]
  %v7183 = vld [vmem:[%s8 + $0x3d0] sm:$0xff]
  %v7184 = vld [vmem:[%s8 + $0x3d8] sm:$0xff]
  %v7185 = vld [vmem:[%s8 + $0x3e0] sm:$0xff]
  %v7186 = vld [vmem:[%s8 + $0x3e8] sm:$0xff]
  %v7187 = vld [vmem:[%s8 + $0x3f0] sm:$0xff]
  %v7188 = vld [vmem:[%s8 + $0x3f8] sm:$0xff]
  %s7189 = scalar_lea.vmem %s7, 8
  %v7190 = vld [vmem:[%s7189] sm:$0xf]
  %v7191 = vld [vmem:[%s7189 + $0x4] sm:$0xf]
  %v7194 = vunpack.c.l.b16 %v7190
  %v7195 = vunpack.c.l.b16 %v7191
  %v7196 = vpack.c.b16 %v7195, %v7194
  %v7198 = vsel %vm6967, %v7196, 0
  %7200 = vmatprep.subr.bf16.mxu0 %v6953
  %7201 = vmatpush1.bf16.msra.mxu0 %v6952
  %7202 = vmatprep.subr.bf16.mxu0 %v6957
  %7203 = vmatpush1.bf16.msra.mxu0 %v6956
  %7204 = vmatprep.subr.bf16.mxu0 0
  %7205 = vmatpush1.bf16.msra.mxu0 0
  %7206 = vmatprep.subr.bf16.mxu0 0
  %7207 = vmatpush1.bf16.msra.mxu0 0
  %7208 = vmatprep.subr.bf16.mxu0 0
  %7209 = vmatpush1.bf16.msra.mxu0 0
  %7210 = vmatprep.subr.bf16.mxu0 0
  %7211 = vmatpush1.bf16.msra.mxu0 0
  %7212 = vmatprep.subr.bf16.mxu0 0
  %7213 = vmatpush1.bf16.msra.mxu0 0
  %7214 = vmatprep.subr.bf16.mxu0 0
  %7215 = vmatpush1.bf16.msra.mxu0 0
  %7216 = vmatprep.subr.bf16.mxu0 0
  %7217 = vmatpush1.bf16.msra.mxu0 0
  %7218 = vmatprep.subr.bf16.mxu0 0
  %7219 = vmatpush1.bf16.msra.mxu0 0
  %7220 = vmatprep.subr.bf16.mxu0 0
  %7221 = vmatpush1.bf16.msra.mxu0 0
  %7222 = vmatprep.subr.bf16.mxu0 0
  %7223 = vmatpush1.bf16.msra.mxu0 0
  %7224 = vmatprep.subr.bf16.mxu0 0
  %7225 = vmatpush1.bf16.msra.mxu0 0
  %7226 = vmatprep.subr.bf16.mxu0 0
  %7227 = vmatpush1.bf16.msra.mxu0 0
  %7228 = vmatprep.subr.bf16.mxu0 0
  %7229 = vmatpush1.bf16.msra.mxu0 0
  %7230 = vmatprep.subr.bf16.mxu0 0
  %7231 = vmatpush1.bf16.msra.mxu0 0
  %7232 = vmatprep.mubr.bf16.mxu0 0
  %7233 = vmatmul.mubr.bf16.gmra.mrb[0].mxu0 %v7198
  %v7234 = vpop.f32.mrb[0].mxu0
  %v7235 = vadd.f32 0.0, %v7234
  %v7236 = vpop.f32.mrb[0].mxu0
  %v7237 = vadd.f32 0.0, %v7236
  %v7238 = vpop.f32.mrb[0].mxu0
  %v7239 = vadd.f32 0.0, %v7238
  %v7240 = vpop.f32.mrb[0].mxu0
  %v7241 = vadd.f32 0.0, %v7240
  %7242 = vdwg.mxu0
  %7243 = vmatprep.subr.bf16.mxu0 %v6955
  %7244 = vmatpush1.bf16.msra.mxu0 %v6954
  %7245 = vmatprep.subr.bf16.mxu0 %v6959
  %7246 = vmatpush1.bf16.msra.mxu0 %v6958
  %7247 = vmatprep.subr.bf16.mxu0 0
  %7248 = vmatpush1.bf16.msra.mxu0 0
  %7249 = vmatprep.subr.bf16.mxu0 0
  %7250 = vmatpush1.bf16.msra.mxu0 0
  %7251 = vmatprep.subr.bf16.mxu0 0
  %7252 = vmatpush1.bf16.msra.mxu0 0
  %7253 = vmatprep.subr.bf16.mxu0 0
  %7254 = vmatpush1.bf16.msra.mxu0 0
  %7255 = vmatprep.subr.bf16.mxu0 0
  %7256 = vmatpush1.bf16.msra.mxu0 0
  %7257 = vmatprep.subr.bf16.mxu0 0
  %7258 = vmatpush1.bf16.msra.mxu0 0
  %7259 = vmatprep.subr.bf16.mxu0 0
  %7260 = vmatpush1.bf16.msra.mxu0 0
  %7261 = vmatprep.subr.bf16.mxu0 0
  %7262 = vmatpush1.bf16.msra.mxu0 0
  %7263 = vmatprep.subr.bf16.mxu0 0
  %7264 = vmatpush1.bf16.msra.mxu0 0
  %7265 = vmatprep.subr.bf16.mxu0 0
  %7266 = vmatpush1.bf16.msra.mxu0 0
  %7267 = vmatprep.subr.bf16.mxu0 0
  %7268 = vmatpush1.bf16.msra.mxu0 0
  %7269 = vmatprep.subr.bf16.mxu0 0
  %7270 = vmatpush1.bf16.msra.mxu0 0
  %7271 = vmatprep.subr.bf16.mxu0 0
  %7272 = vmatpush1.bf16.msra.mxu0 0
  %7273 = vmatprep.subr.bf16.mxu0 0
  %7274 = vmatpush1.bf16.msra.mxu0 0
  %7275 = vmatprep.mubr.bf16.mxu0 0
  %7276 = vmatmul.mubr.bf16.gmra.mrb[0].mxu0 %v7198
  %v7277 = vpop.f32.mrb[0].mxu0
  %v7278 = vadd.f32 0.0, %v7277
  %v7279 = vpop.f32.mrb[0].mxu0
  %v7280 = vadd.f32 0.0, %v7279
  %v7281 = vpop.f32.mrb[0].mxu0
  %v7282 = vadd.f32 0.0, %v7281
  %v7283 = vpop.f32.mrb[0].mxu0
  %v7284 = vadd.f32 0.0, %v7283
  %7285 = vdwg.mxu0
  %v7286 = vpack.c.bf16 %v7239, %v7235
  %v7287 = vpack.c.bf16 %v7241, %v7237
  %v7288 = vpack.c.bf16 %v7282, %v7278
  %v7289 = vpack.c.bf16 %v7284, %v7280
  %s7290 = scalar_lea.vmem %s8, 1024
  %v7291 = vld [vmem:[%s7290] sm:$0xff]
  %v7292 = vld [vmem:[%s7290 + $0x8] sm:$0xff]
  %v7293 = vld [vmem:[%s7290 + $0x10] sm:$0xff]
  %v7294 = vld [vmem:[%s7290 + $0x18] sm:$0xff]
  %v7295 = vld [vmem:[%s7290 + $0x20] sm:$0xff]
  %v7296 = vld [vmem:[%s7290 + $0x28] sm:$0xff]
  %v7297 = vld [vmem:[%s7290 + $0x30] sm:$0xff]
  %v7298 = vld [vmem:[%s7290 + $0x38] sm:$0xff]
  %v7299 = vld [vmem:[%s7290 + $0x40] sm:$0xff]
  %v7300 = vld [vmem:[%s7290 + $0x48] sm:$0xff]
  %v7301 = vld [vmem:[%s7290 + $0x50] sm:$0xff]
  %v7302 = vld [vmem:[%s7290 + $0x58] sm:$0xff]
  %v7303 = vld [vmem:[%s7290 + $0x60] sm:$0xff]
  %v7304 = vld [vmem:[%s7290 + $0x68] sm:$0xff]
  %v7305 = vld [vmem:[%s7290 + $0x70] sm:$0xff]
  %v7306 = vld [vmem:[%s7290 + $0x78] sm:$0xff]
  %v7307 = vld [vmem:[%s7290 + $0x80] sm:$0xff]
  %v7308 = vld [vmem:[%s7290 + $0x88] sm:$0xff]
  %v7309 = vld [vmem:[%s7290 + $0x90] sm:$0xff]
  %v7310 = vld [vmem:[%s7290 + $0x98] sm:$0xff]
  %v7311 = vld [vmem:[%s7290 + $0xa0] sm:$0xff]
  %v7312 = vld [vmem:[%s7290 + $0xa8] sm:$0xff]
  %v7313 = vld [vmem:[%s7290 + $0xb0] sm:$0xff]
  %v7314 = vld [vmem:[%s7290 + $0xb8] sm:$0xff]
  %v7315 = vld [vmem:[%s7290 + $0xc0] sm:$0xff]
  %v7316 = vld [vmem:[%s7290 + $0xc8] sm:$0xff]
  %v7317 = vld [vmem:[%s7290 + $0xd0] sm:$0xff]
  %v7318 = vld [vmem:[%s7290 + $0xd8] sm:$0xff]
  %v7319 = vld [vmem:[%s7290 + $0xe0] sm:$0xff]
  %v7320 = vld [vmem:[%s7290 + $0xe8] sm:$0xff]
  %v7321 = vld [vmem:[%s7290 + $0xf0] sm:$0xff]
  %v7322 = vld [vmem:[%s7290 + $0xf8] sm:$0xff]
  %v7323 = vld [vmem:[%s7290 + $0x100] sm:$0xff]
  %v7324 = vld [vmem:[%s7290 + $0x108] sm:$0xff]
  %v7325 = vld [vmem:[%s7290 + $0x110] sm:$0xff]
  %v7326 = vld [vmem:[%s7290 + $0x118] sm:$0xff]
  %v7327 = vld [vmem:[%s7290 + $0x120] sm:$0xff]
  %v7328 = vld [vmem:[%s7290 + $0x128] sm:$0xff]
  %v7329 = vld [vmem:[%s7290 + $0x130] sm:$0xff]
  %v7330 = vld [vmem:[%s7290 + $0x138] sm:$0xff]
  %v7331 = vld [vmem:[%s7290 + $0x140] sm:$0xff]
  %v7332 = vld [vmem:[%s7290 + $0x148] sm:$0xff]
  %v7333 = vld [vmem:[%s7290 + $0x150] sm:$0xff]
  %v7334 = vld [vmem:[%s7290 + $0x158] sm:$0xff]
  %v7335 = vld [vmem:[%s7290 + $0x160] sm:$0xff]
  %v7336 = vld [vmem:[%s7290 + $0x168] sm:$0xff]
  %v7337 = vld [vmem:[%s7290 + $0x170] sm:$0xff]
  %v7338 = vld [vmem:[%s7290 + $0x178] sm:$0xff]
  %v7339 = vld [vmem:[%s7290 + $0x180] sm:$0xff]
  %v7340 = vld [vmem:[%s7290 + $0x188] sm:$0xff]
  %v7341 = vld [vmem:[%s7290 + $0x190] sm:$0xff]
  %v7342 = vld [vmem:[%s7290 + $0x198] sm:$0xff]
  %v7343 = vld [vmem:[%s7290 + $0x1a0] sm:$0xff]
  %v7344 = vld [vmem:[%s7290 + $0x1a8] sm:$0xff]
  %v7345 = vld [vmem:[%s7290 + $0x1b0] sm:$0xff]
  %v7346 = vld [vmem:[%s7290 + $0x1b8] sm:$0xff]
  %v7347 = vld [vmem:[%s7290 + $0x1c0] sm:$0xff]
  %v7348 = vld [vmem:[%s7290 + $0x1c8] sm:$0xff]
  %v7349 = vld [vmem:[%s7290 + $0x1d0] sm:$0xff]
  %v7350 = vld [vmem:[%s7290 + $0x1d8] sm:$0xff]
  %v7351 = vld [vmem:[%s7290 + $0x1e0] sm:$0xff]
  %v7352 = vld [vmem:[%s7290 + $0x1e8] sm:$0xff]
  %v7353 = vld [vmem:[%s7290 + $0x1f0] sm:$0xff]
  %v7354 = vld [vmem:[%s7290 + $0x1f8] sm:$0xff]
  %v7355 = vld [vmem:[%s7290 + $0x200] sm:$0xff]
  %v7356 = vld [vmem:[%s7290 + $0x208] sm:$0xff]
  %v7357 = vld [vmem:[%s7290 + $0x210] sm:$0xff]
  %v7358 = vld [vmem:[%s7290 + $0x218] sm:$0xff]
  %v7359 = vld [vmem:[%s7290 + $0x220] sm:$0xff]
  %v7360 = vld [vmem:[%s7290 + $0x228] sm:$0xff]
  %v7361 = vld [vmem:[%s7290 + $0x230] sm:$0xff]
  %v7362 = vld [vmem:[%s7290 + $0x238] sm:$0xff]
  %v7363 = vld [vmem:[%s7290 + $0x240] sm:$0xff]
  %v7364 = vld [vmem:[%s7290 + $0x248] sm:$0xff]
  %v7365 = vld [vmem:[%s7290 + $0x250] sm:$0xff]
  %v7366 = vld [vmem:[%s7290 + $0x258] sm:$0xff]
  %v7367 = vld [vmem:[%s7290 + $0x260] sm:$0xff]
  %v7368 = vld [vmem:[%s7290 + $0x268] sm:$0xff]
  %v7369 = vld [vmem:[%s7290 + $0x270] sm:$0xff]
  %v7370 = vld [vmem:[%s7290 + $0x278] sm:$0xff]
  %v7371 = vld [vmem:[%s7290 + $0x280] sm:$0xff]
  %v7372 = vld [vmem:[%s7290 + $0x288] sm:$0xff]
  %v7373 = vld [vmem:[%s7290 + $0x290] sm:$0xff]
  %v7374 = vld [vmem:[%s7290 + $0x298] sm:$0xff]
  %v7375 = vld [vmem:[%s7290 + $0x2a0] sm:$0xff]
  %v7376 = vld [vmem:[%s7290 + $0x2a8] sm:$0xff]
  %v7377 = vld [vmem:[%s7290 + $0x2b0] sm:$0xff]
  %v7378 = vld [vmem:[%s7290 + $0x2b8] sm:$0xff]
  %v7379 = vld [vmem:[%s7290 + $0x2c0] sm:$0xff]
  %v7380 = vld [vmem:[%s7290 + $0x2c8] sm:$0xff]
  %v7381 = vld [vmem:[%s7290 + $0x2d0] sm:$0xff]
  %v7382 = vld [vmem:[%s7290 + $0x2d8] sm:$0xff]
  %v7383 = vld [vmem:[%s7290 + $0x2e0] sm:$0xff]
  %v7384 = vld [vmem:[%s7290 + $0x2e8] sm:$0xff]
  %v7385 = vld [vmem:[%s7290 + $0x2f0] sm:$0xff]
  %v7386 = vld [vmem:[%s7290 + $0x2f8] sm:$0xff]
  %v7387 = vld [vmem:[%s7290 + $0x300] sm:$0xff]
  %v7388 = vld [vmem:[%s7290 + $0x308] sm:$0xff]
  %v7389 = vld [vmem:[%s7290 + $0x310] sm:$0xff]
  %v7390 = vld [vmem:[%s7290 + $0x318] sm:$0xff]
  %v7391 = vld [vmem:[%s7290 + $0x320] sm:$0xff]
  %v7392 = vld [vmem:[%s7290 + $0x328] sm:$0xff]
  %v7393 = vld [vmem:[%s7290 + $0x330] sm:$0xff]
  %v7394 = vld [vmem:[%s7290 + $0x338] sm:$0xff]
  %v7395 = vld [vmem:[%s7290 + $0x340] sm:$0xff]
  %v7396 = vld [vmem:[%s7290 + $0x348] sm:$0xff]
  %v7397 = vld [vmem:[%s7290 + $0x350] sm:$0xff]
  %v7398 = vld [vmem:[%s7290 + $0x358] sm:$0xff]
  %v7399 = vld [vmem:[%s7290 + $0x360] sm:$0xff]
  %v7400 = vld [vmem:[%s7290 + $0x368] sm:$0xff]
  %v7401 = vld [vmem:[%s7290 + $0x370] sm:$0xff]
  %v7402 = vld [vmem:[%s7290 + $0x378] sm:$0xff]
  %v7403 = vld [vmem:[%s7290 + $0x380] sm:$0xff]
  %v7404 = vld [vmem:[%s7290 + $0x388] sm:$0xff]
  %v7405 = vld [vmem:[%s7290 + $0x390] sm:$0xff]
  %v7406 = vld [vmem:[%s7290 + $0x398] sm:$0xff]
  %v7407 = vld [vmem:[%s7290 + $0x3a0] sm:$0xff]
  %v7408 = vld [vmem:[%s7290 + $0x3a8] sm:$0xff]
  %v7409 = vld [vmem:[%s7290 + $0x3b0] sm:$0xff]
  %v7410 = vld [vmem:[%s7290 + $0x3b8] sm:$0xff]
  %v7411 = vld [vmem:[%s7290 + $0x3c0] sm:$0xff]
  %v7412 = vld [vmem:[%s7290 + $0x3c8] sm:$0xff]
  %v7413 = vld [vmem:[%s7290 + $0x3d0] sm:$0xff]
  %v7414 = vld [vmem:[%s7290 + $0x3d8] sm:$0xff]
  %v7415 = vld [vmem:[%s7290 + $0x3e0] sm:$0xff]
  %v7416 = vld [vmem:[%s7290 + $0x3e8] sm:$0xff]
  %v7417 = vld [vmem:[%s7290 + $0x3f0] sm:$0xff]
  %v7418 = vld [vmem:[%s7290 + $0x3f8] sm:$0xff]
  %v7547 = vunpack.c.l.b16 %v7291
  %v7548 = vunpack.c.h.b16 %v7291
  %v7549 = vunpack.c.l.b16 %v7292
  %v7550 = vunpack.c.h.b16 %v7292
  %v7551 = vunpack.c.l.b16 %v7293
  %v7552 = vunpack.c.h.b16 %v7293
  %v7553 = vunpack.c.l.b16 %v7294
  %v7554 = vunpack.c.h.b16 %v7294
  %v7555 = vunpack.c.l.b16 %v7295
  %v7556 = vunpack.c.h.b16 %v7295
  %v7557 = vunpack.c.l.b16 %v7296
  %v7558 = vunpack.c.h.b16 %v7296
  %v7559 = vunpack.c.l.b16 %v7297
  %v7560 = vunpack.c.h.b16 %v7297
  %v7561 = vunpack.c.l.b16 %v7298
  %v7562 = vunpack.c.h.b16 %v7298
  %v7563 = vunpack.c.l.b16 %v7299
  %v7564 = vunpack.c.h.b16 %v7299
  %v7565 = vunpack.c.l.b16 %v7300
  %v7566 = vunpack.c.h.b16 %v7300
  %v7567 = vunpack.c.l.b16 %v7301
  %v7568 = vunpack.c.h.b16 %v7301
  %v7569 = vunpack.c.l.b16 %v7302
  %v7570 = vunpack.c.h.b16 %v7302
  %v7571 = vunpack.c.l.b16 %v7303
  %v7572 = vunpack.c.h.b16 %v7303
  %v7573 = vunpack.c.l.b16 %v7304
  %v7574 = vunpack.c.h.b16 %v7304
  %v7575 = vunpack.c.l.b16 %v7305
  %v7576 = vunpack.c.h.b16 %v7305
  %v7577 = vunpack.c.l.b16 %v7306
  %v7578 = vunpack.c.h.b16 %v7306
  %v7579 = vunpack.c.l.b16 %v7307
  %v7580 = vunpack.c.h.b16 %v7307
  %v7581 = vunpack.c.l.b16 %v7308
  %v7582 = vunpack.c.h.b16 %v7308
  %v7583 = vunpack.c.l.b16 %v7309
  %v7584 = vunpack.c.h.b16 %v7309
  %v7585 = vunpack.c.l.b16 %v7310
  %v7586 = vunpack.c.h.b16 %v7310
  %v7587 = vunpack.c.l.b16 %v7311
  %v7588 = vunpack.c.h.b16 %v7311
  %v7589 = vunpack.c.l.b16 %v7312
  %v7590 = vunpack.c.h.b16 %v7312
  %v7591 = vunpack.c.l.b16 %v7313
  %v7592 = vunpack.c.h.b16 %v7313
  %v7593 = vunpack.c.l.b16 %v7314
  %v7594 = vunpack.c.h.b16 %v7314
  %v7595 = vunpack.c.l.b16 %v7315
  %v7596 = vunpack.c.h.b16 %v7315
  %v7597 = vunpack.c.l.b16 %v7316
  %v7598 = vunpack.c.h.b16 %v7316
  %v7599 = vunpack.c.l.b16 %v7317
  %v7600 = vunpack.c.h.b16 %v7317
  %v7601 = vunpack.c.l.b16 %v7318
  %v7602 = vunpack.c.h.b16 %v7318
  %v7603 = vunpack.c.l.b16 %v7319
  %v7604 = vunpack.c.h.b16 %v7319
  %v7605 = vunpack.c.l.b16 %v7320
  %v7606 = vunpack.c.h.b16 %v7320
  %v7607 = vunpack.c.l.b16 %v7321
  %v7608 = vunpack.c.h.b16 %v7321
  %v7609 = vunpack.c.l.b16 %v7322
  %v7610 = vunpack.c.h.b16 %v7322
  %v7611 = vunpack.c.l.b16 %v7323
  %v7612 = vunpack.c.h.b16 %v7323
  %v7613 = vunpack.c.l.b16 %v7324
  %v7614 = vunpack.c.h.b16 %v7324
  %v7615 = vunpack.c.l.b16 %v7325
  %v7616 = vunpack.c.h.b16 %v7325
  %v7617 = vunpack.c.l.b16 %v7326
  %v7618 = vunpack.c.h.b16 %v7326
  %v7619 = vunpack.c.l.b16 %v7327
  %v7620 = vunpack.c.h.b16 %v7327
  %v7621 = vunpack.c.l.b16 %v7328
  %v7622 = vunpack.c.h.b16 %v7328
  %v7623 = vunpack.c.l.b16 %v7329
  %v7624 = vunpack.c.h.b16 %v7329
  %v7625 = vunpack.c.l.b16 %v7330
  %v7626 = vunpack.c.h.b16 %v7330
  %v7627 = vunpack.c.l.b16 %v7331
  %v7628 = vunpack.c.h.b16 %v7331
  %v7629 = vunpack.c.l.b16 %v7332
  %v7630 = vunpack.c.h.b16 %v7332
  %v7631 = vunpack.c.l.b16 %v7333
  %v7632 = vunpack.c.h.b16 %v7333
  %v7633 = vunpack.c.l.b16 %v7334
  %v7634 = vunpack.c.h.b16 %v7334
  %v7635 = vunpack.c.l.b16 %v7335
  %v7636 = vunpack.c.h.b16 %v7335
  %v7637 = vunpack.c.l.b16 %v7336
  %v7638 = vunpack.c.h.b16 %v7336
  %v7639 = vunpack.c.l.b16 %v7337
  %v7640 = vunpack.c.h.b16 %v7337
  %v7641 = vunpack.c.l.b16 %v7338
  %v7642 = vunpack.c.h.b16 %v7338
  %v7643 = vunpack.c.l.b16 %v7339
  %v7644 = vunpack.c.h.b16 %v7339
  %v7645 = vunpack.c.l.b16 %v7340
  %v7646 = vunpack.c.h.b16 %v7340
  %v7647 = vunpack.c.l.b16 %v7341
  %v7648 = vunpack.c.h.b16 %v7341
  %v7649 = vunpack.c.l.b16 %v7342
  %v7650 = vunpack.c.h.b16 %v7342
  %v7651 = vunpack.c.l.b16 %v7343
  %v7652 = vunpack.c.h.b16 %v7343
  %v7653 = vunpack.c.l.b16 %v7344
  %v7654 = vunpack.c.h.b16 %v7344
  %v7655 = vunpack.c.l.b16 %v7345
  %v7656 = vunpack.c.h.b16 %v7345
  %v7657 = vunpack.c.l.b16 %v7346
  %v7658 = vunpack.c.h.b16 %v7346
  %v7659 = vunpack.c.l.b16 %v7347
  %v7660 = vunpack.c.h.b16 %v7347
  %v7661 = vunpack.c.l.b16 %v7348
  %v7662 = vunpack.c.h.b16 %v7348
  %v7663 = vunpack.c.l.b16 %v7349
  %v7664 = vunpack.c.h.b16 %v7349
  %v7665 = vunpack.c.l.b16 %v7350
  %v7666 = vunpack.c.h.b16 %v7350
  %v7667 = vunpack.c.l.b16 %v7351
  %v7668 = vunpack.c.h.b16 %v7351
  %v7669 = vunpack.c.l.b16 %v7352
  %v7670 = vunpack.c.h.b16 %v7352
  %v7671 = vunpack.c.l.b16 %v7353
  %v7672 = vunpack.c.h.b16 %v7353
  %v7673 = vunpack.c.l.b16 %v7354
  %v7674 = vunpack.c.h.b16 %v7354
  %v7675 = vunpack.c.l.b16 %v7355
  %v7676 = vunpack.c.h.b16 %v7355
  %v7677 = vunpack.c.l.b16 %v7356
  %v7678 = vunpack.c.h.b16 %v7356
  %v7679 = vunpack.c.l.b16 %v7357
  %v7680 = vunpack.c.h.b16 %v7357
  %v7681 = vunpack.c.l.b16 %v7358
  %v7682 = vunpack.c.h.b16 %v7358
  %v7683 = vunpack.c.l.b16 %v7359
  %v7684 = vunpack.c.h.b16 %v7359
  %v7685 = vunpack.c.l.b16 %v7360
  %v7686 = vunpack.c.h.b16 %v7360
  %v7687 = vunpack.c.l.b16 %v7361
  %v7688 = vunpack.c.h.b16 %v7361
  %v7689 = vunpack.c.l.b16 %v7362
  %v7690 = vunpack.c.h.b16 %v7362
  %v7691 = vunpack.c.l.b16 %v7363
  %v7692 = vunpack.c.h.b16 %v7363
  %v7693 = vunpack.c.l.b16 %v7364
  %v7694 = vunpack.c.h.b16 %v7364
  %v7695 = vunpack.c.l.b16 %v7365
  %v7696 = vunpack.c.h.b16 %v7365
  %v7697 = vunpack.c.l.b16 %v7366
  %v7698 = vunpack.c.h.b16 %v7366
  %v7699 = vunpack.c.l.b16 %v7367
  %v7700 = vunpack.c.h.b16 %v7367
  %v7701 = vunpack.c.l.b16 %v7368
  %v7702 = vunpack.c.h.b16 %v7368
  %v7703 = vunpack.c.l.b16 %v7369
  %v7704 = vunpack.c.h.b16 %v7369
  %v7705 = vunpack.c.l.b16 %v7370
  %v7706 = vunpack.c.h.b16 %v7370
  %v7707 = vunpack.c.l.b16 %v7371
  %v7708 = vunpack.c.h.b16 %v7371
  %v7709 = vunpack.c.l.b16 %v7372
  %v7710 = vunpack.c.h.b16 %v7372
  %v7711 = vunpack.c.l.b16 %v7373
  %v7712 = vunpack.c.h.b16 %v7373
  %v7713 = vunpack.c.l.b16 %v7374
  %v7714 = vunpack.c.h.b16 %v7374
  %v7715 = vunpack.c.l.b16 %v7375
  %v7716 = vunpack.c.h.b16 %v7375
  %v7717 = vunpack.c.l.b16 %v7376
  %v7718 = vunpack.c.h.b16 %v7376
  %v7719 = vunpack.c.l.b16 %v7377
  %v7720 = vunpack.c.h.b16 %v7377
  %v7721 = vunpack.c.l.b16 %v7378
  %v7722 = vunpack.c.h.b16 %v7378
  %v7723 = vunpack.c.l.b16 %v7379
  %v7724 = vunpack.c.h.b16 %v7379
  %v7725 = vunpack.c.l.b16 %v7380
  %v7726 = vunpack.c.h.b16 %v7380
  %v7727 = vunpack.c.l.b16 %v7381
  %v7728 = vunpack.c.h.b16 %v7381
  %v7729 = vunpack.c.l.b16 %v7382
  %v7730 = vunpack.c.h.b16 %v7382
  %v7731 = vunpack.c.l.b16 %v7383
  %v7732 = vunpack.c.h.b16 %v7383
  %v7733 = vunpack.c.l.b16 %v7384
  %v7734 = vunpack.c.h.b16 %v7384
  %v7735 = vunpack.c.l.b16 %v7385
  %v7736 = vunpack.c.h.b16 %v7385
  %v7737 = vunpack.c.l.b16 %v7386
  %v7738 = vunpack.c.h.b16 %v7386
  %v7739 = vunpack.c.l.b16 %v7387
  %v7740 = vunpack.c.h.b16 %v7387
  %v7741 = vunpack.c.l.b16 %v7388
  %v7742 = vunpack.c.h.b16 %v7388
  %v7743 = vunpack.c.l.b16 %v7389
  %v7744 = vunpack.c.h.b16 %v7389
  %v7745 = vunpack.c.l.b16 %v7390
  %v7746 = vunpack.c.h.b16 %v7390
  %v7747 = vunpack.c.l.b16 %v7391
  %v7748 = vunpack.c.h.b16 %v7391
  %v7749 = vunpack.c.l.b16 %v7392
  %v7750 = vunpack.c.h.b16 %v7392
  %v7751 = vunpack.c.l.b16 %v7393
  %v7752 = vunpack.c.h.b16 %v7393
  %v7753 = vunpack.c.l.b16 %v7394
  %v7754 = vunpack.c.h.b16 %v7394
  %v7755 = vunpack.c.l.b16 %v7395
  %v7756 = vunpack.c.h.b16 %v7395
  %v7757 = vunpack.c.l.b16 %v7396
  %v7758 = vunpack.c.h.b16 %v7396
  %v7759 = vunpack.c.l.b16 %v7397
  %v7760 = vunpack.c.h.b16 %v7397
  %v7761 = vunpack.c.l.b16 %v7398
  %v7762 = vunpack.c.h.b16 %v7398
  %v7763 = vunpack.c.l.b16 %v7399
  %v7764 = vunpack.c.h.b16 %v7399
  %v7765 = vunpack.c.l.b16 %v7400
  %v7766 = vunpack.c.h.b16 %v7400
  %v7767 = vunpack.c.l.b16 %v7401
  %v7768 = vunpack.c.h.b16 %v7401
  %v7769 = vunpack.c.l.b16 %v7402
  %v7770 = vunpack.c.h.b16 %v7402
  %v7771 = vunpack.c.l.b16 %v7403
  %v7772 = vunpack.c.h.b16 %v7403
  %v7773 = vunpack.c.l.b16 %v7404
  %v7774 = vunpack.c.h.b16 %v7404
  %v7775 = vunpack.c.l.b16 %v7405
  %v7776 = vunpack.c.h.b16 %v7405
  %v7777 = vunpack.c.l.b16 %v7406
  %v7778 = vunpack.c.h.b16 %v7406
  %v7779 = vunpack.c.l.b16 %v7407
  %v7780 = vunpack.c.h.b16 %v7407
  %v7781 = vunpack.c.l.b16 %v7408
  %v7782 = vunpack.c.h.b16 %v7408
  %v7783 = vunpack.c.l.b16 %v7409
  %v7784 = vunpack.c.h.b16 %v7409
  %v7785 = vunpack.c.l.b16 %v7410
  %v7786 = vunpack.c.h.b16 %v7410
  %v7787 = vunpack.c.l.b16 %v7411
  %v7788 = vunpack.c.h.b16 %v7411
  %v7789 = vunpack.c.l.b16 %v7412
  %v7790 = vunpack.c.h.b16 %v7412
  %v7791 = vunpack.c.l.b16 %v7413
  %v7792 = vunpack.c.h.b16 %v7413
  %v7793 = vunpack.c.l.b16 %v7414
  %v7794 = vunpack.c.h.b16 %v7414
  %v7795 = vunpack.c.l.b16 %v7415
  %v7796 = vunpack.c.h.b16 %v7415
  %v7797 = vunpack.c.l.b16 %v7416
  %v7798 = vunpack.c.h.b16 %v7416
  %v7799 = vunpack.c.l.b16 %v7417
  %v7800 = vunpack.c.h.b16 %v7417
  %v7801 = vunpack.c.l.b16 %v7418
  %v7802 = vunpack.c.h.b16 %v7418
  %v7803 = vpack.c.b16 %v7551, %v7547
  %v7804 = vpack.c.b16 %v7552, %v7548
  %v7805 = vpack.c.b16 %v7553, %v7549
  %v7806 = vpack.c.b16 %v7554, %v7550
  %v7807 = vpack.c.b16 %v7559, %v7555
  %v7808 = vpack.c.b16 %v7560, %v7556
  %v7809 = vpack.c.b16 %v7561, %v7557
  %v7810 = vpack.c.b16 %v7562, %v7558
  %v7811 = vpack.c.b16 %v7567, %v7563
  %v7812 = vpack.c.b16 %v7568, %v7564
  %v7813 = vpack.c.b16 %v7569, %v7565
  %v7814 = vpack.c.b16 %v7570, %v7566
  %v7815 = vpack.c.b16 %v7575, %v7571
  %v7816 = vpack.c.b16 %v7576, %v7572
  %v7817 = vpack.c.b16 %v7577, %v7573
  %v7818 = vpack.c.b16 %v7578, %v7574
  %v7819 = vpack.c.b16 %v7583, %v7579
  %v7820 = vpack.c.b16 %v7584, %v7580
  %v7821 = vpack.c.b16 %v7585, %v7581
  %v7822 = vpack.c.b16 %v7586, %v7582
  %v7823 = vpack.c.b16 %v7591, %v7587
  %v7824 = vpack.c.b16 %v7592, %v7588
  %v7825 = vpack.c.b16 %v7593, %v7589
  %v7826 = vpack.c.b16 %v7594, %v7590
  %v7827 = vpack.c.b16 %v7599, %v7595
  %v7828 = vpack.c.b16 %v7600, %v7596
  %v7829 = vpack.c.b16 %v7601, %v7597
  %v7830 = vpack.c.b16 %v7602, %v7598
  %v7831 = vpack.c.b16 %v7607, %v7603
  %v7832 = vpack.c.b16 %v7608, %v7604
  %v7833 = vpack.c.b16 %v7609, %v7605
  %v7834 = vpack.c.b16 %v7610, %v7606
  %v7835 = vpack.c.b16 %v7615, %v7611
  %v7836 = vpack.c.b16 %v7616, %v7612
  %v7837 = vpack.c.b16 %v7617, %v7613
  %v7838 = vpack.c.b16 %v7618, %v7614
  %v7839 = vpack.c.b16 %v7623, %v7619
  %v7840 = vpack.c.b16 %v7624, %v7620
  %v7841 = vpack.c.b16 %v7625, %v7621
  %v7842 = vpack.c.b16 %v7626, %v7622
  %v7843 = vpack.c.b16 %v7631, %v7627
  %v7844 = vpack.c.b16 %v7632, %v7628
  %v7845 = vpack.c.b16 %v7633, %v7629
  %v7846 = vpack.c.b16 %v7634, %v7630
  %v7847 = vpack.c.b16 %v7639, %v7635
  %v7848 = vpack.c.b16 %v7640, %v7636
  %v7849 = vpack.c.b16 %v7641, %v7637
  %v7850 = vpack.c.b16 %v7642, %v7638
  %v7851 = vpack.c.b16 %v7647, %v7643
  %v7852 = vpack.c.b16 %v7648, %v7644
  %v7853 = vpack.c.b16 %v7649, %v7645
  %v7854 = vpack.c.b16 %v7650, %v7646
  %v7855 = vpack.c.b16 %v7655, %v7651
  %v7856 = vpack.c.b16 %v7656, %v7652
  %v7857 = vpack.c.b16 %v7657, %v7653
  %v7858 = vpack.c.b16 %v7658, %v7654
  %v7859 = vpack.c.b16 %v7663, %v7659
  %v7860 = vpack.c.b16 %v7664, %v7660
  %v7861 = vpack.c.b16 %v7665, %v7661
  %v7862 = vpack.c.b16 %v7666, %v7662
  %v7863 = vpack.c.b16 %v7671, %v7667
  %v7864 = vpack.c.b16 %v7672, %v7668
  %v7865 = vpack.c.b16 %v7673, %v7669
  %v7866 = vpack.c.b16 %v7674, %v7670
  %v7867 = vpack.c.b16 %v7679, %v7675
  %v7868 = vpack.c.b16 %v7680, %v7676
  %v7869 = vpack.c.b16 %v7681, %v7677
  %v7870 = vpack.c.b16 %v7682, %v7678
  %v7871 = vpack.c.b16 %v7687, %v7683
  %v7872 = vpack.c.b16 %v7688, %v7684
  %v7873 = vpack.c.b16 %v7689, %v7685
  %v7874 = vpack.c.b16 %v7690, %v7686
  %v7875 = vpack.c.b16 %v7695, %v7691
  %v7876 = vpack.c.b16 %v7696, %v7692
  %v7877 = vpack.c.b16 %v7697, %v7693
  %v7878 = vpack.c.b16 %v7698, %v7694
  %v7879 = vpack.c.b16 %v7703, %v7699
  %v7880 = vpack.c.b16 %v7704, %v7700
  %v7881 = vpack.c.b16 %v7705, %v7701
  %v7882 = vpack.c.b16 %v7706, %v7702
  %v7883 = vpack.c.b16 %v7711, %v7707
  %v7884 = vpack.c.b16 %v7712, %v7708
  %v7885 = vpack.c.b16 %v7713, %v7709
  %v7886 = vpack.c.b16 %v7714, %v7710
  %v7887 = vpack.c.b16 %v7719, %v7715
  %v7888 = vpack.c.b16 %v7720, %v7716
  %v7889 = vpack.c.b16 %v7721, %v7717
  %v7890 = vpack.c.b16 %v7722, %v7718
  %v7891 = vpack.c.b16 %v7727, %v7723
  %v7892 = vpack.c.b16 %v7728, %v7724
  %v7893 = vpack.c.b16 %v7729, %v7725
  %v7894 = vpack.c.b16 %v7730, %v7726
  %v7895 = vpack.c.b16 %v7735, %v7731
  %v7896 = vpack.c.b16 %v7736, %v7732
  %v7897 = vpack.c.b16 %v7737, %v7733
  %v7898 = vpack.c.b16 %v7738, %v7734
  %v7899 = vpack.c.b16 %v7743, %v7739
  %v7900 = vpack.c.b16 %v7744, %v7740
  %v7901 = vpack.c.b16 %v7745, %v7741
  %v7902 = vpack.c.b16 %v7746, %v7742
  %v7903 = vpack.c.b16 %v7751, %v7747
  %v7904 = vpack.c.b16 %v7752, %v7748
  %v7905 = vpack.c.b16 %v7753, %v7749
  %v7906 = vpack.c.b16 %v7754, %v7750
  %v7907 = vpack.c.b16 %v7759, %v7755
  %v7908 = vpack.c.b16 %v7760, %v7756
  %v7909 = vpack.c.b16 %v7761, %v7757
  %v7910 = vpack.c.b16 %v7762, %v7758
  %v7911 = vpack.c.b16 %v7767, %v7763
  %v7912 = vpack.c.b16 %v7768, %v7764
  %v7913 = vpack.c.b16 %v7769, %v7765
  %v7914 = vpack.c.b16 %v7770, %v7766
  %v7915 = vpack.c.b16 %v7775, %v7771
  %v7916 = vpack.c.b16 %v7776, %v7772
  %v7917 = vpack.c.b16 %v7777, %v7773
  %v7918 = vpack.c.b16 %v7778, %v7774
  %v7919 = vpack.c.b16 %v7783, %v7779
  %v7920 = vpack.c.b16 %v7784, %v7780
  %v7921 = vpack.c.b16 %v7785, %v7781
  %v7922 = vpack.c.b16 %v7786, %v7782
  %v7923 = vpack.c.b16 %v7791, %v7787
  %v7924 = vpack.c.b16 %v7792, %v7788
  %v7925 = vpack.c.b16 %v7793, %v7789
  %v7926 = vpack.c.b16 %v7794, %v7790
  %v7927 = vpack.c.b16 %v7799, %v7795
  %v7928 = vpack.c.b16 %v7800, %v7796
  %v7929 = vpack.c.b16 %v7801, %v7797
  %v7930 = vpack.c.b16 %v7802, %v7798
  %8059 = vmatprep.subr.bf16.mxu0 %v7804
  %8060 = vmatpush1.bf16.msra.mxu0 %v7803
  %8061 = vmatprep.subr.bf16.mxu0 %v7808
  %8062 = vmatpush1.bf16.msra.mxu0 %v7807
  %8063 = vmatprep.subr.bf16.mxu0 %v7812
  %8064 = vmatpush1.bf16.msra.mxu0 %v7811
  %8065 = vmatprep.subr.bf16.mxu0 %v7816
  %8066 = vmatpush1.bf16.msra.mxu0 %v7815
  %8067 = vmatprep.subr.bf16.mxu0 %v7820
  %8068 = vmatpush1.bf16.msra.mxu0 %v7819
  %8069 = vmatprep.subr.bf16.mxu0 %v7824
  %8070 = vmatpush1.bf16.msra.mxu0 %v7823
  %8071 = vmatprep.subr.bf16.mxu0 %v7828
  %8072 = vmatpush1.bf16.msra.mxu0 %v7827
  %8073 = vmatprep.subr.bf16.mxu0 %v7832
  %8074 = vmatpush1.bf16.msra.mxu0 %v7831
  %8075 = vmatprep.subr.bf16.mxu0 %v7836
  %8076 = vmatpush1.bf16.msra.mxu0 %v7835
  %8077 = vmatprep.subr.bf16.mxu0 %v7840
  %8078 = vmatpush1.bf16.msra.mxu0 %v7839
  %8079 = vmatprep.subr.bf16.mxu0 %v7844
  %8080 = vmatpush1.bf16.msra.mxu0 %v7843
  %8081 = vmatprep.subr.bf16.mxu0 %v7848
  %8082 = vmatpush1.bf16.msra.mxu0 %v7847
  %8083 = vmatprep.subr.bf16.mxu0 %v7852
  %8084 = vmatpush1.bf16.msra.mxu0 %v7851
  %8085 = vmatprep.subr.bf16.mxu0 %v7856
  %8086 = vmatpush1.bf16.msra.mxu0 %v7855
  %8087 = vmatprep.subr.bf16.mxu0 %v7860
  %8088 = vmatpush1.bf16.msra.mxu0 %v7859
  %8089 = vmatprep.subr.bf16.mxu0 %v7864
  %8090 = vmatpush1.bf16.msra.mxu0 %v7863
  %8091 = vmatprep.mubr.bf16.mxu0 %v7287
  %8092 = vmatmul.mubr.bf16.gmra.mrb[0].mxu0 %v7286
  %v8093 = vpop.f32.mrb[0].mxu0
  %v8094 = vadd.f32 0.0, %v8093
  %v8095 = vpop.f32.mrb[0].mxu0
  %v8096 = vadd.f32 0.0, %v8095
  %v8097 = vpop.f32.mrb[0].mxu0
  %v8098 = vadd.f32 0.0, %v8097
  %v8099 = vpop.f32.mrb[0].mxu0
  %v8100 = vadd.f32 0.0, %v8099
  %8101 = vdwg.mxu0
  %8102 = vmatprep.subr.bf16.mxu0 %v7868
  %8103 = vmatpush1.bf16.msra.mxu0 %v7867
  %8104 = vmatprep.subr.bf16.mxu0 %v7872
  %8105 = vmatpush1.bf16.msra.mxu0 %v7871
  %8106 = vmatprep.subr.bf16.mxu0 %v7876
  %8107 = vmatpush1.bf16.msra.mxu0 %v7875
  %8108 = vmatprep.subr.bf16.mxu0 %v7880
  %8109 = vmatpush1.bf16.msra.mxu0 %v7879
  %8110 = vmatprep.subr.bf16.mxu0 %v7884
  %8111 = vmatpush1.bf16.msra.mxu0 %v7883
  %8112 = vmatprep.subr.bf16.mxu0 %v7888
  %8113 = vmatpush1.bf16.msra.mxu0 %v7887
  %8114 = vmatprep.subr.bf16.mxu0 %v7892
  %8115 = vmatpush1.bf16.msra.mxu0 %v7891
  %8116 = vmatprep.subr.bf16.mxu0 %v7896
  %8117 = vmatpush1.bf16.msra.mxu0 %v7895
  %8118 = vmatprep.subr.bf16.mxu0 %v7900
  %8119 = vmatpush1.bf16.msra.mxu0 %v7899
  %8120 = vmatprep.subr.bf16.mxu0 %v7904
  %8121 = vmatpush1.bf16.msra.mxu0 %v7903
  %8122 = vmatprep.subr.bf16.mxu0 %v7908
  %8123 = vmatpush1.bf16.msra.mxu0 %v7907
  %8124 = vmatprep.subr.bf16.mxu0 %v7912
  %8125 = vmatpush1.bf16.msra.mxu0 %v7911
  %8126 = vmatprep.subr.bf16.mxu0 %v7916
  %8127 = vmatpush1.bf16.msra.mxu0 %v7915
  %8128 = vmatprep.subr.bf16.mxu0 %v7920
  %8129 = vmatpush1.bf16.msra.mxu0 %v7919
  %8130 = vmatprep.subr.bf16.mxu0 %v7924
  %8131 = vmatpush1.bf16.msra.mxu0 %v7923
  %8132 = vmatprep.subr.bf16.mxu0 %v7928
  %8133 = vmatpush1.bf16.msra.mxu0 %v7927
  %8134 = vmatprep.mubr.bf16.mxu0 %v7289
  %8135 = vmatmul.mubr.bf16.gmra.mrb[0].mxu0 %v7288
  %v8136 = vpop.f32.mrb[0].mxu0
  %v8137 = vadd.f32 %v8094, %v8136
  %v8138 = vpop.f32.mrb[0].mxu0
  %v8139 = vadd.f32 %v8096, %v8138
  %v8140 = vpop.f32.mrb[0].mxu0
  %v8141 = vadd.f32 %v8098, %v8140
  %v8142 = vpop.f32.mrb[0].mxu0
  %v8143 = vadd.f32 %v8100, %v8142
  %8144 = vdwg.mxu0
  %8145 = vmatprep.subr.bf16.mxu0 %v7806
  %8146 = vmatpush1.bf16.msra.mxu0 %v7805
  %8147 = vmatprep.subr.bf16.mxu0 %v7810
  %8148 = vmatpush1.bf16.msra.mxu0 %v7809
  %8149 = vmatprep.subr.bf16.mxu0 %v7814
  %8150 = vmatpush1.bf16.msra.mxu0 %v7813
  %8151 = vmatprep.subr.bf16.mxu0 %v7818
  %8152 = vmatpush1.bf16.msra.mxu0 %v7817
  %8153 = vmatprep.subr.bf16.mxu0 %v7822
  %8154 = vmatpush1.bf16.msra.mxu0 %v7821
  %8155 = vmatprep.subr.bf16.mxu0 %v7826
  %8156 = vmatpush1.bf16.msra.mxu0 %v7825
  %8157 = vmatprep.subr.bf16.mxu0 %v7830
  %8158 = vmatpush1.bf16.msra.mxu0 %v7829
  %8159 = vmatprep.subr.bf16.mxu0 %v7834
  %8160 = vmatpush1.bf16.msra.mxu0 %v7833
  %8161 = vmatprep.subr.bf16.mxu0 %v7838
  %8162 = vmatpush1.bf16.msra.mxu0 %v7837
  %8163 = vmatprep.subr.bf16.mxu0 %v7842
  %8164 = vmatpush1.bf16.msra.mxu0 %v7841
  %8165 = vmatprep.subr.bf16.mxu0 %v7846
  %8166 = vmatpush1.bf16.msra.mxu0 %v7845
  %8167 = vmatprep.subr.bf16.mxu0 %v7850
  %8168 = vmatpush1.bf16.msra.mxu0 %v7849
  %8169 = vmatprep.subr.bf16.mxu0 %v7854
  %8170 = vmatpush1.bf16.msra.mxu0 %v7853
  %8171 = vmatprep.subr.bf16.mxu0 %v7858
  %8172 = vmatpush1.bf16.msra.mxu0 %v7857
  %8173 = vmatprep.subr.bf16.mxu0 %v7862
  %8174 = vmatpush1.bf16.msra.mxu0 %v7861
  %8175 = vmatprep.subr.bf16.mxu0 %v7866
  %8176 = vmatpush1.bf16.msra.mxu0 %v7865
  %8177 = vmatprep.mubr.bf16.mxu0 %v7287
  %8178 = vmatmul.mubr.bf16.gmra.mrb[0].mxu0 %v7286
  %v8179 = vpop.f32.mrb[0].mxu0
  %v8180 = vadd.f32 0.0, %v8179
  %v8181 = vpop.f32.mrb[0].mxu0
  %v8182 = vadd.f32 0.0, %v8181
  %v8183 = vpop.f32.mrb[0].mxu0
  %v8184 = vadd.f32 0.0, %v8183
  %v8185 = vpop.f32.mrb[0].mxu0
  %v8186 = vadd.f32 0.0, %v8185
  %8187 = vdwg.mxu0
  %8188 = vmatprep.subr.bf16.mxu0 %v7870
  %8189 = vmatpush1.bf16.msra.mxu0 %v7869
  %8190 = vmatprep.subr.bf16.mxu0 %v7874
  %8191 = vmatpush1.bf16.msra.mxu0 %v7873
  %8192 = vmatprep.subr.bf16.mxu0 %v7878
  %8193 = vmatpush1.bf16.msra.mxu0 %v7877
  %8194 = vmatprep.subr.bf16.mxu0 %v7882
  %8195 = vmatpush1.bf16.msra.mxu0 %v7881
  %8196 = vmatprep.subr.bf16.mxu0 %v7886
  %8197 = vmatpush1.bf16.msra.mxu0 %v7885
  %8198 = vmatprep.subr.bf16.mxu0 %v7890
  %8199 = vmatpush1.bf16.msra.mxu0 %v7889
  %8200 = vmatprep.subr.bf16.mxu0 %v7894
  %8201 = vmatpush1.bf16.msra.mxu0 %v7893
  %8202 = vmatprep.subr.bf16.mxu0 %v7898
  %8203 = vmatpush1.bf16.msra.mxu0 %v7897
  %8204 = vmatprep.subr.bf16.mxu0 %v7902
  %8205 = vmatpush1.bf16.msra.mxu0 %v7901
  %8206 = vmatprep.subr.bf16.mxu0 %v7906
  %8207 = vmatpush1.bf16.msra.mxu0 %v7905
  %8208 = vmatprep.subr.bf16.mxu0 %v7910
  %8209 = vmatpush1.bf16.msra.mxu0 %v7909
  %8210 = vmatprep.subr.bf16.mxu0 %v7914
  %8211 = vmatpush1.bf16.msra.mxu0 %v7913
  %8212 = vmatprep.subr.bf16.mxu0 %v7918
  %8213 = vmatpush1.bf16.msra.mxu0 %v7917
  %8214 = vmatprep.subr.bf16.mxu0 %v7922
  %8215 = vmatpush1.bf16.msra.mxu0 %v7921
  %8216 = vmatprep.subr.bf16.mxu0 %v7926
  %8217 = vmatpush1.bf16.msra.mxu0 %v7925
  %8218 = vmatprep.subr.bf16.mxu0 %v7930
  %8219 = vmatpush1.bf16.msra.mxu0 %v7929
  %8220 = vmatprep.mubr.bf16.mxu0 %v7289
  %8221 = vmatmul.mubr.bf16.gmra.mrb[0].mxu0 %v7288
  %v8222 = vpop.f32.mrb[0].mxu0
  %v8223 = vadd.f32 %v8180, %v8222
  %v8224 = vpop.f32.mrb[0].mxu0
  %v8225 = vadd.f32 %v8182, %v8224
  %v8226 = vpop.f32.mrb[0].mxu0
  %v8227 = vadd.f32 %v8184, %v8226
  %v8228 = vpop.f32.mrb[0].mxu0
  %v8229 = vadd.f32 %v8186, %v8228
  %8230 = vdwg.mxu0
  %v8359 = vunpack.c.l.b16 %v7061
  %v8360 = vunpack.c.h.b16 %v7061
  %v8361 = vunpack.c.l.b16 %v7062
  %v8362 = vunpack.c.h.b16 %v7062
  %v8363 = vunpack.c.l.b16 %v7063
  %v8364 = vunpack.c.h.b16 %v7063
  %v8365 = vunpack.c.l.b16 %v7064
  %v8366 = vunpack.c.h.b16 %v7064
  %v8367 = vunpack.c.l.b16 %v7065
  %v8368 = vunpack.c.h.b16 %v7065
  %v8369 = vunpack.c.l.b16 %v7066
  %v8370 = vunpack.c.h.b16 %v7066
  %v8371 = vunpack.c.l.b16 %v7067
  %v8372 = vunpack.c.h.b16 %v7067
  %v8373 = vunpack.c.l.b16 %v7068
  %v8374 = vunpack.c.h.b16 %v7068
  %v8375 = vunpack.c.l.b16 %v7069
  %v8376 = vunpack.c.h.b16 %v7069
  %v8377 = vunpack.c.l.b16 %v7070
  %v8378 = vunpack.c.h.b16 %v7070
  %v8379 = vunpack.c.l.b16 %v7071
  %v8380 = vunpack.c.h.b16 %v7071
  %v8381 = vunpack.c.l.b16 %v7072
  %v8382 = vunpack.c.h.b16 %v7072
  %v8383 = vunpack.c.l.b16 %v7073
  %v8384 = vunpack.c.h.b16 %v7073
  %v8385 = vunpack.c.l.b16 %v7074
  %v8386 = vunpack.c.h.b16 %v7074
  %v8387 = vunpack.c.l.b16 %v7075
  %v8388 = vunpack.c.h.b16 %v7075
  %v8389 = vunpack.c.l.b16 %v7076
  %v8390 = vunpack.c.h.b16 %v7076
  %v8391 = vunpack.c.l.b16 %v7077
  %v8392 = vunpack.c.h.b16 %v7077
  %v8393 = vunpack.c.l.b16 %v7078
  %v8394 = vunpack.c.h.b16 %v7078
  %v8395 = vunpack.c.l.b16 %v7079
  %v8396 = vunpack.c.h.b16 %v7079
  %v8397 = vunpack.c.l.b16 %v7080
  %v8398 = vunpack.c.h.b16 %v7080
  %v8399 = vunpack.c.l.b16 %v7081
  %v8400 = vunpack.c.h.b16 %v7081
  %v8401 = vunpack.c.l.b16 %v7082
  %v8402 = vunpack.c.h.b16 %v7082
  %v8403 = vunpack.c.l.b16 %v7083
  %v8404 = vunpack.c.h.b16 %v7083
  %v8405 = vunpack.c.l.b16 %v7084
  %v8406 = vunpack.c.h.b16 %v7084
  %v8407 = vunpack.c.l.b16 %v7085
  %v8408 = vunpack.c.h.b16 %v7085
  %v8409 = vunpack.c.l.b16 %v7086
  %v8410 = vunpack.c.h.b16 %v7086
  %v8411 = vunpack.c.l.b16 %v7087
  %v8412 = vunpack.c.h.b16 %v7087
  %v8413 = vunpack.c.l.b16 %v7088
  %v8414 = vunpack.c.h.b16 %v7088
  %v8415 = vunpack.c.l.b16 %v7089
  %v8416 = vunpack.c.h.b16 %v7089
  %v8417 = vunpack.c.l.b16 %v7090
  %v8418 = vunpack.c.h.b16 %v7090
  %v8419 = vunpack.c.l.b16 %v7091
  %v8420 = vunpack.c.h.b16 %v7091
  %v8421 = vunpack.c.l.b16 %v7092
  %v8422 = vunpack.c.h.b16 %v7092
  %v8423 = vunpack.c.l.b16 %v7093
  %v8424 = vunpack.c.h.b16 %v7093
  %v8425 = vunpack.c.l.b16 %v7094
  %v8426 = vunpack.c.h.b16 %v7094
  %v8427 = vunpack.c.l.b16 %v7095
  %v8428 = vunpack.c.h.b16 %v7095
  %v8429 = vunpack.c.l.b16 %v7096
  %v8430 = vunpack.c.h.b16 %v7096
  %v8431 = vunpack.c.l.b16 %v7097
  %v8432 = vunpack.c.h.b16 %v7097
  %v8433 = vunpack.c.l.b16 %v7098
  %v8434 = vunpack.c.h.b16 %v7098
  %v8435 = vunpack.c.l.b16 %v7099
  %v8436 = vunpack.c.h.b16 %v7099
  %v8437 = vunpack.c.l.b16 %v7100
  %v8438 = vunpack.c.h.b16 %v7100
  %v8439 = vunpack.c.l.b16 %v7101
  %v8440 = vunpack.c.h.b16 %v7101
  %v8441 = vunpack.c.l.b16 %v7102
  %v8442 = vunpack.c.h.b16 %v7102
  %v8443 = vunpack.c.l.b16 %v7103
  %v8444 = vunpack.c.h.b16 %v7103
  %v8445 = vunpack.c.l.b16 %v7104
  %v8446 = vunpack.c.h.b16 %v7104
  %v8447 = vunpack.c.l.b16 %v7105
  %v8448 = vunpack.c.h.b16 %v7105
  %v8449 = vunpack.c.l.b16 %v7106
  %v8450 = vunpack.c.h.b16 %v7106
  %v8451 = vunpack.c.l.b16 %v7107
  %v8452 = vunpack.c.h.b16 %v7107
  %v8453 = vunpack.c.l.b16 %v7108
  %v8454 = vunpack.c.h.b16 %v7108
  %v8455 = vunpack.c.l.b16 %v7109
  %v8456 = vunpack.c.h.b16 %v7109
  %v8457 = vunpack.c.l.b16 %v7110
  %v8458 = vunpack.c.h.b16 %v7110
  %v8459 = vunpack.c.l.b16 %v7111
  %v8460 = vunpack.c.h.b16 %v7111
  %v8461 = vunpack.c.l.b16 %v7112
  %v8462 = vunpack.c.h.b16 %v7112
  %v8463 = vunpack.c.l.b16 %v7113
  %v8464 = vunpack.c.h.b16 %v7113
  %v8465 = vunpack.c.l.b16 %v7114
  %v8466 = vunpack.c.h.b16 %v7114
  %v8467 = vunpack.c.l.b16 %v7115
  %v8468 = vunpack.c.h.b16 %v7115
  %v8469 = vunpack.c.l.b16 %v7116
  %v8470 = vunpack.c.h.b16 %v7116
  %v8471 = vunpack.c.l.b16 %v7117
  %v8472 = vunpack.c.h.b16 %v7117
  %v8473 = vunpack.c.l.b16 %v7118
  %v8474 = vunpack.c.h.b16 %v7118
  %v8475 = vunpack.c.l.b16 %v7119
  %v8476 = vunpack.c.h.b16 %v7119
  %v8477 = vunpack.c.l.b16 %v7120
  %v8478 = vunpack.c.h.b16 %v7120
  %v8479 = vunpack.c.l.b16 %v7121
  %v8480 = vunpack.c.h.b16 %v7121
  %v8481 = vunpack.c.l.b16 %v7122
  %v8482 = vunpack.c.h.b16 %v7122
  %v8483 = vunpack.c.l.b16 %v7123
  %v8484 = vunpack.c.h.b16 %v7123
  %v8485 = vunpack.c.l.b16 %v7124
  %v8486 = vunpack.c.h.b16 %v7124
  %v8487 = vunpack.c.l.b16 %v7125
  %v8488 = vunpack.c.h.b16 %v7125
  %v8489 = vunpack.c.l.b16 %v7126
  %v8490 = vunpack.c.h.b16 %v7126
  %v8491 = vunpack.c.l.b16 %v7127
  %v8492 = vunpack.c.h.b16 %v7127
  %v8493 = vunpack.c.l.b16 %v7128
  %v8494 = vunpack.c.h.b16 %v7128
  %v8495 = vunpack.c.l.b16 %v7129
  %v8496 = vunpack.c.h.b16 %v7129
  %v8497 = vunpack.c.l.b16 %v7130
  %v8498 = vunpack.c.h.b16 %v7130
  %v8499 = vunpack.c.l.b16 %v7131
  %v8500 = vunpack.c.h.b16 %v7131
  %v8501 = vunpack.c.l.b16 %v7132
  %v8502 = vunpack.c.h.b16 %v7132
  %v8503 = vunpack.c.l.b16 %v7133
  %v8504 = vunpack.c.h.b16 %v7133
  %v8505 = vunpack.c.l.b16 %v7134
  %v8506 = vunpack.c.h.b16 %v7134
  %v8507 = vunpack.c.l.b16 %v7135
  %v8508 = vunpack.c.h.b16 %v7135
  %v8509 = vunpack.c.l.b16 %v7136
  %v8510 = vunpack.c.h.b16 %v7136
  %v8511 = vunpack.c.l.b16 %v7137
  %v8512 = vunpack.c.h.b16 %v7137
  %v8513 = vunpack.c.l.b16 %v7138
  %v8514 = vunpack.c.h.b16 %v7138
  %v8515 = vunpack.c.l.b16 %v7139
  %v8516 = vunpack.c.h.b16 %v7139
  %v8517 = vunpack.c.l.b16 %v7140
  %v8518 = vunpack.c.h.b16 %v7140
  %v8519 = vunpack.c.l.b16 %v7141
  %v8520 = vunpack.c.h.b16 %v7141
  %v8521 = vunpack.c.l.b16 %v7142
  %v8522 = vunpack.c.h.b16 %v7142
  %v8523 = vunpack.c.l.b16 %v7143
  %v8524 = vunpack.c.h.b16 %v7143
  %v8525 = vunpack.c.l.b16 %v7144
  %v8526 = vunpack.c.h.b16 %v7144
  %v8527 = vunpack.c.l.b16 %v7145
  %v8528 = vunpack.c.h.b16 %v7145
  %v8529 = vunpack.c.l.b16 %v7146
  %v8530 = vunpack.c.h.b16 %v7146
  %v8531 = vunpack.c.l.b16 %v7147
  %v8532 = vunpack.c.h.b16 %v7147
  %v8533 = vunpack.c.l.b16 %v7148
  %v8534 = vunpack.c.h.b16 %v7148
  %v8535 = vunpack.c.l.b16 %v7149
  %v8536 = vunpack.c.h.b16 %v7149
  %v8537 = vunpack.c.l.b16 %v7150
  %v8538 = vunpack.c.h.b16 %v7150
  %v8539 = vunpack.c.l.b16 %v7151
  %v8540 = vunpack.c.h.b16 %v7151
  %v8541 = vunpack.c.l.b16 %v7152
  %v8542 = vunpack.c.h.b16 %v7152
  %v8543 = vunpack.c.l.b16 %v7153
  %v8544 = vunpack.c.h.b16 %v7153
  %v8545 = vunpack.c.l.b16 %v7154
  %v8546 = vunpack.c.h.b16 %v7154
  %v8547 = vunpack.c.l.b16 %v7155
  %v8548 = vunpack.c.h.b16 %v7155
  %v8549 = vunpack.c.l.b16 %v7156
  %v8550 = vunpack.c.h.b16 %v7156
  %v8551 = vunpack.c.l.b16 %v7157
  %v8552 = vunpack.c.h.b16 %v7157
  %v8553 = vunpack.c.l.b16 %v7158
  %v8554 = vunpack.c.h.b16 %v7158
  %v8555 = vunpack.c.l.b16 %v7159
  %v8556 = vunpack.c.h.b16 %v7159
  %v8557 = vunpack.c.l.b16 %v7160
  %v8558 = vunpack.c.h.b16 %v7160
  %v8559 = vunpack.c.l.b16 %v7161
  %v8560 = vunpack.c.h.b16 %v7161
  %v8561 = vunpack.c.l.b16 %v7162
  %v8562 = vunpack.c.h.b16 %v7162
  %v8563 = vunpack.c.l.b16 %v7163
  %v8564 = vunpack.c.h.b16 %v7163
  %v8565 = vunpack.c.l.b16 %v7164
  %v8566 = vunpack.c.h.b16 %v7164
  %v8567 = vunpack.c.l.b16 %v7165
  %v8568 = vunpack.c.h.b16 %v7165
  %v8569 = vunpack.c.l.b16 %v7166
  %v8570 = vunpack.c.h.b16 %v7166
  %v8571 = vunpack.c.l.b16 %v7167
  %v8572 = vunpack.c.h.b16 %v7167
  %v8573 = vunpack.c.l.b16 %v7168
  %v8574 = vunpack.c.h.b16 %v7168
  %v8575 = vunpack.c.l.b16 %v7169
  %v8576 = vunpack.c.h.b16 %v7169
  %v8577 = vunpack.c.l.b16 %v7170
  %v8578 = vunpack.c.h.b16 %v7170
  %v8579 = vunpack.c.l.b16 %v7171
  %v8580 = vunpack.c.h.b16 %v7171
  %v8581 = vunpack.c.l.b16 %v7172
  %v8582 = vunpack.c.h.b16 %v7172
  %v8583 = vunpack.c.l.b16 %v7173
  %v8584 = vunpack.c.h.b16 %v7173
  %v8585 = vunpack.c.l.b16 %v7174
  %v8586 = vunpack.c.h.b16 %v7174
  %v8587 = vunpack.c.l.b16 %v7175
  %v8588 = vunpack.c.h.b16 %v7175
  %v8589 = vunpack.c.l.b16 %v7176
  %v8590 = vunpack.c.h.b16 %v7176
  %v8591 = vunpack.c.l.b16 %v7177
  %v8592 = vunpack.c.h.b16 %v7177
  %v8593 = vunpack.c.l.b16 %v7178
  %v8594 = vunpack.c.h.b16 %v7178
  %v8595 = vunpack.c.l.b16 %v7179
  %v8596 = vunpack.c.h.b16 %v7179
  %v8597 = vunpack.c.l.b16 %v7180
  %v8598 = vunpack.c.h.b16 %v7180
  %v8599 = vunpack.c.l.b16 %v7181
  %v8600 = vunpack.c.h.b16 %v7181
  %v8601 = vunpack.c.l.b16 %v7182
  %v8602 = vunpack.c.h.b16 %v7182
  %v8603 = vunpack.c.l.b16 %v7183
  %v8604 = vunpack.c.h.b16 %v7183
  %v8605 = vunpack.c.l.b16 %v7184
  %v8606 = vunpack.c.h.b16 %v7184
  %v8607 = vunpack.c.l.b16 %v7185
  %v8608 = vunpack.c.h.b16 %v7185
  %v8609 = vunpack.c.l.b16 %v7186
  %v8610 = vunpack.c.h.b16 %v7186
  %v8611 = vunpack.c.l.b16 %v7187
  %v8612 = vunpack.c.h.b16 %v7187
  %v8613 = vunpack.c.l.b16 %v7188
  %v8614 = vunpack.c.h.b16 %v7188
  %v8615 = vpack.c.b16 %v8363, %v8359
  %v8616 = vpack.c.b16 %v8364, %v8360
  %v8617 = vpack.c.b16 %v8365, %v8361
  %v8618 = vpack.c.b16 %v8366, %v8362
  %v8619 = vpack.c.b16 %v8371, %v8367
  %v8620 = vpack.c.b16 %v8372, %v8368
  %v8621 = vpack.c.b16 %v8373, %v8369
  %v8622 = vpack.c.b16 %v8374, %v8370
  %v8623 = vpack.c.b16 %v8379, %v8375
  %v8624 = vpack.c.b16 %v8380, %v8376
  %v8625 = vpack.c.b16 %v8381, %v8377
  %v8626 = vpack.c.b16 %v8382, %v8378
  %v8627 = vpack.c.b16 %v8387, %v8383
  %v8628 = vpack.c.b16 %v8388, %v8384
  %v8629 = vpack.c.b16 %v8389, %v8385
  %v8630 = vpack.c.b16 %v8390, %v8386
  %v8631 = vpack.c.b16 %v8395, %v8391
  %v8632 = vpack.c.b16 %v8396, %v8392
  %v8633 = vpack.c.b16 %v8397, %v8393
  %v8634 = vpack.c.b16 %v8398, %v8394
  %v8635 = vpack.c.b16 %v8403, %v8399
  %v8636 = vpack.c.b16 %v8404, %v8400
  %v8637 = vpack.c.b16 %v8405, %v8401
  %v8638 = vpack.c.b16 %v8406, %v8402
  %v8639 = vpack.c.b16 %v8411, %v8407
  %v8640 = vpack.c.b16 %v8412, %v8408
  %v8641 = vpack.c.b16 %v8413, %v8409
  %v8642 = vpack.c.b16 %v8414, %v8410
  %v8643 = vpack.c.b16 %v8419, %v8415
  %v8644 = vpack.c.b16 %v8420, %v8416
  %v8645 = vpack.c.b16 %v8421, %v8417
  %v8646 = vpack.c.b16 %v8422, %v8418
  %v8647 = vpack.c.b16 %v8427, %v8423
  %v8648 = vpack.c.b16 %v8428, %v8424
  %v8649 = vpack.c.b16 %v8429, %v8425
  %v8650 = vpack.c.b16 %v8430, %v8426
  %v8651 = vpack.c.b16 %v8435, %v8431
  %v8652 = vpack.c.b16 %v8436, %v8432
  %v8653 = vpack.c.b16 %v8437, %v8433
  %v8654 = vpack.c.b16 %v8438, %v8434
  %v8655 = vpack.c.b16 %v8443, %v8439
  %v8656 = vpack.c.b16 %v8444, %v8440
  %v8657 = vpack.c.b16 %v8445, %v8441
  %v8658 = vpack.c.b16 %v8446, %v8442
  %v8659 = vpack.c.b16 %v8451, %v8447
  %v8660 = vpack.c.b16 %v8452, %v8448
  %v8661 = vpack.c.b16 %v8453, %v8449
  %v8662 = vpack.c.b16 %v8454, %v8450
  %v8663 = vpack.c.b16 %v8459, %v8455
  %v8664 = vpack.c.b16 %v8460, %v8456
  %v8665 = vpack.c.b16 %v8461, %v8457
  %v8666 = vpack.c.b16 %v8462, %v8458
  %v8667 = vpack.c.b16 %v8467, %v8463
  %v8668 = vpack.c.b16 %v8468, %v8464
  %v8669 = vpack.c.b16 %v8469, %v8465
  %v8670 = vpack.c.b16 %v8470, %v8466
  %v8671 = vpack.c.b16 %v8475, %v8471
  %v8672 = vpack.c.b16 %v8476, %v8472
  %v8673 = vpack.c.b16 %v8477, %v8473
  %v8674 = vpack.c.b16 %v8478, %v8474
  %v8675 = vpack.c.b16 %v8483, %v8479
  %v8676 = vpack.c.b16 %v8484, %v8480
  %v8677 = vpack.c.b16 %v8485, %v8481
  %v8678 = vpack.c.b16 %v8486, %v8482
  %v8679 = vpack.c.b16 %v8491, %v8487
  %v8680 = vpack.c.b16 %v8492, %v8488
  %v8681 = vpack.c.b16 %v8493, %v8489
  %v8682 = vpack.c.b16 %v8494, %v8490
  %v8683 = vpack.c.b16 %v8499, %v8495
  %v8684 = vpack.c.b16 %v8500, %v8496
  %v8685 = vpack.c.b16 %v8501, %v8497
  %v8686 = vpack.c.b16 %v8502, %v8498
  %v8687 = vpack.c.b16 %v8507, %v8503
  %v8688 = vpack.c.b16 %v8508, %v8504
  %v8689 = vpack.c.b16 %v8509, %v8505
  %v8690 = vpack.c.b16 %v8510, %v8506
  %v8691 = vpack.c.b16 %v8515, %v8511
  %v8692 = vpack.c.b16 %v8516, %v8512
  %v8693 = vpack.c.b16 %v8517, %v8513
  %v8694 = vpack.c.b16 %v8518, %v8514
  %v8695 = vpack.c.b16 %v8523, %v8519
  %v8696 = vpack.c.b16 %v8524, %v8520
  %v8697 = vpack.c.b16 %v8525, %v8521
  %v8698 = vpack.c.b16 %v8526, %v8522
  %v8699 = vpack.c.b16 %v8531, %v8527
  %v8700 = vpack.c.b16 %v8532, %v8528
  %v8701 = vpack.c.b16 %v8533, %v8529
  %v8702 = vpack.c.b16 %v8534, %v8530
  %v8703 = vpack.c.b16 %v8539, %v8535
  %v8704 = vpack.c.b16 %v8540, %v8536
  %v8705 = vpack.c.b16 %v8541, %v8537
  %v8706 = vpack.c.b16 %v8542, %v8538
  %v8707 = vpack.c.b16 %v8547, %v8543
  %v8708 = vpack.c.b16 %v8548, %v8544
  %v8709 = vpack.c.b16 %v8549, %v8545
  %v8710 = vpack.c.b16 %v8550, %v8546
  %v8711 = vpack.c.b16 %v8555, %v8551
  %v8712 = vpack.c.b16 %v8556, %v8552
  %v8713 = vpack.c.b16 %v8557, %v8553
  %v8714 = vpack.c.b16 %v8558, %v8554
  %v8715 = vpack.c.b16 %v8563, %v8559
  %v8716 = vpack.c.b16 %v8564, %v8560
  %v8717 = vpack.c.b16 %v8565, %v8561
  %v8718 = vpack.c.b16 %v8566, %v8562
  %v8719 = vpack.c.b16 %v8571, %v8567
  %v8720 = vpack.c.b16 %v8572, %v8568
  %v8721 = vpack.c.b16 %v8573, %v8569
  %v8722 = vpack.c.b16 %v8574, %v8570
  %v8723 = vpack.c.b16 %v8579, %v8575
  %v8724 = vpack.c.b16 %v8580, %v8576
  %v8725 = vpack.c.b16 %v8581, %v8577
  %v8726 = vpack.c.b16 %v8582, %v8578
  %v8727 = vpack.c.b16 %v8587, %v8583
  %v8728 = vpack.c.b16 %v8588, %v8584
  %v8729 = vpack.c.b16 %v8589, %v8585
  %v8730 = vpack.c.b16 %v8590, %v8586
  %v8731 = vpack.c.b16 %v8595, %v8591
  %v8732 = vpack.c.b16 %v8596, %v8592
  %v8733 = vpack.c.b16 %v8597, %v8593
  %v8734 = vpack.c.b16 %v8598, %v8594
  %v8735 = vpack.c.b16 %v8603, %v8599
  %v8736 = vpack.c.b16 %v8604, %v8600
  %v8737 = vpack.c.b16 %v8605, %v8601
  %v8738 = vpack.c.b16 %v8606, %v8602
  %v8739 = vpack.c.b16 %v8611, %v8607
  %v8740 = vpack.c.b16 %v8612, %v8608
  %v8741 = vpack.c.b16 %v8613, %v8609
  %v8742 = vpack.c.b16 %v8614, %v8610
  %8871 = vmatprep.subr.bf16.mxu0 %v8616
  %8872 = vmatpush1.bf16.msra.mxu0 %v8615
  %8873 = vmatprep.subr.bf16.mxu0 %v8620
  %8874 = vmatpush1.bf16.msra.mxu0 %v8619
  %8875 = vmatprep.subr.bf16.mxu0 %v8624
  %8876 = vmatpush1.bf16.msra.mxu0 %v8623
  %8877 = vmatprep.subr.bf16.mxu0 %v8628
  %8878 = vmatpush1.bf16.msra.mxu0 %v8627
  %8879 = vmatprep.subr.bf16.mxu0 %v8632
  %8880 = vmatpush1.bf16.msra.mxu0 %v8631
  %8881 = vmatprep.subr.bf16.mxu0 %v8636
  %8882 = vmatpush1.bf16.msra.mxu0 %v8635
  %8883 = vmatprep.subr.bf16.mxu0 %v8640
  %8884 = vmatpush1.bf16.msra.mxu0 %v8639
  %8885 = vmatprep.subr.bf16.mxu0 %v8644
  %8886 = vmatpush1.bf16.msra.mxu0 %v8643
  %8887 = vmatprep.subr.bf16.mxu0 %v8648
  %8888 = vmatpush1.bf16.msra.mxu0 %v8647
  %8889 = vmatprep.subr.bf16.mxu0 %v8652
  %8890 = vmatpush1.bf16.msra.mxu0 %v8651
  %8891 = vmatprep.subr.bf16.mxu0 %v8656
  %8892 = vmatpush1.bf16.msra.mxu0 %v8655
  %8893 = vmatprep.subr.bf16.mxu0 %v8660
  %8894 = vmatpush1.bf16.msra.mxu0 %v8659
  %8895 = vmatprep.subr.bf16.mxu0 %v8664
  %8896 = vmatpush1.bf16.msra.mxu0 %v8663
  %8897 = vmatprep.subr.bf16.mxu0 %v8668
  %8898 = vmatpush1.bf16.msra.mxu0 %v8667
  %8899 = vmatprep.subr.bf16.mxu0 %v8672
  %8900 = vmatpush1.bf16.msra.mxu0 %v8671
  %8901 = vmatprep.subr.bf16.mxu0 %v8676
  %8902 = vmatpush1.bf16.msra.mxu0 %v8675
  %8903 = vmatprep.mubr.bf16.mxu0 %v7058
  %8904 = vmatmul.mubr.bf16.gmra.mrb[0].mxu0 %v7057
  %v8905 = vpop.f32.mrb[0].mxu0
  %v8906 = vadd.f32 %v8137, %v8905
  %v8907 = vpop.f32.mrb[0].mxu0
  %v8908 = vadd.f32 %v8139, %v8907
  %v8909 = vpop.f32.mrb[0].mxu0
  %v8910 = vadd.f32 %v8141, %v8909
  %v8911 = vpop.f32.mrb[0].mxu0
  %v8912 = vadd.f32 %v8143, %v8911
  %8913 = vdwg.mxu0
  %8914 = vmatprep.subr.bf16.mxu0 %v8680
  %8915 = vmatpush1.bf16.msra.mxu0 %v8679
  %8916 = vmatprep.subr.bf16.mxu0 %v8684
  %8917 = vmatpush1.bf16.msra.mxu0 %v8683
  %8918 = vmatprep.subr.bf16.mxu0 %v8688
  %8919 = vmatpush1.bf16.msra.mxu0 %v8687
  %8920 = vmatprep.subr.bf16.mxu0 %v8692
  %8921 = vmatpush1.bf16.msra.mxu0 %v8691
  %8922 = vmatprep.subr.bf16.mxu0 %v8696
  %8923 = vmatpush1.bf16.msra.mxu0 %v8695
  %8924 = vmatprep.subr.bf16.mxu0 %v8700
  %8925 = vmatpush1.bf16.msra.mxu0 %v8699
  %8926 = vmatprep.subr.bf16.mxu0 %v8704
  %8927 = vmatpush1.bf16.msra.mxu0 %v8703
  %8928 = vmatprep.subr.bf16.mxu0 %v8708
  %8929 = vmatpush1.bf16.msra.mxu0 %v8707
  %8930 = vmatprep.subr.bf16.mxu0 %v8712
  %8931 = vmatpush1.bf16.msra.mxu0 %v8711
  %8932 = vmatprep.subr.bf16.mxu0 %v8716
  %8933 = vmatpush1.bf16.msra.mxu0 %v8715
  %8934 = vmatprep.subr.bf16.mxu0 %v8720
  %8935 = vmatpush1.bf16.msra.mxu0 %v8719
  %8936 = vmatprep.subr.bf16.mxu0 %v8724
  %8937 = vmatpush1.bf16.msra.mxu0 %v8723
  %8938 = vmatprep.subr.bf16.mxu0 %v8728
  %8939 = vmatpush1.bf16.msra.mxu0 %v8727
  %8940 = vmatprep.subr.bf16.mxu0 %v8732
  %8941 = vmatpush1.bf16.msra.mxu0 %v8731
  %8942 = vmatprep.subr.bf16.mxu0 %v8736
  %8943 = vmatpush1.bf16.msra.mxu0 %v8735
  %8944 = vmatprep.subr.bf16.mxu0 %v8740
  %8945 = vmatpush1.bf16.msra.mxu0 %v8739
  %8946 = vmatprep.mubr.bf16.mxu0 %v7060
  %8947 = vmatmul.mubr.bf16.gmra.mrb[0].mxu0 %v7059
  %v8948 = vpop.f32.mrb[0].mxu0
  %v8949 = vadd.f32 %v8906, %v8948
  %v8950 = vpop.f32.mrb[0].mxu0
  %v8951 = vadd.f32 %v8908, %v8950
  %v8952 = vpop.f32.mrb[0].mxu0
  %v8953 = vadd.f32 %v8910, %v8952
  %v8954 = vpop.f32.mrb[0].mxu0
  %v8955 = vadd.f32 %v8912, %v8954
  %8956 = vdwg.mxu0
  %8957 = vmatprep.subr.bf16.mxu0 %v8618
  %8958 = vmatpush1.bf16.msra.mxu0 %v8617
  %8959 = vmatprep.subr.bf16.mxu0 %v8622
  %8960 = vmatpush1.bf16.msra.mxu0 %v8621
  %8961 = vmatprep.subr.bf16.mxu0 %v8626
  %8962 = vmatpush1.bf16.msra.mxu0 %v8625
  %8963 = vmatprep.subr.bf16.mxu0 %v8630
  %8964 = vmatpush1.bf16.msra.mxu0 %v8629
  %8965 = vmatprep.subr.bf16.mxu0 %v8634
  %8966 = vmatpush1.bf16.msra.mxu0 %v8633
  %8967 = vmatprep.subr.bf16.mxu0 %v8638
  %8968 = vmatpush1.bf16.msra.mxu0 %v8637
  %8969 = vmatprep.subr.bf16.mxu0 %v8642
  %8970 = vmatpush1.bf16.msra.mxu0 %v8641
  %8971 = vmatprep.subr.bf16.mxu0 %v8646
  %8972 = vmatpush1.bf16.msra.mxu0 %v8645
  %8973 = vmatprep.subr.bf16.mxu0 %v8650
  %8974 = vmatpush1.bf16.msra.mxu0 %v8649
  %8975 = vmatprep.subr.bf16.mxu0 %v8654
  %8976 = vmatpush1.bf16.msra.mxu0 %v8653
  %8977 = vmatprep.subr.bf16.mxu0 %v8658
  %8978 = vmatpush1.bf16.msra.mxu0 %v8657
  %8979 = vmatprep.subr.bf16.mxu0 %v8662
  %8980 = vmatpush1.bf16.msra.mxu0 %v8661
  %8981 = vmatprep.subr.bf16.mxu0 %v8666
  %8982 = vmatpush1.bf16.msra.mxu0 %v8665
  %8983 = vmatprep.subr.bf16.mxu0 %v8670
  %8984 = vmatpush1.bf16.msra.mxu0 %v8669
  %8985 = vmatprep.subr.bf16.mxu0 %v8674
  %8986 = vmatpush1.bf16.msra.mxu0 %v8673
  %8987 = vmatprep.subr.bf16.mxu0 %v8678
  %8988 = vmatpush1.bf16.msra.mxu0 %v8677
  %8989 = vmatprep.mubr.bf16.mxu0 %v7058
  %8990 = vmatmul.mubr.bf16.gmra.mrb[0].mxu0 %v7057
  %v8991 = vpop.f32.mrb[0].mxu0
  %v8992 = vadd.f32 %v8223, %v8991
  %v8993 = vpop.f32.mrb[0].mxu0
  %v8994 = vadd.f32 %v8225, %v8993
  %v8995 = vpop.f32.mrb[0].mxu0
  %v8996 = vadd.f32 %v8227, %v8995
  %v8997 = vpop.f32.mrb[0].mxu0
  %v8998 = vadd.f32 %v8229, %v8997
  %8999 = vdwg.mxu0
  %9000 = vmatprep.subr.bf16.mxu0 %v8682
  %9001 = vmatpush1.bf16.msra.mxu0 %v8681
  %9002 = vmatprep.subr.bf16.mxu0 %v8686
  %9003 = vmatpush1.bf16.msra.mxu0 %v8685
  %9004 = vmatprep.subr.bf16.mxu0 %v8690
  %9005 = vmatpush1.bf16.msra.mxu0 %v8689
  %9006 = vmatprep.subr.bf16.mxu0 %v8694
  %9007 = vmatpush1.bf16.msra.mxu0 %v8693
  %9008 = vmatprep.subr.bf16.mxu0 %v8698
  %9009 = vmatpush1.bf16.msra.mxu0 %v8697
  %9010 = vmatprep.subr.bf16.mxu0 %v8702
  %9011 = vmatpush1.bf16.msra.mxu0 %v8701
  %9012 = vmatprep.subr.bf16.mxu0 %v8706
  %9013 = vmatpush1.bf16.msra.mxu0 %v8705
  %9014 = vmatprep.subr.bf16.mxu0 %v8710
  %9015 = vmatpush1.bf16.msra.mxu0 %v8709
  %9016 = vmatprep.subr.bf16.mxu0 %v8714
  %9017 = vmatpush1.bf16.msra.mxu0 %v8713
  %9018 = vmatprep.subr.bf16.mxu0 %v8718
  %9019 = vmatpush1.bf16.msra.mxu0 %v8717
  %9020 = vmatprep.subr.bf16.mxu0 %v8722
  %9021 = vmatpush1.bf16.msra.mxu0 %v8721
  %9022 = vmatprep.subr.bf16.mxu0 %v8726
  %9023 = vmatpush1.bf16.msra.mxu0 %v8725
  %9024 = vmatprep.subr.bf16.mxu0 %v8730
  %9025 = vmatpush1.bf16.msra.mxu0 %v8729
  %9026 = vmatprep.subr.bf16.mxu0 %v8734
  %9027 = vmatpush1.bf16.msra.mxu0 %v8733
  %9028 = vmatprep.subr.bf16.mxu0 %v8738
  %9029 = vmatpush1.bf16.msra.mxu0 %v8737
  %9030 = vmatprep.subr.bf16.mxu0 %v8742
  %9031 = vmatpush1.bf16.msra.mxu0 %v8741
  %9032 = vmatprep.mubr.bf16.mxu0 %v7060
  %9033 = vmatmul.mubr.bf16.gmra.mrb[0].mxu0 %v7059
  %v9034 = vpop.f32.mrb[0].mxu0
  %v9035 = vadd.f32 %v8992, %v9034
  %v9036 = vpop.f32.mrb[0].mxu0
  %v9037 = vadd.f32 %v8994, %v9036
  %v9038 = vpop.f32.mrb[0].mxu0
  %v9039 = vadd.f32 %v8996, %v9038
  %v9040 = vpop.f32.mrb[0].mxu0
  %v9041 = vadd.f32 %v8998, %v9040
  %9042 = vdwg.mxu0
  %s9043 = scalar_lea.vmem %s7, 16
  %v9044 = vld [vmem:[%s9043] sm:$0xf]
  %v9045 = vld [vmem:[%s9043 + $0x4] sm:$0xf]
  %v9048 = vunpack.c.l.b16 %v9044
  %v9049 = vunpack.c.l.b16 %v9045
  %v9050 = vpack.c.b16 %v9049, %v9048
  %v9052 = vsel %vm6967, %v9050, 0
  %9054 = vmatprep.subr.bf16.mxu0 %v6953
  %9055 = vmatpush1.bf16.msra.mxu0 %v6952
  %9056 = vmatprep.subr.bf16.mxu0 %v6957
  %9057 = vmatpush1.bf16.msra.mxu0 %v6956
  %9058 = vmatprep.subr.bf16.mxu0 0
  %9059 = vmatpush1.bf16.msra.mxu0 0
  %9060 = vmatprep.subr.bf16.mxu0 0
  %9061 = vmatpush1.bf16.msra.mxu0 0
  %9062 = vmatprep.subr.bf16.mxu0 0
  %9063 = vmatpush1.bf16.msra.mxu0 0
  %9064 = vmatprep.subr.bf16.mxu0 0
  %9065 = vmatpush1.bf16.msra.mxu0 0
  %9066 = vmatprep.subr.bf16.mxu0 0
  %9067 = vmatpush1.bf16.msra.mxu0 0
  %9068 = vmatprep.subr.bf16.mxu0 0
  %9069 = vmatpush1.bf16.msra.mxu0 0
  %9070 = vmatprep.subr.bf16.mxu0 0
  %9071 = vmatpush1.bf16.msra.mxu0 0
  %9072 = vmatprep.subr.bf16.mxu0 0
  %9073 = vmatpush1.bf16.msra.mxu0 0
  %9074 = vmatprep.subr.bf16.mxu0 0
  %9075 = vmatpush1.bf16.msra.mxu0 0
  %9076 = vmatprep.subr.bf16.mxu0 0
  %9077 = vmatpush1.bf16.msra.mxu0 0
  %9078 = vmatprep.subr.bf16.mxu0 0
  %9079 = vmatpush1.bf16.msra.mxu0 0
  %9080 = vmatprep.subr.bf16.mxu0 0
  %9081 = vmatpush1.bf16.msra.mxu0 0
  %9082 = vmatprep.subr.bf16.mxu0 0
  %9083 = vmatpush1.bf16.msra.mxu0 0
  %9084 = vmatprep.subr.bf16.mxu0 0
  %9085 = vmatpush1.bf16.msra.mxu0 0
  %9086 = vmatprep.mubr.bf16.mxu0 0
  %9087 = vmatmul.mubr.bf16.gmra.mrb[0].mxu0 %v9052
  %v9088 = vpop.f32.mrb[0].mxu0
  %v9089 = vadd.f32 0.0, %v9088
  %v9090 = vpop.f32.mrb[0].mxu0
  %v9091 = vadd.f32 0.0, %v9090
  %v9092 = vpop.f32.mrb[0].mxu0
  %v9093 = vadd.f32 0.0, %v9092
  %v9094 = vpop.f32.mrb[0].mxu0
  %v9095 = vadd.f32 0.0, %v9094
  %9096 = vdwg.mxu0
  %9097 = vmatprep.subr.bf16.mxu0 %v6955
  %9098 = vmatpush1.bf16.msra.mxu0 %v6954
  %9099 = vmatprep.subr.bf16.mxu0 %v6959
  %9100 = vmatpush1.bf16.msra.mxu0 %v6958
  %9101 = vmatprep.subr.bf16.mxu0 0
  %9102 = vmatpush1.bf16.msra.mxu0 0
  %9103 = vmatprep.subr.bf16.mxu0 0
  %9104 = vmatpush1.bf16.msra.mxu0 0
  %9105 = vmatprep.subr.bf16.mxu0 0
  %9106 = vmatpush1.bf16.msra.mxu0 0
  %9107 = vmatprep.subr.bf16.mxu0 0
  %9108 = vmatpush1.bf16.msra.mxu0 0
  %9109 = vmatprep.subr.bf16.mxu0 0
  %9110 = vmatpush1.bf16.msra.mxu0 0
  %9111 = vmatprep.subr.bf16.mxu0 0
  %9112 = vmatpush1.bf16.msra.mxu0 0
  %9113 = vmatprep.subr.bf16.mxu0 0
  %9114 = vmatpush1.bf16.msra.mxu0 0
  %9115 = vmatprep.subr.bf16.mxu0 0
  %9116 = vmatpush1.bf16.msra.mxu0 0
  %9117 = vmatprep.subr.bf16.mxu0 0
  %9118 = vmatpush1.bf16.msra.mxu0 0
  %9119 = vmatprep.subr.bf16.mxu0 0
  %9120 = vmatpush1.bf16.msra.mxu0 0
  %9121 = vmatprep.subr.bf16.mxu0 0
  %9122 = vmatpush1.bf16.msra.mxu0 0
  %9123 = vmatprep.subr.bf16.mxu0 0
  %9124 = vmatpush1.bf16.msra.mxu0 0
  %9125 = vmatprep.subr.bf16.mxu0 0
  %9126 = vmatpush1.bf16.msra.mxu0 0
  %9127 = vmatprep.subr.bf16.mxu0 0
  %9128 = vmatpush1.bf16.msra.mxu0 0
  %9129 = vmatprep.mubr.bf16.mxu0 0
  %9130 = vmatmul.mubr.bf16.gmra.mrb[0].mxu0 %v9052
  %v9131 = vpop.f32.mrb[0].mxu0
  %v9132 = vadd.f32 0.0, %v9131
  %v9133 = vpop.f32.mrb[0].mxu0
  %v9134 = vadd.f32 0.0, %v9133
  %v9135 = vpop.f32.mrb[0].mxu0
  %v9136 = vadd.f32 0.0, %v9135
  %v9137 = vpop.f32.mrb[0].mxu0
  %v9138 = vadd.f32 0.0, %v9137
  %9139 = vdwg.mxu0
  %v9140 = vpack.c.bf16 %v9093, %v9089
  %v9141 = vpack.c.bf16 %v9095, %v9091
  %v9142 = vpack.c.bf16 %v9136, %v9132
  %v9143 = vpack.c.bf16 %v9138, %v9134
  %s9144 = scalar_lea.vmem %s8, 2048
  %v9145 = vld [vmem:[%s9144] sm:$0xff]
  %v9146 = vld [vmem:[%s9144 + $0x8] sm:$0xff]
  %v9147 = vld [vmem:[%s9144 + $0x10] sm:$0xff]
  %v9148 = vld [vmem:[%s9144 + $0x18] sm:$0xff]
  %v9149 = vld [vmem:[%s9144 + $0x20] sm:$0xff]
  %v9150 = vld [vmem:[%s9144 + $0x28] sm:$0xff]
  %v9151 = vld [vmem:[%s9144 + $0x30] sm:$0xff]
  %v9152 = vld [vmem:[%s9144 + $0x38] sm:$0xff]
  %v9153 = vld [vmem:[%s9144 + $0x40] sm:$0xff]
  %v9154 = vld [vmem:[%s9144 + $0x48] sm:$0xff]
  %v9155 = vld [vmem:[%s9144 + $0x50] sm:$0xff]
  %v9156 = vld [vmem:[%s9144 + $0x58] sm:$0xff]
  %v9157 = vld [vmem:[%s9144 + $0x60] sm:$0xff]
  %v9158 = vld [vmem:[%s9144 + $0x68] sm:$0xff]
  %v9159 = vld [vmem:[%s9144 + $0x70] sm:$0xff]
  %v9160 = vld [vmem:[%s9144 + $0x78] sm:$0xff]
  %v9161 = vld [vmem:[%s9144 + $0x80] sm:$0xff]
  %v9162 = vld [vmem:[%s9144 + $0x88] sm:$0xff]
  %v9163 = vld [vmem:[%s9144 + $0x90] sm:$0xff]
  %v9164 = vld [vmem:[%s9144 + $0x98] sm:$0xff]
  %v9165 = vld [vmem:[%s9144 + $0xa0] sm:$0xff]
  %v9166 = vld [vmem:[%s9144 + $0xa8] sm:$0xff]
  %v9167 = vld [vmem:[%s9144 + $0xb0] sm:$0xff]
  %v9168 = vld [vmem:[%s9144 + $0xb8] sm:$0xff]
  %v9169 = vld [vmem:[%s9144 + $0xc0] sm:$0xff]
  %v9170 = vld [vmem:[%s9144 + $0xc8] sm:$0xff]
  %v9171 = vld [vmem:[%s9144 + $0xd0] sm:$0xff]
  %v9172 = vld [vmem:[%s9144 + $0xd8] sm:$0xff]
  %v9173 = vld [vmem:[%s9144 + $0xe0] sm:$0xff]
  %v9174 = vld [vmem:[%s9144 + $0xe8] sm:$0xff]
  %v9175 = vld [vmem:[%s9144 + $0xf0] sm:$0xff]
  %v9176 = vld [vmem:[%s9144 + $0xf8] sm:$0xff]
  %v9177 = vld [vmem:[%s9144 + $0x100] sm:$0xff]
  %v9178 = vld [vmem:[%s9144 + $0x108] sm:$0xff]
  %v9179 = vld [vmem:[%s9144 + $0x110] sm:$0xff]
  %v9180 = vld [vmem:[%s9144 + $0x118] sm:$0xff]
  %v9181 = vld [vmem:[%s9144 + $0x120] sm:$0xff]
  %v9182 = vld [vmem:[%s9144 + $0x128] sm:$0xff]
  %v9183 = vld [vmem:[%s9144 + $0x130] sm:$0xff]
  %v9184 = vld [vmem:[%s9144 + $0x138] sm:$0xff]
  %v9185 = vld [vmem:[%s9144 + $0x140] sm:$0xff]
  %v9186 = vld [vmem:[%s9144 + $0x148] sm:$0xff]
  %v9187 = vld [vmem:[%s9144 + $0x150] sm:$0xff]
  %v9188 = vld [vmem:[%s9144 + $0x158] sm:$0xff]
  %v9189 = vld [vmem:[%s9144 + $0x160] sm:$0xff]
  %v9190 = vld [vmem:[%s9144 + $0x168] sm:$0xff]
  %v9191 = vld [vmem:[%s9144 + $0x170] sm:$0xff]
  %v9192 = vld [vmem:[%s9144 + $0x178] sm:$0xff]
  %v9193 = vld [vmem:[%s9144 + $0x180] sm:$0xff]
  %v9194 = vld [vmem:[%s9144 + $0x188] sm:$0xff]
  %v9195 = vld [vmem:[%s9144 + $0x190] sm:$0xff]
  %v9196 = vld [vmem:[%s9144 + $0x198] sm:$0xff]
  %v9197 = vld [vmem:[%s9144 + $0x1a0] sm:$0xff]
  %v9198 = vld [vmem:[%s9144 + $0x1a8] sm:$0xff]
  %v9199 = vld [vmem:[%s9144 + $0x1b0] sm:$0xff]
  %v9200 = vld [vmem:[%s9144 + $0x1b8] sm:$0xff]
  %v9201 = vld [vmem:[%s9144 + $0x1c0] sm:$0xff]
  %v9202 = vld [vmem:[%s9144 + $0x1c8] sm:$0xff]
  %v9203 = vld [vmem:[%s9144 + $0x1d0] sm:$0xff]
  %v9204 = vld [vmem:[%s9144 + $0x1d8] sm:$0xff]
  %v9205 = vld [vmem:[%s9144 + $0x1e0] sm:$0xff]
  %v9206 = vld [vmem:[%s9144 + $0x1e8] sm:$0xff]
  %v9207 = vld [vmem:[%s9144 + $0x1f0] sm:$0xff]
  %v9208 = vld [vmem:[%s9144 + $0x1f8] sm:$0xff]
  %v9209 = vld [vmem:[%s9144 + $0x200] sm:$0xff]
  %v9210 = vld [vmem:[%s9144 + $0x208] sm:$0xff]
  %v9211 = vld [vmem:[%s9144 + $0x210] sm:$0xff]
  %v9212 = vld [vmem:[%s9144 + $0x218] sm:$0xff]
  %v9213 = vld [vmem:[%s9144 + $0x220] sm:$0xff]
  %v9214 = vld [vmem:[%s9144 + $0x228] sm:$0xff]
  %v9215 = vld [vmem:[%s9144 + $0x230] sm:$0xff]
  %v9216 = vld [vmem:[%s9144 + $0x238] sm:$0xff]
  %v9217 = vld [vmem:[%s9144 + $0x240] sm:$0xff]
  %v9218 = vld [vmem:[%s9144 + $0x248] sm:$0xff]
  %v9219 = vld [vmem:[%s9144 + $0x250] sm:$0xff]
  %v9220 = vld [vmem:[%s9144 + $0x258] sm:$0xff]
  %v9221 = vld [vmem:[%s9144 + $0x260] sm:$0xff]
  %v9222 = vld [vmem:[%s9144 + $0x268] sm:$0xff]
  %v9223 = vld [vmem:[%s9144 + $0x270] sm:$0xff]
  %v9224 = vld [vmem:[%s9144 + $0x278] sm:$0xff]
  %v9225 = vld [vmem:[%s9144 + $0x280] sm:$0xff]
  %v9226 = vld [vmem:[%s9144 + $0x288] sm:$0xff]
  %v9227 = vld [vmem:[%s9144 + $0x290] sm:$0xff]
  %v9228 = vld [vmem:[%s9144 + $0x298] sm:$0xff]
  %v9229 = vld [vmem:[%s9144 + $0x2a0] sm:$0xff]
  %v9230 = vld [vmem:[%s9144 + $0x2a8] sm:$0xff]
  %v9231 = vld [vmem:[%s9144 + $0x2b0] sm:$0xff]
  %v9232 = vld [vmem:[%s9144 + $0x2b8] sm:$0xff]
  %v9233 = vld [vmem:[%s9144 + $0x2c0] sm:$0xff]
  %v9234 = vld [vmem:[%s9144 + $0x2c8] sm:$0xff]
  %v9235 = vld [vmem:[%s9144 + $0x2d0] sm:$0xff]
  %v9236 = vld [vmem:[%s9144 + $0x2d8] sm:$0xff]
  %v9237 = vld [vmem:[%s9144 + $0x2e0] sm:$0xff]
  %v9238 = vld [vmem:[%s9144 + $0x2e8] sm:$0xff]
  %v9239 = vld [vmem:[%s9144 + $0x2f0] sm:$0xff]
  %v9240 = vld [vmem:[%s9144 + $0x2f8] sm:$0xff]
  %v9241 = vld [vmem:[%s9144 + $0x300] sm:$0xff]
  %v9242 = vld [vmem:[%s9144 + $0x308] sm:$0xff]
  %v9243 = vld [vmem:[%s9144 + $0x310] sm:$0xff]
  %v9244 = vld [vmem:[%s9144 + $0x318] sm:$0xff]
  %v9245 = vld [vmem:[%s9144 + $0x320] sm:$0xff]
  %v9246 = vld [vmem:[%s9144 + $0x328] sm:$0xff]
  %v9247 = vld [vmem:[%s9144 + $0x330] sm:$0xff]
  %v9248 = vld [vmem:[%s9144 + $0x338] sm:$0xff]
  %v9249 = vld [vmem:[%s9144 + $0x340] sm:$0xff]
  %v9250 = vld [vmem:[%s9144 + $0x348] sm:$0xff]
  %v9251 = vld [vmem:[%s9144 + $0x350] sm:$0xff]
  %v9252 = vld [vmem:[%s9144 + $0x358] sm:$0xff]
  %v9253 = vld [vmem:[%s9144 + $0x360] sm:$0xff]
  %v9254 = vld [vmem:[%s9144 + $0x368] sm:$0xff]
  %v9255 = vld [vmem:[%s9144 + $0x370] sm:$0xff]
  %v9256 = vld [vmem:[%s9144 + $0x378] sm:$0xff]
  %v9257 = vld [vmem:[%s9144 + $0x380] sm:$0xff]
  %v9258 = vld [vmem:[%s9144 + $0x388] sm:$0xff]
  %v9259 = vld [vmem:[%s9144 + $0x390] sm:$0xff]
  %v9260 = vld [vmem:[%s9144 + $0x398] sm:$0xff]
  %v9261 = vld [vmem:[%s9144 + $0x3a0] sm:$0xff]
  %v9262 = vld [vmem:[%s9144 + $0x3a8] sm:$0xff]
  %v9263 = vld [vmem:[%s9144 + $0x3b0] sm:$0xff]
  %v9264 = vld [vmem:[%s9144 + $0x3b8] sm:$0xff]
  %v9265 = vld [vmem:[%s9144 + $0x3c0] sm:$0xff]
  %v9266 = vld [vmem:[%s9144 + $0x3c8] sm:$0xff]
  %v9267 = vld [vmem:[%s9144 + $0x3d0] sm:$0xff]
  %v9268 = vld [vmem:[%s9144 + $0x3d8] sm:$0xff]
  %v9269 = vld [vmem:[%s9144 + $0x3e0] sm:$0xff]
  %v9270 = vld [vmem:[%s9144 + $0x3e8] sm:$0xff]
  %v9271 = vld [vmem:[%s9144 + $0x3f0] sm:$0xff]
  %v9272 = vld [vmem:[%s9144 + $0x3f8] sm:$0xff]
  %v9401 = vunpack.c.l.b16 %v9145
  %v9402 = vunpack.c.h.b16 %v9145
  %v9403 = vunpack.c.l.b16 %v9146
  %v9404 = vunpack.c.h.b16 %v9146
  %v9405 = vunpack.c.l.b16 %v9147
  %v9406 = vunpack.c.h.b16 %v9147
  %v9407 = vunpack.c.l.b16 %v9148
  %v9408 = vunpack.c.h.b16 %v9148
  %v9409 = vunpack.c.l.b16 %v9149
  %v9410 = vunpack.c.h.b16 %v9149
  %v9411 = vunpack.c.l.b16 %v9150
  %v9412 = vunpack.c.h.b16 %v9150
  %v9413 = vunpack.c.l.b16 %v9151
  %v9414 = vunpack.c.h.b16 %v9151
  %v9415 = vunpack.c.l.b16 %v9152
  %v9416 = vunpack.c.h.b16 %v9152
  %v9417 = vunpack.c.l.b16 %v9153
  %v9418 = vunpack.c.h.b16 %v9153
  %v9419 = vunpack.c.l.b16 %v9154
  %v9420 = vunpack.c.h.b16 %v9154
  %v9421 = vunpack.c.l.b16 %v9155
  %v9422 = vunpack.c.h.b16 %v9155
  %v9423 = vunpack.c.l.b16 %v9156
  %v9424 = vunpack.c.h.b16 %v9156
  %v9425 = vunpack.c.l.b16 %v9157
  %v9426 = vunpack.c.h.b16 %v9157
  %v9427 = vunpack.c.l.b16 %v9158
  %v9428 = vunpack.c.h.b16 %v9158
  %v9429 = vunpack.c.l.b16 %v9159
  %v9430 = vunpack.c.h.b16 %v9159
  %v9431 = vunpack.c.l.b16 %v9160
  %v9432 = vunpack.c.h.b16 %v9160
  %v9433 = vunpack.c.l.b16 %v9161
  %v9434 = vunpack.c.h.b16 %v9161
  %v9435 = vunpack.c.l.b16 %v9162
  %v9436 = vunpack.c.h.b16 %v9162
  %v9437 = vunpack.c.l.b16 %v9163
  %v9438 = vunpack.c.h.b16 %v9163
  %v9439 = vunpack.c.l.b16 %v9164
  %v9440 = vunpack.c.h.b16 %v9164
  %v9441 = vunpack.c.l.b16 %v9165
  %v9442 = vunpack.c.h.b16 %v9165
  %v9443 = vunpack.c.l.b16 %v9166
  %v9444 = vunpack.c.h.b16 %v9166
  %v9445 = vunpack.c.l.b16 %v9167
  %v9446 = vunpack.c.h.b16 %v9167
  %v9447 = vunpack.c.l.b16 %v9168
  %v9448 = vunpack.c.h.b16 %v9168
  %v9449 = vunpack.c.l.b16 %v9169
  %v9450 = vunpack.c.h.b16 %v9169
  %v9451 = vunpack.c.l.b16 %v9170
  %v9452 = vunpack.c.h.b16 %v9170
  %v9453 = vunpack.c.l.b16 %v9171
  %v9454 = vunpack.c.h.b16 %v9171
  %v9455 = vunpack.c.l.b16 %v9172
  %v9456 = vunpack.c.h.b16 %v9172
  %v9457 = vunpack.c.l.b16 %v9173
  %v9458 = vunpack.c.h.b16 %v9173
  %v9459 = vunpack.c.l.b16 %v9174
  %v9460 = vunpack.c.h.b16 %v9174
  %v9461 = vunpack.c.l.b16 %v9175
  %v9462 = vunpack.c.h.b16 %v9175
  %v9463 = vunpack.c.l.b16 %v9176
  %v9464 = vunpack.c.h.b16 %v9176
  %v9465 = vunpack.c.l.b16 %v9177
  %v9466 = vunpack.c.h.b16 %v9177
  %v9467 = vunpack.c.l.b16 %v9178
  %v9468 = vunpack.c.h.b16 %v9178
  %v9469 = vunpack.c.l.b16 %v9179
  %v9470 = vunpack.c.h.b16 %v9179
  %v9471 = vunpack.c.l.b16 %v9180
  %v9472 = vunpack.c.h.b16 %v9180
  %v9473 = vunpack.c.l.b16 %v9181
  %v9474 = vunpack.c.h.b16 %v9181
  %v9475 = vunpack.c.l.b16 %v9182
  %v9476 = vunpack.c.h.b16 %v9182
  %v9477 = vunpack.c.l.b16 %v9183
  %v9478 = vunpack.c.h.b16 %v9183
  %v9479 = vunpack.c.l.b16 %v9184
  %v9480 = vunpack.c.h.b16 %v9184
  %v9481 = vunpack.c.l.b16 %v9185
  %v9482 = vunpack.c.h.b16 %v9185
  %v9483 = vunpack.c.l.b16 %v9186
  %v9484 = vunpack.c.h.b16 %v9186
  %v9485 = vunpack.c.l.b16 %v9187
  %v9486 = vunpack.c.h.b16 %v9187
  %v9487 = vunpack.c.l.b16 %v9188
  %v9488 = vunpack.c.h.b16 %v9188
  %v9489 = vunpack.c.l.b16 %v9189
  %v9490 = vunpack.c.h.b16 %v9189
  %v9491 = vunpack.c.l.b16 %v9190
  %v9492 = vunpack.c.h.b16 %v9190
  %v9493 = vunpack.c.l.b16 %v9191
  %v9494 = vunpack.c.h.b16 %v9191
  %v9495 = vunpack.c.l.b16 %v9192
  %v9496 = vunpack.c.h.b16 %v9192
  %v9497 = vunpack.c.l.b16 %v9193
  %v9498 = vunpack.c.h.b16 %v9193
  %v9499 = vunpack.c.l.b16 %v9194
  %v9500 = vunpack.c.h.b16 %v9194
  %v9501 = vunpack.c.l.b16 %v9195
  %v9502 = vunpack.c.h.b16 %v9195
  %v9503 = vunpack.c.l.b16 %v9196
  %v9504 = vunpack.c.h.b16 %v9196
  %v9505 = vunpack.c.l.b16 %v9197
  %v9506 = vunpack.c.h.b16 %v9197
  %v9507 = vunpack.c.l.b16 %v9198
  %v9508 = vunpack.c.h.b16 %v9198
  %v9509 = vunpack.c.l.b16 %v9199
  %v9510 = vunpack.c.h.b16 %v9199
  %v9511 = vunpack.c.l.b16 %v9200
  %v9512 = vunpack.c.h.b16 %v9200
  %v9513 = vunpack.c.l.b16 %v9201
  %v9514 = vunpack.c.h.b16 %v9201
  %v9515 = vunpack.c.l.b16 %v9202
  %v9516 = vunpack.c.h.b16 %v9202
  %v9517 = vunpack.c.l.b16 %v9203
  %v9518 = vunpack.c.h.b16 %v9203
  %v9519 = vunpack.c.l.b16 %v9204
  %v9520 = vunpack.c.h.b16 %v9204
  %v9521 = vunpack.c.l.b16 %v9205
  %v9522 = vunpack.c.h.b16 %v9205
  %v9523 = vunpack.c.l.b16 %v9206
  %v9524 = vunpack.c.h.b16 %v9206
  %v9525 = vunpack.c.l.b16 %v9207
  %v9526 = vunpack.c.h.b16 %v9207
  %v9527 = vunpack.c.l.b16 %v9208
  %v9528 = vunpack.c.h.b16 %v9208
  %v9529 = vunpack.c.l.b16 %v9209
  %v9530 = vunpack.c.h.b16 %v9209
  %v9531 = vunpack.c.l.b16 %v9210
  %v9532 = vunpack.c.h.b16 %v9210
  %v9533 = vunpack.c.l.b16 %v9211
  %v9534 = vunpack.c.h.b16 %v9211
  %v9535 = vunpack.c.l.b16 %v9212
  %v9536 = vunpack.c.h.b16 %v9212
  %v9537 = vunpack.c.l.b16 %v9213
  %v9538 = vunpack.c.h.b16 %v9213
  %v9539 = vunpack.c.l.b16 %v9214
  %v9540 = vunpack.c.h.b16 %v9214
  %v9541 = vunpack.c.l.b16 %v9215
  %v9542 = vunpack.c.h.b16 %v9215
  %v9543 = vunpack.c.l.b16 %v9216
  %v9544 = vunpack.c.h.b16 %v9216
  %v9545 = vunpack.c.l.b16 %v9217
  %v9546 = vunpack.c.h.b16 %v9217
  %v9547 = vunpack.c.l.b16 %v9218
  %v9548 = vunpack.c.h.b16 %v9218
  %v9549 = vunpack.c.l.b16 %v9219
  %v9550 = vunpack.c.h.b16 %v9219
  %v9551 = vunpack.c.l.b16 %v9220
  %v9552 = vunpack.c.h.b16 %v9220
  %v9553 = vunpack.c.l.b16 %v9221
  %v9554 = vunpack.c.h.b16 %v9221
  %v9555 = vunpack.c.l.b16 %v9222
  %v9556 = vunpack.c.h.b16 %v9222
  %v9557 = vunpack.c.l.b16 %v9223
  %v9558 = vunpack.c.h.b16 %v9223
  %v9559 = vunpack.c.l.b16 %v9224
  %v9560 = vunpack.c.h.b16 %v9224
  %v9561 = vunpack.c.l.b16 %v9225
  %v9562 = vunpack.c.h.b16 %v9225
  %v9563 = vunpack.c.l.b16 %v9226
  %v9564 = vunpack.c.h.b16 %v9226
  %v9565 = vunpack.c.l.b16 %v9227
  %v9566 = vunpack.c.h.b16 %v9227
  %v9567 = vunpack.c.l.b16 %v9228
  %v9568 = vunpack.c.h.b16 %v9228
  %v9569 = vunpack.c.l.b16 %v9229
  %v9570 = vunpack.c.h.b16 %v9229
  %v9571 = vunpack.c.l.b16 %v9230
  %v9572 = vunpack.c.h.b16 %v9230
  %v9573 = vunpack.c.l.b16 %v9231
  %v9574 = vunpack.c.h.b16 %v9231
  %v9575 = vunpack.c.l.b16 %v9232
  %v9576 = vunpack.c.h.b16 %v9232
  %v9577 = vunpack.c.l.b16 %v9233
  %v9578 = vunpack.c.h.b16 %v9233
  %v9579 = vunpack.c.l.b16 %v9234
  %v9580 = vunpack.c.h.b16 %v9234
  %v9581 = vunpack.c.l.b16 %v9235
  %v9582 = vunpack.c.h.b16 %v9235
  %v9583 = vunpack.c.l.b16 %v9236
  %v9584 = vunpack.c.h.b16 %v9236
  %v9585 = vunpack.c.l.b16 %v9237
  %v9586 = vunpack.c.h.b16 %v9237
  %v9587 = vunpack.c.l.b16 %v9238
  %v9588 = vunpack.c.h.b16 %v9238
  %v9589 = vunpack.c.l.b16 %v9239
  %v9590 = vunpack.c.h.b16 %v9239
  %v9591 = vunpack.c.l.b16 %v9240
  %v9592 = vunpack.c.h.b16 %v9240
  %v9593 = vunpack.c.l.b16 %v9241
  %v9594 = vunpack.c.h.b16 %v9241
  %v9595 = vunpack.c.l.b16 %v9242
  %v9596 = vunpack.c.h.b16 %v9242
  %v9597 = vunpack.c.l.b16 %v9243
  %v9598 = vunpack.c.h.b16 %v9243
  %v9599 = vunpack.c.l.b16 %v9244
  %v9600 = vunpack.c.h.b16 %v9244
  %v9601 = vunpack.c.l.b16 %v9245
  %v9602 = vunpack.c.h.b16 %v9245
  %v9603 = vunpack.c.l.b16 %v9246
  %v9604 = vunpack.c.h.b16 %v9246
  %v9605 = vunpack.c.l.b16 %v9247
  %v9606 = vunpack.c.h.b16 %v9247
  %v9607 = vunpack.c.l.b16 %v9248
  %v9608 = vunpack.c.h.b16 %v9248
  %v9609 = vunpack.c.l.b16 %v9249
  %v9610 = vunpack.c.h.b16 %v9249
  %v9611 = vunpack.c.l.b16 %v9250
  %v9612 = vunpack.c.h.b16 %v9250
  %v9613 = vunpack.c.l.b16 %v9251
  %v9614 = vunpack.c.h.b16 %v9251
  %v9615 = vunpack.c.l.b16 %v9252
  %v9616 = vunpack.c.h.b16 %v9252
  %v9617 = vunpack.c.l.b16 %v9253
  %v9618 = vunpack.c.h.b16 %v9253
  %v9619 = vunpack.c.l.b16 %v9254
  %v9620 = vunpack.c.h.b16 %v9254
  %v9621 = vunpack.c.l.b16 %v9255
  %v9622 = vunpack.c.h.b16 %v9255
  %v9623 = vunpack.c.l.b16 %v9256
  %v9624 = vunpack.c.h.b16 %v9256
  %v9625 = vunpack.c.l.b16 %v9257
  %v9626 = vunpack.c.h.b16 %v9257
  %v9627 = vunpack.c.l.b16 %v9258
  %v9628 = vunpack.c.h.b16 %v9258
  %v9629 = vunpack.c.l.b16 %v9259
  %v9630 = vunpack.c.h.b16 %v9259
  %v9631 = vunpack.c.l.b16 %v9260
  %v9632 = vunpack.c.h.b16 %v9260
  %v9633 = vunpack.c.l.b16 %v9261
  %v9634 = vunpack.c.h.b16 %v9261
  %v9635 = vunpack.c.l.b16 %v9262
  %v9636 = vunpack.c.h.b16 %v9262
  %v9637 = vunpack.c.l.b16 %v9263
  %v9638 = vunpack.c.h.b16 %v9263
  %v9639 = vunpack.c.l.b16 %v9264
  %v9640 = vunpack.c.h.b16 %v9264
  %v9641 = vunpack.c.l.b16 %v9265
  %v9642 = vunpack.c.h.b16 %v9265
  %v9643 = vunpack.c.l.b16 %v9266
  %v9644 = vunpack.c.h.b16 %v9266
  %v9645 = vunpack.c.l.b16 %v9267
  %v9646 = vunpack.c.h.b16 %v9267
  %v9647 = vunpack.c.l.b16 %v9268
  %v9648 = vunpack.c.h.b16 %v9268
  %v9649 = vunpack.c.l.b16 %v9269
  %v9650 = vunpack.c.h.b16 %v9269
  %v9651 = vunpack.c.l.b16 %v9270
  %v9652 = vunpack.c.h.b16 %v9270
  %v9653 = vunpack.c.l.b16 %v9271
  %v9654 = vunpack.c.h.b16 %v9271
  %v9655 = vunpack.c.l.b16 %v9272
  %v9656 = vunpack.c.h.b16 %v9272
  %v9657 = vpack.c.b16 %v9405, %v9401
  %v9658 = vpack.c.b16 %v9406, %v9402
  %v9659 = vpack.c.b16 %v9407, %v9403
  %v9660 = vpack.c.b16 %v9408, %v9404
  %v9661 = vpack.c.b16 %v9413, %v9409
  %v9662 = vpack.c.b16 %v9414, %v9410
  %v9663 = vpack.c.b16 %v9415, %v9411
  %v9664 = vpack.c.b16 %v9416, %v9412
  %v9665 = vpack.c.b16 %v9421, %v9417
  %v9666 = vpack.c.b16 %v9422, %v9418
  %v9667 = vpack.c.b16 %v9423, %v9419
  %v9668 = vpack.c.b16 %v9424, %v9420
  %v9669 = vpack.c.b16 %v9429, %v9425
  %v9670 = vpack.c.b16 %v9430, %v9426
  %v9671 = vpack.c.b16 %v9431, %v9427
  %v9672 = vpack.c.b16 %v9432, %v9428
  %v9673 = vpack.c.b16 %v9437, %v9433
  %v9674 = vpack.c.b16 %v9438, %v9434
  %v9675 = vpack.c.b16 %v9439, %v9435
  %v9676 = vpack.c.b16 %v9440, %v9436
  %v9677 = vpack.c.b16 %v9445, %v9441
  %v9678 = vpack.c.b16 %v9446, %v9442
  %v9679 = vpack.c.b16 %v9447, %v9443
  %v9680 = vpack.c.b16 %v9448, %v9444
  %v9681 = vpack.c.b16 %v9453, %v9449
  %v9682 = vpack.c.b16 %v9454, %v9450
  %v9683 = vpack.c.b16 %v9455, %v9451
  %v9684 = vpack.c.b16 %v9456, %v9452
  %v9685 = vpack.c.b16 %v9461, %v9457
  %v9686 = vpack.c.b16 %v9462, %v9458
  %v9687 = vpack.c.b16 %v9463, %v9459
  %v9688 = vpack.c.b16 %v9464, %v9460
  %v9689 = vpack.c.b16 %v9469, %v9465
  %v9690 = vpack.c.b16 %v9470, %v9466
  %v9691 = vpack.c.b16 %v9471, %v9467
  %v9692 = vpack.c.b16 %v9472, %v9468
  %v9693 = vpack.c.b16 %v9477, %v9473
  %v9694 = vpack.c.b16 %v9478, %v9474
  %v9695 = vpack.c.b16 %v9479, %v9475
  %v9696 = vpack.c.b16 %v9480, %v9476
  %v9697 = vpack.c.b16 %v9485, %v9481
  %v9698 = vpack.c.b16 %v9486, %v9482
  %v9699 = vpack.c.b16 %v9487, %v9483
  %v9700 = vpack.c.b16 %v9488, %v9484
  %v9701 = vpack.c.b16 %v9493, %v9489
  %v9702 = vpack.c.b16 %v9494, %v9490
  %v9703 = vpack.c.b16 %v9495, %v9491
  %v9704 = vpack.c.b16 %v9496, %v9492
  %v9705 = vpack.c.b16 %v9501, %v9497
  %v9706 = vpack.c.b16 %v9502, %v9498
  %v9707 = vpack.c.b16 %v9503, %v9499
  %v9708 = vpack.c.b16 %v9504, %v9500
  %v9709 = vpack.c.b16 %v9509, %v9505
  %v9710 = vpack.c.b16 %v9510, %v9506
  %v9711 = vpack.c.b16 %v9511, %v9507
  %v9712 = vpack.c.b16 %v9512, %v9508
  %v9713 = vpack.c.b16 %v9517, %v9513
  %v9714 = vpack.c.b16 %v9518, %v9514
  %v9715 = vpack.c.b16 %v9519, %v9515
  %v9716 = vpack.c.b16 %v9520, %v9516
  %v9717 = vpack.c.b16 %v9525, %v9521
  %v9718 = vpack.c.b16 %v9526, %v9522
  %v9719 = vpack.c.b16 %v9527, %v9523
  %v9720 = vpack.c.b16 %v9528, %v9524
  %v9721 = vpack.c.b16 %v9533, %v9529
  %v9722 = vpack.c.b16 %v9534, %v9530
  %v9723 = vpack.c.b16 %v9535, %v9531
  %v9724 = vpack.c.b16 %v9536, %v9532
  %v9725 = vpack.c.b16 %v9541, %v9537
  %v9726 = vpack.c.b16 %v9542, %v9538
  %v9727 = vpack.c.b16 %v9543, %v9539
  %v9728 = vpack.c.b16 %v9544, %v9540
  %v9729 = vpack.c.b16 %v9549, %v9545
  %v9730 = vpack.c.b16 %v9550, %v9546
  %v9731 = vpack.c.b16 %v9551, %v9547
  %v9732 = vpack.c.b16 %v9552, %v9548
  %v9733 = vpack.c.b16 %v9557, %v9553
  %v9734 = vpack.c.b16 %v9558, %v9554
  %v9735 = vpack.c.b16 %v9559, %v9555
  %v9736 = vpack.c.b16 %v9560, %v9556
  %v9737 = vpack.c.b16 %v9565, %v9561
  %v9738 = vpack.c.b16 %v9566, %v9562
  %v9739 = vpack.c.b16 %v9567, %v9563
  %v9740 = vpack.c.b16 %v9568, %v9564
  %v9741 = vpack.c.b16 %v9573, %v9569
  %v9742 = vpack.c.b16 %v9574, %v9570
  %v9743 = vpack.c.b16 %v9575, %v9571
  %v9744 = vpack.c.b16 %v9576, %v9572
  %v9745 = vpack.c.b16 %v9581, %v9577
  %v9746 = vpack.c.b16 %v9582, %v9578
  %v9747 = vpack.c.b16 %v9583, %v9579
  %v9748 = vpack.c.b16 %v9584, %v9580
  %v9749 = vpack.c.b16 %v9589, %v9585
  %v9750 = vpack.c.b16 %v9590, %v9586
  %v9751 = vpack.c.b16 %v9591, %v9587
  %v9752 = vpack.c.b16 %v9592, %v9588
  %v9753 = vpack.c.b16 %v9597, %v9593
  %v9754 = vpack.c.b16 %v9598, %v9594
  %v9755 = vpack.c.b16 %v9599, %v9595
  %v9756 = vpack.c.b16 %v9600, %v9596
  %v9757 = vpack.c.b16 %v9605, %v9601
  %v9758 = vpack.c.b16 %v9606, %v9602
  %v9759 = vpack.c.b16 %v9607, %v9603
  %v9760 = vpack.c.b16 %v9608, %v9604
  %v9761 = vpack.c.b16 %v9613, %v9609
  %v9762 = vpack.c.b16 %v9614, %v9610
  %v9763 = vpack.c.b16 %v9615, %v9611
  %v9764 = vpack.c.b16 %v9616, %v9612
  %v9765 = vpack.c.b16 %v9621, %v9617
  %v9766 = vpack.c.b16 %v9622, %v9618
  %v9767 = vpack.c.b16 %v9623, %v9619
  %v9768 = vpack.c.b16 %v9624, %v9620
  %v9769 = vpack.c.b16 %v9629, %v9625
  %v9770 = vpack.c.b16 %v9630, %v9626
  %v9771 = vpack.c.b16 %v9631, %v9627
  %v9772 = vpack.c.b16 %v9632, %v9628
  %v9773 = vpack.c.b16 %v9637, %v9633
  %v9774 = vpack.c.b16 %v9638, %v9634
  %v9775 = vpack.c.b16 %v9639, %v9635
  %v9776 = vpack.c.b16 %v9640, %v9636
  %v9777 = vpack.c.b16 %v9645, %v9641
  %v9778 = vpack.c.b16 %v9646, %v9642
  %v9779 = vpack.c.b16 %v9647, %v9643
  %v9780 = vpack.c.b16 %v9648, %v9644
  %v9781 = vpack.c.b16 %v9653, %v9649
  %v9782 = vpack.c.b16 %v9654, %v9650
  %v9783 = vpack.c.b16 %v9655, %v9651
  %v9784 = vpack.c.b16 %v9656, %v9652
  %9913 = vmatprep.subr.bf16.mxu0 %v9658
  %9914 = vmatpush1.bf16.msra.mxu0 %v9657
  %9915 = vmatprep.subr.bf16.mxu0 %v9662
  %9916 = vmatpush1.bf16.msra.mxu0 %v9661
  %9917 = vmatprep.subr.bf16.mxu0 %v9666
  %9918 = vmatpush1.bf16.msra.mxu0 %v9665
  %9919 = vmatprep.subr.bf16.mxu0 %v9670
  %9920 = vmatpush1.bf16.msra.mxu0 %v9669
  %9921 = vmatprep.subr.bf16.mxu0 %v9674
  %9922 = vmatpush1.bf16.msra.mxu0 %v9673
  %9923 = vmatprep.subr.bf16.mxu0 %v9678
  %9924 = vmatpush1.bf16.msra.mxu0 %v9677
  %9925 = vmatprep.subr.bf16.mxu0 %v9682
  %9926 = vmatpush1.bf16.msra.mxu0 %v9681
  %9927 = vmatprep.subr.bf16.mxu0 %v9686
  %9928 = vmatpush1.bf16.msra.mxu0 %v9685
  %9929 = vmatprep.subr.bf16.mxu0 %v9690
  %9930 = vmatpush1.bf16.msra.mxu0 %v9689
  %9931 = vmatprep.subr.bf16.mxu0 %v9694
  %9932 = vmatpush1.bf16.msra.mxu0 %v9693
  %9933 = vmatprep.subr.bf16.mxu0 %v9698
  %9934 = vmatpush1.bf16.msra.mxu0 %v9697
  %9935 = vmatprep.subr.bf16.mxu0 %v9702
  %9936 = vmatpush1.bf16.msra.mxu0 %v9701
  %9937 = vmatprep.subr.bf16.mxu0 %v9706
  %9938 = vmatpush1.bf16.msra.mxu0 %v9705
  %9939 = vmatprep.subr.bf16.mxu0 %v9710
  %9940 = vmatpush1.bf16.msra.mxu0 %v9709
  %9941 = vmatprep.subr.bf16.mxu0 %v9714
  %9942 = vmatpush1.bf16.msra.mxu0 %v9713
  %9943 = vmatprep.subr.bf16.mxu0 %v9718
  %9944 = vmatpush1.bf16.msra.mxu0 %v9717
  %9945 = vmatprep.mubr.bf16.mxu0 %v9141
  %9946 = vmatmul.mubr.bf16.gmra.mrb[0].mxu0 %v9140
  %v9947 = vpop.f32.mrb[0].mxu0
  %v9948 = vadd.f32 0.0, %v9947
  %v9949 = vpop.f32.mrb[0].mxu0
  %v9950 = vadd.f32 0.0, %v9949
  %v9951 = vpop.f32.mrb[0].mxu0
  %v9952 = vadd.f32 0.0, %v9951
  %v9953 = vpop.f32.mrb[0].mxu0
  %v9954 = vadd.f32 0.0, %v9953
  %9955 = vdwg.mxu0
  %9956 = vmatprep.subr.bf16.mxu0 %v9722
  %9957 = vmatpush1.bf16.msra.mxu0 %v9721
  %9958 = vmatprep.subr.bf16.mxu0 %v9726
  %9959 = vmatpush1.bf16.msra.mxu0 %v9725
  %9960 = vmatprep.subr.bf16.mxu0 %v9730
  %9961 = vmatpush1.bf16.msra.mxu0 %v9729
  %9962 = vmatprep.subr.bf16.mxu0 %v9734
  %9963 = vmatpush1.bf16.msra.mxu0 %v9733
  %9964 = vmatprep.subr.bf16.mxu0 %v9738
  %9965 = vmatpush1.bf16.msra.mxu0 %v9737
  %9966 = vmatprep.subr.bf16.mxu0 %v9742
  %9967 = vmatpush1.bf16.msra.mxu0 %v9741
  %9968 = vmatprep.subr.bf16.mxu0 %v9746
  %9969 = vmatpush1.bf16.msra.mxu0 %v9745
  %9970 = vmatprep.subr.bf16.mxu0 %v9750
  %9971 = vmatpush1.bf16.msra.mxu0 %v9749
  %9972 = vmatprep.subr.bf16.mxu0 %v9754
  %9973 = vmatpush1.bf16.msra.mxu0 %v9753
  %9974 = vmatprep.subr.bf16.mxu0 %v9758
  %9975 = vmatpush1.bf16.msra.mxu0 %v9757
  %9976 = vmatprep.subr.bf16.mxu0 %v9762
  %9977 = vmatpush1.bf16.msra.mxu0 %v9761
  %9978 = vmatprep.subr.bf16.mxu0 %v9766
  %9979 = vmatpush1.bf16.msra.mxu0 %v9765
  %9980 = vmatprep.subr.bf16.mxu0 %v9770
  %9981 = vmatpush1.bf16.msra.mxu0 %v9769
  %9982 = vmatprep.subr.bf16.mxu0 %v9774
  %9983 = vmatpush1.bf16.msra.mxu0 %v9773
  %9984 = vmatprep.subr.bf16.mxu0 %v9778
  %9985 = vmatpush1.bf16.msra.mxu0 %v9777
  %9986 = vmatprep.subr.bf16.mxu0 %v9782
  %9987 = vmatpush1.bf16.msra.mxu0 %v9781
  %9988 = vmatprep.mubr.bf16.mxu0 %v9143
  %9989 = vmatmul.mubr.bf16.gmra.mrb[0].mxu0 %v9142
  %v9990 = vpop.f32.mrb[0].mxu0
  %v9991 = vadd.f32 %v9948, %v9990
  %v9992 = vpop.f32.mrb[0].mxu0
  %v9993 = vadd.f32 %v9950, %v9992
  %v9994 = vpop.f32.mrb[0].mxu0
  %v9995 = vadd.f32 %v9952, %v9994
  %v9996 = vpop.f32.mrb[0].mxu0
  %v9997 = vadd.f32 %v9954, %v9996
  %9998 = vdwg.mxu0
  %9999 = vmatprep.subr.bf16.mxu0 %v9660
  %10000 = vmatpush1.bf16.msra.mxu0 %v9659
  %10001 = vmatprep.subr.bf16.mxu0 %v9664
  %10002 = vmatpush1.bf16.msra.mxu0 %v9663
  %10003 = vmatprep.subr.bf16.mxu0 %v9668
  %10004 = vmatpush1.bf16.msra.mxu0 %v9667
  %10005 = vmatprep.subr.bf16.mxu0 %v9672
  %10006 = vmatpush1.bf16.msra.mxu0 %v9671
  %10007 = vmatprep.subr.bf16.mxu0 %v9676
  %10008 = vmatpush1.bf16.msra.mxu0 %v9675
  %10009 = vmatprep.subr.bf16.mxu0 %v9680
  %10010 = vmatpush1.bf16.msra.mxu0 %v9679
  %10011 = vmatprep.subr.bf16.mxu0 %v9684
  %10012 = vmatpush1.bf16.msra.mxu0 %v9683
  %10013 = vmatprep.subr.bf16.mxu0 %v9688
  %10014 = vmatpush1.bf16.msra.mxu0 %v9687
  %10015 = vmatprep.subr.bf16.mxu0 %v9692
  %10016 = vmatpush1.bf16.msra.mxu0 %v9691
  %10017 = vmatprep.subr.bf16.mxu0 %v9696
  %10018 = vmatpush1.bf16.msra.mxu0 %v9695
  %10019 = vmatprep.subr.bf16.mxu0 %v9700
  %10020 = vmatpush1.bf16.msra.mxu0 %v9699
  %10021 = vmatprep.subr.bf16.mxu0 %v9704
  %10022 = vmatpush1.bf16.msra.mxu0 %v9703
  %10023 = vmatprep.subr.bf16.mxu0 %v9708
  %10024 = vmatpush1.bf16.msra.mxu0 %v9707
  %10025 = vmatprep.subr.bf16.mxu0 %v9712
  %10026 = vmatpush1.bf16.msra.mxu0 %v9711
  %10027 = vmatprep.subr.bf16.mxu0 %v9716
  %10028 = vmatpush1.bf16.msra.mxu0 %v9715
  %10029 = vmatprep.subr.bf16.mxu0 %v9720
  %10030 = vmatpush1.bf16.msra.mxu0 %v9719
  %10031 = vmatprep.mubr.bf16.mxu0 %v9141
  %10032 = vmatmul.mubr.bf16.gmra.mrb[0].mxu0 %v9140
  %v10033 = vpop.f32.mrb[0].mxu0
  %v10034 = vadd.f32 0.0, %v10033
  %v10035 = vpop.f32.mrb[0].mxu0
  %v10036 = vadd.f32 0.0, %v10035
  %v10037 = vpop.f32.mrb[0].mxu0
  %v10038 = vadd.f32 0.0, %v10037
  %v10039 = vpop.f32.mrb[0].mxu0
  %v10040 = vadd.f32 0.0, %v10039
  %10041 = vdwg.mxu0
  %10042 = vmatprep.subr.bf16.mxu0 %v9724
  %10043 = vmatpush1.bf16.msra.mxu0 %v9723
  %10044 = vmatprep.subr.bf16.mxu0 %v9728
  %10045 = vmatpush1.bf16.msra.mxu0 %v9727
  %10046 = vmatprep.subr.bf16.mxu0 %v9732
  %10047 = vmatpush1.bf16.msra.mxu0 %v9731
  %10048 = vmatprep.subr.bf16.mxu0 %v9736
  %10049 = vmatpush1.bf16.msra.mxu0 %v9735
  %10050 = vmatprep.subr.bf16.mxu0 %v9740
  %10051 = vmatpush1.bf16.msra.mxu0 %v9739
  %10052 = vmatprep.subr.bf16.mxu0 %v9744
  %10053 = vmatpush1.bf16.msra.mxu0 %v9743
  %10054 = vmatprep.subr.bf16.mxu0 %v9748
  %10055 = vmatpush1.bf16.msra.mxu0 %v9747
  %10056 = vmatprep.subr.bf16.mxu0 %v9752
  %10057 = vmatpush1.bf16.msra.mxu0 %v9751
  %10058 = vmatprep.subr.bf16.mxu0 %v9756
  %10059 = vmatpush1.bf16.msra.mxu0 %v9755
  %10060 = vmatprep.subr.bf16.mxu0 %v9760
  %10061 = vmatpush1.bf16.msra.mxu0 %v9759
  %10062 = vmatprep.subr.bf16.mxu0 %v9764
  %10063 = vmatpush1.bf16.msra.mxu0 %v9763
  %10064 = vmatprep.subr.bf16.mxu0 %v9768
  %10065 = vmatpush1.bf16.msra.mxu0 %v9767
  %10066 = vmatprep.subr.bf16.mxu0 %v9772
  %10067 = vmatpush1.bf16.msra.mxu0 %v9771
  %10068 = vmatprep.subr.bf16.mxu0 %v9776
  %10069 = vmatpush1.bf16.msra.mxu0 %v9775
  %10070 = vmatprep.subr.bf16.mxu0 %v9780
  %10071 = vmatpush1.bf16.msra.mxu0 %v9779
  %10072 = vmatprep.subr.bf16.mxu0 %v9784
  %10073 = vmatpush1.bf16.msra.mxu0 %v9783
  %10074 = vmatprep.mubr.bf16.mxu0 %v9143
  %10075 = vmatmul.mubr.bf16.gmra.mrb[0].mxu0 %v9142
  %v10076 = vpop.f32.mrb[0].mxu0
  %v10077 = vadd.f32 %v10034, %v10076
  %v10078 = vpop.f32.mrb[0].mxu0
  %v10079 = vadd.f32 %v10036, %v10078
  %v10080 = vpop.f32.mrb[0].mxu0
  %v10081 = vadd.f32 %v10038, %v10080
  %v10082 = vpop.f32.mrb[0].mxu0
  %v10083 = vadd.f32 %v10040, %v10082
  %10084 = vdwg.mxu0
  %v10085 = vadd.f32 %v8949, %v9991
  %v10086 = vadd.f32 %v8951, %v9993
  %v10087 = vadd.f32 %v9035, %v10077
  %v10088 = vadd.f32 %v9037, %v10079
  %v10089 = vadd.f32 %v8953, %v9995
  %v10090 = vadd.f32 %v8955, %v9997
  %v10091 = vadd.f32 %v9039, %v10081
  %v10092 = vadd.f32 %v9041, %v10083
  %v10093 = vld [vmem:[%s9] sm:$0xf]
  %v10095 = vlaneseq
  %v10096 = vshrl.u32 %v10095, 7
  %v10097 = vsub.s32 0, %v10096
  %v10098 = vrot.slane %v10093, %v10097
  %v10099 = vlaneseq
  %v10100 = vshrl.u32 %v10099, 7
  %v10101 = vsub.s32 1, %v10100
  %v10102 = vrot.slane %v10093, %v10101
  %v10103 = vlaneseq
  %v10104 = vshrl.u32 %v10103, 7
  %v10105 = vsub.s32 2, %v10104
  %v10106 = vrot.slane %v10093, %v10105
  %v10107 = vlaneseq
  %v10108 = vshrl.u32 %v10107, 7
  %v10109 = vsub.s32 3, %v10108
  %v10110 = vrot.slane %v10093, %v10109
  %v10115 = vadd.f32 %v10085, %v10098
  %v10116 = vadd.f32 %v10086, %v10102
  %v10117 = vadd.f32 %v10087, %v10106
  %v10118 = vadd.f32 %v10088, %v10110
  %v10119 = vadd.f32 %v10089, %v10098
  %v10120 = vadd.f32 %v10090, %v10102
  %v10121 = vadd.f32 %v10091, %v10106
  %v10122 = vadd.f32 %v10092, %v10110
  %v10123 = vmax.f32 %v10115, 0.0
  %v10124 = vmax.f32 %v10116, 0.0
  %v10125 = vmax.f32 %v10117, 0.0
  %v10126 = vmax.f32 %v10118, 0.0
  %v10127 = vmax.f32 %v10119, 0.0
  %v10128 = vmax.f32 %v10120, 0.0
  %v10129 = vmax.f32 %v10121, 0.0
  %v10130 = vmax.f32 %v10122, 0.0
  %10131 = vst [vmem:[%s12] sm:$0xff] %v10123
  %10132 = vst [vmem:[%s12 + $0x8] sm:$0xff] %v10124
  %10133 = vst [vmem:[%s12 + $0x10] sm:$0xff] %v10125
  %10134 = vst [vmem:[%s12 + $0x18] sm:$0xff] %v10126
  %10135 = vst [vmem:[%s12 + $0x20] sm:$0xff] %v10127
  %10136 = vst [vmem:[%s12 + $0x28] sm:$0xff] %v10128
  %10137 = vst [vmem:[%s12 + $0x30] sm:$0xff] %v10129
  %10138 = vst [vmem:[%s12 + $0x38] sm:$0xff] %v10130
  // Predicated region
  $region42: #{backbone_forward.1} parent=0 // pred_check
    _
  $region43: #{backbone_forward.1} parent=0 // pred_check_branch
    %10140 = sbr.rel (0) target = $region45
  $region44: #{backbone_forward.1} parent=0 // pred_region
    _
  $region45: #{backbone_forward.1} parent=0 // pred_fallthru
    _
  // Predicated region
  $region46: #{backbone_forward.1} parent=0 // pred_check
    _
  $region47: #{backbone_forward.1} parent=0 // pred_check_branch
    %10142 = sbr.rel (0) target = $region49
  $region48: #{backbone_forward.1} parent=0 // pred_region
    _
  $region49: #{backbone_forward.1} parent=0 // pred_fallthru
    _
  // Predicated region
  $region50: #{backbone_forward.1} parent=0 // pred_check
    _
  $region51: #{backbone_forward.1} parent=0 // pred_check_branch
    %10144 = sbr.rel (0) target = $region53
  $region52: #{backbone_forward.1} parent=0 // pred_region
    _
  $region53: #{backbone_forward.1} parent=0 // pred_fallthru
    _
  // Predicated region
  $region54: #{backbone_forward.1} parent=0 // pred_check
    _
  $region55: #{backbone_forward.1} parent=0 // pred_check_branch
    %10146 = sbr.rel (0) target = $region57
  $region56: #{backbone_forward.1} parent=0 // pred_region
    _
  $region57: #{backbone_forward.1} parent=0 // pred_fallthru
    _
  // Predicated region
  $region58: #{backbone_forward.1} parent=0 // pred_check
    _
  $region59: #{backbone_forward.1} parent=0 // pred_check_branch
    %10148 = sbr.rel (0) target = $region61
  $region60: #{backbone_forward.1} parent=0 // pred_region
    _
  $region61: #{backbone_forward.1} parent=0 // pred_fallthru
    _
  // Predicated region
  $region62: #{backbone_forward.1} parent=0 // pred_check
    _
  $region63: #{backbone_forward.1} parent=0 // pred_check_branch
    %10150 = sbr.rel (0) target = $region65
  $region64: #{backbone_forward.1} parent=0 // pred_region
    _
  $region65: #{backbone_forward.1} parent=0 // pred_fallthru
    _

</llo_original>
